<compile_context>
chip_gen: v7x
topology: tpu7x:2x2x1
jax: 0.10.0
libtpu: 0.0.40
codegen_flags: <defaults>
</compile_context>

<pallas_src>
import jax
import jax.numpy as jnp
from jax.experimental import pallas as pl
from jax.experimental.pallas import tpu as pltpu


def _round_up(x, m):
    return ((x + m - 1) // m) * m


def _tpu_defaults():
    """Best-effort (num_tensorcores, vmem_capacity_bytes); conservative fallback."""
    num_tc, vmem_cap = 1, 64 << 20
    try:
        info = pltpu.get_tpu_info()
        vmem_cap = int(getattr(info, "vmem_capacity_bytes", vmem_cap) or vmem_cap)
    except Exception:
        pass
    try:
        kind = jax.devices()[0].device_kind.lower()
        if "v7" in kind:            # v7x: 2 TensorCores per chip, 64 MiB VMEM per TC
            num_tc = 2
    except Exception:
        pass
    return num_tc, vmem_cap


# ----------------------------- kernel ---------------------------------------

def _bimodal_kernel(img_ref, txt_ref,
                    adj_i_ref, adj_t_ref,
                    iw1_ref, iw2_ref, iw2c_ref, ibc_ref,
                    tw1_ref, tw2_ref, tw2c_ref, tbc_ref, tb1_ref,
                    emb_i_ref, log_i_ref, emb_t_ref, log_t_ref):
    """One batch tile (Bt, Np, ...) per grid step. All refs are VMEM tiles."""
    Bt, Np, _ = img_ref.shape

    def gcn(s1_f32, adj, w2, w2wc, bc):
        # s1_f32: (Bt*Np, Dbott_p) f32 = feature @ W1 (+ fused Linear bias on text path)
        s1 = s1_f32.reshape(Bt, Np, -1).astype(adj.dtype)
        adj_b = jnp.broadcast_to(adj, (Bt, Np, Np))
        # graph conv 1: adj @ (feat @ W1), LeakyReLU(0.2) as a single max op
        h1 = jnp.einsum("bnm,bmd->bnd", adj_b, s1,
                        preferred_element_type=jnp.float32)
        h1 = jnp.maximum(h1, 0.2 * h1).astype(adj.dtype)
        # graph conv 2 reordered: a2 = adj @ h1 (adjacency runs at bottleneck width)
        a2 = jnp.einsum("bnm,bmd->bnd", adj_b, h1,
                        preferred_element_type=jnp.float32)
        a2 = a2.reshape(Bt * Np, -1).astype(w2.dtype)
        emb = jnp.dot(a2, w2, preferred_element_type=jnp.float32)          # a2 @ W2
        # classifier folded in the wrapper: (a2 @ W2) @ Wc == a2 @ (W2 @ Wc)
        logits = jnp.dot(a2, w2wc, preferred_element_type=jnp.float32) + bc
        return emb.reshape(Bt, Np, -1), logits.reshape(Bt, Np, -1)

    # ---- image branch -------------------------------------------------------
    img_flat = img_ref[...].reshape(Bt * Np, -1)
    s1_img = jnp.dot(img_flat, iw1_ref[...], preferred_element_type=jnp.float32)
    emb_i, log_i = gcn(s1_img, adj_i_ref[...],
                       iw2_ref[...], iw2c_ref[...], ibc_ref[...])
    emb_i_ref[...] = emb_i.astype(emb_i_ref.dtype)
    log_i_ref[...] = log_i.astype(log_i_ref.dtype)

    # ---- text branch: nn.Linear folded into the first graph-conv matmul -----
    txt_flat = txt_ref[...].reshape(Bt * Np, -1)
    s1_txt = (jnp.dot(txt_flat, tw1_ref[...], preferred_element_type=jnp.float32)
              + tb1_ref[...])
    emb_t, log_t = gcn(s1_txt, adj_t_ref[...],
                       tw2_ref[...], tw2c_ref[...], tbc_ref[...])
    emb_t_ref[...] = emb_t.astype(emb_t_ref.dtype)
    log_t_ref[...] = log_t.astype(log_t_ref.dtype)


# ----------------------------- wrapper ---------------------------------------

def bimodal_forward(input_img, input_text, params, *, batch_tile=None,
                    single_buffer_weights=True):
    """params: dict with adjacency + weights (feature-major: y = x @ W), f32."""
    B, N, Din_img = input_img.shape
    _, _, Din_txt = input_text.shape
    E = params["img_w2"].shape[1]          # embedding_size
    C = params["img_wc"].shape[1]          # n_classes
    Dbott = params["img_w1"].shape[1]      # bottleneck_size

    # The PyTorch module builds text_model with the *image* input size but feeds it
    # the embedding-sized Linear output; the Linear fusion below requires they match.
    assert params["lin_w"].shape[1] == params["txt_w1"].shape[0], (
        "text path requires embedding_size == input_size_img (as in the PyTorch module)")

    cdt = jnp.bfloat16                     # MXU operand dtype (f32 accumulation)

    # ---- TPU-friendly padding (lane-dense intermediates / outputs) ----------
    Np = _round_up(N, 16)                  # node axis: bf16 sublane packing
    Dbott_p = _round_up(Dbott, 128)
    Ep = _round_up(E, 128)
    Cp = _round_up(C, 128)

    num_tc, vmem_cap = _tpu_defaults()
    vmem_ceiling = int(min(max(vmem_cap * 3 // 4, 32 << 20), 100 << 20))

    def pad2(a, rows, cols):
        r, c = a.shape
        return jnp.pad(a, ((0, rows - r), (0, cols - c)))

    adj_i = pad2(params["adj_img"], Np, Np).astype(cdt)
    adj_t = pad2(params["adj_text"], Np, Np).astype(cdt)

    # image branch weights (classifier folded: W2 @ Wc in f32, then cast)
    iw1 = pad2(params["img_w1"], Din_img, Dbott_p).astype(cdt)
    iw2 = pad2(params["img_w2"], Dbott_p, Ep).astype(cdt)
    iw2c = pad2(params["img_w2"] @ params["img_wc"], Dbott_p, Cp).astype(cdt)
    ibc = pad2(params["img_bc"], 1, Cp).astype(jnp.float32)

    # text branch: nn.Linear folded into the first GCN matmul (no nonlinearity between)
    tw1_fused = params["lin_w"] @ params["txt_w1"]          # (Din_txt, Dbott) f32
    tb1_fused = params["lin_b"] @ params["txt_w1"]          # (1, Dbott) f32
    tw1 = pad2(tw1_fused, Din_txt, Dbott_p).astype(cdt)
    tb1 = pad2(tb1_fused, 1, Dbott_p).astype(jnp.float32)
    tw2 = pad2(params["txt_w2"], Dbott_p, Ep).astype(cdt)
    tw2c = pad2(params["txt_w2"] @ params["txt_wc"], Dbott_p, Cp).astype(cdt)
    tbc = pad2(params["txt_bc"], 1, Cp).astype(jnp.float32)

    consts = (adj_i, adj_t, iw1, iw2, iw2c, ibc, tw1, tw2, tw2c, tbc, tb1)
    weight_bytes = sum(int(a.size) * a.dtype.itemsize for a in consts)

    # ---- batch tiling --------------------------------------------------------
    if batch_tile is None:
        batch_tile = max(1, min(B, pl.cdiv(512, Np)))      # aim Bt*Np >= 512 MXU rows
        # splitting into >=2 grid steps only pays off on a 2-TensorCore chip (v7x)
        if num_tc >= 2 and B > 1 and pl.cdiv(B, batch_tile) < 2:
            batch_tile = pl.cdiv(B, 2)

    def vmem_estimate(bt, single_buffer):
        wmult = 1 if single_buffer else 2
        blk_in = bt * Np * (Din_img + Din_txt) * 2             # bf16 inputs
        blk_out = bt * Np * (2 * Ep + 2 * Cp) * 4              # f32 outputs
        interm = 2 * bt * Np * (3 * Dbott_p + Ep + Cp) * 4     # f32 temporaries / branch
        return wmult * weight_bytes + 2 * (blk_in + blk_out) + interm + (4 << 20)

    Bt = int(batch_tile)
    while Bt > 1 and vmem_estimate(Bt, single_buffer_weights) > vmem_ceiling:
        Bt = max(1, Bt // 2)                # shrink the tile rather than spill VMEM

    Bp = _round_up(B, Bt)
    grid_b = Bp // Bt

    def pad_feat(x):
        pads = ((0, Bp - B), (0, Np - N), (0, 0))
        if any(p[1] for p in pads):
            x = jnp.pad(x, pads)
        return x.astype(cdt)

    img = pad_feat(input_img)
    txt = pad_feat(input_text)

    out_shapes = (
        jax.ShapeDtypeStruct((Bp, Np, Ep), jnp.float32),
        jax.ShapeDtypeStruct((Bp, Np, Cp), jnp.float32),
        jax.ShapeDtypeStruct((Bp, Np, Ep), jnp.float32),
        jax.ShapeDtypeStruct((Bp, Np, Cp), jnp.float32),
    )

    # ---- cost estimate (advisory) -------------------------------------------
    rows = Bp * Np
    flops = (2 * rows * (Din_img + Din_txt) * Dbott_p     # feat @ W1 (both branches)
             + 8 * Bp * Np * Np * Dbott_p                 # 2 adjacency applies x 2 branches
             + 4 * rows * Dbott_p * Ep                    # a2 @ W2 x 2 branches
             + 4 * rows * Dbott_p * Cp)                   # a2 @ (W2@Wc) x 2 branches
    act_bytes = (int(img.size) + int(txt.size)) * 2 + rows * (2 * Ep + 2 * Cp) * 4
    cost = pl.CostEstimate(flops=flops, transcendentals=0,
                           bytes_accessed=weight_bytes + act_bytes)

    def _call(single_buffer):
        def batched(last):
            return pl.BlockSpec((Bt, Np, last), lambda b: (b, 0, 0))

        def const(arr):
            if single_buffer:
                # Constant index_map -> weights stay resident; ask for a single
                # buffer so they are not double-allocated in VMEM.
                return pl.BlockSpec(arr.shape, lambda b: (0, 0),
                                    pipeline_mode=pl.Buffered(1))
            return pl.BlockSpec(arr.shape, lambda b: (0, 0))

        in_specs = ([batched(Din_img), batched(Din_txt)]
                    + [const(a) for a in consts])
        out_specs = [batched(Ep), batched(Cp), batched(Ep), batched(Cp)]

        vmem_limit = int(min(max(vmem_estimate(Bt, single_buffer), 32 << 20),
                             vmem_ceiling))

        return pl.pallas_call(
            _bimodal_kernel,
            out_shape=out_shapes,
            grid_spec=pltpu.PrefetchScalarGridSpec(
                num_scalar_prefetch=0,
                grid=(grid_b,),
                in_specs=in_specs,
                out_specs=out_specs,
            ),
            compiler_params=pltpu.CompilerParams(
                dimension_semantics=("parallel",),
                vmem_limit_bytes=vmem_limit,
            ),
            cost_estimate=cost,
        )(img, txt, *consts)

    if single_buffer_weights:
        try:
            outs = _call(True)
        except Exception:
            # Fallback differs only in buffer_count; if the failure was unrelated to
            # Buffered(1), the same genuine error re-raises from this second call.
            outs = _call(False)
    else:
        outs = _call(False)

    emb_i, log_i, emb_t, log_t = outs
    return (emb_i[:B, :N, :E], log_i[:B, :N, :C],
            emb_t[:B, :N, :E], log_t[:B, :N, :C])


# -------------------------- parameter construction ---------------------------

def _uniform(key, shape, stdv):
    return jax.random.uniform(key, shape, jnp.float32, minval=-stdv, maxval=stdv)


def make_params(key, *, n_classes, embedding_size, input_size_img,
                bottleneck_size_img, input_size_text, n_nodes):
    ks = jax.random.split(key, 16)
    # Simple deterministic normalized adjacency (identity + ring); the original
    # model loads it from an adj_file which we cannot read here.
    eye = jnp.eye(n_nodes, dtype=jnp.float32)
    ring = jnp.roll(eye, 1, axis=1) + jnp.roll(eye, -1, axis=1)
    adj = eye + 0.25 * ring
    adj = adj / jnp.sum(adj, axis=1, keepdims=True)

    def gcn_params(k1, k2, k3, k4, din, dbott, demb, ncls):
        s1 = 1.0 / (dbott ** 0.5)
        s2 = 1.0 / (demb ** 0.5)
        sc = 1.0 / (demb ** 0.5)
        return dict(
            w1=_uniform(k1, (din, dbott), s1),
            w2=_uniform(k2, (dbott, demb), s2),
            wc=_uniform(k3, (demb, ncls), sc),
            bc=_uniform(k4, (1, ncls), sc),
        )

    img = gcn_params(ks[0], ks[1], ks[2], ks[3],
                     input_size_img, bottleneck_size_img, embedding_size, n_classes)
    # NOTE: the PyTorch code constructs text_model with the *image* sizes.
    txt = gcn_params(ks[4], ks[5], ks[6], ks[7],
                     input_size_img, bottleneck_size_img, embedding_size, n_classes)
    sl = 1.0 / (input_size_text ** 0.5)
    return dict(
        adj_img=adj, adj_text=adj,
        img_w1=img["w1"], img_w2=img["w2"], img_wc=img["wc"], img_bc=img["bc"],
        txt_w1=txt["w1"], txt_w2=txt["w2"], txt_wc=txt["wc"], txt_bc=txt["bc"],
        lin_w=_uniform(ks[8], (input_size_text, embedding_size), sl),   # (in, out) = W^T
        lin_b=_uniform(ks[9], (1, embedding_size), sl),
    )


def _reference(input_img, input_text, p):
    """Pure-JAX f32 reference of the same forward (unfused; validates the fusions)."""
    def gcn(x, adj, w1, w2, wc, bc):
        h = jnp.einsum("nm,bmd->bnd", adj, x @ w1)
        h = jnp.where(h >= 0, h, 0.2 * h)
        emb = jnp.einsum("nm,bmd->bnd", adj, h @ w2)
        return emb, emb @ wc + bc
    ei, li = gcn(input_img, p["adj_img"], p["img_w1"], p["img_w2"],
                 p["img_wc"], p["img_bc"])
    tf = input_text @ p["lin_w"] + p["lin_b"]
    et, lt = gcn(tf, p["adj_text"], p["txt_w1"], p["txt_w2"],
                 p["txt_wc"], p["txt_bc"])
    return ei, li, et, lt


if __name__ == "__main__":
    key = jax.random.PRNGKey(0)
    k_param, k_img, k_txt = jax.random.split(key, 3)

    # Small shapes consistent with the module (embedding_size == input_size_img,
    # as in the defaults 1024 == 1024, which the text path relies on).
    B, N = 8, 8               # batch, anatomy nodes
    n_classes = 8
    embedding_size = 32
    input_size_img = 32
    bottleneck_size_img = 16
    input_size_text = 24

    params = make_params(k_param,
                         n_classes=n_classes,
                         embedding_size=embedding_size,
                         input_size_img=input_size_img,
                         bottleneck_size_img=bottleneck_size_img,
                         input_size_text=input_size_text,
                         n_nodes=N)

    input_img = jax.random.normal(k_img, (B, N, input_size_img), jnp.float32)
    input_text = jax.random.normal(k_txt, (B, N, input_size_text), jnp.float32)

    outs = bimodal_forward(input_img, input_text, params)
    outs = jax.block_until_ready(outs)

    refs = _reference(input_img, input_text, params)
    for o, r in zip(outs, refs):
        assert o.shape == r.shape and o.dtype == jnp.float32
        # bf16 MXU operands with f32 accumulation: tolerance loosened vs pure f32.
        assert jnp.allclose(o, r, atol=5e-2, rtol=5e-2), float(jnp.max(jnp.abs(o - r)))

    print("KERNEL_OK")
</pallas_src>

<mosaic_0001>
module attributes {stable_mosaic.version = 11 : i64} {
  func.func @_bimodal_kernel(%arg0: i32, %arg1: memref<8x16x32xbf16, #tpu.memory_space<vmem>>, %arg2: memref<8x16x24xbf16, #tpu.memory_space<vmem>>, %arg3: memref<16x16xbf16, #tpu.memory_space<vmem>>, %arg4: memref<16x16xbf16, #tpu.memory_space<vmem>>, %arg5: memref<32x128xbf16, #tpu.memory_space<vmem>>, %arg6: memref<128x128xbf16, #tpu.memory_space<vmem>>, %arg7: memref<128x128xbf16, #tpu.memory_space<vmem>>, %arg8: memref<1x128xf32, #tpu.memory_space<vmem>>, %arg9: memref<24x128xbf16, #tpu.memory_space<vmem>>, %arg10: memref<128x128xbf16, #tpu.memory_space<vmem>>, %arg11: memref<128x128xbf16, #tpu.memory_space<vmem>>, %arg12: memref<1x128xf32, #tpu.memory_space<vmem>>, %arg13: memref<1x128xf32, #tpu.memory_space<vmem>>, %arg14: memref<8x16x128xf32, #tpu.memory_space<vmem>>, %arg15: memref<8x16x128xf32, #tpu.memory_space<vmem>>, %arg16: memref<8x16x128xf32, #tpu.memory_space<vmem>>, %arg17: memref<8x16x128xf32, #tpu.memory_space<vmem>>) attributes {dimension_semantics = [#tpu.dimension_semantics<parallel>], iteration_bounds = array<i64: 1>, scalar_prefetch = 0 : i64, scratch_operands = 0 : i64, tpu.core_type = #tpu.core_type<tc>, window_params = [{transform_indices = @transform_0, window_bounds = array<i64: 8, 16, 32>}, {transform_indices = @transform_1, window_bounds = array<i64: 8, 16, 24>}, {pipeline_mode = #tpu.pipeline_mode<synchronous>, transform_indices = @transform_2, window_bounds = array<i64: 16, 16>}, {pipeline_mode = #tpu.pipeline_mode<synchronous>, transform_indices = @transform_3, window_bounds = array<i64: 16, 16>}, {pipeline_mode = #tpu.pipeline_mode<synchronous>, transform_indices = @transform_4, window_bounds = array<i64: 32, 128>}, {pipeline_mode = #tpu.pipeline_mode<synchronous>, transform_indices = @transform_5, window_bounds = array<i64: 128, 128>}, {pipeline_mode = #tpu.pipeline_mode<synchronous>, transform_indices = @transform_6, window_bounds = array<i64: 128, 128>}, {pipeline_mode = #tpu.pipeline_mode<synchronous>, transform_indices = @transform_7, window_bounds = array<i64: 1, 128>}, {pipeline_mode = #tpu.pipeline_mode<synchronous>, transform_indices = @transform_8, window_bounds = array<i64: 24, 128>}, {pipeline_mode = #tpu.pipeline_mode<synchronous>, transform_indices = @transform_9, window_bounds = array<i64: 128, 128>}, {pipeline_mode = #tpu.pipeline_mode<synchronous>, transform_indices = @transform_10, window_bounds = array<i64: 128, 128>}, {pipeline_mode = #tpu.pipeline_mode<synchronous>, transform_indices = @transform_11, window_bounds = array<i64: 1, 128>}, {pipeline_mode = #tpu.pipeline_mode<synchronous>, transform_indices = @transform_12, window_bounds = array<i64: 1, 128>}, {transform_indices = @transform_13, window_bounds = array<i64: 8, 16, 128>}, {transform_indices = @transform_14, window_bounds = array<i64: 8, 16, 128>}, {transform_indices = @transform_15, window_bounds = array<i64: 8, 16, 128>}, {transform_indices = @transform_16, window_bounds = array<i64: 8, 16, 128>}]} {
    %c0 = arith.constant 0 : index
    %c0_0 = arith.constant 0 : index
    %c0_1 = arith.constant 0 : index
    %0 = vector.load %arg1[%c0, %c0_0, %c0_1] : memref<8x16x32xbf16, #tpu.memory_space<vmem>>, vector<8x16x32xbf16>
    %1 = vector.shape_cast %0 : vector<8x16x32xbf16> to vector<128x32xbf16>
    %c0_2 = arith.constant 0 : index
    %c0_3 = arith.constant 0 : index
    %2 = vector.load %arg5[%c0_2, %c0_3] : memref<32x128xbf16, #tpu.memory_space<vmem>>, vector<32x128xbf16>
    %cst = arith.constant dense<0.000000e+00> : vector<128x128xf32>
    %3 = tpu.matmul %1, %2, %cst {dimension_numbers = #tpu.dot_dimension_numbers<[1], [0], [0], [1], [0, 0, 1, 1], [], []>} : vector<128x32xbf16>, vector<32x128xbf16>, vector<128x128xf32> -> vector<128x128xf32>
    %c0_4 = arith.constant 0 : index
    %c0_5 = arith.constant 0 : index
    %4 = vector.load %arg3[%c0_4, %c0_5] : memref<16x16xbf16, #tpu.memory_space<vmem>>, vector<16x16xbf16>
    %c0_6 = arith.constant 0 : index
    %c0_7 = arith.constant 0 : index
    %5 = vector.load %arg6[%c0_6, %c0_7] : memref<128x128xbf16, #tpu.memory_space<vmem>>, vector<128x128xbf16>
    %c0_8 = arith.constant 0 : index
    %c0_9 = arith.constant 0 : index
    %6 = vector.load %arg7[%c0_8, %c0_9] : memref<128x128xbf16, #tpu.memory_space<vmem>>, vector<128x128xbf16>
    %c0_10 = arith.constant 0 : index
    %c0_11 = arith.constant 0 : index
    %7 = vector.load %arg8[%c0_10, %c0_11] : memref<1x128xf32, #tpu.memory_space<vmem>>, vector<1x128xf32>
    %8 = vector.shape_cast %3 : vector<128x128xf32> to vector<8x16x128xf32>
    %9 = arith.truncf %8 : vector<8x16x128xf32> to vector<8x16x128xbf16>
    %10 = vector.shape_cast %4 : vector<16x16xbf16> to vector<1x16x16xbf16>
    %11 = vector.broadcast %10 : vector<1x16x16xbf16> to vector<8x16x16xbf16>
    "tpu.trace_start"() <{level = 10 : i32, message = "bnm,bmd->bnd"}> : () -> ()
    %cst_12 = arith.constant dense<0.000000e+00> : vector<8x16x128xf32>
    %12 = tpu.matmul %11, %9, %cst_12 {dimension_numbers = #tpu.dot_dimension_numbers<[2], [1], [1], [2], [0, 0, 0, 1, 1, 2], [0], [0]>} : vector<8x16x16xbf16>, vector<8x16x128xbf16>, vector<8x16x128xf32> -> vector<8x16x128xf32>
    "tpu.trace_stop"() : () -> ()
    %cst_13 = arith.constant 2.000000e-01 : f32
    %13 = vector.broadcast %cst_13 : f32 to vector<8x16x128xf32>
    %14 = arith.mulf %13, %12 : vector<8x16x128xf32>
    %15 = arith.maximumf %12, %14 : vector<8x16x128xf32>
    %16 = arith.truncf %15 : vector<8x16x128xf32> to vector<8x16x128xbf16>
    "tpu.trace_start"() <{level = 10 : i32, message = "bnm,bmd->bnd"}> : () -> ()
    %cst_14 = arith.constant dense<0.000000e+00> : vector<8x16x128xf32>
    %17 = tpu.matmul %11, %16, %cst_14 {dimension_numbers = #tpu.dot_dimension_numbers<[2], [1], [1], [2], [0, 0, 0, 1, 1, 2], [0], [0]>} : vector<8x16x16xbf16>, vector<8x16x128xbf16>, vector<8x16x128xf32> -> vector<8x16x128xf32>
    "tpu.trace_stop"() : () -> ()
    %18 = vector.shape_cast %17 : vector<8x16x128xf32> to vector<128x128xf32>
    %19 = arith.truncf %18 : vector<128x128xf32> to vector<128x128xbf16>
    %cst_15 = arith.constant dense<0.000000e+00> : vector<128x128xf32>
    %20 = tpu.matmul %19, %5, %cst_15 {dimension_numbers = #tpu.dot_dimension_numbers<[1], [0], [0], [1], [0, 0, 1, 1], [], []>} : vector<128x128xbf16>, vector<128x128xbf16>, vector<128x128xf32> -> vector<128x128xf32>
    %cst_16 = arith.constant dense<0.000000e+00> : vector<128x128xf32>
    %21 = tpu.matmul %19, %6, %cst_16 {dimension_numbers = #tpu.dot_dimension_numbers<[1], [0], [0], [1], [0, 0, 1, 1], [], []>} : vector<128x128xbf16>, vector<128x128xbf16>, vector<128x128xf32> -> vector<128x128xf32>
    %22 = vector.broadcast %7 : vector<1x128xf32> to vector<128x128xf32>
    %23 = arith.addf %21, %22 : vector<128x128xf32>
    %24 = vector.shape_cast %20 : vector<128x128xf32> to vector<8x16x128xf32>
    %25 = vector.shape_cast %23 : vector<128x128xf32> to vector<8x16x128xf32>
    %c0_17 = arith.constant 0 : index
    %c0_18 = arith.constant 0 : index
    %c0_19 = arith.constant 0 : index
    %26 = vector.load %arg14[%c0_17, %c0_18, %c0_19] : memref<8x16x128xf32, #tpu.memory_space<vmem>>, vector<8x16x128xf32>
    tpu.vector_store %arg14[%c0_17, %c0_18, %c0_19], %24 {strides = array<i32>} : memref<8x16x128xf32, #tpu.memory_space<vmem>>, vector<8x16x128xf32>,
    %c0_20 = arith.constant 0 : index
    %c0_21 = arith.constant 0 : index
    %c0_22 = arith.constant 0 : index
    %27 = vector.load %arg15[%c0_20, %c0_21, %c0_22] : memref<8x16x128xf32, #tpu.memory_space<vmem>>, vector<8x16x128xf32>
    tpu.vector_store %arg15[%c0_20, %c0_21, %c0_22], %25 {strides = array<i32>} : memref<8x16x128xf32, #tpu.memory_space<vmem>>, vector<8x16x128xf32>,
    %c0_23 = arith.constant 0 : index
    %c0_24 = arith.constant 0 : index
    %c0_25 = arith.constant 0 : index
    %28 = vector.load %arg2[%c0_23, %c0_24, %c0_25] : memref<8x16x24xbf16, #tpu.memory_space<vmem>>, vector<8x16x24xbf16>
    %29 = vector.shape_cast %28 : vector<8x16x24xbf16> to vector<128x24xbf16>
    %c0_26 = arith.constant 0 : index
    %c0_27 = arith.constant 0 : index
    %30 = vector.load %arg9[%c0_26, %c0_27] : memref<24x128xbf16, #tpu.memory_space<vmem>>, vector<24x128xbf16>
    %cst_28 = arith.constant dense<0.000000e+00> : vector<128x128xf32>
    %31 = tpu.matmul %29, %30, %cst_28 {dimension_numbers = #tpu.dot_dimension_numbers<[1], [0], [0], [1], [0, 0, 1, 1], [], []>} : vector<128x24xbf16>, vector<24x128xbf16>, vector<128x128xf32> -> vector<128x128xf32>
    %c0_29 = arith.constant 0 : index
    %c0_30 = arith.constant 0 : index
    %32 = vector.load %arg13[%c0_29, %c0_30] : memref<1x128xf32, #tpu.memory_space<vmem>>, vector<1x128xf32>
    %33 = vector.broadcast %32 : vector<1x128xf32> to vector<128x128xf32>
    %34 = arith.addf %31, %33 : vector<128x128xf32>
    %c0_31 = arith.constant 0 : index
    %c0_32 = arith.constant 0 : index
    %35 = vector.load %arg4[%c0_31, %c0_32] : memref<16x16xbf16, #tpu.memory_space<vmem>>, vector<16x16xbf16>
    %c0_33 = arith.constant 0 : index
    %c0_34 = arith.constant 0 : index
    %36 = vector.load %arg10[%c0_33, %c0_34] : memref<128x128xbf16, #tpu.memory_space<vmem>>, vector<128x128xbf16>
    %c0_35 = arith.constant 0 : index
    %c0_36 = arith.constant 0 : index
    %37 = vector.load %arg11[%c0_35, %c0_36] : memref<128x128xbf16, #tpu.memory_space<vmem>>, vector<128x128xbf16>
    %c0_37 = arith.constant 0 : index
    %c0_38 = arith.constant 0 : index
    %38 = vector.load %arg12[%c0_37, %c0_38] : memref<1x128xf32, #tpu.memory_space<vmem>>, vector<1x128xf32>
    %39 = vector.shape_cast %34 : vector<128x128xf32> to vector<8x16x128xf32>
    %40 = arith.truncf %39 : vector<8x16x128xf32> to vector<8x16x128xbf16>
    %41 = vector.shape_cast %35 : vector<16x16xbf16> to vector<1x16x16xbf16>
    %42 = vector.broadcast %41 : vector<1x16x16xbf16> to vector<8x16x16xbf16>
    "tpu.trace_start"() <{level = 10 : i32, message = "bnm,bmd->bnd"}> : () -> ()
    %cst_39 = arith.constant dense<0.000000e+00> : vector<8x16x128xf32>
    %43 = tpu.matmul %42, %40, %cst_39 {dimension_numbers = #tpu.dot_dimension_numbers<[2], [1], [1], [2], [0, 0, 0, 1, 1, 2], [0], [0]>} : vector<8x16x16xbf16>, vector<8x16x128xbf16>, vector<8x16x128xf32> -> vector<8x16x128xf32>
    "tpu.trace_stop"() : () -> ()
    %cst_40 = arith.constant 2.000000e-01 : f32
    %44 = vector.broadcast %cst_40 : f32 to vector<8x16x128xf32>
    %45 = arith.mulf %44, %43 : vector<8x16x128xf32>
    %46 = arith.maximumf %43, %45 : vector<8x16x128xf32>
    %47 = arith.truncf %46 : vector<8x16x128xf32> to vector<8x16x128xbf16>
    "tpu.trace_start"() <{level = 10 : i32, message = "bnm,bmd->bnd"}> : () -> ()
    %cst_41 = arith.constant dense<0.000000e+00> : vector<8x16x128xf32>
    %48 = tpu.matmul %42, %47, %cst_41 {dimension_numbers = #tpu.dot_dimension_numbers<[2], [1], [1], [2], [0, 0, 0, 1, 1, 2], [0], [0]>} : vector<8x16x16xbf16>, vector<8x16x128xbf16>, vector<8x16x128xf32> -> vector<8x16x128xf32>
    "tpu.trace_stop"() : () -> ()
    %49 = vector.shape_cast %48 : vector<8x16x128xf32> to vector<128x128xf32>
    %50 = arith.truncf %49 : vector<128x128xf32> to vector<128x128xbf16>
    %cst_42 = arith.constant dense<0.000000e+00> : vector<128x128xf32>
    %51 = tpu.matmul %50, %36, %cst_42 {dimension_numbers = #tpu.dot_dimension_numbers<[1], [0], [0], [1], [0, 0, 1, 1], [], []>} : vector<128x128xbf16>, vector<128x128xbf16>, vector<128x128xf32> -> vector<128x128xf32>
    %cst_43 = arith.constant dense<0.000000e+00> : vector<128x128xf32>
    %52 = tpu.matmul %50, %37, %cst_43 {dimension_numbers = #tpu.dot_dimension_numbers<[1], [0], [0], [1], [0, 0, 1, 1], [], []>} : vector<128x128xbf16>, vector<128x128xbf16>, vector<128x128xf32> -> vector<128x128xf32>
    %53 = vector.broadcast %38 : vector<1x128xf32> to vector<128x128xf32>
    %54 = arith.addf %52, %53 : vector<128x128xf32>
    %55 = vector.shape_cast %51 : vector<128x128xf32> to vector<8x16x128xf32>
    %56 = vector.shape_cast %54 : vector<128x128xf32> to vector<8x16x128xf32>
    %c0_44 = arith.constant 0 : index
    %c0_45 = arith.constant 0 : index
    %c0_46 = arith.constant 0 : index
    %57 = vector.load %arg16[%c0_44, %c0_45, %c0_46] : memref<8x16x128xf32, #tpu.memory_space<vmem>>, vector<8x16x128xf32>
    tpu.vector_store %arg16[%c0_44, %c0_45, %c0_46], %55 {strides = array<i32>} : memref<8x16x128xf32, #tpu.memory_space<vmem>>, vector<8x16x128xf32>,
    %c0_47 = arith.constant 0 : index
    %c0_48 = arith.constant 0 : index
    %c0_49 = arith.constant 0 : index
    %58 = vector.load %arg17[%c0_47, %c0_48, %c0_49] : memref<8x16x128xf32, #tpu.memory_space<vmem>>, vector<8x16x128xf32>
    tpu.vector_store %arg17[%c0_47, %c0_48, %c0_49], %56 {strides = array<i32>} : memref<8x16x128xf32, #tpu.memory_space<vmem>>, vector<8x16x128xf32>,
    return
  }
  func.func @transform_0(%arg0: i32) -> (i32, i32, i32) {
    %c0_i32 = arith.constant 0 : i32
    %c0_i32_0 = arith.constant 0 : i32
    %c0_i32_1 = arith.constant 0 : i32
    return %arg0, %c0_i32, %c0_i32_0 : i32, i32, i32
  }
  func.func @transform_1(%arg0: i32) -> (i32, i32, i32) {
    %c0_i32 = arith.constant 0 : i32
    %c0_i32_0 = arith.constant 0 : i32
    %c0_i32_1 = arith.constant 0 : i32
    return %arg0, %c0_i32, %c0_i32_0 : i32, i32, i32
  }
  func.func @transform_2(%arg0: i32) -> (i32, i32) {
    %c0_i32 = arith.constant 0 : i32
    %c0_i32_0 = arith.constant 0 : i32
    %c0_i32_1 = arith.constant 0 : i32
    return %c0_i32, %c0_i32_0 : i32, i32
  }
  func.func @transform_3(%arg0: i32) -> (i32, i32) {
    %c0_i32 = arith.constant 0 : i32
    %c0_i32_0 = arith.constant 0 : i32
    %c0_i32_1 = arith.constant 0 : i32
    return %c0_i32, %c0_i32_0 : i32, i32
  }
  func.func @transform_4(%arg0: i32) -> (i32, i32) {
    %c0_i32 = arith.constant 0 : i32
    %c0_i32_0 = arith.constant 0 : i32
    %c0_i32_1 = arith.constant 0 : i32
    return %c0_i32, %c0_i32_0 : i32, i32
  }
  func.func @transform_5(%arg0: i32) -> (i32, i32) {
    %c0_i32 = arith.constant 0 : i32
    %c0_i32_0 = arith.constant 0 : i32
    %c0_i32_1 = arith.constant 0 : i32
    return %c0_i32, %c0_i32_0 : i32, i32
  }
  func.func @transform_6(%arg0: i32) -> (i32, i32) {
    %c0_i32 = arith.constant 0 : i32
    %c0_i32_0 = arith.constant 0 : i32
    %c0_i32_1 = arith.constant 0 : i32
    return %c0_i32, %c0_i32_0 : i32, i32
  }
  func.func @transform_7(%arg0: i32) -> (i32, i32) {
    %c0_i32 = arith.constant 0 : i32
    %c0_i32_0 = arith.constant 0 : i32
    %c0_i32_1 = arith.constant 0 : i32
    return %c0_i32, %c0_i32_0 : i32, i32
  }
  func.func @transform_8(%arg0: i32) -> (i32, i32) {
    %c0_i32 = arith.constant 0 : i32
    %c0_i32_0 = arith.constant 0 : i32
    %c0_i32_1 = arith.constant 0 : i32
    return %c0_i32, %c0_i32_0 : i32, i32
  }
  func.func @transform_9(%arg0: i32) -> (i32, i32) {
    %c0_i32 = arith.constant 0 : i32
    %c0_i32_0 = arith.constant 0 : i32
    %c0_i32_1 = arith.constant 0 : i32
    return %c0_i32, %c0_i32_0 : i32, i32
  }
  func.func @transform_10(%arg0: i32) -> (i32, i32) {
    %c0_i32 = arith.constant 0 : i32
    %c0_i32_0 = arith.constant 0 : i32
    %c0_i32_1 = arith.constant 0 : i32
    return %c0_i32, %c0_i32_0 : i32, i32
  }
  func.func @transform_11(%arg0: i32) -> (i32, i32) {
    %c0_i32 = arith.constant 0 : i32
    %c0_i32_0 = arith.constant 0 : i32
    %c0_i32_1 = arith.constant 0 : i32
    return %c0_i32, %c0_i32_0 : i32, i32
  }
  func.func @transform_12(%arg0: i32) -> (i32, i32) {
    %c0_i32 = arith.constant 0 : i32
    %c0_i32_0 = arith.constant 0 : i32
    %c0_i32_1 = arith.constant 0 : i32
    return %c0_i32, %c0_i32_0 : i32, i32
  }
  func.func @transform_13(%arg0: i32) -> (i32, i32, i32) {
    %c0_i32 = arith.constant 0 : i32
    %c0_i32_0 = arith.constant 0 : i32
    %c0_i32_1 = arith.constant 0 : i32
    return %arg0, %c0_i32, %c0_i32_0 : i32, i32, i32
  }
  func.func @transform_14(%arg0: i32) -> (i32, i32, i32) {
    %c0_i32 = arith.constant 0 : i32
    %c0_i32_0 = arith.constant 0 : i32
    %c0_i32_1 = arith.constant 0 : i32
    return %arg0, %c0_i32, %c0_i32_0 : i32, i32, i32
  }
  func.func @transform_15(%arg0: i32) -> (i32, i32, i32) {
    %c0_i32 = arith.constant 0 : i32
    %c0_i32_0 = arith.constant 0 : i32
    %c0_i32_1 = arith.constant 0 : i32
    return %arg0, %c0_i32, %c0_i32_0 : i32, i32, i32
  }
  func.func @transform_16(%arg0: i32) -> (i32, i32, i32) {
    %c0_i32 = arith.constant 0 : i32
    %c0_i32_0 = arith.constant 0 : i32
    %c0_i32_1 = arith.constant 0 : i32
    return %arg0, %c0_i32, %c0_i32_0 : i32, i32, i32
  }
}

module attributes {stable_mosaic.version = 11 : i64} {
  func.func @_bimodal_kernel(%arg0: i32, %arg1: memref<8x16x32xbf16, #tpu.memory_space<vmem>>, %arg2: memref<8x16x24xbf16, #tpu.memory_space<vmem>>, %arg3: memref<16x16xbf16, #tpu.memory_space<vmem>>, %arg4: memref<16x16xbf16, #tpu.memory_space<vmem>>, %arg5: memref<32x128xbf16, #tpu.memory_space<vmem>>, %arg6: memref<128x128xbf16, #tpu.memory_space<vmem>>, %arg7: memref<128x128xbf16, #tpu.memory_space<vmem>>, %arg8: memref<1x128xf32, #tpu.memory_space<vmem>>, %arg9: memref<24x128xbf16, #tpu.memory_space<vmem>>, %arg10: memref<128x128xbf16, #tpu.memory_space<vmem>>, %arg11: memref<128x128xbf16, #tpu.memory_space<vmem>>, %arg12: memref<1x128xf32, #tpu.memory_space<vmem>>, %arg13: memref<1x128xf32, #tpu.memory_space<vmem>>, %arg14: memref<8x16x128xf32, #tpu.memory_space<vmem>>, %arg15: memref<8x16x128xf32, #tpu.memory_space<vmem>>, %arg16: memref<8x16x128xf32, #tpu.memory_space<vmem>>, %arg17: memref<8x16x128xf32, #tpu.memory_space<vmem>>) attributes {dimension_semantics = [#tpu.dimension_semantics<parallel>], iteration_bounds = array<i64: 1>, scalar_prefetch = 0 : i64, scratch_operands = 0 : i64, tpu.core_type = #tpu.core_type<tc>, window_params = [{transform_indices = @transform_0, window_bounds = array<i64: 8, 16, 32>}, {transform_indices = @transform_1, window_bounds = array<i64: 8, 16, 24>}, {pipeline_mode = #tpu.pipeline_mode<synchronous>, transform_indices = @transform_2, window_bounds = array<i64: 16, 16>}, {pipeline_mode = #tpu.pipeline_mode<synchronous>, transform_indices = @transform_3, window_bounds = array<i64: 16, 16>}, {pipeline_mode = #tpu.pipeline_mode<synchronous>, transform_indices = @transform_4, window_bounds = array<i64: 32, 128>}, {pipeline_mode = #tpu.pipeline_mode<synchronous>, transform_indices = @transform_5, window_bounds = array<i64: 128, 128>}, {pipeline_mode = #tpu.pipeline_mode<synchronous>, transform_indices = @transform_6, window_bounds = array<i64: 128, 128>}, {pipeline_mode = #tpu.pipeline_mode<synchronous>, transform_indices = @transform_7, window_bounds = array<i64: 1, 128>}, {pipeline_mode = #tpu.pipeline_mode<synchronous>, transform_indices = @transform_8, window_bounds = array<i64: 24, 128>}, {pipeline_mode = #tpu.pipeline_mode<synchronous>, transform_indices = @transform_9, window_bounds = array<i64: 128, 128>}, {pipeline_mode = #tpu.pipeline_mode<synchronous>, transform_indices = @transform_10, window_bounds = array<i64: 128, 128>}, {pipeline_mode = #tpu.pipeline_mode<synchronous>, transform_indices = @transform_11, window_bounds = array<i64: 1, 128>}, {pipeline_mode = #tpu.pipeline_mode<synchronous>, transform_indices = @transform_12, window_bounds = array<i64: 1, 128>}, {transform_indices = @transform_13, window_bounds = array<i64: 8, 16, 128>}, {transform_indices = @transform_14, window_bounds = array<i64: 8, 16, 128>}, {transform_indices = @transform_15, window_bounds = array<i64: 8, 16, 128>}, {transform_indices = @transform_16, window_bounds = array<i64: 8, 16, 128>}]} {
    %c0 = arith.constant 0 : index
    %c0_0 = arith.constant 0 : index
    %c0_1 = arith.constant 0 : index
    %0 = vector.load %arg1[%c0, %c0_0, %c0_1] : memref<8x16x32xbf16, #tpu.memory_space<vmem>>, vector<8x16x32xbf16>
    %1 = vector.shape_cast %0 : vector<8x16x32xbf16> to vector<128x32xbf16>
    %c0_2 = arith.constant 0 : index
    %c0_3 = arith.constant 0 : index
    %2 = vector.load %arg5[%c0_2, %c0_3] : memref<32x128xbf16, #tpu.memory_space<vmem>>, vector<32x128xbf16>
    %cst = arith.constant dense<0.000000e+00> : vector<128x128xf32>
    %3 = tpu.matmul %1, %2, %cst {dimension_numbers = #tpu.dot_dimension_numbers<[1], [0], [0], [1], [0, 0, 1, 1], [], []>} : vector<128x32xbf16>, vector<32x128xbf16>, vector<128x128xf32> -> vector<128x128xf32>
    %c0_4 = arith.constant 0 : index
    %c0_5 = arith.constant 0 : index
    %4 = vector.load %arg3[%c0_4, %c0_5] : memref<16x16xbf16, #tpu.memory_space<vmem>>, vector<16x16xbf16>
    %c0_6 = arith.constant 0 : index
    %c0_7 = arith.constant 0 : index
    %5 = vector.load %arg6[%c0_6, %c0_7] : memref<128x128xbf16, #tpu.memory_space<vmem>>, vector<128x128xbf16>
    %c0_8 = arith.constant 0 : index
    %c0_9 = arith.constant 0 : index
    %6 = vector.load %arg7[%c0_8, %c0_9] : memref<128x128xbf16, #tpu.memory_space<vmem>>, vector<128x128xbf16>
    %c0_10 = arith.constant 0 : index
    %c0_11 = arith.constant 0 : index
    %7 = vector.load %arg8[%c0_10, %c0_11] : memref<1x128xf32, #tpu.memory_space<vmem>>, vector<1x128xf32>
    %8 = vector.shape_cast %3 : vector<128x128xf32> to vector<8x16x128xf32>
    %9 = arith.truncf %8 : vector<8x16x128xf32> to vector<8x16x128xbf16>
    %10 = vector.shape_cast %4 : vector<16x16xbf16> to vector<1x16x16xbf16>
    %11 = vector.broadcast %10 : vector<1x16x16xbf16> to vector<8x16x16xbf16>
    "tpu.trace_start"() <{level = 10 : i32, message = "bnm,bmd->bnd"}> : () -> ()
    %cst_12 = arith.constant dense<0.000000e+00> : vector<8x16x128xf32>
    %12 = tpu.matmul %11, %9, %cst_12 {dimension_numbers = #tpu.dot_dimension_numbers<[2], [1], [1], [2], [0, 0, 0, 1, 1, 2], [0], [0]>} : vector<8x16x16xbf16>, vector<8x16x128xbf16>, vector<8x16x128xf32> -> vector<8x16x128xf32>
    "tpu.trace_stop"() : () -> ()
    %cst_13 = arith.constant 2.000000e-01 : f32
    %13 = vector.broadcast %cst_13 : f32 to vector<8x16x128xf32>
    %14 = arith.mulf %13, %12 : vector<8x16x128xf32>
    %15 = arith.maximumf %12, %14 : vector<8x16x128xf32>
    %16 = arith.truncf %15 : vector<8x16x128xf32> to vector<8x16x128xbf16>
    "tpu.trace_start"() <{level = 10 : i32, message = "bnm,bmd->bnd"}> : () -> ()
    %cst_14 = arith.constant dense<0.000000e+00> : vector<8x16x128xf32>
    %17 = tpu.matmul %11, %16, %cst_14 {dimension_numbers = #tpu.dot_dimension_numbers<[2], [1], [1], [2], [0, 0, 0, 1, 1, 2], [0], [0]>} : vector<8x16x16xbf16>, vector<8x16x128xbf16>, vector<8x16x128xf32> -> vector<8x16x128xf32>
    "tpu.trace_stop"() : () -> ()
    %18 = vector.shape_cast %17 : vector<8x16x128xf32> to vector<128x128xf32>
    %19 = arith.truncf %18 : vector<128x128xf32> to vector<128x128xbf16>
    %cst_15 = arith.constant dense<0.000000e+00> : vector<128x128xf32>
    %20 = tpu.matmul %19, %5, %cst_15 {dimension_numbers = #tpu.dot_dimension_numbers<[1], [0], [0], [1], [0, 0, 1, 1], [], []>} : vector<128x128xbf16>, vector<128x128xbf16>, vector<128x128xf32> -> vector<128x128xf32>
    %cst_16 = arith.constant dense<0.000000e+00> : vector<128x128xf32>
    %21 = tpu.matmul %19, %6, %cst_16 {dimension_numbers = #tpu.dot_dimension_numbers<[1], [0], [0], [1], [0, 0, 1, 1], [], []>} : vector<128x128xbf16>, vector<128x128xbf16>, vector<128x128xf32> -> vector<128x128xf32>
    %22 = vector.broadcast %7 : vector<1x128xf32> to vector<128x128xf32>
    %23 = arith.addf %21, %22 : vector<128x128xf32>
    %24 = vector.shape_cast %20 : vector<128x128xf32> to vector<8x16x128xf32>
    %25 = vector.shape_cast %23 : vector<128x128xf32> to vector<8x16x128xf32>
    %c0_17 = arith.constant 0 : index
    %c0_18 = arith.constant 0 : index
    %c0_19 = arith.constant 0 : index
    %26 = vector.load %arg14[%c0_17, %c0_18, %c0_19] : memref<8x16x128xf32, #tpu.memory_space<vmem>>, vector<8x16x128xf32>
    tpu.vector_store %arg14[%c0_17, %c0_18, %c0_19], %24 {strides = array<i32>} : memref<8x16x128xf32, #tpu.memory_space<vmem>>, vector<8x16x128xf32>,
    %c0_20 = arith.constant 0 : index
    %c0_21 = arith.constant 0 : index
    %c0_22 = arith.constant 0 : index
    %27 = vector.load %arg15[%c0_20, %c0_21, %c0_22] : memref<8x16x128xf32, #tpu.memory_space<vmem>>, vector<8x16x128xf32>
    tpu.vector_store %arg15[%c0_20, %c0_21, %c0_22], %25 {strides = array<i32>} : memref<8x16x128xf32, #tpu.memory_space<vmem>>, vector<8x16x128xf32>,
    %c0_23 = arith.constant 0 : index
    %c0_24 = arith.constant 0 : index
    %c0_25 = arith.constant 0 : index
    %28 = vector.load %arg2[%c0_23, %c0_24, %c0_25] : memref<8x16x24xbf16, #tpu.memory_space<vmem>>, vector<8x16x24xbf16>
    %29 = vector.shape_cast %28 : vector<8x16x24xbf16> to vector<128x24xbf16>
    %c0_26 = arith.constant 0 : index
    %c0_27 = arith.constant 0 : index
    %30 = vector.load %arg9[%c0_26, %c0_27] : memref<24x128xbf16, #tpu.memory_space<vmem>>, vector<24x128xbf16>
    %cst_28 = arith.constant dense<0.000000e+00> : vector<128x128xf32>
    %31 = tpu.matmul %29, %30, %cst_28 {dimension_numbers = #tpu.dot_dimension_numbers<[1], [0], [0], [1], [0, 0, 1, 1], [], []>} : vector<128x24xbf16>, vector<24x128xbf16>, vector<128x128xf32> -> vector<128x128xf32>
    %c0_29 = arith.constant 0 : index
    %c0_30 = arith.constant 0 : index
    %32 = vector.load %arg13[%c0_29, %c0_30] : memref<1x128xf32, #tpu.memory_space<vmem>>, vector<1x128xf32>
    %33 = vector.broadcast %32 : vector<1x128xf32> to vector<128x128xf32>
    %34 = arith.addf %31, %33 : vector<128x128xf32>
    %c0_31 = arith.constant 0 : index
    %c0_32 = arith.constant 0 : index
    %35 = vector.load %arg4[%c0_31, %c0_32] : memref<16x16xbf16, #tpu.memory_space<vmem>>, vector<16x16xbf16>
    %c0_33 = arith.constant 0 : index
    %c0_34 = arith.constant 0 : index
    %36 = vector.load %arg10[%c0_33, %c0_34] : memref<128x128xbf16, #tpu.memory_space<vmem>>, vector<128x128xbf16>
    %c0_35 = arith.constant 0 : index
    %c0_36 = arith.constant 0 : index
    %37 = vector.load %arg11[%c0_35, %c0_36] : memref<128x128xbf16, #tpu.memory_space<vmem>>, vector<128x128xbf16>
    %c0_37 = arith.constant 0 : index
    %c0_38 = arith.constant 0 : index
    %38 = vector.load %arg12[%c0_37, %c0_38] : memref<1x128xf32, #tpu.memory_space<vmem>>, vector<1x128xf32>
    %39 = vector.shape_cast %34 : vector<128x128xf32> to vector<8x16x128xf32>
    %40 = arith.truncf %39 : vector<8x16x128xf32> to vector<8x16x128xbf16>
    %41 = vector.shape_cast %35 : vector<16x16xbf16> to vector<1x16x16xbf16>
    %42 = vector.broadcast %41 : vector<1x16x16xbf16> to vector<8x16x16xbf16>
    "tpu.trace_start"() <{level = 10 : i32, message = "bnm,bmd->bnd"}> : () -> ()
    %cst_39 = arith.constant dense<0.000000e+00> : vector<8x16x128xf32>
    %43 = tpu.matmul %42, %40, %cst_39 {dimension_numbers = #tpu.dot_dimension_numbers<[2], [1], [1], [2], [0, 0, 0, 1, 1, 2], [0], [0]>} : vector<8x16x16xbf16>, vector<8x16x128xbf16>, vector<8x16x128xf32> -> vector<8x16x128xf32>
    "tpu.trace_stop"() : () -> ()
    %cst_40 = arith.constant 2.000000e-01 : f32
    %44 = vector.broadcast %cst_40 : f32 to vector<8x16x128xf32>
    %45 = arith.mulf %44, %43 : vector<8x16x128xf32>
    %46 = arith.maximumf %43, %45 : vector<8x16x128xf32>
    %47 = arith.truncf %46 : vector<8x16x128xf32> to vector<8x16x128xbf16>
    "tpu.trace_start"() <{level = 10 : i32, message = "bnm,bmd->bnd"}> : () -> ()
    %cst_41 = arith.constant dense<0.000000e+00> : vector<8x16x128xf32>
    %48 = tpu.matmul %42, %47, %cst_41 {dimension_numbers = #tpu.dot_dimension_numbers<[2], [1], [1], [2], [0, 0, 0, 1, 1, 2], [0], [0]>} : vector<8x16x16xbf16>, vector<8x16x128xbf16>, vector<8x16x128xf32> -> vector<8x16x128xf32>
    "tpu.trace_stop"() : () -> ()
    %49 = vector.shape_cast %48 : vector<8x16x128xf32> to vector<128x128xf32>
    %50 = arith.truncf %49 : vector<128x128xf32> to vector<128x128xbf16>
    %cst_42 = arith.constant dense<0.000000e+00> : vector<128x128xf32>
    %51 = tpu.matmul %50, %36, %cst_42 {dimension_numbers = #tpu.dot_dimension_numbers<[1], [0], [0], [1], [0, 0, 1, 1], [], []>} : vector<128x128xbf16>, vector<128x128xbf16>, vector<128x128xf32> -> vector<128x128xf32>
    %cst_43 = arith.constant dense<0.000000e+00> : vector<128x128xf32>
    %52 = tpu.matmul %50, %37, %cst_43 {dimension_numbers = #tpu.dot_dimension_numbers<[1], [0], [0], [1], [0, 0, 1, 1], [], []>} : vector<128x128xbf16>, vector<128x128xbf16>, vector<128x128xf32> -> vector<128x128xf32>
    %53 = vector.broadcast %38 : vector<1x128xf32> to vector<128x128xf32>
    %54 = arith.addf %52, %53 : vector<128x128xf32>
    %55 = vector.shape_cast %51 : vector<128x128xf32> to vector<8x16x128xf32>
    %56 = vector.shape_cast %54 : vector<128x128xf32> to vector<8x16x128xf32>
    %c0_44 = arith.constant 0 : index
    %c0_45 = arith.constant 0 : index
    %c0_46 = arith.constant 0 : index
    %57 = vector.load %arg16[%c0_44, %c0_45, %c0_46] : memref<8x16x128xf32, #tpu.memory_space<vmem>>, vector<8x16x128xf32>
    tpu.vector_store %arg16[%c0_44, %c0_45, %c0_46], %55 {strides = array<i32>} : memref<8x16x128xf32, #tpu.memory_space<vmem>>, vector<8x16x128xf32>,
    %c0_47 = arith.constant 0 : index
    %c0_48 = arith.constant 0 : index
    %c0_49 = arith.constant 0 : index
    %58 = vector.load %arg17[%c0_47, %c0_48, %c0_49] : memref<8x16x128xf32, #tpu.memory_space<vmem>>, vector<8x16x128xf32>
    tpu.vector_store %arg17[%c0_47, %c0_48, %c0_49], %56 {strides = array<i32>} : memref<8x16x128xf32, #tpu.memory_space<vmem>>, vector<8x16x128xf32>,
    return
  }
  func.func @transform_0(%arg0: i32) -> (i32, i32, i32) {
    %c0_i32 = arith.constant 0 : i32
    %c0_i32_0 = arith.constant 0 : i32
    %c0_i32_1 = arith.constant 0 : i32
    return %arg0, %c0_i32, %c0_i32_0 : i32, i32, i32
  }
  func.func @transform_1(%arg0: i32) -> (i32, i32, i32) {
    %c0_i32 = arith.constant 0 : i32
    %c0_i32_0 = arith.constant 0 : i32
    %c0_i32_1 = arith.constant 0 : i32
    return %arg0, %c0_i32, %c0_i32_0 : i32, i32, i32
  }
  func.func @transform_2(%arg0: i32) -> (i32, i32) {
    %c0_i32 = arith.constant 0 : i32
    %c0_i32_0 = arith.constant 0 : i32
    %c0_i32_1 = arith.constant 0 : i32
    return %c0_i32, %c0_i32_0 : i32, i32
  }
  func.func @transform_3(%arg0: i32) -> (i32, i32) {
    %c0_i32 = arith.constant 0 : i32
    %c0_i32_0 = arith.constant 0 : i32
    %c0_i32_1 = arith.constant 0 : i32
    return %c0_i32, %c0_i32_0 : i32, i32
  }
  func.func @transform_4(%arg0: i32) -> (i32, i32) {
    %c0_i32 = arith.constant 0 : i32
    %c0_i32_0 = arith.constant 0 : i32
    %c0_i32_1 = arith.constant 0 : i32
    return %c0_i32, %c0_i32_0 : i32, i32
  }
  func.func @transform_5(%arg0: i32) -> (i32, i32) {
    %c0_i32 = arith.constant 0 : i32
    %c0_i32_0 = arith.constant 0 : i32
    %c0_i32_1 = arith.constant 0 : i32
    return %c0_i32, %c0_i32_0 : i32, i32
  }
  func.func @transform_6(%arg0: i32) -> (i32, i32) {
    %c0_i32 = arith.constant 0 : i32
    %c0_i32_0 = arith.constant 0 : i32
    %c0_i32_1 = arith.constant 0 : i32
    return %c0_i32, %c0_i32_0 : i32, i32
  }
  func.func @transform_7(%arg0: i32) -> (i32, i32) {
    %c0_i32 = arith.constant 0 : i32
    %c0_i32_0 = arith.constant 0 : i32
    %c0_i32_1 = arith.constant 0 : i32
    return %c0_i32, %c0_i32_0 : i32, i32
  }
  func.func @transform_8(%arg0: i32) -> (i32, i32) {
    %c0_i32 = arith.constant 0 : i32
    %c0_i32_0 = arith.constant 0 : i32
    %c0_i32_1 = arith.constant 0 : i32
    return %c0_i32, %c0_i32_0 : i32, i32
  }
  func.func @transform_9(%arg0: i32) -> (i32, i32) {
    %c0_i32 = arith.constant 0 : i32
    %c0_i32_0 = arith.constant 0 : i32
    %c0_i32_1 = arith.constant 0 : i32
    return %c0_i32, %c0_i32_0 : i32, i32
  }
  func.func @transform_10(%arg0: i32) -> (i32, i32) {
    %c0_i32 = arith.constant 0 : i32
    %c0_i32_0 = arith.constant 0 : i32
    %c0_i32_1 = arith.constant 0 : i32
    return %c0_i32, %c0_i32_0 : i32, i32
  }
  func.func @transform_11(%arg0: i32) -> (i32, i32) {
    %c0_i32 = arith.constant 0 : i32
    %c0_i32_0 = arith.constant 0 : i32
    %c0_i32_1 = arith.constant 0 : i32
    return %c0_i32, %c0_i32_0 : i32, i32
  }
  func.func @transform_12(%arg0: i32) -> (i32, i32) {
    %c0_i32 = arith.constant 0 : i32
    %c0_i32_0 = arith.constant 0 : i32
    %c0_i32_1 = arith.constant 0 : i32
    return %c0_i32, %c0_i32_0 : i32, i32
  }
  func.func @transform_13(%arg0: i32) -> (i32, i32, i32) {
    %c0_i32 = arith.constant 0 : i32
    %c0_i32_0 = arith.constant 0 : i32
    %c0_i32_1 = arith.constant 0 : i32
    return %arg0, %c0_i32, %c0_i32_0 : i32, i32, i32
  }
  func.func @transform_14(%arg0: i32) -> (i32, i32, i32) {
    %c0_i32 = arith.constant 0 : i32
    %c0_i32_0 = arith.constant 0 : i32
    %c0_i32_1 = arith.constant 0 : i32
    return %arg0, %c0_i32, %c0_i32_0 : i32, i32, i32
  }
  func.func @transform_15(%arg0: i32) -> (i32, i32, i32) {
    %c0_i32 = arith.constant 0 : i32
    %c0_i32_0 = arith.constant 0 : i32
    %c0_i32_1 = arith.constant 0 : i32
    return %arg0, %c0_i32, %c0_i32_0 : i32, i32, i32
  }
  func.func @transform_16(%arg0: i32) -> (i32, i32, i32) {
    %c0_i32 = arith.constant 0 : i32
    %c0_i32_0 = arith.constant 0 : i32
    %c0_i32_1 = arith.constant 0 : i32
    return %arg0, %c0_i32, %c0_i32_0 : i32, i32, i32
  }
}

</mosaic_0001>

<llo_original>
// kernel: tpu_custom_call.1
$region0: #{tpu_custom_call.1}
  #allocation0 [shape = 'u32[]', space=smem, size = 0x4, offset = 0x4, fixed_abs, tag = 'smem constant byte address 0x4 - core index']
  #allocation1 [shape = 'u32[144,128]{1,0:T(1,128)}', space=vmem, size = 0x12000, scoped, tag = 'internal scratch']
  %s0 = inlined_call_operand.hbm [shape: bf16[8,16,32], index: 0, kind: input, shape index: {}]
  %s1 = inlined_call_operand.hbm [shape: bf16[8,16,24], index: 1, kind: input, shape index: {}]
  %s2 = inlined_call_operand.hbm [shape: bf16[16,16], index: 2, kind: input, shape index: {}]
  %s3 = inlined_call_operand.vmem [shape: bf16[16,16], index: 3, kind: input, shape index: {}]
  %s4 = inlined_call_operand.hbm [shape: bf16[32,128], index: 4, kind: input, shape index: {}]
  %s5 = inlined_call_operand.hbm [shape: bf16[128,128], index: 5, kind: input, shape index: {}]
  %s6 = inlined_call_operand.hbm [shape: bf16[128,128], index: 6, kind: input, shape index: {}]
  %s7 = inlined_call_operand.vmem [shape: f32[1,128], index: 7, kind: input, shape index: {}]
  %s8 = inlined_call_operand.vmem [shape: bf16[24,128], index: 8, kind: input, shape index: {}]
  %s9 = inlined_call_operand.hbm [shape: bf16[128,128], index: 9, kind: input, shape index: {}]
  %s10 = inlined_call_operand.hbm [shape: bf16[128,128], index: 10, kind: input, shape index: {}]
  %s11 = inlined_call_operand.vmem [shape: f32[1,128], index: 11, kind: input, shape index: {}]
  %s12 = inlined_call_operand.vmem [shape: f32[1,128], index: 12, kind: input, shape index: {}]
  %s13 = inlined_call_operand.hbm [shape: f32[8,16,128], index: 13, kind: output, shape index: {0}]
  %s14 = inlined_call_operand.hbm [shape: f32[8,16,128], index: 14, kind: output, shape index: {1}]
  %s15 = inlined_call_operand.hbm [shape: f32[8,16,128], index: 15, kind: output, shape index: {2}]
  %s16 = inlined_call_operand.hbm [shape: f32[8,16,128], index: 16, kind: output, shape index: {3}]
  %17 = xla_tuple %s13, %s14, %s15, %s16
  %s18 = sld [smem:[#allocation0]]
  $region118: #{tpu_custom_call.1} parent=0
    _
  %s20 = ssub.s32 1, %s18
  %s21 = scalar_select 0, %s20, %s18
  $region1: #{tpu_custom_call.1} parent=0
    #allocation2 [shape = 'u8[32768]{0}', space=vmem, size = 0x8000, scoped, tag = 'input window, operand 0, single buffered']
    #allocation3 [shape = 's32[1]{0}', space=sflag, size = 0x4, scoped, tag = 'scoped memory for tpu_custom_call.1']
    #allocation4 [shape = 's32[1]{0}', space=sflag, size = 0x4, scoped, tag = 'scoped memory for tpu_custom_call.1']
    #allocation5 [shape = 'u8[32768]{0}', space=vmem, size = 0x8000, scoped, tag = 'input window, operand 1, single buffered']
    #allocation6 [shape = 's32[1]{0}', space=sflag, size = 0x4, scoped, tag = 'scoped memory for tpu_custom_call.1']
    #allocation7 [shape = 'u8[4096]{0}', space=vmem, size = 0x1000, scoped, tag = 'input window, operand 2, single buffered']
    #allocation8 [shape = 'u8[8192]{0}', space=vmem, size = 0x2000, scoped, tag = 'input window, operand 4, single buffered']
    #allocation9 [shape = 's32[1]{0}', space=sflag, size = 0x4, scoped, tag = 'scoped memory for tpu_custom_call.1']
    #allocation10 [shape = 'u8[32768]{0}', space=vmem, size = 0x8000, scoped, tag = 'input window, operand 5, single buffered']
    #allocation11 [shape = 'u8[32768]{0}', space=vmem, size = 0x8000, scoped, tag = 'input window, operand 6, single buffered']
    #allocation12 [shape = 's32[1]{0}', space=sflag, size = 0x4, scoped, tag = 'scoped memory for tpu_custom_call.1']
    #allocation13 [shape = 'u8[32768]{0}', space=vmem, size = 0x8000, scoped, tag = 'input window, operand 9, single buffered']
    #allocation14 [shape = 'u8[32768]{0}', space=vmem, size = 0x8000, scoped, tag = 'input window, operand 10, single buffered']
    #allocation15 [shape = 's32[1]{0}', space=sflag, size = 0x4, scoped, tag = 'scoped memory for tpu_custom_call.1']
    #allocation16 [shape = 'u8[65536]{0}', space=vmem, size = 0x10000, scoped, tag = 'output window, operand 0, single buffered']
    #allocation17 [shape = 'u8[65536]{0}', space=vmem, size = 0x10000, scoped, tag = 'output window, operand 1, single buffered']
    #allocation18 [shape = 's32[1]{0}', space=sflag, size = 0x4, scoped, tag = 'scoped memory for tpu_custom_call.1']
    #allocation19 [shape = 'u8[65536]{0}', space=vmem, size = 0x10000, scoped, tag = 'output window, operand 2, single buffered']
    #allocation20 [shape = 'u8[65536]{0}', space=vmem, size = 0x10000, scoped, tag = 'output window, operand 3, single buffered']
    #allocation21 [shape = 's32[1]{0}', space=sflag, size = 0x4, scoped, tag = 'scoped memory for tpu_custom_call.1']
    %22 = vsyncpa [#allocation3], 0
    %23 = vsyncpa [#allocation6], 0
    %24 = vsyncpa [#allocation9], 0
    %25 = vsyncpa [#allocation12], 0
    %26 = vsyncpa [#allocation15], 0
    %27 = vsyncpa [#allocation4], 0
    %28 = vsyncpa [#allocation18], 0
    %29 = vsyncpa [#allocation21], 0
    // Predicated region
    $region2: #{tpu_custom_call.1} parent=1 // pred_check
      _
    $region3: #{tpu_custom_call.1} parent=1 // pred_check_branch
      %31 = sbr.rel (0) target = $region5
    $region4: #{tpu_custom_call.1} parent=1 // pred_region
      %s33 = ssub.s32 1024, 1024
      %34 = vsyncadd [#allocation3], %s33
      %s35 = sshll.u32 [#allocation2], 4
      %s36 = int_to_ptr.vmem [resolvable:$true] %s35
      %41 = dma.hbm_to_vmem [thread:$0]  %s0, 1024, %s36, [#allocation3], 64, 64, 4
    $region5: #{tpu_custom_call.1} parent=1 // pred_fallthru
      _
    // Predicated region
    $region6: #{tpu_custom_call.1} parent=1 // pred_check
      _
    $region7: #{tpu_custom_call.1} parent=1 // pred_check_branch
      %43 = sbr.rel (0) target = $region9
    $region8: #{tpu_custom_call.1} parent=1 // pred_region
      %s45 = ssub.s32 1024, 1024
      %46 = vsyncadd [#allocation6], %s45
      %s47 = sshll.u32 [#allocation5], 4
      %s48 = int_to_ptr.vmem [resolvable:$true] %s47
      %53 = dma.hbm_to_vmem [thread:$0]  %s1, 1024, %s48, [#allocation6], 64, 64, 4
    $region9: #{tpu_custom_call.1} parent=1 // pred_fallthru
      _
    // Predicated region
    $region10: #{tpu_custom_call.1} parent=1 // pred_check
      _
    $region11: #{tpu_custom_call.1} parent=1 // pred_check_branch
      %55 = sbr.rel (0) target = $region13
    $region12: #{tpu_custom_call.1} parent=1 // pred_region
      %s57 = ssub.s32 128, 128
      %58 = vsyncadd [#allocation6], %s57
      %s59 = sshll.u32 [#allocation7], 4
      %s60 = int_to_ptr.vmem [resolvable:$true] %s59
      %65 = dma.hbm_to_vmem [thread:$0]  %s2, 128, %s60, [#allocation6], 64, 64, 4
    $region13: #{tpu_custom_call.1} parent=1 // pred_fallthru
      _
    // Predicated region
    $region14: #{tpu_custom_call.1} parent=1 // pred_check
      _
    $region15: #{tpu_custom_call.1} parent=1 // pred_check_branch
      %67 = sbr.rel (0) target = $region17
    $region16: #{tpu_custom_call.1} parent=1 // pred_region
      _
    $region17: #{tpu_custom_call.1} parent=1 // pred_fallthru
      _
    // Predicated region
    $region18: #{tpu_custom_call.1} parent=1 // pred_check
      _
    $region19: #{tpu_custom_call.1} parent=1 // pred_check_branch
      %69 = sbr.rel (0) target = $region21
    $region20: #{tpu_custom_call.1} parent=1 // pred_region
      %s71 = ssub.s32 256, 256
      %72 = vsyncadd [#allocation9], %s71
      %s73 = sshll.u32 [#allocation8], 4
      %s74 = int_to_ptr.vmem [resolvable:$true] %s73
      %79 = dma.hbm_to_vmem [thread:$0]  %s4, 256, %s74, [#allocation9], 64, 64, 4
    $region21: #{tpu_custom_call.1} parent=1 // pred_fallthru
      _
    // Predicated region
    $region22: #{tpu_custom_call.1} parent=1 // pred_check
      _
    $region23: #{tpu_custom_call.1} parent=1 // pred_check_branch
      %81 = sbr.rel (0) target = $region25
    $region24: #{tpu_custom_call.1} parent=1 // pred_region
      %s83 = ssub.s32 1024, 1024
      %84 = vsyncadd [#allocation9], %s83
      %s85 = sshll.u32 [#allocation10], 4
      %s86 = int_to_ptr.vmem [resolvable:$true] %s85
      %91 = dma.hbm_to_vmem [thread:$0]  %s5, 1024, %s86, [#allocation9], 64, 64, 4
    $region25: #{tpu_custom_call.1} parent=1 // pred_fallthru
      _
    // Predicated region
    $region26: #{tpu_custom_call.1} parent=1 // pred_check
      _
    $region27: #{tpu_custom_call.1} parent=1 // pred_check_branch
      %93 = sbr.rel (0) target = $region29
    $region28: #{tpu_custom_call.1} parent=1 // pred_region
      %s95 = ssub.s32 1024, 1024
      %96 = vsyncadd [#allocation12], %s95
      %s97 = sshll.u32 [#allocation11], 4
      %s98 = int_to_ptr.vmem [resolvable:$true] %s97
      %103 = dma.hbm_to_vmem [thread:$0]  %s6, 1024, %s98, [#allocation12], 64, 64, 4
    $region29: #{tpu_custom_call.1} parent=1 // pred_fallthru
      _
    // Predicated region
    $region30: #{tpu_custom_call.1} parent=1 // pred_check
      _
    $region31: #{tpu_custom_call.1} parent=1 // pred_check_branch
      %105 = sbr.rel (0) target = $region33
    $region32: #{tpu_custom_call.1} parent=1 // pred_region
      _
    $region33: #{tpu_custom_call.1} parent=1 // pred_fallthru
      _
    // Predicated region
    $region34: #{tpu_custom_call.1} parent=1 // pred_check
      _
    $region35: #{tpu_custom_call.1} parent=1 // pred_check_branch
      %107 = sbr.rel (0) target = $region37
    $region36: #{tpu_custom_call.1} parent=1 // pred_region
      _
    $region37: #{tpu_custom_call.1} parent=1 // pred_fallthru
      _
    // Predicated region
    $region38: #{tpu_custom_call.1} parent=1 // pred_check
      _
    $region39: #{tpu_custom_call.1} parent=1 // pred_check_branch
      %109 = sbr.rel (0) target = $region41
    $region40: #{tpu_custom_call.1} parent=1 // pred_region
      %s111 = ssub.s32 1024, 1024
      %112 = vsyncadd [#allocation12], %s111
      %s113 = sshll.u32 [#allocation13], 4
      %s114 = int_to_ptr.vmem [resolvable:$true] %s113
      %119 = dma.hbm_to_vmem [thread:$0]  %s9, 1024, %s114, [#allocation12], 64, 64, 4
    $region41: #{tpu_custom_call.1} parent=1 // pred_fallthru
      _
    // Predicated region
    $region42: #{tpu_custom_call.1} parent=1 // pred_check
      _
    $region43: #{tpu_custom_call.1} parent=1 // pred_check_branch
      %121 = sbr.rel (0) target = $region45
    $region44: #{tpu_custom_call.1} parent=1 // pred_region
      %s123 = ssub.s32 1024, 1024
      %124 = vsyncadd [#allocation15], %s123
      %s125 = sshll.u32 [#allocation14], 4
      %s126 = int_to_ptr.vmem [resolvable:$true] %s125
      %131 = dma.hbm_to_vmem [thread:$0]  %s10, 1024, %s126, [#allocation15], 64, 64, 4
    $region45: #{tpu_custom_call.1} parent=1 // pred_fallthru
      _
    // Predicated region
    $region46: #{tpu_custom_call.1} parent=1 // pred_check
      _
    $region47: #{tpu_custom_call.1} parent=1 // pred_check_branch
      %133 = sbr.rel (0) target = $region49
    $region48: #{tpu_custom_call.1} parent=1 // pred_region
      _
    $region49: #{tpu_custom_call.1} parent=1 // pred_fallthru
      _
    // Predicated region
    $region50: #{tpu_custom_call.1} parent=1 // pred_check
      _
    $region51: #{tpu_custom_call.1} parent=1 // pred_check_branch
      %135 = sbr.rel (0) target = $region53
    $region52: #{tpu_custom_call.1} parent=1 // pred_region
      _
    $region53: #{tpu_custom_call.1} parent=1 // pred_fallthru
      _
    // Predicated region
    $region54: #{tpu_custom_call.1} parent=1 // pred_check
      _
    $region55: #{tpu_custom_call.1} parent=1 // pred_check_branch
      %137 = sbr.rel (0) target = $region57
    $region56: #{tpu_custom_call.1} parent=1 // pred_region
      %138 = dma.done [#allocation3], 1024
    $region57: #{tpu_custom_call.1} parent=1 // pred_fallthru
      _
    // Predicated region
    $region58: #{tpu_custom_call.1} parent=1 // pred_check
      _
    $region59: #{tpu_custom_call.1} parent=1 // pred_check_branch
      %140 = sbr.rel (0) target = $region61
    $region60: #{tpu_custom_call.1} parent=1 // pred_region
      %141 = dma.done [#allocation6], 1024
    $region61: #{tpu_custom_call.1} parent=1 // pred_fallthru
      _
    // Predicated region
    $region62: #{tpu_custom_call.1} parent=1 // pred_check
      _
    $region63: #{tpu_custom_call.1} parent=1 // pred_check_branch
      %143 = sbr.rel (0) target = $region65
    $region64: #{tpu_custom_call.1} parent=1 // pred_region
      %144 = dma.done [#allocation6], 128
    $region65: #{tpu_custom_call.1} parent=1 // pred_fallthru
      _
    // Predicated region
    $region66: #{tpu_custom_call.1} parent=1 // pred_check
      _
    $region67: #{tpu_custom_call.1} parent=1 // pred_check_branch
      %146 = sbr.rel (0) target = $region69
    $region68: #{tpu_custom_call.1} parent=1 // pred_region
      %147 = dma.done [#allocation9], 256
    $region69: #{tpu_custom_call.1} parent=1 // pred_fallthru
      _
    // Predicated region
    $region70: #{tpu_custom_call.1} parent=1 // pred_check
      _
    $region71: #{tpu_custom_call.1} parent=1 // pred_check_branch
      %149 = sbr.rel (0) target = $region73
    $region72: #{tpu_custom_call.1} parent=1 // pred_region
      %150 = dma.done [#allocation9], 1024
    $region73: #{tpu_custom_call.1} parent=1 // pred_fallthru
      _
    // Predicated region
    $region74: #{tpu_custom_call.1} parent=1 // pred_check
      _
    $region75: #{tpu_custom_call.1} parent=1 // pred_check_branch
      %152 = sbr.rel (0) target = $region77
    $region76: #{tpu_custom_call.1} parent=1 // pred_region
      %153 = dma.done [#allocation12], 1024
    $region77: #{tpu_custom_call.1} parent=1 // pred_fallthru
      _
    // Predicated region
    $region78: #{tpu_custom_call.1} parent=1 // pred_check
      _
    $region79: #{tpu_custom_call.1} parent=1 // pred_check_branch
      %155 = sbr.rel (0) target = $region81
    $region80: #{tpu_custom_call.1} parent=1 // pred_region
      %156 = dma.done [#allocation12], 1024
    $region81: #{tpu_custom_call.1} parent=1 // pred_fallthru
      _
    // Predicated region
    $region82: #{tpu_custom_call.1} parent=1 // pred_check
      _
    $region83: #{tpu_custom_call.1} parent=1 // pred_check_branch
      %158 = sbr.rel (0) target = $region85
    $region84: #{tpu_custom_call.1} parent=1 // pred_region
      %159 = dma.done [#allocation15], 1024
    $region85: #{tpu_custom_call.1} parent=1 // pred_fallthru
      _
    %v161 = vld [vmem:[#allocation2] sm:$0xf]
    %v162 = vld [vmem:[#allocation2 + $0x4] sm:$0xf]
    %v163 = vld [vmem:[#allocation2 + $0x8] sm:$0xf]
    %v164 = vld [vmem:[#allocation2 + $0xc] sm:$0xf]
    %v165 = vld [vmem:[#allocation2 + $0x10] sm:$0xf]
    %v166 = vld [vmem:[#allocation2 + $0x14] sm:$0xf]
    %v167 = vld [vmem:[#allocation2 + $0x18] sm:$0xf]
    %v168 = vld [vmem:[#allocation2 + $0x1c] sm:$0xf]
    %v169 = vld [vmem:[#allocation2 + $0x20] sm:$0xf]
    %v170 = vld [vmem:[#allocation2 + $0x24] sm:$0xf]
    %v171 = vld [vmem:[#allocation2 + $0x28] sm:$0xf]
    %v172 = vld [vmem:[#allocation2 + $0x2c] sm:$0xf]
    %v173 = vld [vmem:[#allocation2 + $0x30] sm:$0xf]
    %v174 = vld [vmem:[#allocation2 + $0x34] sm:$0xf]
    %v175 = vld [vmem:[#allocation2 + $0x38] sm:$0xf]
    %v176 = vld [vmem:[#allocation2 + $0x3c] sm:$0xf]
    %v177 = vld [vmem:[#allocation8] sm:$0xf]
    %v178 = vld [vmem:[#allocation8 + $0x4] sm:$0xf]
    %v179 = vld [vmem:[#allocation8 + $0x8] sm:$0xf]
    %v180 = vld [vmem:[#allocation8 + $0xc] sm:$0xf]
    %v197 = vunpack.c.l.b16 %v161
    %v198 = vunpack.c.l.b16 %v162
    %v199 = vunpack.c.l.b16 %v163
    %v200 = vunpack.c.l.b16 %v164
    %v201 = vunpack.c.l.b16 %v165
    %v202 = vunpack.c.l.b16 %v166
    %v203 = vunpack.c.l.b16 %v167
    %v204 = vunpack.c.l.b16 %v168
    %v205 = vunpack.c.l.b16 %v169
    %v206 = vunpack.c.l.b16 %v170
    %v207 = vunpack.c.l.b16 %v171
    %v208 = vunpack.c.l.b16 %v172
    %v209 = vunpack.c.l.b16 %v173
    %v210 = vunpack.c.l.b16 %v174
    %v211 = vunpack.c.l.b16 %v175
    %v212 = vunpack.c.l.b16 %v176
    %v213 = vpack.c.b16 %v198, %v197
    %v214 = vpack.c.b16 %v200, %v199
    %v215 = vpack.c.b16 %v202, %v201
    %v216 = vpack.c.b16 %v204, %v203
    %v217 = vpack.c.b16 %v206, %v205
    %v218 = vpack.c.b16 %v208, %v207
    %v219 = vpack.c.b16 %v210, %v209
    %v220 = vpack.c.b16 %v212, %v211
    %v225 = vunpack.c.l.b16 %v177
    %v226 = vunpack.c.l.b16 %v178
    %v227 = vunpack.c.l.b16 %v179
    %v228 = vunpack.c.l.b16 %v180
    %v229 = vpack.c.b16 %v226, %v225
    %v230 = vpack.c.b16 %v228, %v227
    %vm233 = vcmask 261120
    %v235 = vsel %vm233, %v213, 0
    %v238 = vsel %vm233, %v214, 0
    %v241 = vsel %vm233, %v215, 0
    %v244 = vsel %vm233, %v216, 0
    %v247 = vsel %vm233, %v217, 0
    %v250 = vsel %vm233, %v218, 0
    %v253 = vsel %vm233, %v219, 0
    %v256 = vsel %vm233, %v220, 0
    %258 = vmatprep.subr.bf16.mxu0 0
    %259 = vmatpush1.bf16.msra.mxu0 %v229
    %260 = vmatprep.subr.bf16.mxu0 0
    %261 = vmatpush1.bf16.msra.mxu0 %v230
    %262 = vmatprep.subr.bf16.mxu0 0
    %263 = vmatpush1.bf16.msra.mxu0 0
    %264 = vmatprep.subr.bf16.mxu0 0
    %265 = vmatpush1.bf16.msra.mxu0 0
    %266 = vmatprep.subr.bf16.mxu0 0
    %267 = vmatpush1.bf16.msra.mxu0 0
    %268 = vmatprep.subr.bf16.mxu0 0
    %269 = vmatpush1.bf16.msra.mxu0 0
    %270 = vmatprep.subr.bf16.mxu0 0
    %271 = vmatpush1.bf16.msra.mxu0 0
    %272 = vmatprep.subr.bf16.mxu0 0
    %273 = vmatpush1.bf16.msra.mxu0 0
    %274 = vmatprep.subr.bf16.mxu0 0
    %275 = vmatpush1.bf16.msra.mxu0 0
    %276 = vmatprep.subr.bf16.mxu0 0
    %277 = vmatpush1.bf16.msra.mxu0 0
    %278 = vmatprep.subr.bf16.mxu0 0
    %279 = vmatpush1.bf16.msra.mxu0 0
    %280 = vmatprep.subr.bf16.mxu0 0
    %281 = vmatpush1.bf16.msra.mxu0 0
    %282 = vmatprep.subr.bf16.mxu0 0
    %283 = vmatpush1.bf16.msra.mxu0 0
    %284 = vmatprep.subr.bf16.mxu0 0
    %285 = vmatpush1.bf16.msra.mxu0 0
    %286 = vmatprep.subr.bf16.mxu0 0
    %287 = vmatpush1.bf16.msra.mxu0 0
    %288 = vmatprep.subr.bf16.mxu0 0
    %289 = vmatpush1.bf16.msra.mxu0 0
    %290 = vmatprep.mubr.bf16.mxu0 0
    %291 = vmatmul.mubr.bf16.gmra.mrb[0].mxu0 %v235
    %v292 = vpop.f32.mrb[0].mxu0
    %v293 = vadd.f32 0.0, %v292
    %v294 = vpop.f32.mrb[0].mxu0
    %v295 = vpop.f32.mrb[0].mxu0
    %v296 = vadd.f32 0.0, %v295
    %v297 = vpop.f32.mrb[0].mxu0
    %298 = vmatprep.mubr.bf16.mxu0 0
    %299 = vmatmul.mubr.bf16.gmra.mrb[0].mxu0 %v238
    %v300 = vpop.f32.mrb[0].mxu0
    %v301 = vadd.f32 0.0, %v300
    %v302 = vpop.f32.mrb[0].mxu0
    %v303 = vpop.f32.mrb[0].mxu0
    %v304 = vadd.f32 0.0, %v303
    %v305 = vpop.f32.mrb[0].mxu0
    %306 = vmatprep.mubr.bf16.mxu0 0
    %307 = vmatmul.mubr.bf16.gmra.mrb[0].mxu0 %v241
    %v308 = vpop.f32.mrb[0].mxu0
    %v309 = vadd.f32 0.0, %v308
    %v310 = vpop.f32.mrb[0].mxu0
    %v311 = vpop.f32.mrb[0].mxu0
    %v312 = vadd.f32 0.0, %v311
    %v313 = vpop.f32.mrb[0].mxu0
    %314 = vmatprep.mubr.bf16.mxu0 0
    %315 = vmatmul.mubr.bf16.gmra.mrb[0].mxu0 %v244
    %v316 = vpop.f32.mrb[0].mxu0
    %v317 = vadd.f32 0.0, %v316
    %v318 = vpop.f32.mrb[0].mxu0
    %v319 = vpop.f32.mrb[0].mxu0
    %v320 = vadd.f32 0.0, %v319
    %v321 = vpop.f32.mrb[0].mxu0
    %322 = vmatprep.mubr.bf16.mxu0 0
    %323 = vmatmul.mubr.bf16.gmra.mrb[0].mxu0 %v247
    %v324 = vpop.f32.mrb[0].mxu0
    %v325 = vadd.f32 0.0, %v324
    %v326 = vpop.f32.mrb[0].mxu0
    %v327 = vpop.f32.mrb[0].mxu0
    %v328 = vadd.f32 0.0, %v327
    %v329 = vpop.f32.mrb[0].mxu0
    %330 = vmatprep.mubr.bf16.mxu0 0
    %331 = vmatmul.mubr.bf16.gmra.mrb[0].mxu0 %v250
    %v332 = vpop.f32.mrb[0].mxu0
    %v333 = vadd.f32 0.0, %v332
    %v334 = vpop.f32.mrb[0].mxu0
    %v335 = vpop.f32.mrb[0].mxu0
    %v336 = vadd.f32 0.0, %v335
    %v337 = vpop.f32.mrb[0].mxu0
    %338 = vmatprep.mubr.bf16.mxu0 0
    %339 = vmatmul.mubr.bf16.gmra.mrb[0].mxu0 %v253
    %v340 = vpop.f32.mrb[0].mxu0
    %v341 = vadd.f32 0.0, %v340
    %v342 = vpop.f32.mrb[0].mxu0
    %v343 = vpop.f32.mrb[0].mxu0
    %v344 = vadd.f32 0.0, %v343
    %v345 = vpop.f32.mrb[0].mxu0
    %346 = vmatprep.mubr.bf16.mxu0 0
    %347 = vmatmul.mubr.bf16.gmra.mrb[0].mxu0 %v256
    %v348 = vpop.f32.mrb[0].mxu0
    %v349 = vadd.f32 0.0, %v348
    %v350 = vpop.f32.mrb[0].mxu0
    %v351 = vpop.f32.mrb[0].mxu0
    %v352 = vadd.f32 0.0, %v351
    %v353 = vpop.f32.mrb[0].mxu0
    %354 = vdwg.mxu0
    %v355 = vld [vmem:[#allocation7] sm:$0xf]
    %v356 = vld [vmem:[#allocation7 + $0x4] sm:$0xf]
    %v357 = vld [vmem:[#allocation10] sm:$0xf]
    %v358 = vld [vmem:[#allocation10 + $0x4] sm:$0xf]
    %v359 = vld [vmem:[#allocation10 + $0x8] sm:$0xf]
    %v360 = vld [vmem:[#allocation10 + $0xc] sm:$0xf]
    %v361 = vld [vmem:[#allocation10 + $0x10] sm:$0xf]
    %v362 = vld [vmem:[#allocation10 + $0x14] sm:$0xf]
    %v363 = vld [vmem:[#allocation10 + $0x18] sm:$0xf]
    %v364 = vld [vmem:[#allocation10 + $0x1c] sm:$0xf]
    %v365 = vld [vmem:[#allocation10 + $0x20] sm:$0xf]
    %v366 = vld [vmem:[#allocation10 + $0x24] sm:$0xf]
    %v367 = vld [vmem:[#allocation10 + $0x28] sm:$0xf]
    %v368 = vld [vmem:[#allocation10 + $0x2c] sm:$0xf]
    %v369 = vld [vmem:[#allocation10 + $0x30] sm:$0xf]
    %v370 = vld [vmem:[#allocation10 + $0x34] sm:$0xf]
    %v371 = vld [vmem:[#allocation10 + $0x38] sm:$0xf]
    %v372 = vld [vmem:[#allocation10 + $0x3c] sm:$0xf]
    %v373 = vld [vmem:[#allocation11] sm:$0xf]
    %v374 = vld [vmem:[#allocation11 + $0x4] sm:$0xf]
    %v375 = vld [vmem:[#allocation11 + $0x8] sm:$0xf]
    %v376 = vld [vmem:[#allocation11 + $0xc] sm:$0xf]
    %v377 = vld [vmem:[#allocation11 + $0x10] sm:$0xf]
    %v378 = vld [vmem:[#allocation11 + $0x14] sm:$0xf]
    %v379 = vld [vmem:[#allocation11 + $0x18] sm:$0xf]
    %v380 = vld [vmem:[#allocation11 + $0x1c] sm:$0xf]
    %v381 = vld [vmem:[#allocation11 + $0x20] sm:$0xf]
    %v382 = vld [vmem:[#allocation11 + $0x24] sm:$0xf]
    %v383 = vld [vmem:[#allocation11 + $0x28] sm:$0xf]
    %v384 = vld [vmem:[#allocation11 + $0x2c] sm:$0xf]
    %v385 = vld [vmem:[#allocation11 + $0x30] sm:$0xf]
    %v386 = vld [vmem:[#allocation11 + $0x34] sm:$0xf]
    %v387 = vld [vmem:[#allocation11 + $0x38] sm:$0xf]
    %v388 = vld [vmem:[#allocation11 + $0x3c] sm:$0xf]
    %v389 = vld [vmem:[%s7] sm:$0x1]
    %v390 = vpack.c.bf16 %v296, %v293
    %v391 = vpack.c.bf16 %v304, %v301
    %v392 = vpack.c.bf16 %v312, %v309
    %v393 = vpack.c.bf16 %v320, %v317
    %v394 = vpack.c.bf16 %v328, %v325
    %v395 = vpack.c.bf16 %v336, %v333
    %v396 = vpack.c.bf16 %v344, %v341
    %v397 = vpack.c.bf16 %v352, %v349
    %v400 = vunpack.c.l.b16 %v355
    %v401 = vunpack.c.l.b16 %v356
    %v402 = vpack.c.b16 %v401, %v400
    %vm403 = vcmask 130048
    %v405 = vsel %vm403, %v402, 0
    %407 = vmatprep.subr.bf16.mxu0 0
    %408 = vmatpush1.bf16.msra.mxu0 %v390
    %409 = vmatprep.subr.bf16.mxu0 0
    %410 = vmatpush1.bf16.msra.mxu0 0
    %411 = vmatprep.subr.bf16.mxu0 0
    %412 = vmatpush1.bf16.msra.mxu0 0
    %413 = vmatprep.subr.bf16.mxu0 0
    %414 = vmatpush1.bf16.msra.mxu0 0
    %415 = vmatprep.subr.bf16.mxu0 0
    %416 = vmatpush1.bf16.msra.mxu0 0
    %417 = vmatprep.subr.bf16.mxu0 0
    %418 = vmatpush1.bf16.msra.mxu0 0
    %419 = vmatprep.subr.bf16.mxu0 0
    %420 = vmatpush1.bf16.msra.mxu0 0
    %421 = vmatprep.subr.bf16.mxu0 0
    %422 = vmatpush1.bf16.msra.mxu0 0
    %423 = vmatprep.subr.bf16.mxu0 0
    %424 = vmatpush1.bf16.msra.mxu0 0
    %425 = vmatprep.subr.bf16.mxu0 0
    %426 = vmatpush1.bf16.msra.mxu0 0
    %427 = vmatprep.subr.bf16.mxu0 0
    %428 = vmatpush1.bf16.msra.mxu0 0
    %429 = vmatprep.subr.bf16.mxu0 0
    %430 = vmatpush1.bf16.msra.mxu0 0
    %431 = vmatprep.subr.bf16.mxu0 0
    %432 = vmatpush1.bf16.msra.mxu0 0
    %433 = vmatprep.subr.bf16.mxu0 0
    %434 = vmatpush1.bf16.msra.mxu0 0
    %435 = vmatprep.subr.bf16.mxu0 0
    %436 = vmatpush1.bf16.msra.mxu0 0
    %437 = vmatprep.subr.bf16.mxu0 0
    %438 = vmatpush1.bf16.msra.mxu0 0
    %439 = vmatprep.mubr.bf16.mxu0 0
    %440 = vmatmul.mubr.bf16.gmra.mrb[0].mxu0 %v405
    %v441 = vpop.f32.mrb[0].mxu0
    %v442 = vadd.f32 0.0, %v441
    %v443 = vpop.f32.mrb[0].mxu0
    %v444 = vpop.f32.mrb[0].mxu0
    %v445 = vadd.f32 0.0, %v444
    %v446 = vpop.f32.mrb[0].mxu0
    %447 = vdwg.mxu0
    %448 = vmatprep.subr.bf16.mxu0 0
    %449 = vmatpush1.bf16.msra.mxu0 %v391
    %450 = vmatprep.subr.bf16.mxu0 0
    %451 = vmatpush1.bf16.msra.mxu0 0
    %452 = vmatprep.subr.bf16.mxu0 0
    %453 = vmatpush1.bf16.msra.mxu0 0
    %454 = vmatprep.subr.bf16.mxu0 0
    %455 = vmatpush1.bf16.msra.mxu0 0
    %456 = vmatprep.subr.bf16.mxu0 0
    %457 = vmatpush1.bf16.msra.mxu0 0
    %458 = vmatprep.subr.bf16.mxu0 0
    %459 = vmatpush1.bf16.msra.mxu0 0
    %460 = vmatprep.subr.bf16.mxu0 0
    %461 = vmatpush1.bf16.msra.mxu0 0
    %462 = vmatprep.subr.bf16.mxu0 0
    %463 = vmatpush1.bf16.msra.mxu0 0
    %464 = vmatprep.subr.bf16.mxu0 0
    %465 = vmatpush1.bf16.msra.mxu0 0
    %466 = vmatprep.subr.bf16.mxu0 0
    %467 = vmatpush1.bf16.msra.mxu0 0
    %468 = vmatprep.subr.bf16.mxu0 0
    %469 = vmatpush1.bf16.msra.mxu0 0
    %470 = vmatprep.subr.bf16.mxu0 0
    %471 = vmatpush1.bf16.msra.mxu0 0
    %472 = vmatprep.subr.bf16.mxu0 0
    %473 = vmatpush1.bf16.msra.mxu0 0
    %474 = vmatprep.subr.bf16.mxu0 0
    %475 = vmatpush1.bf16.msra.mxu0 0
    %476 = vmatprep.subr.bf16.mxu0 0
    %477 = vmatpush1.bf16.msra.mxu0 0
    %478 = vmatprep.subr.bf16.mxu0 0
    %479 = vmatpush1.bf16.msra.mxu0 0
    %480 = vmatprep.mubr.bf16.mxu0 0
    %481 = vmatmul.mubr.bf16.gmra.mrb[0].mxu0 %v405
    %v482 = vpop.f32.mrb[0].mxu0
    %v483 = vadd.f32 0.0, %v482
    %v484 = vpop.f32.mrb[0].mxu0
    %v485 = vpop.f32.mrb[0].mxu0
    %v486 = vadd.f32 0.0, %v485
    %v487 = vpop.f32.mrb[0].mxu0
    %488 = vdwg.mxu0
    %489 = vmatprep.subr.bf16.mxu0 0
    %490 = vmatpush1.bf16.msra.mxu0 %v392
    %491 = vmatprep.subr.bf16.mxu0 0
    %492 = vmatpush1.bf16.msra.mxu0 0
    %493 = vmatprep.subr.bf16.mxu0 0
    %494 = vmatpush1.bf16.msra.mxu0 0
    %495 = vmatprep.subr.bf16.mxu0 0
    %496 = vmatpush1.bf16.msra.mxu0 0
    %497 = vmatprep.subr.bf16.mxu0 0
    %498 = vmatpush1.bf16.msra.mxu0 0
    %499 = vmatprep.subr.bf16.mxu0 0
    %500 = vmatpush1.bf16.msra.mxu0 0
    %501 = vmatprep.subr.bf16.mxu0 0
    %502 = vmatpush1.bf16.msra.mxu0 0
    %503 = vmatprep.subr.bf16.mxu0 0
    %504 = vmatpush1.bf16.msra.mxu0 0
    %505 = vmatprep.subr.bf16.mxu0 0
    %506 = vmatpush1.bf16.msra.mxu0 0
    %507 = vmatprep.subr.bf16.mxu0 0
    %508 = vmatpush1.bf16.msra.mxu0 0
    %509 = vmatprep.subr.bf16.mxu0 0
    %510 = vmatpush1.bf16.msra.mxu0 0
    %511 = vmatprep.subr.bf16.mxu0 0
    %512 = vmatpush1.bf16.msra.mxu0 0
    %513 = vmatprep.subr.bf16.mxu0 0
    %514 = vmatpush1.bf16.msra.mxu0 0
    %515 = vmatprep.subr.bf16.mxu0 0
    %516 = vmatpush1.bf16.msra.mxu0 0
    %517 = vmatprep.subr.bf16.mxu0 0
    %518 = vmatpush1.bf16.msra.mxu0 0
    %519 = vmatprep.subr.bf16.mxu0 0
    %520 = vmatpush1.bf16.msra.mxu0 0
    %521 = vmatprep.mubr.bf16.mxu0 0
    %522 = vmatmul.mubr.bf16.gmra.mrb[0].mxu0 %v405
    %v523 = vpop.f32.mrb[0].mxu0
    %v524 = vadd.f32 0.0, %v523
    %v525 = vpop.f32.mrb[0].mxu0
    %v526 = vpop.f32.mrb[0].mxu0
    %v527 = vadd.f32 0.0, %v526
    %v528 = vpop.f32.mrb[0].mxu0
    %529 = vdwg.mxu0
    %530 = vmatprep.subr.bf16.mxu0 0
    %531 = vmatpush1.bf16.msra.mxu0 %v393
    %532 = vmatprep.subr.bf16.mxu0 0
    %533 = vmatpush1.bf16.msra.mxu0 0
    %534 = vmatprep.subr.bf16.mxu0 0
    %535 = vmatpush1.bf16.msra.mxu0 0
    %536 = vmatprep.subr.bf16.mxu0 0
    %537 = vmatpush1.bf16.msra.mxu0 0
    %538 = vmatprep.subr.bf16.mxu0 0
    %539 = vmatpush1.bf16.msra.mxu0 0
    %540 = vmatprep.subr.bf16.mxu0 0
    %541 = vmatpush1.bf16.msra.mxu0 0
    %542 = vmatprep.subr.bf16.mxu0 0
    %543 = vmatpush1.bf16.msra.mxu0 0
    %544 = vmatprep.subr.bf16.mxu0 0
    %545 = vmatpush1.bf16.msra.mxu0 0
    %546 = vmatprep.subr.bf16.mxu0 0
    %547 = vmatpush1.bf16.msra.mxu0 0
    %548 = vmatprep.subr.bf16.mxu0 0
    %549 = vmatpush1.bf16.msra.mxu0 0
    %550 = vmatprep.subr.bf16.mxu0 0
    %551 = vmatpush1.bf16.msra.mxu0 0
    %552 = vmatprep.subr.bf16.mxu0 0
    %553 = vmatpush1.bf16.msra.mxu0 0
    %554 = vmatprep.subr.bf16.mxu0 0
    %555 = vmatpush1.bf16.msra.mxu0 0
    %556 = vmatprep.subr.bf16.mxu0 0
    %557 = vmatpush1.bf16.msra.mxu0 0
    %558 = vmatprep.subr.bf16.mxu0 0
    %559 = vmatpush1.bf16.msra.mxu0 0
    %560 = vmatprep.subr.bf16.mxu0 0
    %561 = vmatpush1.bf16.msra.mxu0 0
    %562 = vmatprep.mubr.bf16.mxu0 0
    %563 = vmatmul.mubr.bf16.gmra.mrb[0].mxu0 %v405
    %v564 = vpop.f32.mrb[0].mxu0
    %v565 = vadd.f32 0.0, %v564
    %v566 = vpop.f32.mrb[0].mxu0
    %v567 = vpop.f32.mrb[0].mxu0
    %v568 = vadd.f32 0.0, %v567
    %v569 = vpop.f32.mrb[0].mxu0
    %570 = vdwg.mxu0
    %571 = vmatprep.subr.bf16.mxu0 0
    %572 = vmatpush1.bf16.msra.mxu0 %v394
    %573 = vmatprep.subr.bf16.mxu0 0
    %574 = vmatpush1.bf16.msra.mxu0 0
    %575 = vmatprep.subr.bf16.mxu0 0
    %576 = vmatpush1.bf16.msra.mxu0 0
    %577 = vmatprep.subr.bf16.mxu0 0
    %578 = vmatpush1.bf16.msra.mxu0 0
    %579 = vmatprep.subr.bf16.mxu0 0
    %580 = vmatpush1.bf16.msra.mxu0 0
    %581 = vmatprep.subr.bf16.mxu0 0
    %582 = vmatpush1.bf16.msra.mxu0 0
    %583 = vmatprep.subr.bf16.mxu0 0
    %584 = vmatpush1.bf16.msra.mxu0 0
    %585 = vmatprep.subr.bf16.mxu0 0
    %586 = vmatpush1.bf16.msra.mxu0 0
    %587 = vmatprep.subr.bf16.mxu0 0
    %588 = vmatpush1.bf16.msra.mxu0 0
    %589 = vmatprep.subr.bf16.mxu0 0
    %590 = vmatpush1.bf16.msra.mxu0 0
    %591 = vmatprep.subr.bf16.mxu0 0
    %592 = vmatpush1.bf16.msra.mxu0 0
    %593 = vmatprep.subr.bf16.mxu0 0
    %594 = vmatpush1.bf16.msra.mxu0 0
    %595 = vmatprep.subr.bf16.mxu0 0
    %596 = vmatpush1.bf16.msra.mxu0 0
    %597 = vmatprep.subr.bf16.mxu0 0
    %598 = vmatpush1.bf16.msra.mxu0 0
    %599 = vmatprep.subr.bf16.mxu0 0
    %600 = vmatpush1.bf16.msra.mxu0 0
    %601 = vmatprep.subr.bf16.mxu0 0
    %602 = vmatpush1.bf16.msra.mxu0 0
    %603 = vmatprep.mubr.bf16.mxu0 0
    %604 = vmatmul.mubr.bf16.gmra.mrb[0].mxu0 %v405
    %v605 = vpop.f32.mrb[0].mxu0
    %v606 = vadd.f32 0.0, %v605
    %v607 = vpop.f32.mrb[0].mxu0
    %v608 = vpop.f32.mrb[0].mxu0
    %v609 = vadd.f32 0.0, %v608
    %v610 = vpop.f32.mrb[0].mxu0
    %611 = vdwg.mxu0
    %612 = vmatprep.subr.bf16.mxu0 0
    %613 = vmatpush1.bf16.msra.mxu0 %v395
    %614 = vmatprep.subr.bf16.mxu0 0
    %615 = vmatpush1.bf16.msra.mxu0 0
    %616 = vmatprep.subr.bf16.mxu0 0
    %617 = vmatpush1.bf16.msra.mxu0 0
    %618 = vmatprep.subr.bf16.mxu0 0
    %619 = vmatpush1.bf16.msra.mxu0 0
    %620 = vmatprep.subr.bf16.mxu0 0
    %621 = vmatpush1.bf16.msra.mxu0 0
    %622 = vmatprep.subr.bf16.mxu0 0
    %623 = vmatpush1.bf16.msra.mxu0 0
    %624 = vmatprep.subr.bf16.mxu0 0
    %625 = vmatpush1.bf16.msra.mxu0 0
    %626 = vmatprep.subr.bf16.mxu0 0
    %627 = vmatpush1.bf16.msra.mxu0 0
    %628 = vmatprep.subr.bf16.mxu0 0
    %629 = vmatpush1.bf16.msra.mxu0 0
    %630 = vmatprep.subr.bf16.mxu0 0
    %631 = vmatpush1.bf16.msra.mxu0 0
    %632 = vmatprep.subr.bf16.mxu0 0
    %633 = vmatpush1.bf16.msra.mxu0 0
    %634 = vmatprep.subr.bf16.mxu0 0
    %635 = vmatpush1.bf16.msra.mxu0 0
    %636 = vmatprep.subr.bf16.mxu0 0
    %637 = vmatpush1.bf16.msra.mxu0 0
    %638 = vmatprep.subr.bf16.mxu0 0
    %639 = vmatpush1.bf16.msra.mxu0 0
    %640 = vmatprep.subr.bf16.mxu0 0
    %641 = vmatpush1.bf16.msra.mxu0 0
    %642 = vmatprep.subr.bf16.mxu0 0
    %643 = vmatpush1.bf16.msra.mxu0 0
    %644 = vmatprep.mubr.bf16.mxu0 0
    %645 = vmatmul.mubr.bf16.gmra.mrb[0].mxu0 %v405
    %v646 = vpop.f32.mrb[0].mxu0
    %v647 = vadd.f32 0.0, %v646
    %v648 = vpop.f32.mrb[0].mxu0
    %v649 = vpop.f32.mrb[0].mxu0
    %v650 = vadd.f32 0.0, %v649
    %v651 = vpop.f32.mrb[0].mxu0
    %652 = vdwg.mxu0
    %653 = vmatprep.subr.bf16.mxu0 0
    %654 = vmatpush1.bf16.msra.mxu0 %v396
    %655 = vmatprep.subr.bf16.mxu0 0
    %656 = vmatpush1.bf16.msra.mxu0 0
    %657 = vmatprep.subr.bf16.mxu0 0
    %658 = vmatpush1.bf16.msra.mxu0 0
    %659 = vmatprep.subr.bf16.mxu0 0
    %660 = vmatpush1.bf16.msra.mxu0 0
    %661 = vmatprep.subr.bf16.mxu0 0
    %662 = vmatpush1.bf16.msra.mxu0 0
    %663 = vmatprep.subr.bf16.mxu0 0
    %664 = vmatpush1.bf16.msra.mxu0 0
    %665 = vmatprep.subr.bf16.mxu0 0
    %666 = vmatpush1.bf16.msra.mxu0 0
    %667 = vmatprep.subr.bf16.mxu0 0
    %668 = vmatpush1.bf16.msra.mxu0 0
    %669 = vmatprep.subr.bf16.mxu0 0
    %670 = vmatpush1.bf16.msra.mxu0 0
    %671 = vmatprep.subr.bf16.mxu0 0
    %672 = vmatpush1.bf16.msra.mxu0 0
    %673 = vmatprep.subr.bf16.mxu0 0
    %674 = vmatpush1.bf16.msra.mxu0 0
    %675 = vmatprep.subr.bf16.mxu0 0
    %676 = vmatpush1.bf16.msra.mxu0 0
    %677 = vmatprep.subr.bf16.mxu0 0
    %678 = vmatpush1.bf16.msra.mxu0 0
    %679 = vmatprep.subr.bf16.mxu0 0
    %680 = vmatpush1.bf16.msra.mxu0 0
    %681 = vmatprep.subr.bf16.mxu0 0
    %682 = vmatpush1.bf16.msra.mxu0 0
    %683 = vmatprep.subr.bf16.mxu0 0
    %684 = vmatpush1.bf16.msra.mxu0 0
    %685 = vmatprep.mubr.bf16.mxu0 0
    %686 = vmatmul.mubr.bf16.gmra.mrb[0].mxu0 %v405
    %v687 = vpop.f32.mrb[0].mxu0
    %v688 = vadd.f32 0.0, %v687
    %v689 = vpop.f32.mrb[0].mxu0
    %v690 = vpop.f32.mrb[0].mxu0
    %v691 = vadd.f32 0.0, %v690
    %v692 = vpop.f32.mrb[0].mxu0
    %693 = vdwg.mxu0
    %694 = vmatprep.subr.bf16.mxu0 0
    %695 = vmatpush1.bf16.msra.mxu0 %v397
    %696 = vmatprep.subr.bf16.mxu0 0
    %697 = vmatpush1.bf16.msra.mxu0 0
    %698 = vmatprep.subr.bf16.mxu0 0
    %699 = vmatpush1.bf16.msra.mxu0 0
    %700 = vmatprep.subr.bf16.mxu0 0
    %701 = vmatpush1.bf16.msra.mxu0 0
    %702 = vmatprep.subr.bf16.mxu0 0
    %703 = vmatpush1.bf16.msra.mxu0 0
    %704 = vmatprep.subr.bf16.mxu0 0
    %705 = vmatpush1.bf16.msra.mxu0 0
    %706 = vmatprep.subr.bf16.mxu0 0
    %707 = vmatpush1.bf16.msra.mxu0 0
    %708 = vmatprep.subr.bf16.mxu0 0
    %709 = vmatpush1.bf16.msra.mxu0 0
    %710 = vmatprep.subr.bf16.mxu0 0
    %711 = vmatpush1.bf16.msra.mxu0 0
    %712 = vmatprep.subr.bf16.mxu0 0
    %713 = vmatpush1.bf16.msra.mxu0 0
    %714 = vmatprep.subr.bf16.mxu0 0
    %715 = vmatpush1.bf16.msra.mxu0 0
    %716 = vmatprep.subr.bf16.mxu0 0
    %717 = vmatpush1.bf16.msra.mxu0 0
    %718 = vmatprep.subr.bf16.mxu0 0
    %719 = vmatpush1.bf16.msra.mxu0 0
    %720 = vmatprep.subr.bf16.mxu0 0
    %721 = vmatpush1.bf16.msra.mxu0 0
    %722 = vmatprep.subr.bf16.mxu0 0
    %723 = vmatpush1.bf16.msra.mxu0 0
    %724 = vmatprep.subr.bf16.mxu0 0
    %725 = vmatpush1.bf16.msra.mxu0 0
    %726 = vmatprep.mubr.bf16.mxu0 0
    %727 = vmatmul.mubr.bf16.gmra.mrb[0].mxu0 %v405
    %v728 = vpop.f32.mrb[0].mxu0
    %v729 = vadd.f32 0.0, %v728
    %v730 = vpop.f32.mrb[0].mxu0
    %v731 = vpop.f32.mrb[0].mxu0
    %v732 = vadd.f32 0.0, %v731
    %v733 = vpop.f32.mrb[0].mxu0
    %734 = vdwg.mxu0
    %v735 = vmul.f32 %v442, 0.2
    %v736 = vmul.f32 %v445, 0.2
    %v737 = vmul.f32 %v483, 0.2
    %v738 = vmul.f32 %v486, 0.2
    %v739 = vmul.f32 %v524, 0.2
    %v740 = vmul.f32 %v527, 0.2
    %v741 = vmul.f32 %v565, 0.2
    %v742 = vmul.f32 %v568, 0.2
    %v743 = vmul.f32 %v606, 0.2
    %v744 = vmul.f32 %v609, 0.2
    %v745 = vmul.f32 %v647, 0.2
    %v746 = vmul.f32 %v650, 0.2
    %v747 = vmul.f32 %v688, 0.2
    %v748 = vmul.f32 %v691, 0.2
    %v749 = vmul.f32 %v729, 0.2
    %v750 = vmul.f32 %v732, 0.2
    %v751 = vmax.f32 %v442, %v735
    %v752 = vmax.f32 %v445, %v736
    %v753 = vmax.f32 %v483, %v737
    %v754 = vmax.f32 %v486, %v738
    %v755 = vmax.f32 %v524, %v739
    %v756 = vmax.f32 %v527, %v740
    %v757 = vmax.f32 %v565, %v741
    %v758 = vmax.f32 %v568, %v742
    %v759 = vmax.f32 %v606, %v743
    %v760 = vmax.f32 %v609, %v744
    %v761 = vmax.f32 %v647, %v745
    %v762 = vmax.f32 %v650, %v746
    %v763 = vmax.f32 %v688, %v747
    %v764 = vmax.f32 %v691, %v748
    %v765 = vmax.f32 %v729, %v749
    %v766 = vmax.f32 %v732, %v750
    %v767 = vpack.c.bf16 %v752, %v751
    %v768 = vpack.c.bf16 %v754, %v753
    %v769 = vpack.c.bf16 %v756, %v755
    %v770 = vpack.c.bf16 %v758, %v757
    %v771 = vpack.c.bf16 %v760, %v759
    %v772 = vpack.c.bf16 %v762, %v761
    %v773 = vpack.c.bf16 %v764, %v763
    %v774 = vpack.c.bf16 %v766, %v765
    %775 = vmatprep.subr.bf16.mxu0 0
    %776 = vmatpush1.bf16.msra.mxu0 %v767
    %777 = vmatprep.subr.bf16.mxu0 0
    %778 = vmatpush1.bf16.msra.mxu0 0
    %779 = vmatprep.subr.bf16.mxu0 0
    %780 = vmatpush1.bf16.msra.mxu0 0
    %781 = vmatprep.subr.bf16.mxu0 0
    %782 = vmatpush1.bf16.msra.mxu0 0
    %783 = vmatprep.subr.bf16.mxu0 0
    %784 = vmatpush1.bf16.msra.mxu0 0
    %785 = vmatprep.subr.bf16.mxu0 0
    %786 = vmatpush1.bf16.msra.mxu0 0
    %787 = vmatprep.subr.bf16.mxu0 0
    %788 = vmatpush1.bf16.msra.mxu0 0
    %789 = vmatprep.subr.bf16.mxu0 0
    %790 = vmatpush1.bf16.msra.mxu0 0
    %791 = vmatprep.subr.bf16.mxu0 0
    %792 = vmatpush1.bf16.msra.mxu0 0
    %793 = vmatprep.subr.bf16.mxu0 0
    %794 = vmatpush1.bf16.msra.mxu0 0
    %795 = vmatprep.subr.bf16.mxu0 0
    %796 = vmatpush1.bf16.msra.mxu0 0
    %797 = vmatprep.subr.bf16.mxu0 0
    %798 = vmatpush1.bf16.msra.mxu0 0
    %799 = vmatprep.subr.bf16.mxu0 0
    %800 = vmatpush1.bf16.msra.mxu0 0
    %801 = vmatprep.subr.bf16.mxu0 0
    %802 = vmatpush1.bf16.msra.mxu0 0
    %803 = vmatprep.subr.bf16.mxu0 0
    %804 = vmatpush1.bf16.msra.mxu0 0
    %805 = vmatprep.subr.bf16.mxu0 0
    %806 = vmatpush1.bf16.msra.mxu0 0
    %807 = vmatprep.mubr.bf16.mxu0 0
    %808 = vmatmul.mubr.bf16.gmra.mrb[0].mxu0 %v405
    %v809 = vpop.f32.mrb[0].mxu0
    %v810 = vadd.f32 0.0, %v809
    %v811 = vpop.f32.mrb[0].mxu0
    %v812 = vpop.f32.mrb[0].mxu0
    %v813 = vadd.f32 0.0, %v812
    %v814 = vpop.f32.mrb[0].mxu0
    %815 = vdwg.mxu0
    %816 = vmatprep.subr.bf16.mxu0 0
    %817 = vmatpush1.bf16.msra.mxu0 %v768
    %818 = vmatprep.subr.bf16.mxu0 0
    %819 = vmatpush1.bf16.msra.mxu0 0
    %820 = vmatprep.subr.bf16.mxu0 0
    %821 = vmatpush1.bf16.msra.mxu0 0
    %822 = vmatprep.subr.bf16.mxu0 0
    %823 = vmatpush1.bf16.msra.mxu0 0
    %824 = vmatprep.subr.bf16.mxu0 0
    %825 = vmatpush1.bf16.msra.mxu0 0
    %826 = vmatprep.subr.bf16.mxu0 0
    %827 = vmatpush1.bf16.msra.mxu0 0
    %828 = vmatprep.subr.bf16.mxu0 0
    %829 = vmatpush1.bf16.msra.mxu0 0
    %830 = vmatprep.subr.bf16.mxu0 0
    %831 = vmatpush1.bf16.msra.mxu0 0
    %832 = vmatprep.subr.bf16.mxu0 0
    %833 = vmatpush1.bf16.msra.mxu0 0
    %834 = vmatprep.subr.bf16.mxu0 0
    %835 = vmatpush1.bf16.msra.mxu0 0
    %836 = vmatprep.subr.bf16.mxu0 0
    %837 = vmatpush1.bf16.msra.mxu0 0
    %838 = vmatprep.subr.bf16.mxu0 0
    %839 = vmatpush1.bf16.msra.mxu0 0
    %840 = vmatprep.subr.bf16.mxu0 0
    %841 = vmatpush1.bf16.msra.mxu0 0
    %842 = vmatprep.subr.bf16.mxu0 0
    %843 = vmatpush1.bf16.msra.mxu0 0
    %844 = vmatprep.subr.bf16.mxu0 0
    %845 = vmatpush1.bf16.msra.mxu0 0
    %846 = vmatprep.subr.bf16.mxu0 0
    %847 = vmatpush1.bf16.msra.mxu0 0
    %848 = vmatprep.mubr.bf16.mxu0 0
    %849 = vmatmul.mubr.bf16.gmra.mrb[0].mxu0 %v405
    %v850 = vpop.f32.mrb[0].mxu0
    %v851 = vadd.f32 0.0, %v850
    %v852 = vpop.f32.mrb[0].mxu0
    %v853 = vpop.f32.mrb[0].mxu0
    %v854 = vadd.f32 0.0, %v853
    %v855 = vpop.f32.mrb[0].mxu0
    %856 = vdwg.mxu0
    %857 = vmatprep.subr.bf16.mxu0 0
    %858 = vmatpush1.bf16.msra.mxu0 %v769
    %859 = vmatprep.subr.bf16.mxu0 0
    %860 = vmatpush1.bf16.msra.mxu0 0
    %861 = vmatprep.subr.bf16.mxu0 0
    %862 = vmatpush1.bf16.msra.mxu0 0
    %863 = vmatprep.subr.bf16.mxu0 0
    %864 = vmatpush1.bf16.msra.mxu0 0
    %865 = vmatprep.subr.bf16.mxu0 0
    %866 = vmatpush1.bf16.msra.mxu0 0
    %867 = vmatprep.subr.bf16.mxu0 0
    %868 = vmatpush1.bf16.msra.mxu0 0
    %869 = vmatprep.subr.bf16.mxu0 0
    %870 = vmatpush1.bf16.msra.mxu0 0
    %871 = vmatprep.subr.bf16.mxu0 0
    %872 = vmatpush1.bf16.msra.mxu0 0
    %873 = vmatprep.subr.bf16.mxu0 0
    %874 = vmatpush1.bf16.msra.mxu0 0
    %875 = vmatprep.subr.bf16.mxu0 0
    %876 = vmatpush1.bf16.msra.mxu0 0
    %877 = vmatprep.subr.bf16.mxu0 0
    %878 = vmatpush1.bf16.msra.mxu0 0
    %879 = vmatprep.subr.bf16.mxu0 0
    %880 = vmatpush1.bf16.msra.mxu0 0
    %881 = vmatprep.subr.bf16.mxu0 0
    %882 = vmatpush1.bf16.msra.mxu0 0
    %883 = vmatprep.subr.bf16.mxu0 0
    %884 = vmatpush1.bf16.msra.mxu0 0
    %885 = vmatprep.subr.bf16.mxu0 0
    %886 = vmatpush1.bf16.msra.mxu0 0
    %887 = vmatprep.subr.bf16.mxu0 0
    %888 = vmatpush1.bf16.msra.mxu0 0
    %889 = vmatprep.mubr.bf16.mxu0 0
    %890 = vmatmul.mubr.bf16.gmra.mrb[0].mxu0 %v405
    %v891 = vpop.f32.mrb[0].mxu0
    %v892 = vadd.f32 0.0, %v891
    %v893 = vpop.f32.mrb[0].mxu0
    %v894 = vpop.f32.mrb[0].mxu0
    %v895 = vadd.f32 0.0, %v894
    %v896 = vpop.f32.mrb[0].mxu0
    %897 = vdwg.mxu0
    %898 = vmatprep.subr.bf16.mxu0 0
    %899 = vmatpush1.bf16.msra.mxu0 %v770
    %900 = vmatprep.subr.bf16.mxu0 0
    %901 = vmatpush1.bf16.msra.mxu0 0
    %902 = vmatprep.subr.bf16.mxu0 0
    %903 = vmatpush1.bf16.msra.mxu0 0
    %904 = vmatprep.subr.bf16.mxu0 0
    %905 = vmatpush1.bf16.msra.mxu0 0
    %906 = vmatprep.subr.bf16.mxu0 0
    %907 = vmatpush1.bf16.msra.mxu0 0
    %908 = vmatprep.subr.bf16.mxu0 0
    %909 = vmatpush1.bf16.msra.mxu0 0
    %910 = vmatprep.subr.bf16.mxu0 0
    %911 = vmatpush1.bf16.msra.mxu0 0
    %912 = vmatprep.subr.bf16.mxu0 0
    %913 = vmatpush1.bf16.msra.mxu0 0
    %914 = vmatprep.subr.bf16.mxu0 0
    %915 = vmatpush1.bf16.msra.mxu0 0
    %916 = vmatprep.subr.bf16.mxu0 0
    %917 = vmatpush1.bf16.msra.mxu0 0
    %918 = vmatprep.subr.bf16.mxu0 0
    %919 = vmatpush1.bf16.msra.mxu0 0
    %920 = vmatprep.subr.bf16.mxu0 0
    %921 = vmatpush1.bf16.msra.mxu0 0
    %922 = vmatprep.subr.bf16.mxu0 0
    %923 = vmatpush1.bf16.msra.mxu0 0
    %924 = vmatprep.subr.bf16.mxu0 0
    %925 = vmatpush1.bf16.msra.mxu0 0
    %926 = vmatprep.subr.bf16.mxu0 0
    %927 = vmatpush1.bf16.msra.mxu0 0
    %928 = vmatprep.subr.bf16.mxu0 0
    %929 = vmatpush1.bf16.msra.mxu0 0
    %930 = vmatprep.mubr.bf16.mxu0 0
    %931 = vmatmul.mubr.bf16.gmra.mrb[0].mxu0 %v405
    %v932 = vpop.f32.mrb[0].mxu0
    %v933 = vadd.f32 0.0, %v932
    %v934 = vpop.f32.mrb[0].mxu0
    %v935 = vpop.f32.mrb[0].mxu0
    %v936 = vadd.f32 0.0, %v935
    %v937 = vpop.f32.mrb[0].mxu0
    %938 = vdwg.mxu0
    %939 = vmatprep.subr.bf16.mxu0 0
    %940 = vmatpush1.bf16.msra.mxu0 %v771
    %941 = vmatprep.subr.bf16.mxu0 0
    %942 = vmatpush1.bf16.msra.mxu0 0
    %943 = vmatprep.subr.bf16.mxu0 0
    %944 = vmatpush1.bf16.msra.mxu0 0
    %945 = vmatprep.subr.bf16.mxu0 0
    %946 = vmatpush1.bf16.msra.mxu0 0
    %947 = vmatprep.subr.bf16.mxu0 0
    %948 = vmatpush1.bf16.msra.mxu0 0
    %949 = vmatprep.subr.bf16.mxu0 0
    %950 = vmatpush1.bf16.msra.mxu0 0
    %951 = vmatprep.subr.bf16.mxu0 0
    %952 = vmatpush1.bf16.msra.mxu0 0
    %953 = vmatprep.subr.bf16.mxu0 0
    %954 = vmatpush1.bf16.msra.mxu0 0
    %955 = vmatprep.subr.bf16.mxu0 0
    %956 = vmatpush1.bf16.msra.mxu0 0
    %957 = vmatprep.subr.bf16.mxu0 0
    %958 = vmatpush1.bf16.msra.mxu0 0
    %959 = vmatprep.subr.bf16.mxu0 0
    %960 = vmatpush1.bf16.msra.mxu0 0
    %961 = vmatprep.subr.bf16.mxu0 0
    %962 = vmatpush1.bf16.msra.mxu0 0
    %963 = vmatprep.subr.bf16.mxu0 0
    %964 = vmatpush1.bf16.msra.mxu0 0
    %965 = vmatprep.subr.bf16.mxu0 0
    %966 = vmatpush1.bf16.msra.mxu0 0
    %967 = vmatprep.subr.bf16.mxu0 0
    %968 = vmatpush1.bf16.msra.mxu0 0
    %969 = vmatprep.subr.bf16.mxu0 0
    %970 = vmatpush1.bf16.msra.mxu0 0
    %971 = vmatprep.mubr.bf16.mxu0 0
    %972 = vmatmul.mubr.bf16.gmra.mrb[0].mxu0 %v405
    %v973 = vpop.f32.mrb[0].mxu0
    %v974 = vadd.f32 0.0, %v973
    %v975 = vpop.f32.mrb[0].mxu0
    %v976 = vpop.f32.mrb[0].mxu0
    %v977 = vadd.f32 0.0, %v976
    %v978 = vpop.f32.mrb[0].mxu0
    %979 = vdwg.mxu0
    %980 = vmatprep.subr.bf16.mxu0 0
    %981 = vmatpush1.bf16.msra.mxu0 %v772
    %982 = vmatprep.subr.bf16.mxu0 0
    %983 = vmatpush1.bf16.msra.mxu0 0
    %984 = vmatprep.subr.bf16.mxu0 0
    %985 = vmatpush1.bf16.msra.mxu0 0
    %986 = vmatprep.subr.bf16.mxu0 0
    %987 = vmatpush1.bf16.msra.mxu0 0
    %988 = vmatprep.subr.bf16.mxu0 0
    %989 = vmatpush1.bf16.msra.mxu0 0
    %990 = vmatprep.subr.bf16.mxu0 0
    %991 = vmatpush1.bf16.msra.mxu0 0
    %992 = vmatprep.subr.bf16.mxu0 0
    %993 = vmatpush1.bf16.msra.mxu0 0
    %994 = vmatprep.subr.bf16.mxu0 0
    %995 = vmatpush1.bf16.msra.mxu0 0
    %996 = vmatprep.subr.bf16.mxu0 0
    %997 = vmatpush1.bf16.msra.mxu0 0
    %998 = vmatprep.subr.bf16.mxu0 0
    %999 = vmatpush1.bf16.msra.mxu0 0
    %1000 = vmatprep.subr.bf16.mxu0 0
    %1001 = vmatpush1.bf16.msra.mxu0 0
    %1002 = vmatprep.subr.bf16.mxu0 0
    %1003 = vmatpush1.bf16.msra.mxu0 0
    %1004 = vmatprep.subr.bf16.mxu0 0
    %1005 = vmatpush1.bf16.msra.mxu0 0
    %1006 = vmatprep.subr.bf16.mxu0 0
    %1007 = vmatpush1.bf16.msra.mxu0 0
    %1008 = vmatprep.subr.bf16.mxu0 0
    %1009 = vmatpush1.bf16.msra.mxu0 0
    %1010 = vmatprep.subr.bf16.mxu0 0
    %1011 = vmatpush1.bf16.msra.mxu0 0
    %1012 = vmatprep.mubr.bf16.mxu0 0
    %1013 = vmatmul.mubr.bf16.gmra.mrb[0].mxu0 %v405
    %v1014 = vpop.f32.mrb[0].mxu0
    %v1015 = vadd.f32 0.0, %v1014
    %v1016 = vpop.f32.mrb[0].mxu0
    %v1017 = vpop.f32.mrb[0].mxu0
    %v1018 = vadd.f32 0.0, %v1017
    %v1019 = vpop.f32.mrb[0].mxu0
    %1020 = vdwg.mxu0
    %1021 = vmatprep.subr.bf16.mxu0 0
    %1022 = vmatpush1.bf16.msra.mxu0 %v773
    %1023 = vmatprep.subr.bf16.mxu0 0
    %1024 = vmatpush1.bf16.msra.mxu0 0
    %1025 = vmatprep.subr.bf16.mxu0 0
    %1026 = vmatpush1.bf16.msra.mxu0 0
    %1027 = vmatprep.subr.bf16.mxu0 0
    %1028 = vmatpush1.bf16.msra.mxu0 0
    %1029 = vmatprep.subr.bf16.mxu0 0
    %1030 = vmatpush1.bf16.msra.mxu0 0
    %1031 = vmatprep.subr.bf16.mxu0 0
    %1032 = vmatpush1.bf16.msra.mxu0 0
    %1033 = vmatprep.subr.bf16.mxu0 0
    %1034 = vmatpush1.bf16.msra.mxu0 0
    %1035 = vmatprep.subr.bf16.mxu0 0
    %1036 = vmatpush1.bf16.msra.mxu0 0
    %1037 = vmatprep.subr.bf16.mxu0 0
    %1038 = vmatpush1.bf16.msra.mxu0 0
    %1039 = vmatprep.subr.bf16.mxu0 0
    %1040 = vmatpush1.bf16.msra.mxu0 0
    %1041 = vmatprep.subr.bf16.mxu0 0
    %1042 = vmatpush1.bf16.msra.mxu0 0
    %1043 = vmatprep.subr.bf16.mxu0 0
    %1044 = vmatpush1.bf16.msra.mxu0 0
    %1045 = vmatprep.subr.bf16.mxu0 0
    %1046 = vmatpush1.bf16.msra.mxu0 0
    %1047 = vmatprep.subr.bf16.mxu0 0
    %1048 = vmatpush1.bf16.msra.mxu0 0
    %1049 = vmatprep.subr.bf16.mxu0 0
    %1050 = vmatpush1.bf16.msra.mxu0 0
    %1051 = vmatprep.subr.bf16.mxu0 0
    %1052 = vmatpush1.bf16.msra.mxu0 0
    %1053 = vmatprep.mubr.bf16.mxu0 0
    %1054 = vmatmul.mubr.bf16.gmra.mrb[0].mxu0 %v405
    %v1055 = vpop.f32.mrb[0].mxu0
    %v1056 = vadd.f32 0.0, %v1055
    %v1057 = vpop.f32.mrb[0].mxu0
    %v1058 = vpop.f32.mrb[0].mxu0
    %v1059 = vadd.f32 0.0, %v1058
    %v1060 = vpop.f32.mrb[0].mxu0
    %1061 = vdwg.mxu0
    %1062 = vmatprep.subr.bf16.mxu0 0
    %1063 = vmatpush1.bf16.msra.mxu0 %v774
    %1064 = vmatprep.subr.bf16.mxu0 0
    %1065 = vmatpush1.bf16.msra.mxu0 0
    %1066 = vmatprep.subr.bf16.mxu0 0
    %1067 = vmatpush1.bf16.msra.mxu0 0
    %1068 = vmatprep.subr.bf16.mxu0 0
    %1069 = vmatpush1.bf16.msra.mxu0 0
    %1070 = vmatprep.subr.bf16.mxu0 0
    %1071 = vmatpush1.bf16.msra.mxu0 0
    %1072 = vmatprep.subr.bf16.mxu0 0
    %1073 = vmatpush1.bf16.msra.mxu0 0
    %1074 = vmatprep.subr.bf16.mxu0 0
    %1075 = vmatpush1.bf16.msra.mxu0 0
    %1076 = vmatprep.subr.bf16.mxu0 0
    %1077 = vmatpush1.bf16.msra.mxu0 0
    %1078 = vmatprep.subr.bf16.mxu0 0
    %1079 = vmatpush1.bf16.msra.mxu0 0
    %1080 = vmatprep.subr.bf16.mxu0 0
    %1081 = vmatpush1.bf16.msra.mxu0 0
    %1082 = vmatprep.subr.bf16.mxu0 0
    %1083 = vmatpush1.bf16.msra.mxu0 0
    %1084 = vmatprep.subr.bf16.mxu0 0
    %1085 = vmatpush1.bf16.msra.mxu0 0
    %1086 = vmatprep.subr.bf16.mxu0 0
    %1087 = vmatpush1.bf16.msra.mxu0 0
    %1088 = vmatprep.subr.bf16.mxu0 0
    %1089 = vmatpush1.bf16.msra.mxu0 0
    %1090 = vmatprep.subr.bf16.mxu0 0
    %1091 = vmatpush1.bf16.msra.mxu0 0
    %1092 = vmatprep.subr.bf16.mxu0 0
    %1093 = vmatpush1.bf16.msra.mxu0 0
    %1094 = vmatprep.mubr.bf16.mxu0 0
    %1095 = vmatmul.mubr.bf16.gmra.mrb[0].mxu0 %v405
    %v1096 = vpop.f32.mrb[0].mxu0
    %v1097 = vadd.f32 0.0, %v1096
    %v1098 = vpop.f32.mrb[0].mxu0
    %v1099 = vpop.f32.mrb[0].mxu0
    %v1100 = vadd.f32 0.0, %v1099
    %v1101 = vpop.f32.mrb[0].mxu0
    %1102 = vdwg.mxu0
    %v1103 = vpack.c.bf16 %v813, %v810
    %v1104 = vpack.c.bf16 %v854, %v851
    %v1105 = vpack.c.bf16 %v895, %v892
    %v1106 = vpack.c.bf16 %v936, %v933
    %v1107 = vpack.c.bf16 %v977, %v974
    %v1108 = vpack.c.bf16 %v1018, %v1015
    %v1109 = vpack.c.bf16 %v1059, %v1056
    %v1110 = vpack.c.bf16 %v1100, %v1097
    %v1127 = vunpack.c.l.b16 %v357
    %v1128 = vunpack.c.l.b16 %v358
    %v1129 = vunpack.c.l.b16 %v359
    %v1130 = vunpack.c.l.b16 %v360
    %v1131 = vunpack.c.l.b16 %v361
    %v1132 = vunpack.c.l.b16 %v362
    %v1133 = vunpack.c.l.b16 %v363
    %v1134 = vunpack.c.l.b16 %v364
    %v1135 = vunpack.c.l.b16 %v365
    %v1136 = vunpack.c.l.b16 %v366
    %v1137 = vunpack.c.l.b16 %v367
    %v1138 = vunpack.c.l.b16 %v368
    %v1139 = vunpack.c.l.b16 %v369
    %v1140 = vunpack.c.l.b16 %v370
    %v1141 = vunpack.c.l.b16 %v371
    %v1142 = vunpack.c.l.b16 %v372
    %v1143 = vpack.c.b16 %v1128, %v1127
    %v1144 = vpack.c.b16 %v1130, %v1129
    %v1145 = vpack.c.b16 %v1132, %v1131
    %v1146 = vpack.c.b16 %v1134, %v1133
    %v1147 = vpack.c.b16 %v1136, %v1135
    %v1148 = vpack.c.b16 %v1138, %v1137
    %v1149 = vpack.c.b16 %v1140, %v1139
    %v1150 = vpack.c.b16 %v1142, %v1141
    %1159 = vmatprep.subr.bf16.mxu0 0
    %1160 = vmatpush1.bf16.msra.mxu0 %v1143
    %1161 = vmatprep.subr.bf16.mxu0 0
    %1162 = vmatpush1.bf16.msra.mxu0 %v1144
    %1163 = vmatprep.subr.bf16.mxu0 0
    %1164 = vmatpush1.bf16.msra.mxu0 %v1145
    %1165 = vmatprep.subr.bf16.mxu0 0
    %1166 = vmatpush1.bf16.msra.mxu0 %v1146
    %1167 = vmatprep.subr.bf16.mxu0 0
    %1168 = vmatpush1.bf16.msra.mxu0 %v1147
    %1169 = vmatprep.subr.bf16.mxu0 0
    %1170 = vmatpush1.bf16.msra.mxu0 %v1148
    %1171 = vmatprep.subr.bf16.mxu0 0
    %1172 = vmatpush1.bf16.msra.mxu0 %v1149
    %1173 = vmatprep.subr.bf16.mxu0 0
    %1174 = vmatpush1.bf16.msra.mxu0 %v1150
    %1175 = vmatprep.subr.bf16.mxu0 0
    %1176 = vmatpush1.bf16.msra.mxu0 0
    %1177 = vmatprep.subr.bf16.mxu0 0
    %1178 = vmatpush1.bf16.msra.mxu0 0
    %1179 = vmatprep.subr.bf16.mxu0 0
    %1180 = vmatpush1.bf16.msra.mxu0 0
    %1181 = vmatprep.subr.bf16.mxu0 0
    %1182 = vmatpush1.bf16.msra.mxu0 0
    %1183 = vmatprep.subr.bf16.mxu0 0
    %1184 = vmatpush1.bf16.msra.mxu0 0
    %1185 = vmatprep.subr.bf16.mxu0 0
    %1186 = vmatpush1.bf16.msra.mxu0 0
    %1187 = vmatprep.subr.bf16.mxu0 0
    %1188 = vmatpush1.bf16.msra.mxu0 0
    %1189 = vmatprep.subr.bf16.mxu0 0
    %1190 = vmatpush1.bf16.msra.mxu0 0
    %1191 = vmatprep.mubr.bf16.mxu0 0
    %1192 = vmatmul.mubr.bf16.gmra.mrb[0].mxu0 %v1103
    %v1193 = vpop.f32.mrb[0].mxu0
    %v1194 = vadd.f32 0.0, %v1193
    %v1195 = vpop.f32.mrb[0].mxu0
    %v1196 = vpop.f32.mrb[0].mxu0
    %v1197 = vadd.f32 0.0, %v1196
    %v1198 = vpop.f32.mrb[0].mxu0
    %1199 = vmatprep.mubr.bf16.mxu0 0
    %1200 = vmatmul.mubr.bf16.gmra.mrb[0].mxu0 %v1104
    %v1201 = vpop.f32.mrb[0].mxu0
    %v1202 = vadd.f32 0.0, %v1201
    %v1203 = vpop.f32.mrb[0].mxu0
    %v1204 = vpop.f32.mrb[0].mxu0
    %v1205 = vadd.f32 0.0, %v1204
    %v1206 = vpop.f32.mrb[0].mxu0
    %1207 = vmatprep.mubr.bf16.mxu0 0
    %1208 = vmatmul.mubr.bf16.gmra.mrb[0].mxu0 %v1105
    %v1209 = vpop.f32.mrb[0].mxu0
    %v1210 = vadd.f32 0.0, %v1209
    %v1211 = vpop.f32.mrb[0].mxu0
    %v1212 = vpop.f32.mrb[0].mxu0
    %v1213 = vadd.f32 0.0, %v1212
    %v1214 = vpop.f32.mrb[0].mxu0
    %1215 = vmatprep.mubr.bf16.mxu0 0
    %1216 = vmatmul.mubr.bf16.gmra.mrb[0].mxu0 %v1106
    %v1217 = vpop.f32.mrb[0].mxu0
    %v1218 = vadd.f32 0.0, %v1217
    %v1219 = vpop.f32.mrb[0].mxu0
    %v1220 = vpop.f32.mrb[0].mxu0
    %v1221 = vadd.f32 0.0, %v1220
    %v1222 = vpop.f32.mrb[0].mxu0
    %1223 = vmatprep.mubr.bf16.mxu0 0
    %1224 = vmatmul.mubr.bf16.gmra.mrb[0].mxu0 %v1107
    %v1225 = vpop.f32.mrb[0].mxu0
    %v1226 = vadd.f32 0.0, %v1225
    %v1227 = vpop.f32.mrb[0].mxu0
    %v1228 = vpop.f32.mrb[0].mxu0
    %v1229 = vadd.f32 0.0, %v1228
    %v1230 = vpop.f32.mrb[0].mxu0
    %1231 = vmatprep.mubr.bf16.mxu0 0
    %1232 = vmatmul.mubr.bf16.gmra.mrb[0].mxu0 %v1108
    %v1233 = vpop.f32.mrb[0].mxu0
    %v1234 = vadd.f32 0.0, %v1233
    %v1235 = vpop.f32.mrb[0].mxu0
    %v1236 = vpop.f32.mrb[0].mxu0
    %v1237 = vadd.f32 0.0, %v1236
    %v1238 = vpop.f32.mrb[0].mxu0
    %1239 = vmatprep.mubr.bf16.mxu0 0
    %1240 = vmatmul.mubr.bf16.gmra.mrb[0].mxu0 %v1109
    %v1241 = vpop.f32.mrb[0].mxu0
    %v1242 = vadd.f32 0.0, %v1241
    %v1243 = vpop.f32.mrb[0].mxu0
    %v1244 = vpop.f32.mrb[0].mxu0
    %v1245 = vadd.f32 0.0, %v1244
    %v1246 = vpop.f32.mrb[0].mxu0
    %1247 = vmatprep.mubr.bf16.mxu0 0
    %1248 = vmatmul.mubr.bf16.gmra.mrb[0].mxu0 %v1110
    %v1249 = vpop.f32.mrb[0].mxu0
    %v1250 = vadd.f32 0.0, %v1249
    %v1251 = vpop.f32.mrb[0].mxu0
    %v1252 = vpop.f32.mrb[0].mxu0
    %v1253 = vadd.f32 0.0, %v1252
    %v1254 = vpop.f32.mrb[0].mxu0
    %1255 = vdwg.mxu0
    %v1257 = vlaneseq
    %v1258 = vshrl.u32 %v1257, 7
    %v1259 = vsub.s32 0, %v1258
    %v1260 = vrot.slane %v389, %v1259
    %v1278 = vunpack.c.l.b16 %v373
    %v1279 = vunpack.c.l.b16 %v374
    %v1280 = vunpack.c.l.b16 %v375
    %v1281 = vunpack.c.l.b16 %v376
    %v1282 = vunpack.c.l.b16 %v377
    %v1283 = vunpack.c.l.b16 %v378
    %v1284 = vunpack.c.l.b16 %v379
    %v1285 = vunpack.c.l.b16 %v380
    %v1286 = vunpack.c.l.b16 %v381
    %v1287 = vunpack.c.l.b16 %v382
    %v1288 = vunpack.c.l.b16 %v383
    %v1289 = vunpack.c.l.b16 %v384
    %v1290 = vunpack.c.l.b16 %v385
    %v1291 = vunpack.c.l.b16 %v386
    %v1292 = vunpack.c.l.b16 %v387
    %v1293 = vunpack.c.l.b16 %v388
    %v1294 = vpack.c.b16 %v1279, %v1278
    %v1295 = vpack.c.b16 %v1281, %v1280
    %v1296 = vpack.c.b16 %v1283, %v1282
    %v1297 = vpack.c.b16 %v1285, %v1284
    %v1298 = vpack.c.b16 %v1287, %v1286
    %v1299 = vpack.c.b16 %v1289, %v1288
    %v1300 = vpack.c.b16 %v1291, %v1290
    %v1301 = vpack.c.b16 %v1293, %v1292
    %1310 = vmatprep.subr.bf16.mxu0 0
    %1311 = vmatpush1.bf16.msra.mxu0 %v1294
    %1312 = vmatprep.subr.bf16.mxu0 0
    %1313 = vmatpush1.bf16.msra.mxu0 %v1295
    %1314 = vmatprep.subr.bf16.mxu0 0
    %1315 = vmatpush1.bf16.msra.mxu0 %v1296
    %1316 = vmatprep.subr.bf16.mxu0 0
    %1317 = vmatpush1.bf16.msra.mxu0 %v1297
    %1318 = vmatprep.subr.bf16.mxu0 0
    %1319 = vmatpush1.bf16.msra.mxu0 %v1298
    %1320 = vmatprep.subr.bf16.mxu0 0
    %1321 = vmatpush1.bf16.msra.mxu0 %v1299
    %1322 = vmatprep.subr.bf16.mxu0 0
    %1323 = vmatpush1.bf16.msra.mxu0 %v1300
    %1324 = vmatprep.subr.bf16.mxu0 0
    %1325 = vmatpush1.bf16.msra.mxu0 %v1301
    %1326 = vmatprep.subr.bf16.mxu0 0
    %1327 = vmatpush1.bf16.msra.mxu0 0
    %1328 = vmatprep.subr.bf16.mxu0 0
    %1329 = vmatpush1.bf16.msra.mxu0 0
    %1330 = vmatprep.subr.bf16.mxu0 0
    %1331 = vmatpush1.bf16.msra.mxu0 0
    %1332 = vmatprep.subr.bf16.mxu0 0
    %1333 = vmatpush1.bf16.msra.mxu0 0
    %1334 = vmatprep.subr.bf16.mxu0 0
    %1335 = vmatpush1.bf16.msra.mxu0 0
    %1336 = vmatprep.subr.bf16.mxu0 0
    %1337 = vmatpush1.bf16.msra.mxu0 0
    %1338 = vmatprep.subr.bf16.mxu0 0
    %1339 = vmatpush1.bf16.msra.mxu0 0
    %1340 = vmatprep.subr.bf16.mxu0 0
    %1341 = vmatpush1.bf16.msra.mxu0 0
    %1342 = vmatprep.mubr.bf16.mxu0 0
    %1343 = vmatmul.mubr.bf16.gmra.mrb[0].mxu0 %v1103
    %v1344 = vpop.f32.mrb[0].mxu0
    %v1345 = vadd.f32 %v1260, %v1344
    %v1346 = vpop.f32.mrb[0].mxu0
    %v1347 = vpop.f32.mrb[0].mxu0
    %v1348 = vadd.f32 %v1260, %v1347
    %v1349 = vpop.f32.mrb[0].mxu0
    %1350 = vmatprep.mubr.bf16.mxu0 0
    %1351 = vmatmul.mubr.bf16.gmra.mrb[0].mxu0 %v1104
    %v1352 = vpop.f32.mrb[0].mxu0
    %v1353 = vadd.f32 %v1260, %v1352
    %v1354 = vpop.f32.mrb[0].mxu0
    %v1355 = vpop.f32.mrb[0].mxu0
    %v1356 = vadd.f32 %v1260, %v1355
    %v1357 = vpop.f32.mrb[0].mxu0
    %1358 = vmatprep.mubr.bf16.mxu0 0
    %1359 = vmatmul.mubr.bf16.gmra.mrb[0].mxu0 %v1105
    %v1360 = vpop.f32.mrb[0].mxu0
    %v1361 = vadd.f32 %v1260, %v1360
    %v1362 = vpop.f32.mrb[0].mxu0
    %v1363 = vpop.f32.mrb[0].mxu0
    %v1364 = vadd.f32 %v1260, %v1363
    %v1365 = vpop.f32.mrb[0].mxu0
    %1366 = vmatprep.mubr.bf16.mxu0 0
    %1367 = vmatmul.mubr.bf16.gmra.mrb[0].mxu0 %v1106
    %v1368 = vpop.f32.mrb[0].mxu0
    %v1369 = vadd.f32 %v1260, %v1368
    %v1370 = vpop.f32.mrb[0].mxu0
    %v1371 = vpop.f32.mrb[0].mxu0
    %v1372 = vadd.f32 %v1260, %v1371
    %v1373 = vpop.f32.mrb[0].mxu0
    %1374 = vmatprep.mubr.bf16.mxu0 0
    %1375 = vmatmul.mubr.bf16.gmra.mrb[0].mxu0 %v1107
    %v1376 = vpop.f32.mrb[0].mxu0
    %v1377 = vadd.f32 %v1260, %v1376
    %v1378 = vpop.f32.mrb[0].mxu0
    %v1379 = vpop.f32.mrb[0].mxu0
    %v1380 = vadd.f32 %v1260, %v1379
    %v1381 = vpop.f32.mrb[0].mxu0
    %1382 = vmatprep.mubr.bf16.mxu0 0
    %1383 = vmatmul.mubr.bf16.gmra.mrb[0].mxu0 %v1108
    %v1384 = vpop.f32.mrb[0].mxu0
    %v1385 = vadd.f32 %v1260, %v1384
    %v1386 = vpop.f32.mrb[0].mxu0
    %v1387 = vpop.f32.mrb[0].mxu0
    %v1388 = vadd.f32 %v1260, %v1387
    %v1389 = vpop.f32.mrb[0].mxu0
    %1390 = vmatprep.mubr.bf16.mxu0 0
    %1391 = vmatmul.mubr.bf16.gmra.mrb[0].mxu0 %v1109
    %v1392 = vpop.f32.mrb[0].mxu0
    %v1393 = vadd.f32 %v1260, %v1392
    %v1394 = vpop.f32.mrb[0].mxu0
    %v1395 = vpop.f32.mrb[0].mxu0
    %v1396 = vadd.f32 %v1260, %v1395
    %v1397 = vpop.f32.mrb[0].mxu0
    %1398 = vmatprep.mubr.bf16.mxu0 0
    %1399 = vmatmul.mubr.bf16.gmra.mrb[0].mxu0 %v1110
    %v1400 = vpop.f32.mrb[0].mxu0
    %v1401 = vadd.f32 %v1260, %v1400
    %v1402 = vpop.f32.mrb[0].mxu0
    %v1403 = vpop.f32.mrb[0].mxu0
    %v1404 = vadd.f32 %v1260, %v1403
    %v1405 = vpop.f32.mrb[0].mxu0
    %1406 = vdwg.mxu0
    %1407 = vst [vmem:[#allocation16] sm:$0xff] %v1194
    %1408 = vst [vmem:[#allocation16 + $0x8] sm:$0xff] %v1197
    %1409 = vst [vmem:[#allocation16 + $0x10] sm:$0xff] %v1202
    %1410 = vst [vmem:[#allocation16 + $0x18] sm:$0xff] %v1205
    %1411 = vst [vmem:[#allocation16 + $0x20] sm:$0xff] %v1210
    %1412 = vst [vmem:[#allocation16 + $0x28] sm:$0xff] %v1213
    %1413 = vst [vmem:[#allocation16 + $0x30] sm:$0xff] %v1218
    %1414 = vst [vmem:[#allocation16 + $0x38] sm:$0xff] %v1221
    %1415 = vst [vmem:[#allocation16 + $0x40] sm:$0xff] %v1226
    %1416 = vst [vmem:[#allocation16 + $0x48] sm:$0xff] %v1229
    %1417 = vst [vmem:[#allocation16 + $0x50] sm:$0xff] %v1234
    %1418 = vst [vmem:[#allocation16 + $0x58] sm:$0xff] %v1237
    %1419 = vst [vmem:[#allocation16 + $0x60] sm:$0xff] %v1242
    %1420 = vst [vmem:[#allocation16 + $0x68] sm:$0xff] %v1245
    %1421 = vst [vmem:[#allocation16 + $0x70] sm:$0xff] %v1250
    %1422 = vst [vmem:[#allocation16 + $0x78] sm:$0xff] %v1253
    %1423 = vst [vmem:[#allocation17] sm:$0xff] %v1345
    %1424 = vst [vmem:[#allocation17 + $0x8] sm:$0xff] %v1348
    %1425 = vst [vmem:[#allocation17 + $0x10] sm:$0xff] %v1353
    %1426 = vst [vmem:[#allocation17 + $0x18] sm:$0xff] %v1356
    %1427 = vst [vmem:[#allocation17 + $0x20] sm:$0xff] %v1361
    %1428 = vst [vmem:[#allocation17 + $0x28] sm:$0xff] %v1364
    %1429 = vst [vmem:[#allocation17 + $0x30] sm:$0xff] %v1369
    %1430 = vst [vmem:[#allocation17 + $0x38] sm:$0xff] %v1372
    %1431 = vst [vmem:[#allocation17 + $0x40] sm:$0xff] %v1377
    %1432 = vst [vmem:[#allocation17 + $0x48] sm:$0xff] %v1380
    %1433 = vst [vmem:[#allocation17 + $0x50] sm:$0xff] %v1385
    %1434 = vst [vmem:[#allocation17 + $0x58] sm:$0xff] %v1388
    %1435 = vst [vmem:[#allocation17 + $0x60] sm:$0xff] %v1393
    %1436 = vst [vmem:[#allocation17 + $0x68] sm:$0xff] %v1396
    %1437 = vst [vmem:[#allocation17 + $0x70] sm:$0xff] %v1401
    %1438 = vst [vmem:[#allocation17 + $0x78] sm:$0xff] %v1404
    %v1439 = vld [vmem:[#allocation5] sm:$0xf]
    %v1440 = vld [vmem:[#allocation5 + $0x4] sm:$0xf]
    %v1441 = vld [vmem:[#allocation5 + $0x8] sm:$0xf]
    %v1442 = vld [vmem:[#allocation5 + $0xc] sm:$0xf]
    %v1443 = vld [vmem:[#allocation5 + $0x10] sm:$0xf]
    %v1444 = vld [vmem:[#allocation5 + $0x14] sm:$0xf]
    %v1445 = vld [vmem:[#allocation5 + $0x18] sm:$0xf]
    %v1446 = vld [vmem:[#allocation5 + $0x1c] sm:$0xf]
    %v1447 = vld [vmem:[#allocation5 + $0x20] sm:$0xf]
    %v1448 = vld [vmem:[#allocation5 + $0x24] sm:$0xf]
    %v1449 = vld [vmem:[#allocation5 + $0x28] sm:$0xf]
    %v1450 = vld [vmem:[#allocation5 + $0x2c] sm:$0xf]
    %v1451 = vld [vmem:[#allocation5 + $0x30] sm:$0xf]
    %v1452 = vld [vmem:[#allocation5 + $0x34] sm:$0xf]
    %v1453 = vld [vmem:[#allocation5 + $0x38] sm:$0xf]
    %v1454 = vld [vmem:[#allocation5 + $0x3c] sm:$0xf]
    %v1455 = vld [vmem:[%s8] sm:$0xf]
    %v1456 = vld [vmem:[%s8 + $0x4] sm:$0xf]
    %v1457 = vld [vmem:[%s8 + $0x8] sm:$0xf]
    %v1458 = vld [vmem:[%s12] sm:$0x1]
    %v1460 = vlaneseq
    %v1461 = vshrl.u32 %v1460, 7
    %v1462 = vsub.s32 0, %v1461
    %v1463 = vrot.slane %v1458, %v1462
    %v1481 = vunpack.c.l.b16 %v1439
    %v1482 = vunpack.c.l.b16 %v1440
    %v1483 = vunpack.c.l.b16 %v1441
    %v1484 = vunpack.c.l.b16 %v1442
    %v1485 = vunpack.c.l.b16 %v1443
    %v1486 = vunpack.c.l.b16 %v1444
    %v1487 = vunpack.c.l.b16 %v1445
    %v1488 = vunpack.c.l.b16 %v1446
    %v1489 = vunpack.c.l.b16 %v1447
    %v1490 = vunpack.c.l.b16 %v1448
    %v1491 = vunpack.c.l.b16 %v1449
    %v1492 = vunpack.c.l.b16 %v1450
    %v1493 = vunpack.c.l.b16 %v1451
    %v1494 = vunpack.c.l.b16 %v1452
    %v1495 = vunpack.c.l.b16 %v1453
    %v1496 = vunpack.c.l.b16 %v1454
    %v1497 = vpack.c.b16 %v1482, %v1481
    %v1498 = vpack.c.b16 %v1484, %v1483
    %v1499 = vpack.c.b16 %v1486, %v1485
    %v1500 = vpack.c.b16 %v1488, %v1487
    %v1501 = vpack.c.b16 %v1490, %v1489
    %v1502 = vpack.c.b16 %v1492, %v1491
    %v1503 = vpack.c.b16 %v1494, %v1493
    %v1504 = vpack.c.b16 %v1496, %v1495
    %v1508 = vunpack.c.l.b16 %v1455
    %v1509 = vunpack.c.l.b16 %v1456
    %v1510 = vunpack.c.l.b16 %v1457
    %v1511 = vpack.c.b16 %v1509, %v1508
    %v1512 = vpack.c.b16 %v1510, %v1510
    %vm1514 = vcmask 195584
    %v1516 = vsel %vm1514, %v1497, 0
    %v1519 = vsel %vm1514, %v1498, 0
    %v1522 = vsel %vm1514, %v1499, 0
    %v1525 = vsel %vm1514, %v1500, 0
    %v1528 = vsel %vm1514, %v1501, 0
    %v1531 = vsel %vm1514, %v1502, 0
    %v1534 = vsel %vm1514, %v1503, 0
    %v1537 = vsel %vm1514, %v1504, 0
    %vm1539 = vcmask 1043456
    %v1541 = vsel %vm1539, %v1512, 0
    %1543 = vmatprep.subr.bf16.mxu0 0
    %1544 = vmatpush1.bf16.msra.mxu0 %v1511
    %1545 = vmatprep.subr.bf16.mxu0 0
    %1546 = vmatpush1.bf16.msra.mxu0 %v1541
    %1547 = vmatprep.subr.bf16.mxu0 0
    %1548 = vmatpush1.bf16.msra.mxu0 0
    %1549 = vmatprep.subr.bf16.mxu0 0
    %1550 = vmatpush1.bf16.msra.mxu0 0
    %1551 = vmatprep.subr.bf16.mxu0 0
    %1552 = vmatpush1.bf16.msra.mxu0 0
    %1553 = vmatprep.subr.bf16.mxu0 0
    %1554 = vmatpush1.bf16.msra.mxu0 0
    %1555 = vmatprep.subr.bf16.mxu0 0
    %1556 = vmatpush1.bf16.msra.mxu0 0
    %1557 = vmatprep.subr.bf16.mxu0 0
    %1558 = vmatpush1.bf16.msra.mxu0 0
    %1559 = vmatprep.subr.bf16.mxu0 0
    %1560 = vmatpush1.bf16.msra.mxu0 0
    %1561 = vmatprep.subr.bf16.mxu0 0
    %1562 = vmatpush1.bf16.msra.mxu0 0
    %1563 = vmatprep.subr.bf16.mxu0 0
    %1564 = vmatpush1.bf16.msra.mxu0 0
    %1565 = vmatprep.subr.bf16.mxu0 0
    %1566 = vmatpush1.bf16.msra.mxu0 0
    %1567 = vmatprep.subr.bf16.mxu0 0
    %1568 = vmatpush1.bf16.msra.mxu0 0
    %1569 = vmatprep.subr.bf16.mxu0 0
    %1570 = vmatpush1.bf16.msra.mxu0 0
    %1571 = vmatprep.subr.bf16.mxu0 0
    %1572 = vmatpush1.bf16.msra.mxu0 0
    %1573 = vmatprep.subr.bf16.mxu0 0
    %1574 = vmatpush1.bf16.msra.mxu0 0
    %1575 = vmatprep.mubr.bf16.mxu0 0
    %1576 = vmatmul.mubr.bf16.gmra.mrb[0].mxu0 %v1516
    %v1577 = vpop.f32.mrb[0].mxu0
    %v1578 = vadd.f32 %v1463, %v1577
    %v1579 = vpop.f32.mrb[0].mxu0
    %v1580 = vpop.f32.mrb[0].mxu0
    %v1581 = vadd.f32 %v1463, %v1580
    %v1582 = vpop.f32.mrb[0].mxu0
    %1583 = vmatprep.mubr.bf16.mxu0 0
    %1584 = vmatmul.mubr.bf16.gmra.mrb[0].mxu0 %v1519
    %v1585 = vpop.f32.mrb[0].mxu0
    %v1586 = vadd.f32 %v1463, %v1585
    %v1587 = vpop.f32.mrb[0].mxu0
    %v1588 = vpop.f32.mrb[0].mxu0
    %v1589 = vadd.f32 %v1463, %v1588
    %v1590 = vpop.f32.mrb[0].mxu0
    %1591 = vmatprep.mubr.bf16.mxu0 0
    %1592 = vmatmul.mubr.bf16.gmra.mrb[0].mxu0 %v1522
    %v1593 = vpop.f32.mrb[0].mxu0
    %v1594 = vadd.f32 %v1463, %v1593
    %v1595 = vpop.f32.mrb[0].mxu0
    %v1596 = vpop.f32.mrb[0].mxu0
    %v1597 = vadd.f32 %v1463, %v1596
    %v1598 = vpop.f32.mrb[0].mxu0
    %1599 = vmatprep.mubr.bf16.mxu0 0
    %1600 = vmatmul.mubr.bf16.gmra.mrb[0].mxu0 %v1525
    %v1601 = vpop.f32.mrb[0].mxu0
    %v1602 = vadd.f32 %v1463, %v1601
    %v1603 = vpop.f32.mrb[0].mxu0
    %v1604 = vpop.f32.mrb[0].mxu0
    %v1605 = vadd.f32 %v1463, %v1604
    %v1606 = vpop.f32.mrb[0].mxu0
    %1607 = vmatprep.mubr.bf16.mxu0 0
    %1608 = vmatmul.mubr.bf16.gmra.mrb[0].mxu0 %v1528
    %v1609 = vpop.f32.mrb[0].mxu0
    %v1610 = vadd.f32 %v1463, %v1609
    %v1611 = vpop.f32.mrb[0].mxu0
    %v1612 = vpop.f32.mrb[0].mxu0
    %v1613 = vadd.f32 %v1463, %v1612
    %v1614 = vpop.f32.mrb[0].mxu0
    %1615 = vmatprep.mubr.bf16.mxu0 0
    %1616 = vmatmul.mubr.bf16.gmra.mrb[0].mxu0 %v1531
    %v1617 = vpop.f32.mrb[0].mxu0
    %v1618 = vadd.f32 %v1463, %v1617
    %v1619 = vpop.f32.mrb[0].mxu0
    %v1620 = vpop.f32.mrb[0].mxu0
    %v1621 = vadd.f32 %v1463, %v1620
    %v1622 = vpop.f32.mrb[0].mxu0
    %1623 = vmatprep.mubr.bf16.mxu0 0
    %1624 = vmatmul.mubr.bf16.gmra.mrb[0].mxu0 %v1534
    %v1625 = vpop.f32.mrb[0].mxu0
    %v1626 = vadd.f32 %v1463, %v1625
    %v1627 = vpop.f32.mrb[0].mxu0
    %v1628 = vpop.f32.mrb[0].mxu0
    %v1629 = vadd.f32 %v1463, %v1628
    %v1630 = vpop.f32.mrb[0].mxu0
    %1631 = vmatprep.mubr.bf16.mxu0 0
    %1632 = vmatmul.mubr.bf16.gmra.mrb[0].mxu0 %v1537
    %v1633 = vpop.f32.mrb[0].mxu0
    %v1634 = vadd.f32 %v1463, %v1633
    %v1635 = vpop.f32.mrb[0].mxu0
    %v1636 = vpop.f32.mrb[0].mxu0
    %v1637 = vadd.f32 %v1463, %v1636
    %v1638 = vpop.f32.mrb[0].mxu0
    %1639 = vdwg.mxu0
    %v1640 = vld [vmem:[%s3] sm:$0xf]
    %v1641 = vld [vmem:[%s3 + $0x4] sm:$0xf]
    %v1642 = vld [vmem:[#allocation13] sm:$0xf]
    %v1643 = vld [vmem:[#allocation13 + $0x4] sm:$0xf]
    %v1644 = vld [vmem:[#allocation13 + $0x8] sm:$0xf]
    %v1645 = vld [vmem:[#allocation13 + $0xc] sm:$0xf]
    %v1646 = vld [vmem:[#allocation13 + $0x10] sm:$0xf]
    %v1647 = vld [vmem:[#allocation13 + $0x14] sm:$0xf]
    %v1648 = vld [vmem:[#allocation13 + $0x18] sm:$0xf]
    %v1649 = vld [vmem:[#allocation13 + $0x1c] sm:$0xf]
    %v1650 = vld [vmem:[#allocation13 + $0x20] sm:$0xf]
    %v1651 = vld [vmem:[#allocation13 + $0x24] sm:$0xf]
    %v1652 = vld [vmem:[#allocation13 + $0x28] sm:$0xf]
    %v1653 = vld [vmem:[#allocation13 + $0x2c] sm:$0xf]
    %v1654 = vld [vmem:[#allocation13 + $0x30] sm:$0xf]
    %v1655 = vld [vmem:[#allocation13 + $0x34] sm:$0xf]
    %v1656 = vld [vmem:[#allocation13 + $0x38] sm:$0xf]
    %v1657 = vld [vmem:[#allocation13 + $0x3c] sm:$0xf]
    %v1658 = vld [vmem:[#allocation14] sm:$0xf]
    %v1659 = vld [vmem:[#allocation14 + $0x4] sm:$0xf]
    %v1660 = vld [vmem:[#allocation14 + $0x8] sm:$0xf]
    %v1661 = vld [vmem:[#allocation14 + $0xc] sm:$0xf]
    %v1662 = vld [vmem:[#allocation14 + $0x10] sm:$0xf]
    %v1663 = vld [vmem:[#allocation14 + $0x14] sm:$0xf]
    %v1664 = vld [vmem:[#allocation14 + $0x18] sm:$0xf]
    %v1665 = vld [vmem:[#allocation14 + $0x1c] sm:$0xf]
    %v1666 = vld [vmem:[#allocation14 + $0x20] sm:$0xf]
    %v1667 = vld [vmem:[#allocation14 + $0x24] sm:$0xf]
    %v1668 = vld [vmem:[#allocation14 + $0x28] sm:$0xf]
    %v1669 = vld [vmem:[#allocation14 + $0x2c] sm:$0xf]
    %v1670 = vld [vmem:[#allocation14 + $0x30] sm:$0xf]
    %v1671 = vld [vmem:[#allocation14 + $0x34] sm:$0xf]
    %v1672 = vld [vmem:[#allocation14 + $0x38] sm:$0xf]
    %v1673 = vld [vmem:[#allocation14 + $0x3c] sm:$0xf]
    %v1674 = vld [vmem:[%s11] sm:$0x1]
    %v1675 = vpack.c.bf16 %v1581, %v1578
    %v1676 = vpack.c.bf16 %v1589, %v1586
    %v1677 = vpack.c.bf16 %v1597, %v1594
    %v1678 = vpack.c.bf16 %v1605, %v1602
    %v1679 = vpack.c.bf16 %v1613, %v1610
    %v1680 = vpack.c.bf16 %v1621, %v1618
    %v1681 = vpack.c.bf16 %v1629, %v1626
    %v1682 = vpack.c.bf16 %v1637, %v1634
    %v1685 = vunpack.c.l.b16 %v1640
    %v1686 = vunpack.c.l.b16 %v1641
    %v1687 = vpack.c.b16 %v1686, %v1685
    %v1689 = vsel %vm403, %v1687, 0
    %1691 = vmatprep.subr.bf16.mxu0 0
    %1692 = vmatpush1.bf16.msra.mxu0 %v1675
    %1693 = vmatprep.subr.bf16.mxu0 0
    %1694 = vmatpush1.bf16.msra.mxu0 0
    %1695 = vmatprep.subr.bf16.mxu0 0
    %1696 = vmatpush1.bf16.msra.mxu0 0
    %1697 = vmatprep.subr.bf16.mxu0 0
    %1698 = vmatpush1.bf16.msra.mxu0 0
    %1699 = vmatprep.subr.bf16.mxu0 0
    %1700 = vmatpush1.bf16.msra.mxu0 0
    %1701 = vmatprep.subr.bf16.mxu0 0
    %1702 = vmatpush1.bf16.msra.mxu0 0
    %1703 = vmatprep.subr.bf16.mxu0 0
    %1704 = vmatpush1.bf16.msra.mxu0 0
    %1705 = vmatprep.subr.bf16.mxu0 0
    %1706 = vmatpush1.bf16.msra.mxu0 0
    %1707 = vmatprep.subr.bf16.mxu0 0
    %1708 = vmatpush1.bf16.msra.mxu0 0
    %1709 = vmatprep.subr.bf16.mxu0 0
    %1710 = vmatpush1.bf16.msra.mxu0 0
    %1711 = vmatprep.subr.bf16.mxu0 0
    %1712 = vmatpush1.bf16.msra.mxu0 0
    %1713 = vmatprep.subr.bf16.mxu0 0
    %1714 = vmatpush1.bf16.msra.mxu0 0
    %1715 = vmatprep.subr.bf16.mxu0 0
    %1716 = vmatpush1.bf16.msra.mxu0 0
    %1717 = vmatprep.subr.bf16.mxu0 0
    %1718 = vmatpush1.bf16.msra.mxu0 0
    %1719 = vmatprep.subr.bf16.mxu0 0
    %1720 = vmatpush1.bf16.msra.mxu0 0
    %1721 = vmatprep.subr.bf16.mxu0 0
    %1722 = vmatpush1.bf16.msra.mxu0 0
    %1723 = vmatprep.mubr.bf16.mxu0 0
    %1724 = vmatmul.mubr.bf16.gmra.mrb[0].mxu0 %v1689
    %v1725 = vpop.f32.mrb[0].mxu0
    %v1726 = vadd.f32 0.0, %v1725
    %v1727 = vpop.f32.mrb[0].mxu0
    %v1728 = vpop.f32.mrb[0].mxu0
    %v1729 = vadd.f32 0.0, %v1728
    %v1730 = vpop.f32.mrb[0].mxu0
    %1731 = vdwg.mxu0
    %1732 = vmatprep.subr.bf16.mxu0 0
    %1733 = vmatpush1.bf16.msra.mxu0 %v1676
    %1734 = vmatprep.subr.bf16.mxu0 0
    %1735 = vmatpush1.bf16.msra.mxu0 0
    %1736 = vmatprep.subr.bf16.mxu0 0
    %1737 = vmatpush1.bf16.msra.mxu0 0
    %1738 = vmatprep.subr.bf16.mxu0 0
    %1739 = vmatpush1.bf16.msra.mxu0 0
    %1740 = vmatprep.subr.bf16.mxu0 0
    %1741 = vmatpush1.bf16.msra.mxu0 0
    %1742 = vmatprep.subr.bf16.mxu0 0
    %1743 = vmatpush1.bf16.msra.mxu0 0
    %1744 = vmatprep.subr.bf16.mxu0 0
    %1745 = vmatpush1.bf16.msra.mxu0 0
    %1746 = vmatprep.subr.bf16.mxu0 0
    %1747 = vmatpush1.bf16.msra.mxu0 0
    %1748 = vmatprep.subr.bf16.mxu0 0
    %1749 = vmatpush1.bf16.msra.mxu0 0
    %1750 = vmatprep.subr.bf16.mxu0 0
    %1751 = vmatpush1.bf16.msra.mxu0 0
    %1752 = vmatprep.subr.bf16.mxu0 0
    %1753 = vmatpush1.bf16.msra.mxu0 0
    %1754 = vmatprep.subr.bf16.mxu0 0
    %1755 = vmatpush1.bf16.msra.mxu0 0
    %1756 = vmatprep.subr.bf16.mxu0 0
    %1757 = vmatpush1.bf16.msra.mxu0 0
    %1758 = vmatprep.subr.bf16.mxu0 0
    %1759 = vmatpush1.bf16.msra.mxu0 0
    %1760 = vmatprep.subr.bf16.mxu0 0
    %1761 = vmatpush1.bf16.msra.mxu0 0
    %1762 = vmatprep.subr.bf16.mxu0 0
    %1763 = vmatpush1.bf16.msra.mxu0 0
    %1764 = vmatprep.mubr.bf16.mxu0 0
    %1765 = vmatmul.mubr.bf16.gmra.mrb[0].mxu0 %v1689
    %v1766 = vpop.f32.mrb[0].mxu0
    %v1767 = vadd.f32 0.0, %v1766
    %v1768 = vpop.f32.mrb[0].mxu0
    %v1769 = vpop.f32.mrb[0].mxu0
    %v1770 = vadd.f32 0.0, %v1769
    %v1771 = vpop.f32.mrb[0].mxu0
    %1772 = vdwg.mxu0
    %1773 = vmatprep.subr.bf16.mxu0 0
    %1774 = vmatpush1.bf16.msra.mxu0 %v1677
    %1775 = vmatprep.subr.bf16.mxu0 0
    %1776 = vmatpush1.bf16.msra.mxu0 0
    %1777 = vmatprep.subr.bf16.mxu0 0
    %1778 = vmatpush1.bf16.msra.mxu0 0
    %1779 = vmatprep.subr.bf16.mxu0 0
    %1780 = vmatpush1.bf16.msra.mxu0 0
    %1781 = vmatprep.subr.bf16.mxu0 0
    %1782 = vmatpush1.bf16.msra.mxu0 0
    %1783 = vmatprep.subr.bf16.mxu0 0
    %1784 = vmatpush1.bf16.msra.mxu0 0
    %1785 = vmatprep.subr.bf16.mxu0 0
    %1786 = vmatpush1.bf16.msra.mxu0 0
    %1787 = vmatprep.subr.bf16.mxu0 0
    %1788 = vmatpush1.bf16.msra.mxu0 0
    %1789 = vmatprep.subr.bf16.mxu0 0
    %1790 = vmatpush1.bf16.msra.mxu0 0
    %1791 = vmatprep.subr.bf16.mxu0 0
    %1792 = vmatpush1.bf16.msra.mxu0 0
    %1793 = vmatprep.subr.bf16.mxu0 0
    %1794 = vmatpush1.bf16.msra.mxu0 0
    %1795 = vmatprep.subr.bf16.mxu0 0
    %1796 = vmatpush1.bf16.msra.mxu0 0
    %1797 = vmatprep.subr.bf16.mxu0 0
    %1798 = vmatpush1.bf16.msra.mxu0 0
    %1799 = vmatprep.subr.bf16.mxu0 0
    %1800 = vmatpush1.bf16.msra.mxu0 0
    %1801 = vmatprep.subr.bf16.mxu0 0
    %1802 = vmatpush1.bf16.msra.mxu0 0
    %1803 = vmatprep.subr.bf16.mxu0 0
    %1804 = vmatpush1.bf16.msra.mxu0 0
    %1805 = vmatprep.mubr.bf16.mxu0 0
    %1806 = vmatmul.mubr.bf16.gmra.mrb[0].mxu0 %v1689
    %v1807 = vpop.f32.mrb[0].mxu0
    %v1808 = vadd.f32 0.0, %v1807
    %v1809 = vpop.f32.mrb[0].mxu0
    %v1810 = vpop.f32.mrb[0].mxu0
    %v1811 = vadd.f32 0.0, %v1810
    %v1812 = vpop.f32.mrb[0].mxu0
    %1813 = vdwg.mxu0
    %1814 = vmatprep.subr.bf16.mxu0 0
    %1815 = vmatpush1.bf16.msra.mxu0 %v1678
    %1816 = vmatprep.subr.bf16.mxu0 0
    %1817 = vmatpush1.bf16.msra.mxu0 0
    %1818 = vmatprep.subr.bf16.mxu0 0
    %1819 = vmatpush1.bf16.msra.mxu0 0
    %1820 = vmatprep.subr.bf16.mxu0 0
    %1821 = vmatpush1.bf16.msra.mxu0 0
    %1822 = vmatprep.subr.bf16.mxu0 0
    %1823 = vmatpush1.bf16.msra.mxu0 0
    %1824 = vmatprep.subr.bf16.mxu0 0
    %1825 = vmatpush1.bf16.msra.mxu0 0
    %1826 = vmatprep.subr.bf16.mxu0 0
    %1827 = vmatpush1.bf16.msra.mxu0 0
    %1828 = vmatprep.subr.bf16.mxu0 0
    %1829 = vmatpush1.bf16.msra.mxu0 0
    %1830 = vmatprep.subr.bf16.mxu0 0
    %1831 = vmatpush1.bf16.msra.mxu0 0
    %1832 = vmatprep.subr.bf16.mxu0 0
    %1833 = vmatpush1.bf16.msra.mxu0 0
    %1834 = vmatprep.subr.bf16.mxu0 0
    %1835 = vmatpush1.bf16.msra.mxu0 0
    %1836 = vmatprep.subr.bf16.mxu0 0
    %1837 = vmatpush1.bf16.msra.mxu0 0
    %1838 = vmatprep.subr.bf16.mxu0 0
    %1839 = vmatpush1.bf16.msra.mxu0 0
    %1840 = vmatprep.subr.bf16.mxu0 0
    %1841 = vmatpush1.bf16.msra.mxu0 0
    %1842 = vmatprep.subr.bf16.mxu0 0
    %1843 = vmatpush1.bf16.msra.mxu0 0
    %1844 = vmatprep.subr.bf16.mxu0 0
    %1845 = vmatpush1.bf16.msra.mxu0 0
    %1846 = vmatprep.mubr.bf16.mxu0 0
    %1847 = vmatmul.mubr.bf16.gmra.mrb[0].mxu0 %v1689
    %v1848 = vpop.f32.mrb[0].mxu0
    %v1849 = vadd.f32 0.0, %v1848
    %v1850 = vpop.f32.mrb[0].mxu0
    %v1851 = vpop.f32.mrb[0].mxu0
    %v1852 = vadd.f32 0.0, %v1851
    %v1853 = vpop.f32.mrb[0].mxu0
    %1854 = vdwg.mxu0
    %1855 = vmatprep.subr.bf16.mxu0 0
    %1856 = vmatpush1.bf16.msra.mxu0 %v1679
    %1857 = vmatprep.subr.bf16.mxu0 0
    %1858 = vmatpush1.bf16.msra.mxu0 0
    %1859 = vmatprep.subr.bf16.mxu0 0
    %1860 = vmatpush1.bf16.msra.mxu0 0
    %1861 = vmatprep.subr.bf16.mxu0 0
    %1862 = vmatpush1.bf16.msra.mxu0 0
    %1863 = vmatprep.subr.bf16.mxu0 0
    %1864 = vmatpush1.bf16.msra.mxu0 0
    %1865 = vmatprep.subr.bf16.mxu0 0
    %1866 = vmatpush1.bf16.msra.mxu0 0
    %1867 = vmatprep.subr.bf16.mxu0 0
    %1868 = vmatpush1.bf16.msra.mxu0 0
    %1869 = vmatprep.subr.bf16.mxu0 0
    %1870 = vmatpush1.bf16.msra.mxu0 0
    %1871 = vmatprep.subr.bf16.mxu0 0
    %1872 = vmatpush1.bf16.msra.mxu0 0
    %1873 = vmatprep.subr.bf16.mxu0 0
    %1874 = vmatpush1.bf16.msra.mxu0 0
    %1875 = vmatprep.subr.bf16.mxu0 0
    %1876 = vmatpush1.bf16.msra.mxu0 0
    %1877 = vmatprep.subr.bf16.mxu0 0
    %1878 = vmatpush1.bf16.msra.mxu0 0
    %1879 = vmatprep.subr.bf16.mxu0 0
    %1880 = vmatpush1.bf16.msra.mxu0 0
    %1881 = vmatprep.subr.bf16.mxu0 0
    %1882 = vmatpush1.bf16.msra.mxu0 0
    %1883 = vmatprep.subr.bf16.mxu0 0
    %1884 = vmatpush1.bf16.msra.mxu0 0
    %1885 = vmatprep.subr.bf16.mxu0 0
    %1886 = vmatpush1.bf16.msra.mxu0 0
    %1887 = vmatprep.mubr.bf16.mxu0 0
    %1888 = vmatmul.mubr.bf16.gmra.mrb[0].mxu0 %v1689
    %v1889 = vpop.f32.mrb[0].mxu0
    %v1890 = vadd.f32 0.0, %v1889
    %v1891 = vpop.f32.mrb[0].mxu0
    %v1892 = vpop.f32.mrb[0].mxu0
    %v1893 = vadd.f32 0.0, %v1892
    %v1894 = vpop.f32.mrb[0].mxu0
    %1895 = vdwg.mxu0
    %1896 = vmatprep.subr.bf16.mxu0 0
    %1897 = vmatpush1.bf16.msra.mxu0 %v1680
    %1898 = vmatprep.subr.bf16.mxu0 0
    %1899 = vmatpush1.bf16.msra.mxu0 0
    %1900 = vmatprep.subr.bf16.mxu0 0
    %1901 = vmatpush1.bf16.msra.mxu0 0
    %1902 = vmatprep.subr.bf16.mxu0 0
    %1903 = vmatpush1.bf16.msra.mxu0 0
    %1904 = vmatprep.subr.bf16.mxu0 0
    %1905 = vmatpush1.bf16.msra.mxu0 0
    %1906 = vmatprep.subr.bf16.mxu0 0
    %1907 = vmatpush1.bf16.msra.mxu0 0
    %1908 = vmatprep.subr.bf16.mxu0 0
    %1909 = vmatpush1.bf16.msra.mxu0 0
    %1910 = vmatprep.subr.bf16.mxu0 0
    %1911 = vmatpush1.bf16.msra.mxu0 0
    %1912 = vmatprep.subr.bf16.mxu0 0
    %1913 = vmatpush1.bf16.msra.mxu0 0
    %1914 = vmatprep.subr.bf16.mxu0 0
    %1915 = vmatpush1.bf16.msra.mxu0 0
    %1916 = vmatprep.subr.bf16.mxu0 0
    %1917 = vmatpush1.bf16.msra.mxu0 0
    %1918 = vmatprep.subr.bf16.mxu0 0
    %1919 = vmatpush1.bf16.msra.mxu0 0
    %1920 = vmatprep.subr.bf16.mxu0 0
    %1921 = vmatpush1.bf16.msra.mxu0 0
    %1922 = vmatprep.subr.bf16.mxu0 0
    %1923 = vmatpush1.bf16.msra.mxu0 0
    %1924 = vmatprep.subr.bf16.mxu0 0
    %1925 = vmatpush1.bf16.msra.mxu0 0
    %1926 = vmatprep.subr.bf16.mxu0 0
    %1927 = vmatpush1.bf16.msra.mxu0 0
    %1928 = vmatprep.mubr.bf16.mxu0 0
    %1929 = vmatmul.mubr.bf16.gmra.mrb[0].mxu0 %v1689
    %v1930 = vpop.f32.mrb[0].mxu0
    %v1931 = vadd.f32 0.0, %v1930
    %v1932 = vpop.f32.mrb[0].mxu0
    %v1933 = vpop.f32.mrb[0].mxu0
    %v1934 = vadd.f32 0.0, %v1933
    %v1935 = vpop.f32.mrb[0].mxu0
    %1936 = vdwg.mxu0
    %1937 = vmatprep.subr.bf16.mxu0 0
    %1938 = vmatpush1.bf16.msra.mxu0 %v1681
    %1939 = vmatprep.subr.bf16.mxu0 0
    %1940 = vmatpush1.bf16.msra.mxu0 0
    %1941 = vmatprep.subr.bf16.mxu0 0
    %1942 = vmatpush1.bf16.msra.mxu0 0
    %1943 = vmatprep.subr.bf16.mxu0 0
    %1944 = vmatpush1.bf16.msra.mxu0 0
    %1945 = vmatprep.subr.bf16.mxu0 0
    %1946 = vmatpush1.bf16.msra.mxu0 0
    %1947 = vmatprep.subr.bf16.mxu0 0
    %1948 = vmatpush1.bf16.msra.mxu0 0
    %1949 = vmatprep.subr.bf16.mxu0 0
    %1950 = vmatpush1.bf16.msra.mxu0 0
    %1951 = vmatprep.subr.bf16.mxu0 0
    %1952 = vmatpush1.bf16.msra.mxu0 0
    %1953 = vmatprep.subr.bf16.mxu0 0
    %1954 = vmatpush1.bf16.msra.mxu0 0
    %1955 = vmatprep.subr.bf16.mxu0 0
    %1956 = vmatpush1.bf16.msra.mxu0 0
    %1957 = vmatprep.subr.bf16.mxu0 0
    %1958 = vmatpush1.bf16.msra.mxu0 0
    %1959 = vmatprep.subr.bf16.mxu0 0
    %1960 = vmatpush1.bf16.msra.mxu0 0
    %1961 = vmatprep.subr.bf16.mxu0 0
    %1962 = vmatpush1.bf16.msra.mxu0 0
    %1963 = vmatprep.subr.bf16.mxu0 0
    %1964 = vmatpush1.bf16.msra.mxu0 0
    %1965 = vmatprep.subr.bf16.mxu0 0
    %1966 = vmatpush1.bf16.msra.mxu0 0
    %1967 = vmatprep.subr.bf16.mxu0 0
    %1968 = vmatpush1.bf16.msra.mxu0 0
    %1969 = vmatprep.mubr.bf16.mxu0 0
    %1970 = vmatmul.mubr.bf16.gmra.mrb[0].mxu0 %v1689
    %v1971 = vpop.f32.mrb[0].mxu0
    %v1972 = vadd.f32 0.0, %v1971
    %v1973 = vpop.f32.mrb[0].mxu0
    %v1974 = vpop.f32.mrb[0].mxu0
    %v1975 = vadd.f32 0.0, %v1974
    %v1976 = vpop.f32.mrb[0].mxu0
    %1977 = vdwg.mxu0
    %1978 = vmatprep.subr.bf16.mxu0 0
    %1979 = vmatpush1.bf16.msra.mxu0 %v1682
    %1980 = vmatprep.subr.bf16.mxu0 0
    %1981 = vmatpush1.bf16.msra.mxu0 0
    %1982 = vmatprep.subr.bf16.mxu0 0
    %1983 = vmatpush1.bf16.msra.mxu0 0
    %1984 = vmatprep.subr.bf16.mxu0 0
    %1985 = vmatpush1.bf16.msra.mxu0 0
    %1986 = vmatprep.subr.bf16.mxu0 0
    %1987 = vmatpush1.bf16.msra.mxu0 0
    %1988 = vmatprep.subr.bf16.mxu0 0
    %1989 = vmatpush1.bf16.msra.mxu0 0
    %1990 = vmatprep.subr.bf16.mxu0 0
    %1991 = vmatpush1.bf16.msra.mxu0 0
    %1992 = vmatprep.subr.bf16.mxu0 0
    %1993 = vmatpush1.bf16.msra.mxu0 0
    %1994 = vmatprep.subr.bf16.mxu0 0
    %1995 = vmatpush1.bf16.msra.mxu0 0
    %1996 = vmatprep.subr.bf16.mxu0 0
    %1997 = vmatpush1.bf16.msra.mxu0 0
    %1998 = vmatprep.subr.bf16.mxu0 0
    %1999 = vmatpush1.bf16.msra.mxu0 0
    %2000 = vmatprep.subr.bf16.mxu0 0
    %2001 = vmatpush1.bf16.msra.mxu0 0
    %2002 = vmatprep.subr.bf16.mxu0 0
    %2003 = vmatpush1.bf16.msra.mxu0 0
    %2004 = vmatprep.subr.bf16.mxu0 0
    %2005 = vmatpush1.bf16.msra.mxu0 0
    %2006 = vmatprep.subr.bf16.mxu0 0
    %2007 = vmatpush1.bf16.msra.mxu0 0
    %2008 = vmatprep.subr.bf16.mxu0 0
    %2009 = vmatpush1.bf16.msra.mxu0 0
    %2010 = vmatprep.mubr.bf16.mxu0 0
    %2011 = vmatmul.mubr.bf16.gmra.mrb[0].mxu0 %v1689
    %v2012 = vpop.f32.mrb[0].mxu0
    %v2013 = vadd.f32 0.0, %v2012
    %v2014 = vpop.f32.mrb[0].mxu0
    %v2015 = vpop.f32.mrb[0].mxu0
    %v2016 = vadd.f32 0.0, %v2015
    %v2017 = vpop.f32.mrb[0].mxu0
    %2018 = vdwg.mxu0
    %v2019 = vmul.f32 %v1726, 0.2
    %v2020 = vmul.f32 %v1729, 0.2
    %v2021 = vmul.f32 %v1767, 0.2
    %v2022 = vmul.f32 %v1770, 0.2
    %v2023 = vmul.f32 %v1808, 0.2
    %v2024 = vmul.f32 %v1811, 0.2
    %v2025 = vmul.f32 %v1849, 0.2
    %v2026 = vmul.f32 %v1852, 0.2
    %v2027 = vmul.f32 %v1890, 0.2
    %v2028 = vmul.f32 %v1893, 0.2
    %v2029 = vmul.f32 %v1931, 0.2
    %v2030 = vmul.f32 %v1934, 0.2
    %v2031 = vmul.f32 %v1972, 0.2
    %v2032 = vmul.f32 %v1975, 0.2
    %v2033 = vmul.f32 %v2013, 0.2
    %v2034 = vmul.f32 %v2016, 0.2
    %v2035 = vmax.f32 %v1726, %v2019
    %v2036 = vmax.f32 %v1729, %v2020
    %v2037 = vmax.f32 %v1767, %v2021
    %v2038 = vmax.f32 %v1770, %v2022
    %v2039 = vmax.f32 %v1808, %v2023
    %v2040 = vmax.f32 %v1811, %v2024
    %v2041 = vmax.f32 %v1849, %v2025
    %v2042 = vmax.f32 %v1852, %v2026
    %v2043 = vmax.f32 %v1890, %v2027
    %v2044 = vmax.f32 %v1893, %v2028
    %v2045 = vmax.f32 %v1931, %v2029
    %v2046 = vmax.f32 %v1934, %v2030
    %v2047 = vmax.f32 %v1972, %v2031
    %v2048 = vmax.f32 %v1975, %v2032
    %v2049 = vmax.f32 %v2013, %v2033
    %v2050 = vmax.f32 %v2016, %v2034
    %v2051 = vpack.c.bf16 %v2036, %v2035
    %v2052 = vpack.c.bf16 %v2038, %v2037
    %v2053 = vpack.c.bf16 %v2040, %v2039
    %v2054 = vpack.c.bf16 %v2042, %v2041
    %v2055 = vpack.c.bf16 %v2044, %v2043
    %v2056 = vpack.c.bf16 %v2046, %v2045
    %v2057 = vpack.c.bf16 %v2048, %v2047
    %v2058 = vpack.c.bf16 %v2050, %v2049
    %2059 = vmatprep.subr.bf16.mxu0 0
    %2060 = vmatpush1.bf16.msra.mxu0 %v2051
    %2061 = vmatprep.subr.bf16.mxu0 0
    %2062 = vmatpush1.bf16.msra.mxu0 0
    %2063 = vmatprep.subr.bf16.mxu0 0
    %2064 = vmatpush1.bf16.msra.mxu0 0
    %2065 = vmatprep.subr.bf16.mxu0 0
    %2066 = vmatpush1.bf16.msra.mxu0 0
    %2067 = vmatprep.subr.bf16.mxu0 0
    %2068 = vmatpush1.bf16.msra.mxu0 0
    %2069 = vmatprep.subr.bf16.mxu0 0
    %2070 = vmatpush1.bf16.msra.mxu0 0
    %2071 = vmatprep.subr.bf16.mxu0 0
    %2072 = vmatpush1.bf16.msra.mxu0 0
    %2073 = vmatprep.subr.bf16.mxu0 0
    %2074 = vmatpush1.bf16.msra.mxu0 0
    %2075 = vmatprep.subr.bf16.mxu0 0
    %2076 = vmatpush1.bf16.msra.mxu0 0
    %2077 = vmatprep.subr.bf16.mxu0 0
    %2078 = vmatpush1.bf16.msra.mxu0 0
    %2079 = vmatprep.subr.bf16.mxu0 0
    %2080 = vmatpush1.bf16.msra.mxu0 0
    %2081 = vmatprep.subr.bf16.mxu0 0
    %2082 = vmatpush1.bf16.msra.mxu0 0
    %2083 = vmatprep.subr.bf16.mxu0 0
    %2084 = vmatpush1.bf16.msra.mxu0 0
    %2085 = vmatprep.subr.bf16.mxu0 0
    %2086 = vmatpush1.bf16.msra.mxu0 0
    %2087 = vmatprep.subr.bf16.mxu0 0
    %2088 = vmatpush1.bf16.msra.mxu0 0
    %2089 = vmatprep.subr.bf16.mxu0 0
    %2090 = vmatpush1.bf16.msra.mxu0 0
    %2091 = vmatprep.mubr.bf16.mxu0 0
    %2092 = vmatmul.mubr.bf16.gmra.mrb[0].mxu0 %v1689
    %v2093 = vpop.f32.mrb[0].mxu0
    %v2094 = vadd.f32 0.0, %v2093
    %v2095 = vpop.f32.mrb[0].mxu0
    %v2096 = vpop.f32.mrb[0].mxu0
    %v2097 = vadd.f32 0.0, %v2096
    %v2098 = vpop.f32.mrb[0].mxu0
    %2099 = vdwg.mxu0
    %2100 = vmatprep.subr.bf16.mxu0 0
    %2101 = vmatpush1.bf16.msra.mxu0 %v2052
    %2102 = vmatprep.subr.bf16.mxu0 0
    %2103 = vmatpush1.bf16.msra.mxu0 0
    %2104 = vmatprep.subr.bf16.mxu0 0
    %2105 = vmatpush1.bf16.msra.mxu0 0
    %2106 = vmatprep.subr.bf16.mxu0 0
    %2107 = vmatpush1.bf16.msra.mxu0 0
    %2108 = vmatprep.subr.bf16.mxu0 0
    %2109 = vmatpush1.bf16.msra.mxu0 0
    %2110 = vmatprep.subr.bf16.mxu0 0
    %2111 = vmatpush1.bf16.msra.mxu0 0
    %2112 = vmatprep.subr.bf16.mxu0 0
    %2113 = vmatpush1.bf16.msra.mxu0 0
    %2114 = vmatprep.subr.bf16.mxu0 0
    %2115 = vmatpush1.bf16.msra.mxu0 0
    %2116 = vmatprep.subr.bf16.mxu0 0
    %2117 = vmatpush1.bf16.msra.mxu0 0
    %2118 = vmatprep.subr.bf16.mxu0 0
    %2119 = vmatpush1.bf16.msra.mxu0 0
    %2120 = vmatprep.subr.bf16.mxu0 0
    %2121 = vmatpush1.bf16.msra.mxu0 0
    %2122 = vmatprep.subr.bf16.mxu0 0
    %2123 = vmatpush1.bf16.msra.mxu0 0
    %2124 = vmatprep.subr.bf16.mxu0 0
    %2125 = vmatpush1.bf16.msra.mxu0 0
    %2126 = vmatprep.subr.bf16.mxu0 0
    %2127 = vmatpush1.bf16.msra.mxu0 0
    %2128 = vmatprep.subr.bf16.mxu0 0
    %2129 = vmatpush1.bf16.msra.mxu0 0
    %2130 = vmatprep.subr.bf16.mxu0 0
    %2131 = vmatpush1.bf16.msra.mxu0 0
    %2132 = vmatprep.mubr.bf16.mxu0 0
    %2133 = vmatmul.mubr.bf16.gmra.mrb[0].mxu0 %v1689
    %v2134 = vpop.f32.mrb[0].mxu0
    %v2135 = vadd.f32 0.0, %v2134
    %v2136 = vpop.f32.mrb[0].mxu0
    %v2137 = vpop.f32.mrb[0].mxu0
    %v2138 = vadd.f32 0.0, %v2137
    %v2139 = vpop.f32.mrb[0].mxu0
    %2140 = vdwg.mxu0
    %2141 = vmatprep.subr.bf16.mxu0 0
    %2142 = vmatpush1.bf16.msra.mxu0 %v2053
    %2143 = vmatprep.subr.bf16.mxu0 0
    %2144 = vmatpush1.bf16.msra.mxu0 0
    %2145 = vmatprep.subr.bf16.mxu0 0
    %2146 = vmatpush1.bf16.msra.mxu0 0
    %2147 = vmatprep.subr.bf16.mxu0 0
    %2148 = vmatpush1.bf16.msra.mxu0 0
    %2149 = vmatprep.subr.bf16.mxu0 0
    %2150 = vmatpush1.bf16.msra.mxu0 0
    %2151 = vmatprep.subr.bf16.mxu0 0
    %2152 = vmatpush1.bf16.msra.mxu0 0
    %2153 = vmatprep.subr.bf16.mxu0 0
    %2154 = vmatpush1.bf16.msra.mxu0 0
    %2155 = vmatprep.subr.bf16.mxu0 0
    %2156 = vmatpush1.bf16.msra.mxu0 0
    %2157 = vmatprep.subr.bf16.mxu0 0
    %2158 = vmatpush1.bf16.msra.mxu0 0
    %2159 = vmatprep.subr.bf16.mxu0 0
    %2160 = vmatpush1.bf16.msra.mxu0 0
    %2161 = vmatprep.subr.bf16.mxu0 0
    %2162 = vmatpush1.bf16.msra.mxu0 0
    %2163 = vmatprep.subr.bf16.mxu0 0
    %2164 = vmatpush1.bf16.msra.mxu0 0
    %2165 = vmatprep.subr.bf16.mxu0 0
    %2166 = vmatpush1.bf16.msra.mxu0 0
    %2167 = vmatprep.subr.bf16.mxu0 0
    %2168 = vmatpush1.bf16.msra.mxu0 0
    %2169 = vmatprep.subr.bf16.mxu0 0
    %2170 = vmatpush1.bf16.msra.mxu0 0
    %2171 = vmatprep.subr.bf16.mxu0 0
    %2172 = vmatpush1.bf16.msra.mxu0 0
    %2173 = vmatprep.mubr.bf16.mxu0 0
    %2174 = vmatmul.mubr.bf16.gmra.mrb[0].mxu0 %v1689
    %v2175 = vpop.f32.mrb[0].mxu0
    %v2176 = vadd.f32 0.0, %v2175
    %v2177 = vpop.f32.mrb[0].mxu0
    %v2178 = vpop.f32.mrb[0].mxu0
    %v2179 = vadd.f32 0.0, %v2178
    %v2180 = vpop.f32.mrb[0].mxu0
    %2181 = vdwg.mxu0
    %2182 = vmatprep.subr.bf16.mxu0 0
    %2183 = vmatpush1.bf16.msra.mxu0 %v2054
    %2184 = vmatprep.subr.bf16.mxu0 0
    %2185 = vmatpush1.bf16.msra.mxu0 0
    %2186 = vmatprep.subr.bf16.mxu0 0
    %2187 = vmatpush1.bf16.msra.mxu0 0
    %2188 = vmatprep.subr.bf16.mxu0 0
    %2189 = vmatpush1.bf16.msra.mxu0 0
    %2190 = vmatprep.subr.bf16.mxu0 0
    %2191 = vmatpush1.bf16.msra.mxu0 0
    %2192 = vmatprep.subr.bf16.mxu0 0
    %2193 = vmatpush1.bf16.msra.mxu0 0
    %2194 = vmatprep.subr.bf16.mxu0 0
    %2195 = vmatpush1.bf16.msra.mxu0 0
    %2196 = vmatprep.subr.bf16.mxu0 0
    %2197 = vmatpush1.bf16.msra.mxu0 0
    %2198 = vmatprep.subr.bf16.mxu0 0
    %2199 = vmatpush1.bf16.msra.mxu0 0
    %2200 = vmatprep.subr.bf16.mxu0 0
    %2201 = vmatpush1.bf16.msra.mxu0 0
    %2202 = vmatprep.subr.bf16.mxu0 0
    %2203 = vmatpush1.bf16.msra.mxu0 0
    %2204 = vmatprep.subr.bf16.mxu0 0
    %2205 = vmatpush1.bf16.msra.mxu0 0
    %2206 = vmatprep.subr.bf16.mxu0 0
    %2207 = vmatpush1.bf16.msra.mxu0 0
    %2208 = vmatprep.subr.bf16.mxu0 0
    %2209 = vmatpush1.bf16.msra.mxu0 0
    %2210 = vmatprep.subr.bf16.mxu0 0
    %2211 = vmatpush1.bf16.msra.mxu0 0
    %2212 = vmatprep.subr.bf16.mxu0 0
    %2213 = vmatpush1.bf16.msra.mxu0 0
    %2214 = vmatprep.mubr.bf16.mxu0 0
    %2215 = vmatmul.mubr.bf16.gmra.mrb[0].mxu0 %v1689
    %v2216 = vpop.f32.mrb[0].mxu0
    %v2217 = vadd.f32 0.0, %v2216
    %v2218 = vpop.f32.mrb[0].mxu0
    %v2219 = vpop.f32.mrb[0].mxu0
    %v2220 = vadd.f32 0.0, %v2219
    %v2221 = vpop.f32.mrb[0].mxu0
    %2222 = vdwg.mxu0
    %2223 = vmatprep.subr.bf16.mxu0 0
    %2224 = vmatpush1.bf16.msra.mxu0 %v2055
    %2225 = vmatprep.subr.bf16.mxu0 0
    %2226 = vmatpush1.bf16.msra.mxu0 0
    %2227 = vmatprep.subr.bf16.mxu0 0
    %2228 = vmatpush1.bf16.msra.mxu0 0
    %2229 = vmatprep.subr.bf16.mxu0 0
    %2230 = vmatpush1.bf16.msra.mxu0 0
    %2231 = vmatprep.subr.bf16.mxu0 0
    %2232 = vmatpush1.bf16.msra.mxu0 0
    %2233 = vmatprep.subr.bf16.mxu0 0
    %2234 = vmatpush1.bf16.msra.mxu0 0
    %2235 = vmatprep.subr.bf16.mxu0 0
    %2236 = vmatpush1.bf16.msra.mxu0 0
    %2237 = vmatprep.subr.bf16.mxu0 0
    %2238 = vmatpush1.bf16.msra.mxu0 0
    %2239 = vmatprep.subr.bf16.mxu0 0
    %2240 = vmatpush1.bf16.msra.mxu0 0
    %2241 = vmatprep.subr.bf16.mxu0 0
    %2242 = vmatpush1.bf16.msra.mxu0 0
    %2243 = vmatprep.subr.bf16.mxu0 0
    %2244 = vmatpush1.bf16.msra.mxu0 0
    %2245 = vmatprep.subr.bf16.mxu0 0
    %2246 = vmatpush1.bf16.msra.mxu0 0
    %2247 = vmatprep.subr.bf16.mxu0 0
    %2248 = vmatpush1.bf16.msra.mxu0 0
    %2249 = vmatprep.subr.bf16.mxu0 0
    %2250 = vmatpush1.bf16.msra.mxu0 0
    %2251 = vmatprep.subr.bf16.mxu0 0
    %2252 = vmatpush1.bf16.msra.mxu0 0
    %2253 = vmatprep.subr.bf16.mxu0 0
    %2254 = vmatpush1.bf16.msra.mxu0 0
    %2255 = vmatprep.mubr.bf16.mxu0 0
    %2256 = vmatmul.mubr.bf16.gmra.mrb[0].mxu0 %v1689
    %v2257 = vpop.f32.mrb[0].mxu0
    %v2258 = vadd.f32 0.0, %v2257
    %v2259 = vpop.f32.mrb[0].mxu0
    %v2260 = vpop.f32.mrb[0].mxu0
    %v2261 = vadd.f32 0.0, %v2260
    %v2262 = vpop.f32.mrb[0].mxu0
    %2263 = vdwg.mxu0
    %2264 = vmatprep.subr.bf16.mxu0 0
    %2265 = vmatpush1.bf16.msra.mxu0 %v2056
    %2266 = vmatprep.subr.bf16.mxu0 0
    %2267 = vmatpush1.bf16.msra.mxu0 0
    %2268 = vmatprep.subr.bf16.mxu0 0
    %2269 = vmatpush1.bf16.msra.mxu0 0
    %2270 = vmatprep.subr.bf16.mxu0 0
    %2271 = vmatpush1.bf16.msra.mxu0 0
    %2272 = vmatprep.subr.bf16.mxu0 0
    %2273 = vmatpush1.bf16.msra.mxu0 0
    %2274 = vmatprep.subr.bf16.mxu0 0
    %2275 = vmatpush1.bf16.msra.mxu0 0
    %2276 = vmatprep.subr.bf16.mxu0 0
    %2277 = vmatpush1.bf16.msra.mxu0 0
    %2278 = vmatprep.subr.bf16.mxu0 0
    %2279 = vmatpush1.bf16.msra.mxu0 0
    %2280 = vmatprep.subr.bf16.mxu0 0
    %2281 = vmatpush1.bf16.msra.mxu0 0
    %2282 = vmatprep.subr.bf16.mxu0 0
    %2283 = vmatpush1.bf16.msra.mxu0 0
    %2284 = vmatprep.subr.bf16.mxu0 0
    %2285 = vmatpush1.bf16.msra.mxu0 0
    %2286 = vmatprep.subr.bf16.mxu0 0
    %2287 = vmatpush1.bf16.msra.mxu0 0
    %2288 = vmatprep.subr.bf16.mxu0 0
    %2289 = vmatpush1.bf16.msra.mxu0 0
    %2290 = vmatprep.subr.bf16.mxu0 0
    %2291 = vmatpush1.bf16.msra.mxu0 0
    %2292 = vmatprep.subr.bf16.mxu0 0
    %2293 = vmatpush1.bf16.msra.mxu0 0
    %2294 = vmatprep.subr.bf16.mxu0 0
    %2295 = vmatpush1.bf16.msra.mxu0 0
    %2296 = vmatprep.mubr.bf16.mxu0 0
    %2297 = vmatmul.mubr.bf16.gmra.mrb[0].mxu0 %v1689
    %v2298 = vpop.f32.mrb[0].mxu0
    %v2299 = vadd.f32 0.0, %v2298
    %v2300 = vpop.f32.mrb[0].mxu0
    %v2301 = vpop.f32.mrb[0].mxu0
    %v2302 = vadd.f32 0.0, %v2301
    %v2303 = vpop.f32.mrb[0].mxu0
    %2304 = vdwg.mxu0
    %2305 = vmatprep.subr.bf16.mxu0 0
    %2306 = vmatpush1.bf16.msra.mxu0 %v2057
    %2307 = vmatprep.subr.bf16.mxu0 0
    %2308 = vmatpush1.bf16.msra.mxu0 0
    %2309 = vmatprep.subr.bf16.mxu0 0
    %2310 = vmatpush1.bf16.msra.mxu0 0
    %2311 = vmatprep.subr.bf16.mxu0 0
    %2312 = vmatpush1.bf16.msra.mxu0 0
    %2313 = vmatprep.subr.bf16.mxu0 0
    %2314 = vmatpush1.bf16.msra.mxu0 0
    %2315 = vmatprep.subr.bf16.mxu0 0
    %2316 = vmatpush1.bf16.msra.mxu0 0
    %2317 = vmatprep.subr.bf16.mxu0 0
    %2318 = vmatpush1.bf16.msra.mxu0 0
    %2319 = vmatprep.subr.bf16.mxu0 0
    %2320 = vmatpush1.bf16.msra.mxu0 0
    %2321 = vmatprep.subr.bf16.mxu0 0
    %2322 = vmatpush1.bf16.msra.mxu0 0
    %2323 = vmatprep.subr.bf16.mxu0 0
    %2324 = vmatpush1.bf16.msra.mxu0 0
    %2325 = vmatprep.subr.bf16.mxu0 0
    %2326 = vmatpush1.bf16.msra.mxu0 0
    %2327 = vmatprep.subr.bf16.mxu0 0
    %2328 = vmatpush1.bf16.msra.mxu0 0
    %2329 = vmatprep.subr.bf16.mxu0 0
    %2330 = vmatpush1.bf16.msra.mxu0 0
    %2331 = vmatprep.subr.bf16.mxu0 0
    %2332 = vmatpush1.bf16.msra.mxu0 0
    %2333 = vmatprep.subr.bf16.mxu0 0
    %2334 = vmatpush1.bf16.msra.mxu0 0
    %2335 = vmatprep.subr.bf16.mxu0 0
    %2336 = vmatpush1.bf16.msra.mxu0 0
    %2337 = vmatprep.mubr.bf16.mxu0 0
    %2338 = vmatmul.mubr.bf16.gmra.mrb[0].mxu0 %v1689
    %v2339 = vpop.f32.mrb[0].mxu0
    %v2340 = vadd.f32 0.0, %v2339
    %v2341 = vpop.f32.mrb[0].mxu0
    %v2342 = vpop.f32.mrb[0].mxu0
    %v2343 = vadd.f32 0.0, %v2342
    %v2344 = vpop.f32.mrb[0].mxu0
    %2345 = vdwg.mxu0
    %2346 = vmatprep.subr.bf16.mxu0 0
    %2347 = vmatpush1.bf16.msra.mxu0 %v2058
    %2348 = vmatprep.subr.bf16.mxu0 0
    %2349 = vmatpush1.bf16.msra.mxu0 0
    %2350 = vmatprep.subr.bf16.mxu0 0
    %2351 = vmatpush1.bf16.msra.mxu0 0
    %2352 = vmatprep.subr.bf16.mxu0 0
    %2353 = vmatpush1.bf16.msra.mxu0 0
    %2354 = vmatprep.subr.bf16.mxu0 0
    %2355 = vmatpush1.bf16.msra.mxu0 0
    %2356 = vmatprep.subr.bf16.mxu0 0
    %2357 = vmatpush1.bf16.msra.mxu0 0
    %2358 = vmatprep.subr.bf16.mxu0 0
    %2359 = vmatpush1.bf16.msra.mxu0 0
    %2360 = vmatprep.subr.bf16.mxu0 0
    %2361 = vmatpush1.bf16.msra.mxu0 0
    %2362 = vmatprep.subr.bf16.mxu0 0
    %2363 = vmatpush1.bf16.msra.mxu0 0
    %2364 = vmatprep.subr.bf16.mxu0 0
    %2365 = vmatpush1.bf16.msra.mxu0 0
    %2366 = vmatprep.subr.bf16.mxu0 0
    %2367 = vmatpush1.bf16.msra.mxu0 0
    %2368 = vmatprep.subr.bf16.mxu0 0
    %2369 = vmatpush1.bf16.msra.mxu0 0
    %2370 = vmatprep.subr.bf16.mxu0 0
    %2371 = vmatpush1.bf16.msra.mxu0 0
    %2372 = vmatprep.subr.bf16.mxu0 0
    %2373 = vmatpush1.bf16.msra.mxu0 0
    %2374 = vmatprep.subr.bf16.mxu0 0
    %2375 = vmatpush1.bf16.msra.mxu0 0
    %2376 = vmatprep.subr.bf16.mxu0 0
    %2377 = vmatpush1.bf16.msra.mxu0 0
    %2378 = vmatprep.mubr.bf16.mxu0 0
    %2379 = vmatmul.mubr.bf16.gmra.mrb[0].mxu0 %v1689
    %v2380 = vpop.f32.mrb[0].mxu0
    %v2381 = vadd.f32 0.0, %v2380
    %v2382 = vpop.f32.mrb[0].mxu0
    %v2383 = vpop.f32.mrb[0].mxu0
    %v2384 = vadd.f32 0.0, %v2383
    %v2385 = vpop.f32.mrb[0].mxu0
    %2386 = vdwg.mxu0
    %v2387 = vpack.c.bf16 %v2097, %v2094
    %v2388 = vpack.c.bf16 %v2138, %v2135
    %v2389 = vpack.c.bf16 %v2179, %v2176
    %v2390 = vpack.c.bf16 %v2220, %v2217
    %v2391 = vpack.c.bf16 %v2261, %v2258
    %v2392 = vpack.c.bf16 %v2302, %v2299
    %v2393 = vpack.c.bf16 %v2343, %v2340
    %v2394 = vpack.c.bf16 %v2384, %v2381
    %v2411 = vunpack.c.l.b16 %v1642
    %v2412 = vunpack.c.l.b16 %v1643
    %v2413 = vunpack.c.l.b16 %v1644
    %v2414 = vunpack.c.l.b16 %v1645
    %v2415 = vunpack.c.l.b16 %v1646
    %v2416 = vunpack.c.l.b16 %v1647
    %v2417 = vunpack.c.l.b16 %v1648
    %v2418 = vunpack.c.l.b16 %v1649
    %v2419 = vunpack.c.l.b16 %v1650
    %v2420 = vunpack.c.l.b16 %v1651
    %v2421 = vunpack.c.l.b16 %v1652
    %v2422 = vunpack.c.l.b16 %v1653
    %v2423 = vunpack.c.l.b16 %v1654
    %v2424 = vunpack.c.l.b16 %v1655
    %v2425 = vunpack.c.l.b16 %v1656
    %v2426 = vunpack.c.l.b16 %v1657
    %v2427 = vpack.c.b16 %v2412, %v2411
    %v2428 = vpack.c.b16 %v2414, %v2413
    %v2429 = vpack.c.b16 %v2416, %v2415
    %v2430 = vpack.c.b16 %v2418, %v2417
    %v2431 = vpack.c.b16 %v2420, %v2419
    %v2432 = vpack.c.b16 %v2422, %v2421
    %v2433 = vpack.c.b16 %v2424, %v2423
    %v2434 = vpack.c.b16 %v2426, %v2425
    %2443 = vmatprep.subr.bf16.mxu0 0
    %2444 = vmatpush1.bf16.msra.mxu0 %v2427
    %2445 = vmatprep.subr.bf16.mxu0 0
    %2446 = vmatpush1.bf16.msra.mxu0 %v2428
    %2447 = vmatprep.subr.bf16.mxu0 0
    %2448 = vmatpush1.bf16.msra.mxu0 %v2429
    %2449 = vmatprep.subr.bf16.mxu0 0
    %2450 = vmatpush1.bf16.msra.mxu0 %v2430
    %2451 = vmatprep.subr.bf16.mxu0 0
    %2452 = vmatpush1.bf16.msra.mxu0 %v2431
    %2453 = vmatprep.subr.bf16.mxu0 0
    %2454 = vmatpush1.bf16.msra.mxu0 %v2432
    %2455 = vmatprep.subr.bf16.mxu0 0
    %2456 = vmatpush1.bf16.msra.mxu0 %v2433
    %2457 = vmatprep.subr.bf16.mxu0 0
    %2458 = vmatpush1.bf16.msra.mxu0 %v2434
    %2459 = vmatprep.subr.bf16.mxu0 0
    %2460 = vmatpush1.bf16.msra.mxu0 0
    %2461 = vmatprep.subr.bf16.mxu0 0
    %2462 = vmatpush1.bf16.msra.mxu0 0
    %2463 = vmatprep.subr.bf16.mxu0 0
    %2464 = vmatpush1.bf16.msra.mxu0 0
    %2465 = vmatprep.subr.bf16.mxu0 0
    %2466 = vmatpush1.bf16.msra.mxu0 0
    %2467 = vmatprep.subr.bf16.mxu0 0
    %2468 = vmatpush1.bf16.msra.mxu0 0
    %2469 = vmatprep.subr.bf16.mxu0 0
    %2470 = vmatpush1.bf16.msra.mxu0 0
    %2471 = vmatprep.subr.bf16.mxu0 0
    %2472 = vmatpush1.bf16.msra.mxu0 0
    %2473 = vmatprep.subr.bf16.mxu0 0
    %2474 = vmatpush1.bf16.msra.mxu0 0
    %2475 = vmatprep.mubr.bf16.mxu0 0
    %2476 = vmatmul.mubr.bf16.gmra.mrb[0].mxu0 %v2387
    %v2477 = vpop.f32.mrb[0].mxu0
    %v2478 = vadd.f32 0.0, %v2477
    %v2479 = vpop.f32.mrb[0].mxu0
    %v2480 = vpop.f32.mrb[0].mxu0
    %v2481 = vadd.f32 0.0, %v2480
    %v2482 = vpop.f32.mrb[0].mxu0
    %2483 = vmatprep.mubr.bf16.mxu0 0
    %2484 = vmatmul.mubr.bf16.gmra.mrb[0].mxu0 %v2388
    %v2485 = vpop.f32.mrb[0].mxu0
    %v2486 = vadd.f32 0.0, %v2485
    %v2487 = vpop.f32.mrb[0].mxu0
    %v2488 = vpop.f32.mrb[0].mxu0
    %v2489 = vadd.f32 0.0, %v2488
    %v2490 = vpop.f32.mrb[0].mxu0
    %2491 = vmatprep.mubr.bf16.mxu0 0
    %2492 = vmatmul.mubr.bf16.gmra.mrb[0].mxu0 %v2389
    %v2493 = vpop.f32.mrb[0].mxu0
    %v2494 = vadd.f32 0.0, %v2493
    %v2495 = vpop.f32.mrb[0].mxu0
    %v2496 = vpop.f32.mrb[0].mxu0
    %v2497 = vadd.f32 0.0, %v2496
    %v2498 = vpop.f32.mrb[0].mxu0
    %2499 = vmatprep.mubr.bf16.mxu0 0
    %2500 = vmatmul.mubr.bf16.gmra.mrb[0].mxu0 %v2390
    %v2501 = vpop.f32.mrb[0].mxu0
    %v2502 = vadd.f32 0.0, %v2501
    %v2503 = vpop.f32.mrb[0].mxu0
    %v2504 = vpop.f32.mrb[0].mxu0
    %v2505 = vadd.f32 0.0, %v2504
    %v2506 = vpop.f32.mrb[0].mxu0
    %2507 = vmatprep.mubr.bf16.mxu0 0
    %2508 = vmatmul.mubr.bf16.gmra.mrb[0].mxu0 %v2391
    %v2509 = vpop.f32.mrb[0].mxu0
    %v2510 = vadd.f32 0.0, %v2509
    %v2511 = vpop.f32.mrb[0].mxu0
    %v2512 = vpop.f32.mrb[0].mxu0
    %v2513 = vadd.f32 0.0, %v2512
    %v2514 = vpop.f32.mrb[0].mxu0
    %2515 = vmatprep.mubr.bf16.mxu0 0
    %2516 = vmatmul.mubr.bf16.gmra.mrb[0].mxu0 %v2392
    %v2517 = vpop.f32.mrb[0].mxu0
    %v2518 = vadd.f32 0.0, %v2517
    %v2519 = vpop.f32.mrb[0].mxu0
    %v2520 = vpop.f32.mrb[0].mxu0
    %v2521 = vadd.f32 0.0, %v2520
    %v2522 = vpop.f32.mrb[0].mxu0
    %2523 = vmatprep.mubr.bf16.mxu0 0
    %2524 = vmatmul.mubr.bf16.gmra.mrb[0].mxu0 %v2393
    %v2525 = vpop.f32.mrb[0].mxu0
    %v2526 = vadd.f32 0.0, %v2525
    %v2527 = vpop.f32.mrb[0].mxu0
    %v2528 = vpop.f32.mrb[0].mxu0
    %v2529 = vadd.f32 0.0, %v2528
    %v2530 = vpop.f32.mrb[0].mxu0
    %2531 = vmatprep.mubr.bf16.mxu0 0
    %2532 = vmatmul.mubr.bf16.gmra.mrb[0].mxu0 %v2394
    %v2533 = vpop.f32.mrb[0].mxu0
    %v2534 = vadd.f32 0.0, %v2533
    %v2535 = vpop.f32.mrb[0].mxu0
    %v2536 = vpop.f32.mrb[0].mxu0
    %v2537 = vadd.f32 0.0, %v2536
    %v2538 = vpop.f32.mrb[0].mxu0
    %2539 = vdwg.mxu0
    %v2541 = vlaneseq
    %v2542 = vshrl.u32 %v2541, 7
    %v2543 = vsub.s32 0, %v2542
    %v2544 = vrot.slane %v1674, %v2543
    %v2562 = vunpack.c.l.b16 %v1658
    %v2563 = vunpack.c.l.b16 %v1659
    %v2564 = vunpack.c.l.b16 %v1660
    %v2565 = vunpack.c.l.b16 %v1661
    %v2566 = vunpack.c.l.b16 %v1662
    %v2567 = vunpack.c.l.b16 %v1663
    %v2568 = vunpack.c.l.b16 %v1664
    %v2569 = vunpack.c.l.b16 %v1665
    %v2570 = vunpack.c.l.b16 %v1666
    %v2571 = vunpack.c.l.b16 %v1667
    %v2572 = vunpack.c.l.b16 %v1668
    %v2573 = vunpack.c.l.b16 %v1669
    %v2574 = vunpack.c.l.b16 %v1670
    %v2575 = vunpack.c.l.b16 %v1671
    %v2576 = vunpack.c.l.b16 %v1672
    %v2577 = vunpack.c.l.b16 %v1673
    %v2578 = vpack.c.b16 %v2563, %v2562
    %v2579 = vpack.c.b16 %v2565, %v2564
    %v2580 = vpack.c.b16 %v2567, %v2566
    %v2581 = vpack.c.b16 %v2569, %v2568
    %v2582 = vpack.c.b16 %v2571, %v2570
    %v2583 = vpack.c.b16 %v2573, %v2572
    %v2584 = vpack.c.b16 %v2575, %v2574
    %v2585 = vpack.c.b16 %v2577, %v2576
    %2594 = vmatprep.subr.bf16.mxu0 0
    %2595 = vmatpush1.bf16.msra.mxu0 %v2578
    %2596 = vmatprep.subr.bf16.mxu0 0
    %2597 = vmatpush1.bf16.msra.mxu0 %v2579
    %2598 = vmatprep.subr.bf16.mxu0 0
    %2599 = vmatpush1.bf16.msra.mxu0 %v2580
    %2600 = vmatprep.subr.bf16.mxu0 0
    %2601 = vmatpush1.bf16.msra.mxu0 %v2581
    %2602 = vmatprep.subr.bf16.mxu0 0
    %2603 = vmatpush1.bf16.msra.mxu0 %v2582
    %2604 = vmatprep.subr.bf16.mxu0 0
    %2605 = vmatpush1.bf16.msra.mxu0 %v2583
    %2606 = vmatprep.subr.bf16.mxu0 0
    %2607 = vmatpush1.bf16.msra.mxu0 %v2584
    %2608 = vmatprep.subr.bf16.mxu0 0
    %2609 = vmatpush1.bf16.msra.mxu0 %v2585
    %2610 = vmatprep.subr.bf16.mxu0 0
    %2611 = vmatpush1.bf16.msra.mxu0 0
    %2612 = vmatprep.subr.bf16.mxu0 0
    %2613 = vmatpush1.bf16.msra.mxu0 0
    %2614 = vmatprep.subr.bf16.mxu0 0
    %2615 = vmatpush1.bf16.msra.mxu0 0
    %2616 = vmatprep.subr.bf16.mxu0 0
    %2617 = vmatpush1.bf16.msra.mxu0 0
    %2618 = vmatprep.subr.bf16.mxu0 0
    %2619 = vmatpush1.bf16.msra.mxu0 0
    %2620 = vmatprep.subr.bf16.mxu0 0
    %2621 = vmatpush1.bf16.msra.mxu0 0
    %2622 = vmatprep.subr.bf16.mxu0 0
    %2623 = vmatpush1.bf16.msra.mxu0 0
    %2624 = vmatprep.subr.bf16.mxu0 0
    %2625 = vmatpush1.bf16.msra.mxu0 0
    %2626 = vmatprep.mubr.bf16.mxu0 0
    %2627 = vmatmul.mubr.bf16.gmra.mrb[0].mxu0 %v2387
    %v2628 = vpop.f32.mrb[0].mxu0
    %v2629 = vadd.f32 %v2544, %v2628
    %v2630 = vpop.f32.mrb[0].mxu0
    %v2631 = vpop.f32.mrb[0].mxu0
    %v2632 = vadd.f32 %v2544, %v2631
    %v2633 = vpop.f32.mrb[0].mxu0
    %2634 = vmatprep.mubr.bf16.mxu0 0
    %2635 = vmatmul.mubr.bf16.gmra.mrb[0].mxu0 %v2388
    %v2636 = vpop.f32.mrb[0].mxu0
    %v2637 = vadd.f32 %v2544, %v2636
    %v2638 = vpop.f32.mrb[0].mxu0
    %v2639 = vpop.f32.mrb[0].mxu0
    %v2640 = vadd.f32 %v2544, %v2639
    %v2641 = vpop.f32.mrb[0].mxu0
    %2642 = vmatprep.mubr.bf16.mxu0 0
    %2643 = vmatmul.mubr.bf16.gmra.mrb[0].mxu0 %v2389
    %v2644 = vpop.f32.mrb[0].mxu0
    %v2645 = vadd.f32 %v2544, %v2644
    %v2646 = vpop.f32.mrb[0].mxu0
    %v2647 = vpop.f32.mrb[0].mxu0
    %v2648 = vadd.f32 %v2544, %v2647
    %v2649 = vpop.f32.mrb[0].mxu0
    %2650 = vmatprep.mubr.bf16.mxu0 0
    %2651 = vmatmul.mubr.bf16.gmra.mrb[0].mxu0 %v2390
    %v2652 = vpop.f32.mrb[0].mxu0
    %v2653 = vadd.f32 %v2544, %v2652
    %v2654 = vpop.f32.mrb[0].mxu0
    %v2655 = vpop.f32.mrb[0].mxu0
    %v2656 = vadd.f32 %v2544, %v2655
    %v2657 = vpop.f32.mrb[0].mxu0
    %2658 = vmatprep.mubr.bf16.mxu0 0
    %2659 = vmatmul.mubr.bf16.gmra.mrb[0].mxu0 %v2391
    %v2660 = vpop.f32.mrb[0].mxu0
    %v2661 = vadd.f32 %v2544, %v2660
    %v2662 = vpop.f32.mrb[0].mxu0
    %v2663 = vpop.f32.mrb[0].mxu0
    %v2664 = vadd.f32 %v2544, %v2663
    %v2665 = vpop.f32.mrb[0].mxu0
    %2666 = vmatprep.mubr.bf16.mxu0 0
    %2667 = vmatmul.mubr.bf16.gmra.mrb[0].mxu0 %v2392
    %v2668 = vpop.f32.mrb[0].mxu0
    %v2669 = vadd.f32 %v2544, %v2668
    %v2670 = vpop.f32.mrb[0].mxu0
    %v2671 = vpop.f32.mrb[0].mxu0
    %v2672 = vadd.f32 %v2544, %v2671
    %v2673 = vpop.f32.mrb[0].mxu0
    %2674 = vmatprep.mubr.bf16.mxu0 0
    %2675 = vmatmul.mubr.bf16.gmra.mrb[0].mxu0 %v2393
    %v2676 = vpop.f32.mrb[0].mxu0
    %v2677 = vadd.f32 %v2544, %v2676
    %v2678 = vpop.f32.mrb[0].mxu0
    %v2679 = vpop.f32.mrb[0].mxu0
    %v2680 = vadd.f32 %v2544, %v2679
    %v2681 = vpop.f32.mrb[0].mxu0
    %2682 = vmatprep.mubr.bf16.mxu0 0
    %2683 = vmatmul.mubr.bf16.gmra.mrb[0].mxu0 %v2394
    %v2684 = vpop.f32.mrb[0].mxu0
    %v2685 = vadd.f32 %v2544, %v2684
    %v2686 = vpop.f32.mrb[0].mxu0
    %v2687 = vpop.f32.mrb[0].mxu0
    %v2688 = vadd.f32 %v2544, %v2687
    %v2689 = vpop.f32.mrb[0].mxu0
    %2690 = vdwg.mxu0
    %2691 = vst [vmem:[#allocation19] sm:$0xff] %v2478
    %2692 = vst [vmem:[#allocation19 + $0x8] sm:$0xff] %v2481
    %2693 = vst [vmem:[#allocation19 + $0x10] sm:$0xff] %v2486
    %2694 = vst [vmem:[#allocation19 + $0x18] sm:$0xff] %v2489
    %2695 = vst [vmem:[#allocation19 + $0x20] sm:$0xff] %v2494
    %2696 = vst [vmem:[#allocation19 + $0x28] sm:$0xff] %v2497
    %2697 = vst [vmem:[#allocation19 + $0x30] sm:$0xff] %v2502
    %2698 = vst [vmem:[#allocation19 + $0x38] sm:$0xff] %v2505
    %2699 = vst [vmem:[#allocation19 + $0x40] sm:$0xff] %v2510
    %2700 = vst [vmem:[#allocation19 + $0x48] sm:$0xff] %v2513
    %2701 = vst [vmem:[#allocation19 + $0x50] sm:$0xff] %v2518
    %2702 = vst [vmem:[#allocation19 + $0x58] sm:$0xff] %v2521
    %2703 = vst [vmem:[#allocation19 + $0x60] sm:$0xff] %v2526
    %2704 = vst [vmem:[#allocation19 + $0x68] sm:$0xff] %v2529
    %2705 = vst [vmem:[#allocation19 + $0x70] sm:$0xff] %v2534
    %2706 = vst [vmem:[#allocation19 + $0x78] sm:$0xff] %v2537
    %2707 = vst [vmem:[#allocation20] sm:$0xff] %v2629
    %2708 = vst [vmem:[#allocation20 + $0x8] sm:$0xff] %v2632
    %2709 = vst [vmem:[#allocation20 + $0x10] sm:$0xff] %v2637
    %2710 = vst [vmem:[#allocation20 + $0x18] sm:$0xff] %v2640
    %2711 = vst [vmem:[#allocation20 + $0x20] sm:$0xff] %v2645
    %2712 = vst [vmem:[#allocation20 + $0x28] sm:$0xff] %v2648
    %2713 = vst [vmem:[#allocation20 + $0x30] sm:$0xff] %v2653
    %2714 = vst [vmem:[#allocation20 + $0x38] sm:$0xff] %v2656
    %2715 = vst [vmem:[#allocation20 + $0x40] sm:$0xff] %v2661
    %2716 = vst [vmem:[#allocation20 + $0x48] sm:$0xff] %v2664
    %2717 = vst [vmem:[#allocation20 + $0x50] sm:$0xff] %v2669
    %2718 = vst [vmem:[#allocation20 + $0x58] sm:$0xff] %v2672
    %2719 = vst [vmem:[#allocation20 + $0x60] sm:$0xff] %v2677
    %2720 = vst [vmem:[#allocation20 + $0x68] sm:$0xff] %v2680
    %2721 = vst [vmem:[#allocation20 + $0x70] sm:$0xff] %v2685
    %2722 = vst [vmem:[#allocation20 + $0x78] sm:$0xff] %v2688
    // Predicated region
    $region86: #{tpu_custom_call.1} parent=1 // pred_check
      _
    $region87: #{tpu_custom_call.1} parent=1 // pred_check_branch
      %2724 = sbr.rel (0) target = $region89
    $region88: #{tpu_custom_call.1} parent=1 // pred_region
      %s2726 = ssub.s32 2048, 2048
      %2727 = vsyncadd [#allocation4], %s2726
      %s2728 = sshll.u32 [#allocation16], 4
      %s2729 = int_to_ptr.vmem [resolvable:$true] %s2728
      %2734 = dma.vmem_to_hbm [thread:$0]  %s2729, 2048, %s13, [#allocation4], 128, 128, 8
    $region89: #{tpu_custom_call.1} parent=1 // pred_fallthru
      _
    // Predicated region
    $region90: #{tpu_custom_call.1} parent=1 // pred_check
      _
    $region91: #{tpu_custom_call.1} parent=1 // pred_check_branch
      %2736 = sbr.rel (0) target = $region93
    $region92: #{tpu_custom_call.1} parent=1 // pred_region
      %s2738 = ssub.s32 2048, 2048
      %2739 = vsyncadd [#allocation18], %s2738
      %s2740 = sshll.u32 [#allocation17], 4
      %s2741 = int_to_ptr.vmem [resolvable:$true] %s2740
      %2746 = dma.vmem_to_hbm [thread:$0]  %s2741, 2048, %s14, [#allocation18], 128, 128, 8
    $region93: #{tpu_custom_call.1} parent=1 // pred_fallthru
      _
    // Predicated region
    $region94: #{tpu_custom_call.1} parent=1 // pred_check
      _
    $region95: #{tpu_custom_call.1} parent=1 // pred_check_branch
      %2748 = sbr.rel (0) target = $region97
    $region96: #{tpu_custom_call.1} parent=1 // pred_region
      %s2750 = ssub.s32 2048, 2048
      %2751 = vsyncadd [#allocation18], %s2750
      %s2752 = sshll.u32 [#allocation19], 4
      %s2753 = int_to_ptr.vmem [resolvable:$true] %s2752
      %2758 = dma.vmem_to_hbm [thread:$0]  %s2753, 2048, %s15, [#allocation18], 128, 128, 8
    $region97: #{tpu_custom_call.1} parent=1 // pred_fallthru
      _
    // Predicated region
    $region98: #{tpu_custom_call.1} parent=1 // pred_check
      _
    $region99: #{tpu_custom_call.1} parent=1 // pred_check_branch
      %2760 = sbr.rel (0) target = $region101
    $region100: #{tpu_custom_call.1} parent=1 // pred_region
      %s2762 = ssub.s32 2048, 2048
      %2763 = vsyncadd [#allocation21], %s2762
      %s2764 = sshll.u32 [#allocation20], 4
      %s2765 = int_to_ptr.vmem [resolvable:$true] %s2764
      %2770 = dma.vmem_to_hbm [thread:$0]  %s2765, 2048, %s16, [#allocation21], 128, 128, 8
    $region101: #{tpu_custom_call.1} parent=1 // pred_fallthru
      _
    // Predicated region
    $region102: #{tpu_custom_call.1} parent=1 // pred_check
      _
    $region103: #{tpu_custom_call.1} parent=1 // pred_check_branch
      %2772 = sbr.rel (0) target = $region105
    $region104: #{tpu_custom_call.1} parent=1 // pred_region
      %2773 = dma.done [#allocation4], 2048
    $region105: #{tpu_custom_call.1} parent=1 // pred_fallthru
      _
    // Predicated region
    $region106: #{tpu_custom_call.1} parent=1 // pred_check
      _
    $region107: #{tpu_custom_call.1} parent=1 // pred_check_branch
      %2775 = sbr.rel (0) target = $region109
    $region108: #{tpu_custom_call.1} parent=1 // pred_region
      %2776 = dma.done [#allocation18], 2048
    $region109: #{tpu_custom_call.1} parent=1 // pred_fallthru
      _
    // Predicated region
    $region110: #{tpu_custom_call.1} parent=1 // pred_check
      _
    $region111: #{tpu_custom_call.1} parent=1 // pred_check_branch
      %2778 = sbr.rel (0) target = $region113
    $region112: #{tpu_custom_call.1} parent=1 // pred_region
      %2779 = dma.done [#allocation18], 2048
    $region113: #{tpu_custom_call.1} parent=1 // pred_fallthru
      _
    // Predicated region
    $region114: #{tpu_custom_call.1} parent=1 // pred_check
      _
    $region115: #{tpu_custom_call.1} parent=1 // pred_check_branch
      %2781 = sbr.rel (0) target = $region117
    $region116: #{tpu_custom_call.1} parent=1 // pred_region
      %2782 = dma.done [#allocation21], 2048
    $region117: #{tpu_custom_call.1} parent=1 // pred_fallthru
      _
    %2783 = vsyncpa [#allocation3], 1
    %2784 = vsyncpa [#allocation6], 1
    %2785 = vsyncpa [#allocation9], 1
    %2786 = vsyncpa [#allocation12], 1
    %2787 = vsyncpa [#allocation15], 1
    %2788 = vsyncpa [#allocation4], 1
    %2789 = vsyncpa [#allocation18], 1
    %2790 = vsyncpa [#allocation21], 1

// kernel: tpu_custom_call.1
$region0: #{tpu_custom_call.1}
  #allocation0 [shape = 'u32[]', space=smem, size = 0x4, offset = 0x4, fixed_abs, tag = 'smem constant byte address 0x4 - core index']
  #allocation1 [shape = 'u32[144,128]{1,0:T(1,128)}', space=vmem, size = 0x12000, scoped, tag = 'internal scratch']
  %s0 = inlined_call_operand.hbm [shape: bf16[8,16,32], index: 0, kind: input, shape index: {}]
  %s1 = inlined_call_operand.hbm [shape: bf16[8,16,24], index: 1, kind: input, shape index: {}]
  %s2 = inlined_call_operand.hbm [shape: bf16[16,16], index: 2, kind: input, shape index: {}]
  %s3 = inlined_call_operand.vmem [shape: bf16[16,16], index: 3, kind: input, shape index: {}]
  %s4 = inlined_call_operand.hbm [shape: bf16[32,128], index: 4, kind: input, shape index: {}]
  %s5 = inlined_call_operand.hbm [shape: bf16[128,128], index: 5, kind: input, shape index: {}]
  %s6 = inlined_call_operand.hbm [shape: bf16[128,128], index: 6, kind: input, shape index: {}]
  %s7 = inlined_call_operand.vmem [shape: f32[1,128], index: 7, kind: input, shape index: {}]
  %s8 = inlined_call_operand.vmem [shape: bf16[24,128], index: 8, kind: input, shape index: {}]
  %s9 = inlined_call_operand.hbm [shape: bf16[128,128], index: 9, kind: input, shape index: {}]
  %s10 = inlined_call_operand.hbm [shape: bf16[128,128], index: 10, kind: input, shape index: {}]
  %s11 = inlined_call_operand.vmem [shape: f32[1,128], index: 11, kind: input, shape index: {}]
  %s12 = inlined_call_operand.vmem [shape: f32[1,128], index: 12, kind: input, shape index: {}]
  %s13 = inlined_call_operand.hbm [shape: f32[8,16,128], index: 13, kind: output, shape index: {0}]
  %s14 = inlined_call_operand.hbm [shape: f32[8,16,128], index: 14, kind: output, shape index: {1}]
  %s15 = inlined_call_operand.hbm [shape: f32[8,16,128], index: 15, kind: output, shape index: {2}]
  %s16 = inlined_call_operand.hbm [shape: f32[8,16,128], index: 16, kind: output, shape index: {3}]
  %17 = xla_tuple %s13, %s14, %s15, %s16
  %s18 = sld [smem:[#allocation0]]
  $region118: #{tpu_custom_call.1} parent=0
    _
  %s20 = ssub.s32 1, %s18
  %s21 = scalar_select 0, %s20, %s18
  $region1: #{tpu_custom_call.1} parent=0
    #allocation2 [shape = 'u8[32768]{0}', space=vmem, size = 0x8000, scoped, tag = 'input window, operand 0, single buffered']
    #allocation3 [shape = 's32[1]{0}', space=sflag, size = 0x4, scoped, tag = 'scoped memory for tpu_custom_call.1']
    #allocation4 [shape = 's32[1]{0}', space=sflag, size = 0x4, scoped, tag = 'scoped memory for tpu_custom_call.1']
    #allocation5 [shape = 'u8[32768]{0}', space=vmem, size = 0x8000, scoped, tag = 'input window, operand 1, single buffered']
    #allocation6 [shape = 's32[1]{0}', space=sflag, size = 0x4, scoped, tag = 'scoped memory for tpu_custom_call.1']
    #allocation7 [shape = 'u8[4096]{0}', space=vmem, size = 0x1000, scoped, tag = 'input window, operand 2, single buffered']
    #allocation8 [shape = 'u8[8192]{0}', space=vmem, size = 0x2000, scoped, tag = 'input window, operand 4, single buffered']
    #allocation9 [shape = 's32[1]{0}', space=sflag, size = 0x4, scoped, tag = 'scoped memory for tpu_custom_call.1']
    #allocation10 [shape = 'u8[32768]{0}', space=vmem, size = 0x8000, scoped, tag = 'input window, operand 5, single buffered']
    #allocation11 [shape = 'u8[32768]{0}', space=vmem, size = 0x8000, scoped, tag = 'input window, operand 6, single buffered']
    #allocation12 [shape = 's32[1]{0}', space=sflag, size = 0x4, scoped, tag = 'scoped memory for tpu_custom_call.1']
    #allocation13 [shape = 'u8[32768]{0}', space=vmem, size = 0x8000, scoped, tag = 'input window, operand 9, single buffered']
    #allocation14 [shape = 'u8[32768]{0}', space=vmem, size = 0x8000, scoped, tag = 'input window, operand 10, single buffered']
    #allocation15 [shape = 's32[1]{0}', space=sflag, size = 0x4, scoped, tag = 'scoped memory for tpu_custom_call.1']
    #allocation16 [shape = 'u8[65536]{0}', space=vmem, size = 0x10000, scoped, tag = 'output window, operand 0, single buffered']
    #allocation17 [shape = 'u8[65536]{0}', space=vmem, size = 0x10000, scoped, tag = 'output window, operand 1, single buffered']
    #allocation18 [shape = 's32[1]{0}', space=sflag, size = 0x4, scoped, tag = 'scoped memory for tpu_custom_call.1']
    #allocation19 [shape = 'u8[65536]{0}', space=vmem, size = 0x10000, scoped, tag = 'output window, operand 2, single buffered']
    #allocation20 [shape = 'u8[65536]{0}', space=vmem, size = 0x10000, scoped, tag = 'output window, operand 3, single buffered']
    #allocation21 [shape = 's32[1]{0}', space=sflag, size = 0x4, scoped, tag = 'scoped memory for tpu_custom_call.1']
    %22 = vsyncpa [#allocation3], 0
    %23 = vsyncpa [#allocation6], 0
    %24 = vsyncpa [#allocation9], 0
    %25 = vsyncpa [#allocation12], 0
    %26 = vsyncpa [#allocation15], 0
    %27 = vsyncpa [#allocation4], 0
    %28 = vsyncpa [#allocation18], 0
    %29 = vsyncpa [#allocation21], 0
    // Predicated region
    $region2: #{tpu_custom_call.1} parent=1 // pred_check
      _
    $region3: #{tpu_custom_call.1} parent=1 // pred_check_branch
      %31 = sbr.rel (0) target = $region5
    $region4: #{tpu_custom_call.1} parent=1 // pred_region
      %s33 = ssub.s32 1024, 1024
      %34 = vsyncadd [#allocation3], %s33
      %s35 = sshll.u32 [#allocation2], 4
      %s36 = int_to_ptr.vmem [resolvable:$true] %s35
      %41 = dma.hbm_to_vmem [thread:$0]  %s0, 1024, %s36, [#allocation3], 64, 64, 4
    $region5: #{tpu_custom_call.1} parent=1 // pred_fallthru
      _
    // Predicated region
    $region6: #{tpu_custom_call.1} parent=1 // pred_check
      _
    $region7: #{tpu_custom_call.1} parent=1 // pred_check_branch
      %43 = sbr.rel (0) target = $region9
    $region8: #{tpu_custom_call.1} parent=1 // pred_region
      %s45 = ssub.s32 1024, 1024
      %46 = vsyncadd [#allocation6], %s45
      %s47 = sshll.u32 [#allocation5], 4
      %s48 = int_to_ptr.vmem [resolvable:$true] %s47
      %53 = dma.hbm_to_vmem [thread:$0]  %s1, 1024, %s48, [#allocation6], 64, 64, 4
    $region9: #{tpu_custom_call.1} parent=1 // pred_fallthru
      _
    // Predicated region
    $region10: #{tpu_custom_call.1} parent=1 // pred_check
      _
    $region11: #{tpu_custom_call.1} parent=1 // pred_check_branch
      %55 = sbr.rel (0) target = $region13
    $region12: #{tpu_custom_call.1} parent=1 // pred_region
      %s57 = ssub.s32 128, 128
      %58 = vsyncadd [#allocation6], %s57
      %s59 = sshll.u32 [#allocation7], 4
      %s60 = int_to_ptr.vmem [resolvable:$true] %s59
      %65 = dma.hbm_to_vmem [thread:$0]  %s2, 128, %s60, [#allocation6], 64, 64, 4
    $region13: #{tpu_custom_call.1} parent=1 // pred_fallthru
      _
    // Predicated region
    $region14: #{tpu_custom_call.1} parent=1 // pred_check
      _
    $region15: #{tpu_custom_call.1} parent=1 // pred_check_branch
      %67 = sbr.rel (0) target = $region17
    $region16: #{tpu_custom_call.1} parent=1 // pred_region
      _
    $region17: #{tpu_custom_call.1} parent=1 // pred_fallthru
      _
    // Predicated region
    $region18: #{tpu_custom_call.1} parent=1 // pred_check
      _
    $region19: #{tpu_custom_call.1} parent=1 // pred_check_branch
      %69 = sbr.rel (0) target = $region21
    $region20: #{tpu_custom_call.1} parent=1 // pred_region
      %s71 = ssub.s32 256, 256
      %72 = vsyncadd [#allocation9], %s71
      %s73 = sshll.u32 [#allocation8], 4
      %s74 = int_to_ptr.vmem [resolvable:$true] %s73
      %79 = dma.hbm_to_vmem [thread:$0]  %s4, 256, %s74, [#allocation9], 64, 64, 4
    $region21: #{tpu_custom_call.1} parent=1 // pred_fallthru
      _
    // Predicated region
    $region22: #{tpu_custom_call.1} parent=1 // pred_check
      _
    $region23: #{tpu_custom_call.1} parent=1 // pred_check_branch
      %81 = sbr.rel (0) target = $region25
    $region24: #{tpu_custom_call.1} parent=1 // pred_region
      %s83 = ssub.s32 1024, 1024
      %84 = vsyncadd [#allocation9], %s83
      %s85 = sshll.u32 [#allocation10], 4
      %s86 = int_to_ptr.vmem [resolvable:$true] %s85
      %91 = dma.hbm_to_vmem [thread:$0]  %s5, 1024, %s86, [#allocation9], 64, 64, 4
    $region25: #{tpu_custom_call.1} parent=1 // pred_fallthru
      _
    // Predicated region
    $region26: #{tpu_custom_call.1} parent=1 // pred_check
      _
    $region27: #{tpu_custom_call.1} parent=1 // pred_check_branch
      %93 = sbr.rel (0) target = $region29
    $region28: #{tpu_custom_call.1} parent=1 // pred_region
      %s95 = ssub.s32 1024, 1024
      %96 = vsyncadd [#allocation12], %s95
      %s97 = sshll.u32 [#allocation11], 4
      %s98 = int_to_ptr.vmem [resolvable:$true] %s97
      %103 = dma.hbm_to_vmem [thread:$0]  %s6, 1024, %s98, [#allocation12], 64, 64, 4
    $region29: #{tpu_custom_call.1} parent=1 // pred_fallthru
      _
    // Predicated region
    $region30: #{tpu_custom_call.1} parent=1 // pred_check
      _
    $region31: #{tpu_custom_call.1} parent=1 // pred_check_branch
      %105 = sbr.rel (0) target = $region33
    $region32: #{tpu_custom_call.1} parent=1 // pred_region
      _
    $region33: #{tpu_custom_call.1} parent=1 // pred_fallthru
      _
    // Predicated region
    $region34: #{tpu_custom_call.1} parent=1 // pred_check
      _
    $region35: #{tpu_custom_call.1} parent=1 // pred_check_branch
      %107 = sbr.rel (0) target = $region37
    $region36: #{tpu_custom_call.1} parent=1 // pred_region
      _
    $region37: #{tpu_custom_call.1} parent=1 // pred_fallthru
      _
    // Predicated region
    $region38: #{tpu_custom_call.1} parent=1 // pred_check
      _
    $region39: #{tpu_custom_call.1} parent=1 // pred_check_branch
      %109 = sbr.rel (0) target = $region41
    $region40: #{tpu_custom_call.1} parent=1 // pred_region
      %s111 = ssub.s32 1024, 1024
      %112 = vsyncadd [#allocation12], %s111
      %s113 = sshll.u32 [#allocation13], 4
      %s114 = int_to_ptr.vmem [resolvable:$true] %s113
      %119 = dma.hbm_to_vmem [thread:$0]  %s9, 1024, %s114, [#allocation12], 64, 64, 4
    $region41: #{tpu_custom_call.1} parent=1 // pred_fallthru
      _
    // Predicated region
    $region42: #{tpu_custom_call.1} parent=1 // pred_check
      _
    $region43: #{tpu_custom_call.1} parent=1 // pred_check_branch
      %121 = sbr.rel (0) target = $region45
    $region44: #{tpu_custom_call.1} parent=1 // pred_region
      %s123 = ssub.s32 1024, 1024
      %124 = vsyncadd [#allocation15], %s123
      %s125 = sshll.u32 [#allocation14], 4
      %s126 = int_to_ptr.vmem [resolvable:$true] %s125
      %131 = dma.hbm_to_vmem [thread:$0]  %s10, 1024, %s126, [#allocation15], 64, 64, 4
    $region45: #{tpu_custom_call.1} parent=1 // pred_fallthru
      _
    // Predicated region
    $region46: #{tpu_custom_call.1} parent=1 // pred_check
      _
    $region47: #{tpu_custom_call.1} parent=1 // pred_check_branch
      %133 = sbr.rel (0) target = $region49
    $region48: #{tpu_custom_call.1} parent=1 // pred_region
      _
    $region49: #{tpu_custom_call.1} parent=1 // pred_fallthru
      _
    // Predicated region
    $region50: #{tpu_custom_call.1} parent=1 // pred_check
      _
    $region51: #{tpu_custom_call.1} parent=1 // pred_check_branch
      %135 = sbr.rel (0) target = $region53
    $region52: #{tpu_custom_call.1} parent=1 // pred_region
      _
    $region53: #{tpu_custom_call.1} parent=1 // pred_fallthru
      _
    // Predicated region
    $region54: #{tpu_custom_call.1} parent=1 // pred_check
      _
    $region55: #{tpu_custom_call.1} parent=1 // pred_check_branch
      %137 = sbr.rel (0) target = $region57
    $region56: #{tpu_custom_call.1} parent=1 // pred_region
      %138 = dma.done [#allocation3], 1024
    $region57: #{tpu_custom_call.1} parent=1 // pred_fallthru
      _
    // Predicated region
    $region58: #{tpu_custom_call.1} parent=1 // pred_check
      _
    $region59: #{tpu_custom_call.1} parent=1 // pred_check_branch
      %140 = sbr.rel (0) target = $region61
    $region60: #{tpu_custom_call.1} parent=1 // pred_region
      %141 = dma.done [#allocation6], 1024
    $region61: #{tpu_custom_call.1} parent=1 // pred_fallthru
      _
    // Predicated region
    $region62: #{tpu_custom_call.1} parent=1 // pred_check
      _
    $region63: #{tpu_custom_call.1} parent=1 // pred_check_branch
      %143 = sbr.rel (0) target = $region65
    $region64: #{tpu_custom_call.1} parent=1 // pred_region
      %144 = dma.done [#allocation6], 128
    $region65: #{tpu_custom_call.1} parent=1 // pred_fallthru
      _
    // Predicated region
    $region66: #{tpu_custom_call.1} parent=1 // pred_check
      _
    $region67: #{tpu_custom_call.1} parent=1 // pred_check_branch
      %146 = sbr.rel (0) target = $region69
    $region68: #{tpu_custom_call.1} parent=1 // pred_region
      %147 = dma.done [#allocation9], 256
    $region69: #{tpu_custom_call.1} parent=1 // pred_fallthru
      _
    // Predicated region
    $region70: #{tpu_custom_call.1} parent=1 // pred_check
      _
    $region71: #{tpu_custom_call.1} parent=1 // pred_check_branch
      %149 = sbr.rel (0) target = $region73
    $region72: #{tpu_custom_call.1} parent=1 // pred_region
      %150 = dma.done [#allocation9], 1024
    $region73: #{tpu_custom_call.1} parent=1 // pred_fallthru
      _
    // Predicated region
    $region74: #{tpu_custom_call.1} parent=1 // pred_check
      _
    $region75: #{tpu_custom_call.1} parent=1 // pred_check_branch
      %152 = sbr.rel (0) target = $region77
    $region76: #{tpu_custom_call.1} parent=1 // pred_region
      %153 = dma.done [#allocation12], 1024
    $region77: #{tpu_custom_call.1} parent=1 // pred_fallthru
      _
    // Predicated region
    $region78: #{tpu_custom_call.1} parent=1 // pred_check
      _
    $region79: #{tpu_custom_call.1} parent=1 // pred_check_branch
      %155 = sbr.rel (0) target = $region81
    $region80: #{tpu_custom_call.1} parent=1 // pred_region
      %156 = dma.done [#allocation12], 1024
    $region81: #{tpu_custom_call.1} parent=1 // pred_fallthru
      _
    // Predicated region
    $region82: #{tpu_custom_call.1} parent=1 // pred_check
      _
    $region83: #{tpu_custom_call.1} parent=1 // pred_check_branch
      %158 = sbr.rel (0) target = $region85
    $region84: #{tpu_custom_call.1} parent=1 // pred_region
      %159 = dma.done [#allocation15], 1024
    $region85: #{tpu_custom_call.1} parent=1 // pred_fallthru
      _
    %v161 = vld [vmem:[#allocation2] sm:$0xf]
    %v162 = vld [vmem:[#allocation2 + $0x4] sm:$0xf]
    %v163 = vld [vmem:[#allocation2 + $0x8] sm:$0xf]
    %v164 = vld [vmem:[#allocation2 + $0xc] sm:$0xf]
    %v165 = vld [vmem:[#allocation2 + $0x10] sm:$0xf]
    %v166 = vld [vmem:[#allocation2 + $0x14] sm:$0xf]
    %v167 = vld [vmem:[#allocation2 + $0x18] sm:$0xf]
    %v168 = vld [vmem:[#allocation2 + $0x1c] sm:$0xf]
    %v169 = vld [vmem:[#allocation2 + $0x20] sm:$0xf]
    %v170 = vld [vmem:[#allocation2 + $0x24] sm:$0xf]
    %v171 = vld [vmem:[#allocation2 + $0x28] sm:$0xf]
    %v172 = vld [vmem:[#allocation2 + $0x2c] sm:$0xf]
    %v173 = vld [vmem:[#allocation2 + $0x30] sm:$0xf]
    %v174 = vld [vmem:[#allocation2 + $0x34] sm:$0xf]
    %v175 = vld [vmem:[#allocation2 + $0x38] sm:$0xf]
    %v176 = vld [vmem:[#allocation2 + $0x3c] sm:$0xf]
    %v177 = vld [vmem:[#allocation8] sm:$0xf]
    %v178 = vld [vmem:[#allocation8 + $0x4] sm:$0xf]
    %v179 = vld [vmem:[#allocation8 + $0x8] sm:$0xf]
    %v180 = vld [vmem:[#allocation8 + $0xc] sm:$0xf]
    %v197 = vunpack.c.l.b16 %v161
    %v198 = vunpack.c.l.b16 %v162
    %v199 = vunpack.c.l.b16 %v163
    %v200 = vunpack.c.l.b16 %v164
    %v201 = vunpack.c.l.b16 %v165
    %v202 = vunpack.c.l.b16 %v166
    %v203 = vunpack.c.l.b16 %v167
    %v204 = vunpack.c.l.b16 %v168
    %v205 = vunpack.c.l.b16 %v169
    %v206 = vunpack.c.l.b16 %v170
    %v207 = vunpack.c.l.b16 %v171
    %v208 = vunpack.c.l.b16 %v172
    %v209 = vunpack.c.l.b16 %v173
    %v210 = vunpack.c.l.b16 %v174
    %v211 = vunpack.c.l.b16 %v175
    %v212 = vunpack.c.l.b16 %v176
    %v213 = vpack.c.b16 %v198, %v197
    %v214 = vpack.c.b16 %v200, %v199
    %v215 = vpack.c.b16 %v202, %v201
    %v216 = vpack.c.b16 %v204, %v203
    %v217 = vpack.c.b16 %v206, %v205
    %v218 = vpack.c.b16 %v208, %v207
    %v219 = vpack.c.b16 %v210, %v209
    %v220 = vpack.c.b16 %v212, %v211
    %v225 = vunpack.c.l.b16 %v177
    %v226 = vunpack.c.l.b16 %v178
    %v227 = vunpack.c.l.b16 %v179
    %v228 = vunpack.c.l.b16 %v180
    %v229 = vpack.c.b16 %v226, %v225
    %v230 = vpack.c.b16 %v228, %v227
    %vm233 = vcmask 261120
    %v235 = vsel %vm233, %v213, 0
    %v238 = vsel %vm233, %v214, 0
    %v241 = vsel %vm233, %v215, 0
    %v244 = vsel %vm233, %v216, 0
    %v247 = vsel %vm233, %v217, 0
    %v250 = vsel %vm233, %v218, 0
    %v253 = vsel %vm233, %v219, 0
    %v256 = vsel %vm233, %v220, 0
    %258 = vmatprep.subr.bf16.mxu0 0
    %259 = vmatpush1.bf16.msra.mxu0 %v229
    %260 = vmatprep.subr.bf16.mxu0 0
    %261 = vmatpush1.bf16.msra.mxu0 %v230
    %262 = vmatprep.subr.bf16.mxu0 0
    %263 = vmatpush1.bf16.msra.mxu0 0
    %264 = vmatprep.subr.bf16.mxu0 0
    %265 = vmatpush1.bf16.msra.mxu0 0
    %266 = vmatprep.subr.bf16.mxu0 0
    %267 = vmatpush1.bf16.msra.mxu0 0
    %268 = vmatprep.subr.bf16.mxu0 0
    %269 = vmatpush1.bf16.msra.mxu0 0
    %270 = vmatprep.subr.bf16.mxu0 0
    %271 = vmatpush1.bf16.msra.mxu0 0
    %272 = vmatprep.subr.bf16.mxu0 0
    %273 = vmatpush1.bf16.msra.mxu0 0
    %274 = vmatprep.subr.bf16.mxu0 0
    %275 = vmatpush1.bf16.msra.mxu0 0
    %276 = vmatprep.subr.bf16.mxu0 0
    %277 = vmatpush1.bf16.msra.mxu0 0
    %278 = vmatprep.subr.bf16.mxu0 0
    %279 = vmatpush1.bf16.msra.mxu0 0
    %280 = vmatprep.subr.bf16.mxu0 0
    %281 = vmatpush1.bf16.msra.mxu0 0
    %282 = vmatprep.subr.bf16.mxu0 0
    %283 = vmatpush1.bf16.msra.mxu0 0
    %284 = vmatprep.subr.bf16.mxu0 0
    %285 = vmatpush1.bf16.msra.mxu0 0
    %286 = vmatprep.subr.bf16.mxu0 0
    %287 = vmatpush1.bf16.msra.mxu0 0
    %288 = vmatprep.subr.bf16.mxu0 0
    %289 = vmatpush1.bf16.msra.mxu0 0
    %290 = vmatprep.mubr.bf16.mxu0 0
    %291 = vmatmul.mubr.bf16.gmra.mrb[0].mxu0 %v235
    %v292 = vpop.f32.mrb[0].mxu0
    %v293 = vadd.f32 0.0, %v292
    %v294 = vpop.f32.mrb[0].mxu0
    %v295 = vpop.f32.mrb[0].mxu0
    %v296 = vadd.f32 0.0, %v295
    %v297 = vpop.f32.mrb[0].mxu0
    %298 = vmatprep.mubr.bf16.mxu0 0
    %299 = vmatmul.mubr.bf16.gmra.mrb[0].mxu0 %v238
    %v300 = vpop.f32.mrb[0].mxu0
    %v301 = vadd.f32 0.0, %v300
    %v302 = vpop.f32.mrb[0].mxu0
    %v303 = vpop.f32.mrb[0].mxu0
    %v304 = vadd.f32 0.0, %v303
    %v305 = vpop.f32.mrb[0].mxu0
    %306 = vmatprep.mubr.bf16.mxu0 0
    %307 = vmatmul.mubr.bf16.gmra.mrb[0].mxu0 %v241
    %v308 = vpop.f32.mrb[0].mxu0
    %v309 = vadd.f32 0.0, %v308
    %v310 = vpop.f32.mrb[0].mxu0
    %v311 = vpop.f32.mrb[0].mxu0
    %v312 = vadd.f32 0.0, %v311
    %v313 = vpop.f32.mrb[0].mxu0
    %314 = vmatprep.mubr.bf16.mxu0 0
    %315 = vmatmul.mubr.bf16.gmra.mrb[0].mxu0 %v244
    %v316 = vpop.f32.mrb[0].mxu0
    %v317 = vadd.f32 0.0, %v316
    %v318 = vpop.f32.mrb[0].mxu0
    %v319 = vpop.f32.mrb[0].mxu0
    %v320 = vadd.f32 0.0, %v319
    %v321 = vpop.f32.mrb[0].mxu0
    %322 = vmatprep.mubr.bf16.mxu0 0
    %323 = vmatmul.mubr.bf16.gmra.mrb[0].mxu0 %v247
    %v324 = vpop.f32.mrb[0].mxu0
    %v325 = vadd.f32 0.0, %v324
    %v326 = vpop.f32.mrb[0].mxu0
    %v327 = vpop.f32.mrb[0].mxu0
    %v328 = vadd.f32 0.0, %v327
    %v329 = vpop.f32.mrb[0].mxu0
    %330 = vmatprep.mubr.bf16.mxu0 0
    %331 = vmatmul.mubr.bf16.gmra.mrb[0].mxu0 %v250
    %v332 = vpop.f32.mrb[0].mxu0
    %v333 = vadd.f32 0.0, %v332
    %v334 = vpop.f32.mrb[0].mxu0
    %v335 = vpop.f32.mrb[0].mxu0
    %v336 = vadd.f32 0.0, %v335
    %v337 = vpop.f32.mrb[0].mxu0
    %338 = vmatprep.mubr.bf16.mxu0 0
    %339 = vmatmul.mubr.bf16.gmra.mrb[0].mxu0 %v253
    %v340 = vpop.f32.mrb[0].mxu0
    %v341 = vadd.f32 0.0, %v340
    %v342 = vpop.f32.mrb[0].mxu0
    %v343 = vpop.f32.mrb[0].mxu0
    %v344 = vadd.f32 0.0, %v343
    %v345 = vpop.f32.mrb[0].mxu0
    %346 = vmatprep.mubr.bf16.mxu0 0
    %347 = vmatmul.mubr.bf16.gmra.mrb[0].mxu0 %v256
    %v348 = vpop.f32.mrb[0].mxu0
    %v349 = vadd.f32 0.0, %v348
    %v350 = vpop.f32.mrb[0].mxu0
    %v351 = vpop.f32.mrb[0].mxu0
    %v352 = vadd.f32 0.0, %v351
    %v353 = vpop.f32.mrb[0].mxu0
    %354 = vdwg.mxu0
    %v355 = vld [vmem:[#allocation7] sm:$0xf]
    %v356 = vld [vmem:[#allocation7 + $0x4] sm:$0xf]
    %v357 = vld [vmem:[#allocation10] sm:$0xf]
    %v358 = vld [vmem:[#allocation10 + $0x4] sm:$0xf]
    %v359 = vld [vmem:[#allocation10 + $0x8] sm:$0xf]
    %v360 = vld [vmem:[#allocation10 + $0xc] sm:$0xf]
    %v361 = vld [vmem:[#allocation10 + $0x10] sm:$0xf]
    %v362 = vld [vmem:[#allocation10 + $0x14] sm:$0xf]
    %v363 = vld [vmem:[#allocation10 + $0x18] sm:$0xf]
    %v364 = vld [vmem:[#allocation10 + $0x1c] sm:$0xf]
    %v365 = vld [vmem:[#allocation10 + $0x20] sm:$0xf]
    %v366 = vld [vmem:[#allocation10 + $0x24] sm:$0xf]
    %v367 = vld [vmem:[#allocation10 + $0x28] sm:$0xf]
    %v368 = vld [vmem:[#allocation10 + $0x2c] sm:$0xf]
    %v369 = vld [vmem:[#allocation10 + $0x30] sm:$0xf]
    %v370 = vld [vmem:[#allocation10 + $0x34] sm:$0xf]
    %v371 = vld [vmem:[#allocation10 + $0x38] sm:$0xf]
    %v372 = vld [vmem:[#allocation10 + $0x3c] sm:$0xf]
    %v373 = vld [vmem:[#allocation11] sm:$0xf]
    %v374 = vld [vmem:[#allocation11 + $0x4] sm:$0xf]
    %v375 = vld [vmem:[#allocation11 + $0x8] sm:$0xf]
    %v376 = vld [vmem:[#allocation11 + $0xc] sm:$0xf]
    %v377 = vld [vmem:[#allocation11 + $0x10] sm:$0xf]
    %v378 = vld [vmem:[#allocation11 + $0x14] sm:$0xf]
    %v379 = vld [vmem:[#allocation11 + $0x18] sm:$0xf]
    %v380 = vld [vmem:[#allocation11 + $0x1c] sm:$0xf]
    %v381 = vld [vmem:[#allocation11 + $0x20] sm:$0xf]
    %v382 = vld [vmem:[#allocation11 + $0x24] sm:$0xf]
    %v383 = vld [vmem:[#allocation11 + $0x28] sm:$0xf]
    %v384 = vld [vmem:[#allocation11 + $0x2c] sm:$0xf]
    %v385 = vld [vmem:[#allocation11 + $0x30] sm:$0xf]
    %v386 = vld [vmem:[#allocation11 + $0x34] sm:$0xf]
    %v387 = vld [vmem:[#allocation11 + $0x38] sm:$0xf]
    %v388 = vld [vmem:[#allocation11 + $0x3c] sm:$0xf]
    %v389 = vld [vmem:[%s7] sm:$0x1]
    %v390 = vpack.c.bf16 %v296, %v293
    %v391 = vpack.c.bf16 %v304, %v301
    %v392 = vpack.c.bf16 %v312, %v309
    %v393 = vpack.c.bf16 %v320, %v317
    %v394 = vpack.c.bf16 %v328, %v325
    %v395 = vpack.c.bf16 %v336, %v333
    %v396 = vpack.c.bf16 %v344, %v341
    %v397 = vpack.c.bf16 %v352, %v349
    %v400 = vunpack.c.l.b16 %v355
    %v401 = vunpack.c.l.b16 %v356
    %v402 = vpack.c.b16 %v401, %v400
    %vm403 = vcmask 130048
    %v405 = vsel %vm403, %v402, 0
    %407 = vmatprep.subr.bf16.mxu0 0
    %408 = vmatpush1.bf16.msra.mxu0 %v390
    %409 = vmatprep.subr.bf16.mxu0 0
    %410 = vmatpush1.bf16.msra.mxu0 0
    %411 = vmatprep.subr.bf16.mxu0 0
    %412 = vmatpush1.bf16.msra.mxu0 0
    %413 = vmatprep.subr.bf16.mxu0 0
    %414 = vmatpush1.bf16.msra.mxu0 0
    %415 = vmatprep.subr.bf16.mxu0 0
    %416 = vmatpush1.bf16.msra.mxu0 0
    %417 = vmatprep.subr.bf16.mxu0 0
    %418 = vmatpush1.bf16.msra.mxu0 0
    %419 = vmatprep.subr.bf16.mxu0 0
    %420 = vmatpush1.bf16.msra.mxu0 0
    %421 = vmatprep.subr.bf16.mxu0 0
    %422 = vmatpush1.bf16.msra.mxu0 0
    %423 = vmatprep.subr.bf16.mxu0 0
    %424 = vmatpush1.bf16.msra.mxu0 0
    %425 = vmatprep.subr.bf16.mxu0 0
    %426 = vmatpush1.bf16.msra.mxu0 0
    %427 = vmatprep.subr.bf16.mxu0 0
    %428 = vmatpush1.bf16.msra.mxu0 0
    %429 = vmatprep.subr.bf16.mxu0 0
    %430 = vmatpush1.bf16.msra.mxu0 0
    %431 = vmatprep.subr.bf16.mxu0 0
    %432 = vmatpush1.bf16.msra.mxu0 0
    %433 = vmatprep.subr.bf16.mxu0 0
    %434 = vmatpush1.bf16.msra.mxu0 0
    %435 = vmatprep.subr.bf16.mxu0 0
    %436 = vmatpush1.bf16.msra.mxu0 0
    %437 = vmatprep.subr.bf16.mxu0 0
    %438 = vmatpush1.bf16.msra.mxu0 0
    %439 = vmatprep.mubr.bf16.mxu0 0
    %440 = vmatmul.mubr.bf16.gmra.mrb[0].mxu0 %v405
    %v441 = vpop.f32.mrb[0].mxu0
    %v442 = vadd.f32 0.0, %v441
    %v443 = vpop.f32.mrb[0].mxu0
    %v444 = vpop.f32.mrb[0].mxu0
    %v445 = vadd.f32 0.0, %v444
    %v446 = vpop.f32.mrb[0].mxu0
    %447 = vdwg.mxu0
    %448 = vmatprep.subr.bf16.mxu0 0
    %449 = vmatpush1.bf16.msra.mxu0 %v391
    %450 = vmatprep.subr.bf16.mxu0 0
    %451 = vmatpush1.bf16.msra.mxu0 0
    %452 = vmatprep.subr.bf16.mxu0 0
    %453 = vmatpush1.bf16.msra.mxu0 0
    %454 = vmatprep.subr.bf16.mxu0 0
    %455 = vmatpush1.bf16.msra.mxu0 0
    %456 = vmatprep.subr.bf16.mxu0 0
    %457 = vmatpush1.bf16.msra.mxu0 0
    %458 = vmatprep.subr.bf16.mxu0 0
    %459 = vmatpush1.bf16.msra.mxu0 0
    %460 = vmatprep.subr.bf16.mxu0 0
    %461 = vmatpush1.bf16.msra.mxu0 0
    %462 = vmatprep.subr.bf16.mxu0 0
    %463 = vmatpush1.bf16.msra.mxu0 0
    %464 = vmatprep.subr.bf16.mxu0 0
    %465 = vmatpush1.bf16.msra.mxu0 0
    %466 = vmatprep.subr.bf16.mxu0 0
    %467 = vmatpush1.bf16.msra.mxu0 0
    %468 = vmatprep.subr.bf16.mxu0 0
    %469 = vmatpush1.bf16.msra.mxu0 0
    %470 = vmatprep.subr.bf16.mxu0 0
    %471 = vmatpush1.bf16.msra.mxu0 0
    %472 = vmatprep.subr.bf16.mxu0 0
    %473 = vmatpush1.bf16.msra.mxu0 0
    %474 = vmatprep.subr.bf16.mxu0 0
    %475 = vmatpush1.bf16.msra.mxu0 0
    %476 = vmatprep.subr.bf16.mxu0 0
    %477 = vmatpush1.bf16.msra.mxu0 0
    %478 = vmatprep.subr.bf16.mxu0 0
    %479 = vmatpush1.bf16.msra.mxu0 0
    %480 = vmatprep.mubr.bf16.mxu0 0
    %481 = vmatmul.mubr.bf16.gmra.mrb[0].mxu0 %v405
    %v482 = vpop.f32.mrb[0].mxu0
    %v483 = vadd.f32 0.0, %v482
    %v484 = vpop.f32.mrb[0].mxu0
    %v485 = vpop.f32.mrb[0].mxu0
    %v486 = vadd.f32 0.0, %v485
    %v487 = vpop.f32.mrb[0].mxu0
    %488 = vdwg.mxu0
    %489 = vmatprep.subr.bf16.mxu0 0
    %490 = vmatpush1.bf16.msra.mxu0 %v392
    %491 = vmatprep.subr.bf16.mxu0 0
    %492 = vmatpush1.bf16.msra.mxu0 0
    %493 = vmatprep.subr.bf16.mxu0 0
    %494 = vmatpush1.bf16.msra.mxu0 0
    %495 = vmatprep.subr.bf16.mxu0 0
    %496 = vmatpush1.bf16.msra.mxu0 0
    %497 = vmatprep.subr.bf16.mxu0 0
    %498 = vmatpush1.bf16.msra.mxu0 0
    %499 = vmatprep.subr.bf16.mxu0 0
    %500 = vmatpush1.bf16.msra.mxu0 0
    %501 = vmatprep.subr.bf16.mxu0 0
    %502 = vmatpush1.bf16.msra.mxu0 0
    %503 = vmatprep.subr.bf16.mxu0 0
    %504 = vmatpush1.bf16.msra.mxu0 0
    %505 = vmatprep.subr.bf16.mxu0 0
    %506 = vmatpush1.bf16.msra.mxu0 0
    %507 = vmatprep.subr.bf16.mxu0 0
    %508 = vmatpush1.bf16.msra.mxu0 0
    %509 = vmatprep.subr.bf16.mxu0 0
    %510 = vmatpush1.bf16.msra.mxu0 0
    %511 = vmatprep.subr.bf16.mxu0 0
    %512 = vmatpush1.bf16.msra.mxu0 0
    %513 = vmatprep.subr.bf16.mxu0 0
    %514 = vmatpush1.bf16.msra.mxu0 0
    %515 = vmatprep.subr.bf16.mxu0 0
    %516 = vmatpush1.bf16.msra.mxu0 0
    %517 = vmatprep.subr.bf16.mxu0 0
    %518 = vmatpush1.bf16.msra.mxu0 0
    %519 = vmatprep.subr.bf16.mxu0 0
    %520 = vmatpush1.bf16.msra.mxu0 0
    %521 = vmatprep.mubr.bf16.mxu0 0
    %522 = vmatmul.mubr.bf16.gmra.mrb[0].mxu0 %v405
    %v523 = vpop.f32.mrb[0].mxu0
    %v524 = vadd.f32 0.0, %v523
    %v525 = vpop.f32.mrb[0].mxu0
    %v526 = vpop.f32.mrb[0].mxu0
    %v527 = vadd.f32 0.0, %v526
    %v528 = vpop.f32.mrb[0].mxu0
    %529 = vdwg.mxu0
    %530 = vmatprep.subr.bf16.mxu0 0
    %531 = vmatpush1.bf16.msra.mxu0 %v393
    %532 = vmatprep.subr.bf16.mxu0 0
    %533 = vmatpush1.bf16.msra.mxu0 0
    %534 = vmatprep.subr.bf16.mxu0 0
    %535 = vmatpush1.bf16.msra.mxu0 0
    %536 = vmatprep.subr.bf16.mxu0 0
    %537 = vmatpush1.bf16.msra.mxu0 0
    %538 = vmatprep.subr.bf16.mxu0 0
    %539 = vmatpush1.bf16.msra.mxu0 0
    %540 = vmatprep.subr.bf16.mxu0 0
    %541 = vmatpush1.bf16.msra.mxu0 0
    %542 = vmatprep.subr.bf16.mxu0 0
    %543 = vmatpush1.bf16.msra.mxu0 0
    %544 = vmatprep.subr.bf16.mxu0 0
    %545 = vmatpush1.bf16.msra.mxu0 0
    %546 = vmatprep.subr.bf16.mxu0 0
    %547 = vmatpush1.bf16.msra.mxu0 0
    %548 = vmatprep.subr.bf16.mxu0 0
    %549 = vmatpush1.bf16.msra.mxu0 0
    %550 = vmatprep.subr.bf16.mxu0 0
    %551 = vmatpush1.bf16.msra.mxu0 0
    %552 = vmatprep.subr.bf16.mxu0 0
    %553 = vmatpush1.bf16.msra.mxu0 0
    %554 = vmatprep.subr.bf16.mxu0 0
    %555 = vmatpush1.bf16.msra.mxu0 0
    %556 = vmatprep.subr.bf16.mxu0 0
    %557 = vmatpush1.bf16.msra.mxu0 0
    %558 = vmatprep.subr.bf16.mxu0 0
    %559 = vmatpush1.bf16.msra.mxu0 0
    %560 = vmatprep.subr.bf16.mxu0 0
    %561 = vmatpush1.bf16.msra.mxu0 0
    %562 = vmatprep.mubr.bf16.mxu0 0
    %563 = vmatmul.mubr.bf16.gmra.mrb[0].mxu0 %v405
    %v564 = vpop.f32.mrb[0].mxu0
    %v565 = vadd.f32 0.0, %v564
    %v566 = vpop.f32.mrb[0].mxu0
    %v567 = vpop.f32.mrb[0].mxu0
    %v568 = vadd.f32 0.0, %v567
    %v569 = vpop.f32.mrb[0].mxu0
    %570 = vdwg.mxu0
    %571 = vmatprep.subr.bf16.mxu0 0
    %572 = vmatpush1.bf16.msra.mxu0 %v394
    %573 = vmatprep.subr.bf16.mxu0 0
    %574 = vmatpush1.bf16.msra.mxu0 0
    %575 = vmatprep.subr.bf16.mxu0 0
    %576 = vmatpush1.bf16.msra.mxu0 0
    %577 = vmatprep.subr.bf16.mxu0 0
    %578 = vmatpush1.bf16.msra.mxu0 0
    %579 = vmatprep.subr.bf16.mxu0 0
    %580 = vmatpush1.bf16.msra.mxu0 0
    %581 = vmatprep.subr.bf16.mxu0 0
    %582 = vmatpush1.bf16.msra.mxu0 0
    %583 = vmatprep.subr.bf16.mxu0 0
    %584 = vmatpush1.bf16.msra.mxu0 0
    %585 = vmatprep.subr.bf16.mxu0 0
    %586 = vmatpush1.bf16.msra.mxu0 0
    %587 = vmatprep.subr.bf16.mxu0 0
    %588 = vmatpush1.bf16.msra.mxu0 0
    %589 = vmatprep.subr.bf16.mxu0 0
    %590 = vmatpush1.bf16.msra.mxu0 0
    %591 = vmatprep.subr.bf16.mxu0 0
    %592 = vmatpush1.bf16.msra.mxu0 0
    %593 = vmatprep.subr.bf16.mxu0 0
    %594 = vmatpush1.bf16.msra.mxu0 0
    %595 = vmatprep.subr.bf16.mxu0 0
    %596 = vmatpush1.bf16.msra.mxu0 0
    %597 = vmatprep.subr.bf16.mxu0 0
    %598 = vmatpush1.bf16.msra.mxu0 0
    %599 = vmatprep.subr.bf16.mxu0 0
    %600 = vmatpush1.bf16.msra.mxu0 0
    %601 = vmatprep.subr.bf16.mxu0 0
    %602 = vmatpush1.bf16.msra.mxu0 0
    %603 = vmatprep.mubr.bf16.mxu0 0
    %604 = vmatmul.mubr.bf16.gmra.mrb[0].mxu0 %v405
    %v605 = vpop.f32.mrb[0].mxu0
    %v606 = vadd.f32 0.0, %v605
    %v607 = vpop.f32.mrb[0].mxu0
    %v608 = vpop.f32.mrb[0].mxu0
    %v609 = vadd.f32 0.0, %v608
    %v610 = vpop.f32.mrb[0].mxu0
    %611 = vdwg.mxu0
    %612 = vmatprep.subr.bf16.mxu0 0
    %613 = vmatpush1.bf16.msra.mxu0 %v395
    %614 = vmatprep.subr.bf16.mxu0 0
    %615 = vmatpush1.bf16.msra.mxu0 0
    %616 = vmatprep.subr.bf16.mxu0 0
    %617 = vmatpush1.bf16.msra.mxu0 0
    %618 = vmatprep.subr.bf16.mxu0 0
    %619 = vmatpush1.bf16.msra.mxu0 0
    %620 = vmatprep.subr.bf16.mxu0 0
    %621 = vmatpush1.bf16.msra.mxu0 0
    %622 = vmatprep.subr.bf16.mxu0 0
    %623 = vmatpush1.bf16.msra.mxu0 0
    %624 = vmatprep.subr.bf16.mxu0 0
    %625 = vmatpush1.bf16.msra.mxu0 0
    %626 = vmatprep.subr.bf16.mxu0 0
    %627 = vmatpush1.bf16.msra.mxu0 0
    %628 = vmatprep.subr.bf16.mxu0 0
    %629 = vmatpush1.bf16.msra.mxu0 0
    %630 = vmatprep.subr.bf16.mxu0 0
    %631 = vmatpush1.bf16.msra.mxu0 0
    %632 = vmatprep.subr.bf16.mxu0 0
    %633 = vmatpush1.bf16.msra.mxu0 0
    %634 = vmatprep.subr.bf16.mxu0 0
    %635 = vmatpush1.bf16.msra.mxu0 0
    %636 = vmatprep.subr.bf16.mxu0 0
    %637 = vmatpush1.bf16.msra.mxu0 0
    %638 = vmatprep.subr.bf16.mxu0 0
    %639 = vmatpush1.bf16.msra.mxu0 0
    %640 = vmatprep.subr.bf16.mxu0 0
    %641 = vmatpush1.bf16.msra.mxu0 0
    %642 = vmatprep.subr.bf16.mxu0 0
    %643 = vmatpush1.bf16.msra.mxu0 0
    %644 = vmatprep.mubr.bf16.mxu0 0
    %645 = vmatmul.mubr.bf16.gmra.mrb[0].mxu0 %v405
    %v646 = vpop.f32.mrb[0].mxu0
    %v647 = vadd.f32 0.0, %v646
    %v648 = vpop.f32.mrb[0].mxu0
    %v649 = vpop.f32.mrb[0].mxu0
    %v650 = vadd.f32 0.0, %v649
    %v651 = vpop.f32.mrb[0].mxu0
    %652 = vdwg.mxu0
    %653 = vmatprep.subr.bf16.mxu0 0
    %654 = vmatpush1.bf16.msra.mxu0 %v396
    %655 = vmatprep.subr.bf16.mxu0 0
    %656 = vmatpush1.bf16.msra.mxu0 0
    %657 = vmatprep.subr.bf16.mxu0 0
    %658 = vmatpush1.bf16.msra.mxu0 0
    %659 = vmatprep.subr.bf16.mxu0 0
    %660 = vmatpush1.bf16.msra.mxu0 0
    %661 = vmatprep.subr.bf16.mxu0 0
    %662 = vmatpush1.bf16.msra.mxu0 0
    %663 = vmatprep.subr.bf16.mxu0 0
    %664 = vmatpush1.bf16.msra.mxu0 0
    %665 = vmatprep.subr.bf16.mxu0 0
    %666 = vmatpush1.bf16.msra.mxu0 0
    %667 = vmatprep.subr.bf16.mxu0 0
    %668 = vmatpush1.bf16.msra.mxu0 0
    %669 = vmatprep.subr.bf16.mxu0 0
    %670 = vmatpush1.bf16.msra.mxu0 0
    %671 = vmatprep.subr.bf16.mxu0 0
    %672 = vmatpush1.bf16.msra.mxu0 0
    %673 = vmatprep.subr.bf16.mxu0 0
    %674 = vmatpush1.bf16.msra.mxu0 0
    %675 = vmatprep.subr.bf16.mxu0 0
    %676 = vmatpush1.bf16.msra.mxu0 0
    %677 = vmatprep.subr.bf16.mxu0 0
    %678 = vmatpush1.bf16.msra.mxu0 0
    %679 = vmatprep.subr.bf16.mxu0 0
    %680 = vmatpush1.bf16.msra.mxu0 0
    %681 = vmatprep.subr.bf16.mxu0 0
    %682 = vmatpush1.bf16.msra.mxu0 0
    %683 = vmatprep.subr.bf16.mxu0 0
    %684 = vmatpush1.bf16.msra.mxu0 0
    %685 = vmatprep.mubr.bf16.mxu0 0
    %686 = vmatmul.mubr.bf16.gmra.mrb[0].mxu0 %v405
    %v687 = vpop.f32.mrb[0].mxu0
    %v688 = vadd.f32 0.0, %v687
    %v689 = vpop.f32.mrb[0].mxu0
    %v690 = vpop.f32.mrb[0].mxu0
    %v691 = vadd.f32 0.0, %v690
    %v692 = vpop.f32.mrb[0].mxu0
    %693 = vdwg.mxu0
    %694 = vmatprep.subr.bf16.mxu0 0
    %695 = vmatpush1.bf16.msra.mxu0 %v397
    %696 = vmatprep.subr.bf16.mxu0 0
    %697 = vmatpush1.bf16.msra.mxu0 0
    %698 = vmatprep.subr.bf16.mxu0 0
    %699 = vmatpush1.bf16.msra.mxu0 0
    %700 = vmatprep.subr.bf16.mxu0 0
    %701 = vmatpush1.bf16.msra.mxu0 0
    %702 = vmatprep.subr.bf16.mxu0 0
    %703 = vmatpush1.bf16.msra.mxu0 0
    %704 = vmatprep.subr.bf16.mxu0 0
    %705 = vmatpush1.bf16.msra.mxu0 0
    %706 = vmatprep.subr.bf16.mxu0 0
    %707 = vmatpush1.bf16.msra.mxu0 0
    %708 = vmatprep.subr.bf16.mxu0 0
    %709 = vmatpush1.bf16.msra.mxu0 0
    %710 = vmatprep.subr.bf16.mxu0 0
    %711 = vmatpush1.bf16.msra.mxu0 0
    %712 = vmatprep.subr.bf16.mxu0 0
    %713 = vmatpush1.bf16.msra.mxu0 0
    %714 = vmatprep.subr.bf16.mxu0 0
    %715 = vmatpush1.bf16.msra.mxu0 0
    %716 = vmatprep.subr.bf16.mxu0 0
    %717 = vmatpush1.bf16.msra.mxu0 0
    %718 = vmatprep.subr.bf16.mxu0 0
    %719 = vmatpush1.bf16.msra.mxu0 0
    %720 = vmatprep.subr.bf16.mxu0 0
    %721 = vmatpush1.bf16.msra.mxu0 0
    %722 = vmatprep.subr.bf16.mxu0 0
    %723 = vmatpush1.bf16.msra.mxu0 0
    %724 = vmatprep.subr.bf16.mxu0 0
    %725 = vmatpush1.bf16.msra.mxu0 0
    %726 = vmatprep.mubr.bf16.mxu0 0
    %727 = vmatmul.mubr.bf16.gmra.mrb[0].mxu0 %v405
    %v728 = vpop.f32.mrb[0].mxu0
    %v729 = vadd.f32 0.0, %v728
    %v730 = vpop.f32.mrb[0].mxu0
    %v731 = vpop.f32.mrb[0].mxu0
    %v732 = vadd.f32 0.0, %v731
    %v733 = vpop.f32.mrb[0].mxu0
    %734 = vdwg.mxu0
    %v735 = vmul.f32 %v442, 0.2
    %v736 = vmul.f32 %v445, 0.2
    %v737 = vmul.f32 %v483, 0.2
    %v738 = vmul.f32 %v486, 0.2
    %v739 = vmul.f32 %v524, 0.2
    %v740 = vmul.f32 %v527, 0.2
    %v741 = vmul.f32 %v565, 0.2
    %v742 = vmul.f32 %v568, 0.2
    %v743 = vmul.f32 %v606, 0.2
    %v744 = vmul.f32 %v609, 0.2
    %v745 = vmul.f32 %v647, 0.2
    %v746 = vmul.f32 %v650, 0.2
    %v747 = vmul.f32 %v688, 0.2
    %v748 = vmul.f32 %v691, 0.2
    %v749 = vmul.f32 %v729, 0.2
    %v750 = vmul.f32 %v732, 0.2
    %v751 = vmax.f32 %v442, %v735
    %v752 = vmax.f32 %v445, %v736
    %v753 = vmax.f32 %v483, %v737
    %v754 = vmax.f32 %v486, %v738
    %v755 = vmax.f32 %v524, %v739
    %v756 = vmax.f32 %v527, %v740
    %v757 = vmax.f32 %v565, %v741
    %v758 = vmax.f32 %v568, %v742
    %v759 = vmax.f32 %v606, %v743
    %v760 = vmax.f32 %v609, %v744
    %v761 = vmax.f32 %v647, %v745
    %v762 = vmax.f32 %v650, %v746
    %v763 = vmax.f32 %v688, %v747
    %v764 = vmax.f32 %v691, %v748
    %v765 = vmax.f32 %v729, %v749
    %v766 = vmax.f32 %v732, %v750
    %v767 = vpack.c.bf16 %v752, %v751
    %v768 = vpack.c.bf16 %v754, %v753
    %v769 = vpack.c.bf16 %v756, %v755
    %v770 = vpack.c.bf16 %v758, %v757
    %v771 = vpack.c.bf16 %v760, %v759
    %v772 = vpack.c.bf16 %v762, %v761
    %v773 = vpack.c.bf16 %v764, %v763
    %v774 = vpack.c.bf16 %v766, %v765
    %775 = vmatprep.subr.bf16.mxu0 0
    %776 = vmatpush1.bf16.msra.mxu0 %v767
    %777 = vmatprep.subr.bf16.mxu0 0
    %778 = vmatpush1.bf16.msra.mxu0 0
    %779 = vmatprep.subr.bf16.mxu0 0
    %780 = vmatpush1.bf16.msra.mxu0 0
    %781 = vmatprep.subr.bf16.mxu0 0
    %782 = vmatpush1.bf16.msra.mxu0 0
    %783 = vmatprep.subr.bf16.mxu0 0
    %784 = vmatpush1.bf16.msra.mxu0 0
    %785 = vmatprep.subr.bf16.mxu0 0
    %786 = vmatpush1.bf16.msra.mxu0 0
    %787 = vmatprep.subr.bf16.mxu0 0
    %788 = vmatpush1.bf16.msra.mxu0 0
    %789 = vmatprep.subr.bf16.mxu0 0
    %790 = vmatpush1.bf16.msra.mxu0 0
    %791 = vmatprep.subr.bf16.mxu0 0
    %792 = vmatpush1.bf16.msra.mxu0 0
    %793 = vmatprep.subr.bf16.mxu0 0
    %794 = vmatpush1.bf16.msra.mxu0 0
    %795 = vmatprep.subr.bf16.mxu0 0
    %796 = vmatpush1.bf16.msra.mxu0 0
    %797 = vmatprep.subr.bf16.mxu0 0
    %798 = vmatpush1.bf16.msra.mxu0 0
    %799 = vmatprep.subr.bf16.mxu0 0
    %800 = vmatpush1.bf16.msra.mxu0 0
    %801 = vmatprep.subr.bf16.mxu0 0
    %802 = vmatpush1.bf16.msra.mxu0 0
    %803 = vmatprep.subr.bf16.mxu0 0
    %804 = vmatpush1.bf16.msra.mxu0 0
    %805 = vmatprep.subr.bf16.mxu0 0
    %806 = vmatpush1.bf16.msra.mxu0 0
    %807 = vmatprep.mubr.bf16.mxu0 0
    %808 = vmatmul.mubr.bf16.gmra.mrb[0].mxu0 %v405
    %v809 = vpop.f32.mrb[0].mxu0
    %v810 = vadd.f32 0.0, %v809
    %v811 = vpop.f32.mrb[0].mxu0
    %v812 = vpop.f32.mrb[0].mxu0
    %v813 = vadd.f32 0.0, %v812
    %v814 = vpop.f32.mrb[0].mxu0
    %815 = vdwg.mxu0
    %816 = vmatprep.subr.bf16.mxu0 0
    %817 = vmatpush1.bf16.msra.mxu0 %v768
    %818 = vmatprep.subr.bf16.mxu0 0
    %819 = vmatpush1.bf16.msra.mxu0 0
    %820 = vmatprep.subr.bf16.mxu0 0
    %821 = vmatpush1.bf16.msra.mxu0 0
    %822 = vmatprep.subr.bf16.mxu0 0
    %823 = vmatpush1.bf16.msra.mxu0 0
    %824 = vmatprep.subr.bf16.mxu0 0
    %825 = vmatpush1.bf16.msra.mxu0 0
    %826 = vmatprep.subr.bf16.mxu0 0
    %827 = vmatpush1.bf16.msra.mxu0 0
    %828 = vmatprep.subr.bf16.mxu0 0
    %829 = vmatpush1.bf16.msra.mxu0 0
    %830 = vmatprep.subr.bf16.mxu0 0
    %831 = vmatpush1.bf16.msra.mxu0 0
    %832 = vmatprep.subr.bf16.mxu0 0
    %833 = vmatpush1.bf16.msra.mxu0 0
    %834 = vmatprep.subr.bf16.mxu0 0
    %835 = vmatpush1.bf16.msra.mxu0 0
    %836 = vmatprep.subr.bf16.mxu0 0
    %837 = vmatpush1.bf16.msra.mxu0 0
    %838 = vmatprep.subr.bf16.mxu0 0
    %839 = vmatpush1.bf16.msra.mxu0 0
    %840 = vmatprep.subr.bf16.mxu0 0
    %841 = vmatpush1.bf16.msra.mxu0 0
    %842 = vmatprep.subr.bf16.mxu0 0
    %843 = vmatpush1.bf16.msra.mxu0 0
    %844 = vmatprep.subr.bf16.mxu0 0
    %845 = vmatpush1.bf16.msra.mxu0 0
    %846 = vmatprep.subr.bf16.mxu0 0
    %847 = vmatpush1.bf16.msra.mxu0 0
    %848 = vmatprep.mubr.bf16.mxu0 0
    %849 = vmatmul.mubr.bf16.gmra.mrb[0].mxu0 %v405
    %v850 = vpop.f32.mrb[0].mxu0
    %v851 = vadd.f32 0.0, %v850
    %v852 = vpop.f32.mrb[0].mxu0
    %v853 = vpop.f32.mrb[0].mxu0
    %v854 = vadd.f32 0.0, %v853
    %v855 = vpop.f32.mrb[0].mxu0
    %856 = vdwg.mxu0
    %857 = vmatprep.subr.bf16.mxu0 0
    %858 = vmatpush1.bf16.msra.mxu0 %v769
    %859 = vmatprep.subr.bf16.mxu0 0
    %860 = vmatpush1.bf16.msra.mxu0 0
    %861 = vmatprep.subr.bf16.mxu0 0
    %862 = vmatpush1.bf16.msra.mxu0 0
    %863 = vmatprep.subr.bf16.mxu0 0
    %864 = vmatpush1.bf16.msra.mxu0 0
    %865 = vmatprep.subr.bf16.mxu0 0
    %866 = vmatpush1.bf16.msra.mxu0 0
    %867 = vmatprep.subr.bf16.mxu0 0
    %868 = vmatpush1.bf16.msra.mxu0 0
    %869 = vmatprep.subr.bf16.mxu0 0
    %870 = vmatpush1.bf16.msra.mxu0 0
    %871 = vmatprep.subr.bf16.mxu0 0
    %872 = vmatpush1.bf16.msra.mxu0 0
    %873 = vmatprep.subr.bf16.mxu0 0
    %874 = vmatpush1.bf16.msra.mxu0 0
    %875 = vmatprep.subr.bf16.mxu0 0
    %876 = vmatpush1.bf16.msra.mxu0 0
    %877 = vmatprep.subr.bf16.mxu0 0
    %878 = vmatpush1.bf16.msra.mxu0 0
    %879 = vmatprep.subr.bf16.mxu0 0
    %880 = vmatpush1.bf16.msra.mxu0 0
    %881 = vmatprep.subr.bf16.mxu0 0
    %882 = vmatpush1.bf16.msra.mxu0 0
    %883 = vmatprep.subr.bf16.mxu0 0
    %884 = vmatpush1.bf16.msra.mxu0 0
    %885 = vmatprep.subr.bf16.mxu0 0
    %886 = vmatpush1.bf16.msra.mxu0 0
    %887 = vmatprep.subr.bf16.mxu0 0
    %888 = vmatpush1.bf16.msra.mxu0 0
    %889 = vmatprep.mubr.bf16.mxu0 0
    %890 = vmatmul.mubr.bf16.gmra.mrb[0].mxu0 %v405
    %v891 = vpop.f32.mrb[0].mxu0
    %v892 = vadd.f32 0.0, %v891
    %v893 = vpop.f32.mrb[0].mxu0
    %v894 = vpop.f32.mrb[0].mxu0
    %v895 = vadd.f32 0.0, %v894
    %v896 = vpop.f32.mrb[0].mxu0
    %897 = vdwg.mxu0
    %898 = vmatprep.subr.bf16.mxu0 0
    %899 = vmatpush1.bf16.msra.mxu0 %v770
    %900 = vmatprep.subr.bf16.mxu0 0
    %901 = vmatpush1.bf16.msra.mxu0 0
    %902 = vmatprep.subr.bf16.mxu0 0
    %903 = vmatpush1.bf16.msra.mxu0 0
    %904 = vmatprep.subr.bf16.mxu0 0
    %905 = vmatpush1.bf16.msra.mxu0 0
    %906 = vmatprep.subr.bf16.mxu0 0
    %907 = vmatpush1.bf16.msra.mxu0 0
    %908 = vmatprep.subr.bf16.mxu0 0
    %909 = vmatpush1.bf16.msra.mxu0 0
    %910 = vmatprep.subr.bf16.mxu0 0
    %911 = vmatpush1.bf16.msra.mxu0 0
    %912 = vmatprep.subr.bf16.mxu0 0
    %913 = vmatpush1.bf16.msra.mxu0 0
    %914 = vmatprep.subr.bf16.mxu0 0
    %915 = vmatpush1.bf16.msra.mxu0 0
    %916 = vmatprep.subr.bf16.mxu0 0
    %917 = vmatpush1.bf16.msra.mxu0 0
    %918 = vmatprep.subr.bf16.mxu0 0
    %919 = vmatpush1.bf16.msra.mxu0 0
    %920 = vmatprep.subr.bf16.mxu0 0
    %921 = vmatpush1.bf16.msra.mxu0 0
    %922 = vmatprep.subr.bf16.mxu0 0
    %923 = vmatpush1.bf16.msra.mxu0 0
    %924 = vmatprep.subr.bf16.mxu0 0
    %925 = vmatpush1.bf16.msra.mxu0 0
    %926 = vmatprep.subr.bf16.mxu0 0
    %927 = vmatpush1.bf16.msra.mxu0 0
    %928 = vmatprep.subr.bf16.mxu0 0
    %929 = vmatpush1.bf16.msra.mxu0 0
    %930 = vmatprep.mubr.bf16.mxu0 0
    %931 = vmatmul.mubr.bf16.gmra.mrb[0].mxu0 %v405
    %v932 = vpop.f32.mrb[0].mxu0
    %v933 = vadd.f32 0.0, %v932
    %v934 = vpop.f32.mrb[0].mxu0
    %v935 = vpop.f32.mrb[0].mxu0
    %v936 = vadd.f32 0.0, %v935
    %v937 = vpop.f32.mrb[0].mxu0
    %938 = vdwg.mxu0
    %939 = vmatprep.subr.bf16.mxu0 0
    %940 = vmatpush1.bf16.msra.mxu0 %v771
    %941 = vmatprep.subr.bf16.mxu0 0
    %942 = vmatpush1.bf16.msra.mxu0 0
    %943 = vmatprep.subr.bf16.mxu0 0
    %944 = vmatpush1.bf16.msra.mxu0 0
    %945 = vmatprep.subr.bf16.mxu0 0
    %946 = vmatpush1.bf16.msra.mxu0 0
    %947 = vmatprep.subr.bf16.mxu0 0
    %948 = vmatpush1.bf16.msra.mxu0 0
    %949 = vmatprep.subr.bf16.mxu0 0
    %950 = vmatpush1.bf16.msra.mxu0 0
    %951 = vmatprep.subr.bf16.mxu0 0
    %952 = vmatpush1.bf16.msra.mxu0 0
    %953 = vmatprep.subr.bf16.mxu0 0
    %954 = vmatpush1.bf16.msra.mxu0 0
    %955 = vmatprep.subr.bf16.mxu0 0
    %956 = vmatpush1.bf16.msra.mxu0 0
    %957 = vmatprep.subr.bf16.mxu0 0
    %958 = vmatpush1.bf16.msra.mxu0 0
    %959 = vmatprep.subr.bf16.mxu0 0
    %960 = vmatpush1.bf16.msra.mxu0 0
    %961 = vmatprep.subr.bf16.mxu0 0
    %962 = vmatpush1.bf16.msra.mxu0 0
    %963 = vmatprep.subr.bf16.mxu0 0
    %964 = vmatpush1.bf16.msra.mxu0 0
    %965 = vmatprep.subr.bf16.mxu0 0
    %966 = vmatpush1.bf16.msra.mxu0 0
    %967 = vmatprep.subr.bf16.mxu0 0
    %968 = vmatpush1.bf16.msra.mxu0 0
    %969 = vmatprep.subr.bf16.mxu0 0
    %970 = vmatpush1.bf16.msra.mxu0 0
    %971 = vmatprep.mubr.bf16.mxu0 0
    %972 = vmatmul.mubr.bf16.gmra.mrb[0].mxu0 %v405
    %v973 = vpop.f32.mrb[0].mxu0
    %v974 = vadd.f32 0.0, %v973
    %v975 = vpop.f32.mrb[0].mxu0
    %v976 = vpop.f32.mrb[0].mxu0
    %v977 = vadd.f32 0.0, %v976
    %v978 = vpop.f32.mrb[0].mxu0
    %979 = vdwg.mxu0
    %980 = vmatprep.subr.bf16.mxu0 0
    %981 = vmatpush1.bf16.msra.mxu0 %v772
    %982 = vmatprep.subr.bf16.mxu0 0
    %983 = vmatpush1.bf16.msra.mxu0 0
    %984 = vmatprep.subr.bf16.mxu0 0
    %985 = vmatpush1.bf16.msra.mxu0 0
    %986 = vmatprep.subr.bf16.mxu0 0
    %987 = vmatpush1.bf16.msra.mxu0 0
    %988 = vmatprep.subr.bf16.mxu0 0
    %989 = vmatpush1.bf16.msra.mxu0 0
    %990 = vmatprep.subr.bf16.mxu0 0
    %991 = vmatpush1.bf16.msra.mxu0 0
    %992 = vmatprep.subr.bf16.mxu0 0
    %993 = vmatpush1.bf16.msra.mxu0 0
    %994 = vmatprep.subr.bf16.mxu0 0
    %995 = vmatpush1.bf16.msra.mxu0 0
    %996 = vmatprep.subr.bf16.mxu0 0
    %997 = vmatpush1.bf16.msra.mxu0 0
    %998 = vmatprep.subr.bf16.mxu0 0
    %999 = vmatpush1.bf16.msra.mxu0 0
    %1000 = vmatprep.subr.bf16.mxu0 0
    %1001 = vmatpush1.bf16.msra.mxu0 0
    %1002 = vmatprep.subr.bf16.mxu0 0
    %1003 = vmatpush1.bf16.msra.mxu0 0
    %1004 = vmatprep.subr.bf16.mxu0 0
    %1005 = vmatpush1.bf16.msra.mxu0 0
    %1006 = vmatprep.subr.bf16.mxu0 0
    %1007 = vmatpush1.bf16.msra.mxu0 0
    %1008 = vmatprep.subr.bf16.mxu0 0
    %1009 = vmatpush1.bf16.msra.mxu0 0
    %1010 = vmatprep.subr.bf16.mxu0 0
    %1011 = vmatpush1.bf16.msra.mxu0 0
    %1012 = vmatprep.mubr.bf16.mxu0 0
    %1013 = vmatmul.mubr.bf16.gmra.mrb[0].mxu0 %v405
    %v1014 = vpop.f32.mrb[0].mxu0
    %v1015 = vadd.f32 0.0, %v1014
    %v1016 = vpop.f32.mrb[0].mxu0
    %v1017 = vpop.f32.mrb[0].mxu0
    %v1018 = vadd.f32 0.0, %v1017
    %v1019 = vpop.f32.mrb[0].mxu0
    %1020 = vdwg.mxu0
    %1021 = vmatprep.subr.bf16.mxu0 0
    %1022 = vmatpush1.bf16.msra.mxu0 %v773
    %1023 = vmatprep.subr.bf16.mxu0 0
    %1024 = vmatpush1.bf16.msra.mxu0 0
    %1025 = vmatprep.subr.bf16.mxu0 0
    %1026 = vmatpush1.bf16.msra.mxu0 0
    %1027 = vmatprep.subr.bf16.mxu0 0
    %1028 = vmatpush1.bf16.msra.mxu0 0
    %1029 = vmatprep.subr.bf16.mxu0 0
    %1030 = vmatpush1.bf16.msra.mxu0 0
    %1031 = vmatprep.subr.bf16.mxu0 0
    %1032 = vmatpush1.bf16.msra.mxu0 0
    %1033 = vmatprep.subr.bf16.mxu0 0
    %1034 = vmatpush1.bf16.msra.mxu0 0
    %1035 = vmatprep.subr.bf16.mxu0 0
    %1036 = vmatpush1.bf16.msra.mxu0 0
    %1037 = vmatprep.subr.bf16.mxu0 0
    %1038 = vmatpush1.bf16.msra.mxu0 0
    %1039 = vmatprep.subr.bf16.mxu0 0
    %1040 = vmatpush1.bf16.msra.mxu0 0
    %1041 = vmatprep.subr.bf16.mxu0 0
    %1042 = vmatpush1.bf16.msra.mxu0 0
    %1043 = vmatprep.subr.bf16.mxu0 0
    %1044 = vmatpush1.bf16.msra.mxu0 0
    %1045 = vmatprep.subr.bf16.mxu0 0
    %1046 = vmatpush1.bf16.msra.mxu0 0
    %1047 = vmatprep.subr.bf16.mxu0 0
    %1048 = vmatpush1.bf16.msra.mxu0 0
    %1049 = vmatprep.subr.bf16.mxu0 0
    %1050 = vmatpush1.bf16.msra.mxu0 0
    %1051 = vmatprep.subr.bf16.mxu0 0
    %1052 = vmatpush1.bf16.msra.mxu0 0
    %1053 = vmatprep.mubr.bf16.mxu0 0
    %1054 = vmatmul.mubr.bf16.gmra.mrb[0].mxu0 %v405
    %v1055 = vpop.f32.mrb[0].mxu0
    %v1056 = vadd.f32 0.0, %v1055
    %v1057 = vpop.f32.mrb[0].mxu0
    %v1058 = vpop.f32.mrb[0].mxu0
    %v1059 = vadd.f32 0.0, %v1058
    %v1060 = vpop.f32.mrb[0].mxu0
    %1061 = vdwg.mxu0
    %1062 = vmatprep.subr.bf16.mxu0 0
    %1063 = vmatpush1.bf16.msra.mxu0 %v774
    %1064 = vmatprep.subr.bf16.mxu0 0
    %1065 = vmatpush1.bf16.msra.mxu0 0
    %1066 = vmatprep.subr.bf16.mxu0 0
    %1067 = vmatpush1.bf16.msra.mxu0 0
    %1068 = vmatprep.subr.bf16.mxu0 0
    %1069 = vmatpush1.bf16.msra.mxu0 0
    %1070 = vmatprep.subr.bf16.mxu0 0
    %1071 = vmatpush1.bf16.msra.mxu0 0
    %1072 = vmatprep.subr.bf16.mxu0 0
    %1073 = vmatpush1.bf16.msra.mxu0 0
    %1074 = vmatprep.subr.bf16.mxu0 0
    %1075 = vmatpush1.bf16.msra.mxu0 0
    %1076 = vmatprep.subr.bf16.mxu0 0
    %1077 = vmatpush1.bf16.msra.mxu0 0
    %1078 = vmatprep.subr.bf16.mxu0 0
    %1079 = vmatpush1.bf16.msra.mxu0 0
    %1080 = vmatprep.subr.bf16.mxu0 0
    %1081 = vmatpush1.bf16.msra.mxu0 0
    %1082 = vmatprep.subr.bf16.mxu0 0
    %1083 = vmatpush1.bf16.msra.mxu0 0
    %1084 = vmatprep.subr.bf16.mxu0 0
    %1085 = vmatpush1.bf16.msra.mxu0 0
    %1086 = vmatprep.subr.bf16.mxu0 0
    %1087 = vmatpush1.bf16.msra.mxu0 0
    %1088 = vmatprep.subr.bf16.mxu0 0
    %1089 = vmatpush1.bf16.msra.mxu0 0
    %1090 = vmatprep.subr.bf16.mxu0 0
    %1091 = vmatpush1.bf16.msra.mxu0 0
    %1092 = vmatprep.subr.bf16.mxu0 0
    %1093 = vmatpush1.bf16.msra.mxu0 0
    %1094 = vmatprep.mubr.bf16.mxu0 0
    %1095 = vmatmul.mubr.bf16.gmra.mrb[0].mxu0 %v405
    %v1096 = vpop.f32.mrb[0].mxu0
    %v1097 = vadd.f32 0.0, %v1096
    %v1098 = vpop.f32.mrb[0].mxu0
    %v1099 = vpop.f32.mrb[0].mxu0
    %v1100 = vadd.f32 0.0, %v1099
    %v1101 = vpop.f32.mrb[0].mxu0
    %1102 = vdwg.mxu0
    %v1103 = vpack.c.bf16 %v813, %v810
    %v1104 = vpack.c.bf16 %v854, %v851
    %v1105 = vpack.c.bf16 %v895, %v892
    %v1106 = vpack.c.bf16 %v936, %v933
    %v1107 = vpack.c.bf16 %v977, %v974
    %v1108 = vpack.c.bf16 %v1018, %v1015
    %v1109 = vpack.c.bf16 %v1059, %v1056
    %v1110 = vpack.c.bf16 %v1100, %v1097
    %v1127 = vunpack.c.l.b16 %v357
    %v1128 = vunpack.c.l.b16 %v358
    %v1129 = vunpack.c.l.b16 %v359
    %v1130 = vunpack.c.l.b16 %v360
    %v1131 = vunpack.c.l.b16 %v361
    %v1132 = vunpack.c.l.b16 %v362
    %v1133 = vunpack.c.l.b16 %v363
    %v1134 = vunpack.c.l.b16 %v364
    %v1135 = vunpack.c.l.b16 %v365
    %v1136 = vunpack.c.l.b16 %v366
    %v1137 = vunpack.c.l.b16 %v367
    %v1138 = vunpack.c.l.b16 %v368
    %v1139 = vunpack.c.l.b16 %v369
    %v1140 = vunpack.c.l.b16 %v370
    %v1141 = vunpack.c.l.b16 %v371
    %v1142 = vunpack.c.l.b16 %v372
    %v1143 = vpack.c.b16 %v1128, %v1127
    %v1144 = vpack.c.b16 %v1130, %v1129
    %v1145 = vpack.c.b16 %v1132, %v1131
    %v1146 = vpack.c.b16 %v1134, %v1133
    %v1147 = vpack.c.b16 %v1136, %v1135
    %v1148 = vpack.c.b16 %v1138, %v1137
    %v1149 = vpack.c.b16 %v1140, %v1139
    %v1150 = vpack.c.b16 %v1142, %v1141
    %1159 = vmatprep.subr.bf16.mxu0 0
    %1160 = vmatpush1.bf16.msra.mxu0 %v1143
    %1161 = vmatprep.subr.bf16.mxu0 0
    %1162 = vmatpush1.bf16.msra.mxu0 %v1144
    %1163 = vmatprep.subr.bf16.mxu0 0
    %1164 = vmatpush1.bf16.msra.mxu0 %v1145
    %1165 = vmatprep.subr.bf16.mxu0 0
    %1166 = vmatpush1.bf16.msra.mxu0 %v1146
    %1167 = vmatprep.subr.bf16.mxu0 0
    %1168 = vmatpush1.bf16.msra.mxu0 %v1147
    %1169 = vmatprep.subr.bf16.mxu0 0
    %1170 = vmatpush1.bf16.msra.mxu0 %v1148
    %1171 = vmatprep.subr.bf16.mxu0 0
    %1172 = vmatpush1.bf16.msra.mxu0 %v1149
    %1173 = vmatprep.subr.bf16.mxu0 0
    %1174 = vmatpush1.bf16.msra.mxu0 %v1150
    %1175 = vmatprep.subr.bf16.mxu0 0
    %1176 = vmatpush1.bf16.msra.mxu0 0
    %1177 = vmatprep.subr.bf16.mxu0 0
    %1178 = vmatpush1.bf16.msra.mxu0 0
    %1179 = vmatprep.subr.bf16.mxu0 0
    %1180 = vmatpush1.bf16.msra.mxu0 0
    %1181 = vmatprep.subr.bf16.mxu0 0
    %1182 = vmatpush1.bf16.msra.mxu0 0
    %1183 = vmatprep.subr.bf16.mxu0 0
    %1184 = vmatpush1.bf16.msra.mxu0 0
    %1185 = vmatprep.subr.bf16.mxu0 0
    %1186 = vmatpush1.bf16.msra.mxu0 0
    %1187 = vmatprep.subr.bf16.mxu0 0
    %1188 = vmatpush1.bf16.msra.mxu0 0
    %1189 = vmatprep.subr.bf16.mxu0 0
    %1190 = vmatpush1.bf16.msra.mxu0 0
    %1191 = vmatprep.mubr.bf16.mxu0 0
    %1192 = vmatmul.mubr.bf16.gmra.mrb[0].mxu0 %v1103
    %v1193 = vpop.f32.mrb[0].mxu0
    %v1194 = vadd.f32 0.0, %v1193
    %v1195 = vpop.f32.mrb[0].mxu0
    %v1196 = vpop.f32.mrb[0].mxu0
    %v1197 = vadd.f32 0.0, %v1196
    %v1198 = vpop.f32.mrb[0].mxu0
    %1199 = vmatprep.mubr.bf16.mxu0 0
    %1200 = vmatmul.mubr.bf16.gmra.mrb[0].mxu0 %v1104
    %v1201 = vpop.f32.mrb[0].mxu0
    %v1202 = vadd.f32 0.0, %v1201
    %v1203 = vpop.f32.mrb[0].mxu0
    %v1204 = vpop.f32.mrb[0].mxu0
    %v1205 = vadd.f32 0.0, %v1204
    %v1206 = vpop.f32.mrb[0].mxu0
    %1207 = vmatprep.mubr.bf16.mxu0 0
    %1208 = vmatmul.mubr.bf16.gmra.mrb[0].mxu0 %v1105
    %v1209 = vpop.f32.mrb[0].mxu0
    %v1210 = vadd.f32 0.0, %v1209
    %v1211 = vpop.f32.mrb[0].mxu0
    %v1212 = vpop.f32.mrb[0].mxu0
    %v1213 = vadd.f32 0.0, %v1212
    %v1214 = vpop.f32.mrb[0].mxu0
    %1215 = vmatprep.mubr.bf16.mxu0 0
    %1216 = vmatmul.mubr.bf16.gmra.mrb[0].mxu0 %v1106
    %v1217 = vpop.f32.mrb[0].mxu0
    %v1218 = vadd.f32 0.0, %v1217
    %v1219 = vpop.f32.mrb[0].mxu0
    %v1220 = vpop.f32.mrb[0].mxu0
    %v1221 = vadd.f32 0.0, %v1220
    %v1222 = vpop.f32.mrb[0].mxu0
    %1223 = vmatprep.mubr.bf16.mxu0 0
    %1224 = vmatmul.mubr.bf16.gmra.mrb[0].mxu0 %v1107
    %v1225 = vpop.f32.mrb[0].mxu0
    %v1226 = vadd.f32 0.0, %v1225
    %v1227 = vpop.f32.mrb[0].mxu0
    %v1228 = vpop.f32.mrb[0].mxu0
    %v1229 = vadd.f32 0.0, %v1228
    %v1230 = vpop.f32.mrb[0].mxu0
    %1231 = vmatprep.mubr.bf16.mxu0 0
    %1232 = vmatmul.mubr.bf16.gmra.mrb[0].mxu0 %v1108
    %v1233 = vpop.f32.mrb[0].mxu0
    %v1234 = vadd.f32 0.0, %v1233
    %v1235 = vpop.f32.mrb[0].mxu0
    %v1236 = vpop.f32.mrb[0].mxu0
    %v1237 = vadd.f32 0.0, %v1236
    %v1238 = vpop.f32.mrb[0].mxu0
    %1239 = vmatprep.mubr.bf16.mxu0 0
    %1240 = vmatmul.mubr.bf16.gmra.mrb[0].mxu0 %v1109
    %v1241 = vpop.f32.mrb[0].mxu0
    %v1242 = vadd.f32 0.0, %v1241
    %v1243 = vpop.f32.mrb[0].mxu0
    %v1244 = vpop.f32.mrb[0].mxu0
    %v1245 = vadd.f32 0.0, %v1244
    %v1246 = vpop.f32.mrb[0].mxu0
    %1247 = vmatprep.mubr.bf16.mxu0 0
    %1248 = vmatmul.mubr.bf16.gmra.mrb[0].mxu0 %v1110
    %v1249 = vpop.f32.mrb[0].mxu0
    %v1250 = vadd.f32 0.0, %v1249
    %v1251 = vpop.f32.mrb[0].mxu0
    %v1252 = vpop.f32.mrb[0].mxu0
    %v1253 = vadd.f32 0.0, %v1252
    %v1254 = vpop.f32.mrb[0].mxu0
    %1255 = vdwg.mxu0
    %v1257 = vlaneseq
    %v1258 = vshrl.u32 %v1257, 7
    %v1259 = vsub.s32 0, %v1258
    %v1260 = vrot.slane %v389, %v1259
    %v1278 = vunpack.c.l.b16 %v373
    %v1279 = vunpack.c.l.b16 %v374
    %v1280 = vunpack.c.l.b16 %v375
    %v1281 = vunpack.c.l.b16 %v376
    %v1282 = vunpack.c.l.b16 %v377
    %v1283 = vunpack.c.l.b16 %v378
    %v1284 = vunpack.c.l.b16 %v379
    %v1285 = vunpack.c.l.b16 %v380
    %v1286 = vunpack.c.l.b16 %v381
    %v1287 = vunpack.c.l.b16 %v382
    %v1288 = vunpack.c.l.b16 %v383
    %v1289 = vunpack.c.l.b16 %v384
    %v1290 = vunpack.c.l.b16 %v385
    %v1291 = vunpack.c.l.b16 %v386
    %v1292 = vunpack.c.l.b16 %v387
    %v1293 = vunpack.c.l.b16 %v388
    %v1294 = vpack.c.b16 %v1279, %v1278
    %v1295 = vpack.c.b16 %v1281, %v1280
    %v1296 = vpack.c.b16 %v1283, %v1282
    %v1297 = vpack.c.b16 %v1285, %v1284
    %v1298 = vpack.c.b16 %v1287, %v1286
    %v1299 = vpack.c.b16 %v1289, %v1288
    %v1300 = vpack.c.b16 %v1291, %v1290
    %v1301 = vpack.c.b16 %v1293, %v1292
    %1310 = vmatprep.subr.bf16.mxu0 0
    %1311 = vmatpush1.bf16.msra.mxu0 %v1294
    %1312 = vmatprep.subr.bf16.mxu0 0
    %1313 = vmatpush1.bf16.msra.mxu0 %v1295
    %1314 = vmatprep.subr.bf16.mxu0 0
    %1315 = vmatpush1.bf16.msra.mxu0 %v1296
    %1316 = vmatprep.subr.bf16.mxu0 0
    %1317 = vmatpush1.bf16.msra.mxu0 %v1297
    %1318 = vmatprep.subr.bf16.mxu0 0
    %1319 = vmatpush1.bf16.msra.mxu0 %v1298
    %1320 = vmatprep.subr.bf16.mxu0 0
    %1321 = vmatpush1.bf16.msra.mxu0 %v1299
    %1322 = vmatprep.subr.bf16.mxu0 0
    %1323 = vmatpush1.bf16.msra.mxu0 %v1300
    %1324 = vmatprep.subr.bf16.mxu0 0
    %1325 = vmatpush1.bf16.msra.mxu0 %v1301
    %1326 = vmatprep.subr.bf16.mxu0 0
    %1327 = vmatpush1.bf16.msra.mxu0 0
    %1328 = vmatprep.subr.bf16.mxu0 0
    %1329 = vmatpush1.bf16.msra.mxu0 0
    %1330 = vmatprep.subr.bf16.mxu0 0
    %1331 = vmatpush1.bf16.msra.mxu0 0
    %1332 = vmatprep.subr.bf16.mxu0 0
    %1333 = vmatpush1.bf16.msra.mxu0 0
    %1334 = vmatprep.subr.bf16.mxu0 0
    %1335 = vmatpush1.bf16.msra.mxu0 0
    %1336 = vmatprep.subr.bf16.mxu0 0
    %1337 = vmatpush1.bf16.msra.mxu0 0
    %1338 = vmatprep.subr.bf16.mxu0 0
    %1339 = vmatpush1.bf16.msra.mxu0 0
    %1340 = vmatprep.subr.bf16.mxu0 0
    %1341 = vmatpush1.bf16.msra.mxu0 0
    %1342 = vmatprep.mubr.bf16.mxu0 0
    %1343 = vmatmul.mubr.bf16.gmra.mrb[0].mxu0 %v1103
    %v1344 = vpop.f32.mrb[0].mxu0
    %v1345 = vadd.f32 %v1260, %v1344
    %v1346 = vpop.f32.mrb[0].mxu0
    %v1347 = vpop.f32.mrb[0].mxu0
    %v1348 = vadd.f32 %v1260, %v1347
    %v1349 = vpop.f32.mrb[0].mxu0
    %1350 = vmatprep.mubr.bf16.mxu0 0
    %1351 = vmatmul.mubr.bf16.gmra.mrb[0].mxu0 %v1104
    %v1352 = vpop.f32.mrb[0].mxu0
    %v1353 = vadd.f32 %v1260, %v1352
    %v1354 = vpop.f32.mrb[0].mxu0
    %v1355 = vpop.f32.mrb[0].mxu0
    %v1356 = vadd.f32 %v1260, %v1355
    %v1357 = vpop.f32.mrb[0].mxu0
    %1358 = vmatprep.mubr.bf16.mxu0 0
    %1359 = vmatmul.mubr.bf16.gmra.mrb[0].mxu0 %v1105
    %v1360 = vpop.f32.mrb[0].mxu0
    %v1361 = vadd.f32 %v1260, %v1360
    %v1362 = vpop.f32.mrb[0].mxu0
    %v1363 = vpop.f32.mrb[0].mxu0
    %v1364 = vadd.f32 %v1260, %v1363
    %v1365 = vpop.f32.mrb[0].mxu0
    %1366 = vmatprep.mubr.bf16.mxu0 0
    %1367 = vmatmul.mubr.bf16.gmra.mrb[0].mxu0 %v1106
    %v1368 = vpop.f32.mrb[0].mxu0
    %v1369 = vadd.f32 %v1260, %v1368
    %v1370 = vpop.f32.mrb[0].mxu0
    %v1371 = vpop.f32.mrb[0].mxu0
    %v1372 = vadd.f32 %v1260, %v1371
    %v1373 = vpop.f32.mrb[0].mxu0
    %1374 = vmatprep.mubr.bf16.mxu0 0
    %1375 = vmatmul.mubr.bf16.gmra.mrb[0].mxu0 %v1107
    %v1376 = vpop.f32.mrb[0].mxu0
    %v1377 = vadd.f32 %v1260, %v1376
    %v1378 = vpop.f32.mrb[0].mxu0
    %v1379 = vpop.f32.mrb[0].mxu0
    %v1380 = vadd.f32 %v1260, %v1379
    %v1381 = vpop.f32.mrb[0].mxu0
    %1382 = vmatprep.mubr.bf16.mxu0 0
    %1383 = vmatmul.mubr.bf16.gmra.mrb[0].mxu0 %v1108
    %v1384 = vpop.f32.mrb[0].mxu0
    %v1385 = vadd.f32 %v1260, %v1384
    %v1386 = vpop.f32.mrb[0].mxu0
    %v1387 = vpop.f32.mrb[0].mxu0
    %v1388 = vadd.f32 %v1260, %v1387
    %v1389 = vpop.f32.mrb[0].mxu0
    %1390 = vmatprep.mubr.bf16.mxu0 0
    %1391 = vmatmul.mubr.bf16.gmra.mrb[0].mxu0 %v1109
    %v1392 = vpop.f32.mrb[0].mxu0
    %v1393 = vadd.f32 %v1260, %v1392
    %v1394 = vpop.f32.mrb[0].mxu0
    %v1395 = vpop.f32.mrb[0].mxu0
    %v1396 = vadd.f32 %v1260, %v1395
    %v1397 = vpop.f32.mrb[0].mxu0
    %1398 = vmatprep.mubr.bf16.mxu0 0
    %1399 = vmatmul.mubr.bf16.gmra.mrb[0].mxu0 %v1110
    %v1400 = vpop.f32.mrb[0].mxu0
    %v1401 = vadd.f32 %v1260, %v1400
    %v1402 = vpop.f32.mrb[0].mxu0
    %v1403 = vpop.f32.mrb[0].mxu0
    %v1404 = vadd.f32 %v1260, %v1403
    %v1405 = vpop.f32.mrb[0].mxu0
    %1406 = vdwg.mxu0
    %1407 = vst [vmem:[#allocation16] sm:$0xff] %v1194
    %1408 = vst [vmem:[#allocation16 + $0x8] sm:$0xff] %v1197
    %1409 = vst [vmem:[#allocation16 + $0x10] sm:$0xff] %v1202
    %1410 = vst [vmem:[#allocation16 + $0x18] sm:$0xff] %v1205
    %1411 = vst [vmem:[#allocation16 + $0x20] sm:$0xff] %v1210
    %1412 = vst [vmem:[#allocation16 + $0x28] sm:$0xff] %v1213
    %1413 = vst [vmem:[#allocation16 + $0x30] sm:$0xff] %v1218
    %1414 = vst [vmem:[#allocation16 + $0x38] sm:$0xff] %v1221
    %1415 = vst [vmem:[#allocation16 + $0x40] sm:$0xff] %v1226
    %1416 = vst [vmem:[#allocation16 + $0x48] sm:$0xff] %v1229
    %1417 = vst [vmem:[#allocation16 + $0x50] sm:$0xff] %v1234
    %1418 = vst [vmem:[#allocation16 + $0x58] sm:$0xff] %v1237
    %1419 = vst [vmem:[#allocation16 + $0x60] sm:$0xff] %v1242
    %1420 = vst [vmem:[#allocation16 + $0x68] sm:$0xff] %v1245
    %1421 = vst [vmem:[#allocation16 + $0x70] sm:$0xff] %v1250
    %1422 = vst [vmem:[#allocation16 + $0x78] sm:$0xff] %v1253
    %1423 = vst [vmem:[#allocation17] sm:$0xff] %v1345
    %1424 = vst [vmem:[#allocation17 + $0x8] sm:$0xff] %v1348
    %1425 = vst [vmem:[#allocation17 + $0x10] sm:$0xff] %v1353
    %1426 = vst [vmem:[#allocation17 + $0x18] sm:$0xff] %v1356
    %1427 = vst [vmem:[#allocation17 + $0x20] sm:$0xff] %v1361
    %1428 = vst [vmem:[#allocation17 + $0x28] sm:$0xff] %v1364
    %1429 = vst [vmem:[#allocation17 + $0x30] sm:$0xff] %v1369
    %1430 = vst [vmem:[#allocation17 + $0x38] sm:$0xff] %v1372
    %1431 = vst [vmem:[#allocation17 + $0x40] sm:$0xff] %v1377
    %1432 = vst [vmem:[#allocation17 + $0x48] sm:$0xff] %v1380
    %1433 = vst [vmem:[#allocation17 + $0x50] sm:$0xff] %v1385
    %1434 = vst [vmem:[#allocation17 + $0x58] sm:$0xff] %v1388
    %1435 = vst [vmem:[#allocation17 + $0x60] sm:$0xff] %v1393
    %1436 = vst [vmem:[#allocation17 + $0x68] sm:$0xff] %v1396
    %1437 = vst [vmem:[#allocation17 + $0x70] sm:$0xff] %v1401
    %1438 = vst [vmem:[#allocation17 + $0x78] sm:$0xff] %v1404
    %v1439 = vld [vmem:[#allocation5] sm:$0xf]
    %v1440 = vld [vmem:[#allocation5 + $0x4] sm:$0xf]
    %v1441 = vld [vmem:[#allocation5 + $0x8] sm:$0xf]
    %v1442 = vld [vmem:[#allocation5 + $0xc] sm:$0xf]
    %v1443 = vld [vmem:[#allocation5 + $0x10] sm:$0xf]
    %v1444 = vld [vmem:[#allocation5 + $0x14] sm:$0xf]
    %v1445 = vld [vmem:[#allocation5 + $0x18] sm:$0xf]
    %v1446 = vld [vmem:[#allocation5 + $0x1c] sm:$0xf]
    %v1447 = vld [vmem:[#allocation5 + $0x20] sm:$0xf]
    %v1448 = vld [vmem:[#allocation5 + $0x24] sm:$0xf]
    %v1449 = vld [vmem:[#allocation5 + $0x28] sm:$0xf]
    %v1450 = vld [vmem:[#allocation5 + $0x2c] sm:$0xf]
    %v1451 = vld [vmem:[#allocation5 + $0x30] sm:$0xf]
    %v1452 = vld [vmem:[#allocation5 + $0x34] sm:$0xf]
    %v1453 = vld [vmem:[#allocation5 + $0x38] sm:$0xf]
    %v1454 = vld [vmem:[#allocation5 + $0x3c] sm:$0xf]
    %v1455 = vld [vmem:[%s8] sm:$0xf]
    %v1456 = vld [vmem:[%s8 + $0x4] sm:$0xf]
    %v1457 = vld [vmem:[%s8 + $0x8] sm:$0xf]
    %v1458 = vld [vmem:[%s12] sm:$0x1]
    %v1460 = vlaneseq
    %v1461 = vshrl.u32 %v1460, 7
    %v1462 = vsub.s32 0, %v1461
    %v1463 = vrot.slane %v1458, %v1462
    %v1481 = vunpack.c.l.b16 %v1439
    %v1482 = vunpack.c.l.b16 %v1440
    %v1483 = vunpack.c.l.b16 %v1441
    %v1484 = vunpack.c.l.b16 %v1442
    %v1485 = vunpack.c.l.b16 %v1443
    %v1486 = vunpack.c.l.b16 %v1444
    %v1487 = vunpack.c.l.b16 %v1445
    %v1488 = vunpack.c.l.b16 %v1446
    %v1489 = vunpack.c.l.b16 %v1447
    %v1490 = vunpack.c.l.b16 %v1448
    %v1491 = vunpack.c.l.b16 %v1449
    %v1492 = vunpack.c.l.b16 %v1450
    %v1493 = vunpack.c.l.b16 %v1451
    %v1494 = vunpack.c.l.b16 %v1452
    %v1495 = vunpack.c.l.b16 %v1453
    %v1496 = vunpack.c.l.b16 %v1454
    %v1497 = vpack.c.b16 %v1482, %v1481
    %v1498 = vpack.c.b16 %v1484, %v1483
    %v1499 = vpack.c.b16 %v1486, %v1485
    %v1500 = vpack.c.b16 %v1488, %v1487
    %v1501 = vpack.c.b16 %v1490, %v1489
    %v1502 = vpack.c.b16 %v1492, %v1491
    %v1503 = vpack.c.b16 %v1494, %v1493
    %v1504 = vpack.c.b16 %v1496, %v1495
    %v1508 = vunpack.c.l.b16 %v1455
    %v1509 = vunpack.c.l.b16 %v1456
    %v1510 = vunpack.c.l.b16 %v1457
    %v1511 = vpack.c.b16 %v1509, %v1508
    %v1512 = vpack.c.b16 %v1510, %v1510
    %vm1514 = vcmask 195584
    %v1516 = vsel %vm1514, %v1497, 0
    %v1519 = vsel %vm1514, %v1498, 0
    %v1522 = vsel %vm1514, %v1499, 0
    %v1525 = vsel %vm1514, %v1500, 0
    %v1528 = vsel %vm1514, %v1501, 0
    %v1531 = vsel %vm1514, %v1502, 0
    %v1534 = vsel %vm1514, %v1503, 0
    %v1537 = vsel %vm1514, %v1504, 0
    %vm1539 = vcmask 1043456
    %v1541 = vsel %vm1539, %v1512, 0
    %1543 = vmatprep.subr.bf16.mxu0 0
    %1544 = vmatpush1.bf16.msra.mxu0 %v1511
    %1545 = vmatprep.subr.bf16.mxu0 0
    %1546 = vmatpush1.bf16.msra.mxu0 %v1541
    %1547 = vmatprep.subr.bf16.mxu0 0
    %1548 = vmatpush1.bf16.msra.mxu0 0
    %1549 = vmatprep.subr.bf16.mxu0 0
    %1550 = vmatpush1.bf16.msra.mxu0 0
    %1551 = vmatprep.subr.bf16.mxu0 0
    %1552 = vmatpush1.bf16.msra.mxu0 0
    %1553 = vmatprep.subr.bf16.mxu0 0
    %1554 = vmatpush1.bf16.msra.mxu0 0
    %1555 = vmatprep.subr.bf16.mxu0 0
    %1556 = vmatpush1.bf16.msra.mxu0 0
    %1557 = vmatprep.subr.bf16.mxu0 0
    %1558 = vmatpush1.bf16.msra.mxu0 0
    %1559 = vmatprep.subr.bf16.mxu0 0
    %1560 = vmatpush1.bf16.msra.mxu0 0
    %1561 = vmatprep.subr.bf16.mxu0 0
    %1562 = vmatpush1.bf16.msra.mxu0 0
    %1563 = vmatprep.subr.bf16.mxu0 0
    %1564 = vmatpush1.bf16.msra.mxu0 0
    %1565 = vmatprep.subr.bf16.mxu0 0
    %1566 = vmatpush1.bf16.msra.mxu0 0
    %1567 = vmatprep.subr.bf16.mxu0 0
    %1568 = vmatpush1.bf16.msra.mxu0 0
    %1569 = vmatprep.subr.bf16.mxu0 0
    %1570 = vmatpush1.bf16.msra.mxu0 0
    %1571 = vmatprep.subr.bf16.mxu0 0
    %1572 = vmatpush1.bf16.msra.mxu0 0
    %1573 = vmatprep.subr.bf16.mxu0 0
    %1574 = vmatpush1.bf16.msra.mxu0 0
    %1575 = vmatprep.mubr.bf16.mxu0 0
    %1576 = vmatmul.mubr.bf16.gmra.mrb[0].mxu0 %v1516
    %v1577 = vpop.f32.mrb[0].mxu0
    %v1578 = vadd.f32 %v1463, %v1577
    %v1579 = vpop.f32.mrb[0].mxu0
    %v1580 = vpop.f32.mrb[0].mxu0
    %v1581 = vadd.f32 %v1463, %v1580
    %v1582 = vpop.f32.mrb[0].mxu0
    %1583 = vmatprep.mubr.bf16.mxu0 0
    %1584 = vmatmul.mubr.bf16.gmra.mrb[0].mxu0 %v1519
    %v1585 = vpop.f32.mrb[0].mxu0
    %v1586 = vadd.f32 %v1463, %v1585
    %v1587 = vpop.f32.mrb[0].mxu0
    %v1588 = vpop.f32.mrb[0].mxu0
    %v1589 = vadd.f32 %v1463, %v1588
    %v1590 = vpop.f32.mrb[0].mxu0
    %1591 = vmatprep.mubr.bf16.mxu0 0
    %1592 = vmatmul.mubr.bf16.gmra.mrb[0].mxu0 %v1522
    %v1593 = vpop.f32.mrb[0].mxu0
    %v1594 = vadd.f32 %v1463, %v1593
    %v1595 = vpop.f32.mrb[0].mxu0
    %v1596 = vpop.f32.mrb[0].mxu0
    %v1597 = vadd.f32 %v1463, %v1596
    %v1598 = vpop.f32.mrb[0].mxu0
    %1599 = vmatprep.mubr.bf16.mxu0 0
    %1600 = vmatmul.mubr.bf16.gmra.mrb[0].mxu0 %v1525
    %v1601 = vpop.f32.mrb[0].mxu0
    %v1602 = vadd.f32 %v1463, %v1601
    %v1603 = vpop.f32.mrb[0].mxu0
    %v1604 = vpop.f32.mrb[0].mxu0
    %v1605 = vadd.f32 %v1463, %v1604
    %v1606 = vpop.f32.mrb[0].mxu0
    %1607 = vmatprep.mubr.bf16.mxu0 0
    %1608 = vmatmul.mubr.bf16.gmra.mrb[0].mxu0 %v1528
    %v1609 = vpop.f32.mrb[0].mxu0
    %v1610 = vadd.f32 %v1463, %v1609
    %v1611 = vpop.f32.mrb[0].mxu0
    %v1612 = vpop.f32.mrb[0].mxu0
    %v1613 = vadd.f32 %v1463, %v1612
    %v1614 = vpop.f32.mrb[0].mxu0
    %1615 = vmatprep.mubr.bf16.mxu0 0
    %1616 = vmatmul.mubr.bf16.gmra.mrb[0].mxu0 %v1531
    %v1617 = vpop.f32.mrb[0].mxu0
    %v1618 = vadd.f32 %v1463, %v1617
    %v1619 = vpop.f32.mrb[0].mxu0
    %v1620 = vpop.f32.mrb[0].mxu0
    %v1621 = vadd.f32 %v1463, %v1620
    %v1622 = vpop.f32.mrb[0].mxu0
    %1623 = vmatprep.mubr.bf16.mxu0 0
    %1624 = vmatmul.mubr.bf16.gmra.mrb[0].mxu0 %v1534
    %v1625 = vpop.f32.mrb[0].mxu0
    %v1626 = vadd.f32 %v1463, %v1625
    %v1627 = vpop.f32.mrb[0].mxu0
    %v1628 = vpop.f32.mrb[0].mxu0
    %v1629 = vadd.f32 %v1463, %v1628
    %v1630 = vpop.f32.mrb[0].mxu0
    %1631 = vmatprep.mubr.bf16.mxu0 0
    %1632 = vmatmul.mubr.bf16.gmra.mrb[0].mxu0 %v1537
    %v1633 = vpop.f32.mrb[0].mxu0
    %v1634 = vadd.f32 %v1463, %v1633
    %v1635 = vpop.f32.mrb[0].mxu0
    %v1636 = vpop.f32.mrb[0].mxu0
    %v1637 = vadd.f32 %v1463, %v1636
    %v1638 = vpop.f32.mrb[0].mxu0
    %1639 = vdwg.mxu0
    %v1640 = vld [vmem:[%s3] sm:$0xf]
    %v1641 = vld [vmem:[%s3 + $0x4] sm:$0xf]
    %v1642 = vld [vmem:[#allocation13] sm:$0xf]
    %v1643 = vld [vmem:[#allocation13 + $0x4] sm:$0xf]
    %v1644 = vld [vmem:[#allocation13 + $0x8] sm:$0xf]
    %v1645 = vld [vmem:[#allocation13 + $0xc] sm:$0xf]
    %v1646 = vld [vmem:[#allocation13 + $0x10] sm:$0xf]
    %v1647 = vld [vmem:[#allocation13 + $0x14] sm:$0xf]
    %v1648 = vld [vmem:[#allocation13 + $0x18] sm:$0xf]
    %v1649 = vld [vmem:[#allocation13 + $0x1c] sm:$0xf]
    %v1650 = vld [vmem:[#allocation13 + $0x20] sm:$0xf]
    %v1651 = vld [vmem:[#allocation13 + $0x24] sm:$0xf]
    %v1652 = vld [vmem:[#allocation13 + $0x28] sm:$0xf]
    %v1653 = vld [vmem:[#allocation13 + $0x2c] sm:$0xf]
    %v1654 = vld [vmem:[#allocation13 + $0x30] sm:$0xf]
    %v1655 = vld [vmem:[#allocation13 + $0x34] sm:$0xf]
    %v1656 = vld [vmem:[#allocation13 + $0x38] sm:$0xf]
    %v1657 = vld [vmem:[#allocation13 + $0x3c] sm:$0xf]
    %v1658 = vld [vmem:[#allocation14] sm:$0xf]
    %v1659 = vld [vmem:[#allocation14 + $0x4] sm:$0xf]
    %v1660 = vld [vmem:[#allocation14 + $0x8] sm:$0xf]
    %v1661 = vld [vmem:[#allocation14 + $0xc] sm:$0xf]
    %v1662 = vld [vmem:[#allocation14 + $0x10] sm:$0xf]
    %v1663 = vld [vmem:[#allocation14 + $0x14] sm:$0xf]
    %v1664 = vld [vmem:[#allocation14 + $0x18] sm:$0xf]
    %v1665 = vld [vmem:[#allocation14 + $0x1c] sm:$0xf]
    %v1666 = vld [vmem:[#allocation14 + $0x20] sm:$0xf]
    %v1667 = vld [vmem:[#allocation14 + $0x24] sm:$0xf]
    %v1668 = vld [vmem:[#allocation14 + $0x28] sm:$0xf]
    %v1669 = vld [vmem:[#allocation14 + $0x2c] sm:$0xf]
    %v1670 = vld [vmem:[#allocation14 + $0x30] sm:$0xf]
    %v1671 = vld [vmem:[#allocation14 + $0x34] sm:$0xf]
    %v1672 = vld [vmem:[#allocation14 + $0x38] sm:$0xf]
    %v1673 = vld [vmem:[#allocation14 + $0x3c] sm:$0xf]
    %v1674 = vld [vmem:[%s11] sm:$0x1]
    %v1675 = vpack.c.bf16 %v1581, %v1578
    %v1676 = vpack.c.bf16 %v1589, %v1586
    %v1677 = vpack.c.bf16 %v1597, %v1594
    %v1678 = vpack.c.bf16 %v1605, %v1602
    %v1679 = vpack.c.bf16 %v1613, %v1610
    %v1680 = vpack.c.bf16 %v1621, %v1618
    %v1681 = vpack.c.bf16 %v1629, %v1626
    %v1682 = vpack.c.bf16 %v1637, %v1634
    %v1685 = vunpack.c.l.b16 %v1640
    %v1686 = vunpack.c.l.b16 %v1641
    %v1687 = vpack.c.b16 %v1686, %v1685
    %v1689 = vsel %vm403, %v1687, 0
    %1691 = vmatprep.subr.bf16.mxu0 0
    %1692 = vmatpush1.bf16.msra.mxu0 %v1675
    %1693 = vmatprep.subr.bf16.mxu0 0
    %1694 = vmatpush1.bf16.msra.mxu0 0
    %1695 = vmatprep.subr.bf16.mxu0 0
    %1696 = vmatpush1.bf16.msra.mxu0 0
    %1697 = vmatprep.subr.bf16.mxu0 0
    %1698 = vmatpush1.bf16.msra.mxu0 0
    %1699 = vmatprep.subr.bf16.mxu0 0
    %1700 = vmatpush1.bf16.msra.mxu0 0
    %1701 = vmatprep.subr.bf16.mxu0 0
    %1702 = vmatpush1.bf16.msra.mxu0 0
    %1703 = vmatprep.subr.bf16.mxu0 0
    %1704 = vmatpush1.bf16.msra.mxu0 0
    %1705 = vmatprep.subr.bf16.mxu0 0
    %1706 = vmatpush1.bf16.msra.mxu0 0
    %1707 = vmatprep.subr.bf16.mxu0 0
    %1708 = vmatpush1.bf16.msra.mxu0 0
    %1709 = vmatprep.subr.bf16.mxu0 0
    %1710 = vmatpush1.bf16.msra.mxu0 0
    %1711 = vmatprep.subr.bf16.mxu0 0
    %1712 = vmatpush1.bf16.msra.mxu0 0
    %1713 = vmatprep.subr.bf16.mxu0 0
    %1714 = vmatpush1.bf16.msra.mxu0 0
    %1715 = vmatprep.subr.bf16.mxu0 0
    %1716 = vmatpush1.bf16.msra.mxu0 0
    %1717 = vmatprep.subr.bf16.mxu0 0
    %1718 = vmatpush1.bf16.msra.mxu0 0
    %1719 = vmatprep.subr.bf16.mxu0 0
    %1720 = vmatpush1.bf16.msra.mxu0 0
    %1721 = vmatprep.subr.bf16.mxu0 0
    %1722 = vmatpush1.bf16.msra.mxu0 0
    %1723 = vmatprep.mubr.bf16.mxu0 0
    %1724 = vmatmul.mubr.bf16.gmra.mrb[0].mxu0 %v1689
    %v1725 = vpop.f32.mrb[0].mxu0
    %v1726 = vadd.f32 0.0, %v1725
    %v1727 = vpop.f32.mrb[0].mxu0
    %v1728 = vpop.f32.mrb[0].mxu0
    %v1729 = vadd.f32 0.0, %v1728
    %v1730 = vpop.f32.mrb[0].mxu0
    %1731 = vdwg.mxu0
    %1732 = vmatprep.subr.bf16.mxu0 0
    %1733 = vmatpush1.bf16.msra.mxu0 %v1676
    %1734 = vmatprep.subr.bf16.mxu0 0
    %1735 = vmatpush1.bf16.msra.mxu0 0
    %1736 = vmatprep.subr.bf16.mxu0 0
    %1737 = vmatpush1.bf16.msra.mxu0 0
    %1738 = vmatprep.subr.bf16.mxu0 0
    %1739 = vmatpush1.bf16.msra.mxu0 0
    %1740 = vmatprep.subr.bf16.mxu0 0
    %1741 = vmatpush1.bf16.msra.mxu0 0
    %1742 = vmatprep.subr.bf16.mxu0 0
    %1743 = vmatpush1.bf16.msra.mxu0 0
    %1744 = vmatprep.subr.bf16.mxu0 0
    %1745 = vmatpush1.bf16.msra.mxu0 0
    %1746 = vmatprep.subr.bf16.mxu0 0
    %1747 = vmatpush1.bf16.msra.mxu0 0
    %1748 = vmatprep.subr.bf16.mxu0 0
    %1749 = vmatpush1.bf16.msra.mxu0 0
    %1750 = vmatprep.subr.bf16.mxu0 0
    %1751 = vmatpush1.bf16.msra.mxu0 0
    %1752 = vmatprep.subr.bf16.mxu0 0
    %1753 = vmatpush1.bf16.msra.mxu0 0
    %1754 = vmatprep.subr.bf16.mxu0 0
    %1755 = vmatpush1.bf16.msra.mxu0 0
    %1756 = vmatprep.subr.bf16.mxu0 0
    %1757 = vmatpush1.bf16.msra.mxu0 0
    %1758 = vmatprep.subr.bf16.mxu0 0
    %1759 = vmatpush1.bf16.msra.mxu0 0
    %1760 = vmatprep.subr.bf16.mxu0 0
    %1761 = vmatpush1.bf16.msra.mxu0 0
    %1762 = vmatprep.subr.bf16.mxu0 0
    %1763 = vmatpush1.bf16.msra.mxu0 0
    %1764 = vmatprep.mubr.bf16.mxu0 0
    %1765 = vmatmul.mubr.bf16.gmra.mrb[0].mxu0 %v1689
    %v1766 = vpop.f32.mrb[0].mxu0
    %v1767 = vadd.f32 0.0, %v1766
    %v1768 = vpop.f32.mrb[0].mxu0
    %v1769 = vpop.f32.mrb[0].mxu0
    %v1770 = vadd.f32 0.0, %v1769
    %v1771 = vpop.f32.mrb[0].mxu0
    %1772 = vdwg.mxu0
    %1773 = vmatprep.subr.bf16.mxu0 0
    %1774 = vmatpush1.bf16.msra.mxu0 %v1677
    %1775 = vmatprep.subr.bf16.mxu0 0
    %1776 = vmatpush1.bf16.msra.mxu0 0
    %1777 = vmatprep.subr.bf16.mxu0 0
    %1778 = vmatpush1.bf16.msra.mxu0 0
    %1779 = vmatprep.subr.bf16.mxu0 0
    %1780 = vmatpush1.bf16.msra.mxu0 0
    %1781 = vmatprep.subr.bf16.mxu0 0
    %1782 = vmatpush1.bf16.msra.mxu0 0
    %1783 = vmatprep.subr.bf16.mxu0 0
    %1784 = vmatpush1.bf16.msra.mxu0 0
    %1785 = vmatprep.subr.bf16.mxu0 0
    %1786 = vmatpush1.bf16.msra.mxu0 0
    %1787 = vmatprep.subr.bf16.mxu0 0
    %1788 = vmatpush1.bf16.msra.mxu0 0
    %1789 = vmatprep.subr.bf16.mxu0 0
    %1790 = vmatpush1.bf16.msra.mxu0 0
    %1791 = vmatprep.subr.bf16.mxu0 0
    %1792 = vmatpush1.bf16.msra.mxu0 0
    %1793 = vmatprep.subr.bf16.mxu0 0
    %1794 = vmatpush1.bf16.msra.mxu0 0
    %1795 = vmatprep.subr.bf16.mxu0 0
    %1796 = vmatpush1.bf16.msra.mxu0 0
    %1797 = vmatprep.subr.bf16.mxu0 0
    %1798 = vmatpush1.bf16.msra.mxu0 0
    %1799 = vmatprep.subr.bf16.mxu0 0
    %1800 = vmatpush1.bf16.msra.mxu0 0
    %1801 = vmatprep.subr.bf16.mxu0 0
    %1802 = vmatpush1.bf16.msra.mxu0 0
    %1803 = vmatprep.subr.bf16.mxu0 0
    %1804 = vmatpush1.bf16.msra.mxu0 0
    %1805 = vmatprep.mubr.bf16.mxu0 0
    %1806 = vmatmul.mubr.bf16.gmra.mrb[0].mxu0 %v1689
    %v1807 = vpop.f32.mrb[0].mxu0
    %v1808 = vadd.f32 0.0, %v1807
    %v1809 = vpop.f32.mrb[0].mxu0
    %v1810 = vpop.f32.mrb[0].mxu0
    %v1811 = vadd.f32 0.0, %v1810
    %v1812 = vpop.f32.mrb[0].mxu0
    %1813 = vdwg.mxu0
    %1814 = vmatprep.subr.bf16.mxu0 0
    %1815 = vmatpush1.bf16.msra.mxu0 %v1678
    %1816 = vmatprep.subr.bf16.mxu0 0
    %1817 = vmatpush1.bf16.msra.mxu0 0
    %1818 = vmatprep.subr.bf16.mxu0 0
    %1819 = vmatpush1.bf16.msra.mxu0 0
    %1820 = vmatprep.subr.bf16.mxu0 0
    %1821 = vmatpush1.bf16.msra.mxu0 0
    %1822 = vmatprep.subr.bf16.mxu0 0
    %1823 = vmatpush1.bf16.msra.mxu0 0
    %1824 = vmatprep.subr.bf16.mxu0 0
    %1825 = vmatpush1.bf16.msra.mxu0 0
    %1826 = vmatprep.subr.bf16.mxu0 0
    %1827 = vmatpush1.bf16.msra.mxu0 0
    %1828 = vmatprep.subr.bf16.mxu0 0
    %1829 = vmatpush1.bf16.msra.mxu0 0
    %1830 = vmatprep.subr.bf16.mxu0 0
    %1831 = vmatpush1.bf16.msra.mxu0 0
    %1832 = vmatprep.subr.bf16.mxu0 0
    %1833 = vmatpush1.bf16.msra.mxu0 0
    %1834 = vmatprep.subr.bf16.mxu0 0
    %1835 = vmatpush1.bf16.msra.mxu0 0
    %1836 = vmatprep.subr.bf16.mxu0 0
    %1837 = vmatpush1.bf16.msra.mxu0 0
    %1838 = vmatprep.subr.bf16.mxu0 0
    %1839 = vmatpush1.bf16.msra.mxu0 0
    %1840 = vmatprep.subr.bf16.mxu0 0
    %1841 = vmatpush1.bf16.msra.mxu0 0
    %1842 = vmatprep.subr.bf16.mxu0 0
    %1843 = vmatpush1.bf16.msra.mxu0 0
    %1844 = vmatprep.subr.bf16.mxu0 0
    %1845 = vmatpush1.bf16.msra.mxu0 0
    %1846 = vmatprep.mubr.bf16.mxu0 0
    %1847 = vmatmul.mubr.bf16.gmra.mrb[0].mxu0 %v1689
    %v1848 = vpop.f32.mrb[0].mxu0
    %v1849 = vadd.f32 0.0, %v1848
    %v1850 = vpop.f32.mrb[0].mxu0
    %v1851 = vpop.f32.mrb[0].mxu0
    %v1852 = vadd.f32 0.0, %v1851
    %v1853 = vpop.f32.mrb[0].mxu0
    %1854 = vdwg.mxu0
    %1855 = vmatprep.subr.bf16.mxu0 0
    %1856 = vmatpush1.bf16.msra.mxu0 %v1679
    %1857 = vmatprep.subr.bf16.mxu0 0
    %1858 = vmatpush1.bf16.msra.mxu0 0
    %1859 = vmatprep.subr.bf16.mxu0 0
    %1860 = vmatpush1.bf16.msra.mxu0 0
    %1861 = vmatprep.subr.bf16.mxu0 0
    %1862 = vmatpush1.bf16.msra.mxu0 0
    %1863 = vmatprep.subr.bf16.mxu0 0
    %1864 = vmatpush1.bf16.msra.mxu0 0
    %1865 = vmatprep.subr.bf16.mxu0 0
    %1866 = vmatpush1.bf16.msra.mxu0 0
    %1867 = vmatprep.subr.bf16.mxu0 0
    %1868 = vmatpush1.bf16.msra.mxu0 0
    %1869 = vmatprep.subr.bf16.mxu0 0
    %1870 = vmatpush1.bf16.msra.mxu0 0
    %1871 = vmatprep.subr.bf16.mxu0 0
    %1872 = vmatpush1.bf16.msra.mxu0 0
    %1873 = vmatprep.subr.bf16.mxu0 0
    %1874 = vmatpush1.bf16.msra.mxu0 0
    %1875 = vmatprep.subr.bf16.mxu0 0
    %1876 = vmatpush1.bf16.msra.mxu0 0
    %1877 = vmatprep.subr.bf16.mxu0 0
    %1878 = vmatpush1.bf16.msra.mxu0 0
    %1879 = vmatprep.subr.bf16.mxu0 0
    %1880 = vmatpush1.bf16.msra.mxu0 0
    %1881 = vmatprep.subr.bf16.mxu0 0
    %1882 = vmatpush1.bf16.msra.mxu0 0
    %1883 = vmatprep.subr.bf16.mxu0 0
    %1884 = vmatpush1.bf16.msra.mxu0 0
    %1885 = vmatprep.subr.bf16.mxu0 0
    %1886 = vmatpush1.bf16.msra.mxu0 0
    %1887 = vmatprep.mubr.bf16.mxu0 0
    %1888 = vmatmul.mubr.bf16.gmra.mrb[0].mxu0 %v1689
    %v1889 = vpop.f32.mrb[0].mxu0
    %v1890 = vadd.f32 0.0, %v1889
    %v1891 = vpop.f32.mrb[0].mxu0
    %v1892 = vpop.f32.mrb[0].mxu0
    %v1893 = vadd.f32 0.0, %v1892
    %v1894 = vpop.f32.mrb[0].mxu0
    %1895 = vdwg.mxu0
    %1896 = vmatprep.subr.bf16.mxu0 0
    %1897 = vmatpush1.bf16.msra.mxu0 %v1680
    %1898 = vmatprep.subr.bf16.mxu0 0
    %1899 = vmatpush1.bf16.msra.mxu0 0
    %1900 = vmatprep.subr.bf16.mxu0 0
    %1901 = vmatpush1.bf16.msra.mxu0 0
    %1902 = vmatprep.subr.bf16.mxu0 0
    %1903 = vmatpush1.bf16.msra.mxu0 0
    %1904 = vmatprep.subr.bf16.mxu0 0
    %1905 = vmatpush1.bf16.msra.mxu0 0
    %1906 = vmatprep.subr.bf16.mxu0 0
    %1907 = vmatpush1.bf16.msra.mxu0 0
    %1908 = vmatprep.subr.bf16.mxu0 0
    %1909 = vmatpush1.bf16.msra.mxu0 0
    %1910 = vmatprep.subr.bf16.mxu0 0
    %1911 = vmatpush1.bf16.msra.mxu0 0
    %1912 = vmatprep.subr.bf16.mxu0 0
    %1913 = vmatpush1.bf16.msra.mxu0 0
    %1914 = vmatprep.subr.bf16.mxu0 0
    %1915 = vmatpush1.bf16.msra.mxu0 0
    %1916 = vmatprep.subr.bf16.mxu0 0
    %1917 = vmatpush1.bf16.msra.mxu0 0
    %1918 = vmatprep.subr.bf16.mxu0 0
    %1919 = vmatpush1.bf16.msra.mxu0 0
    %1920 = vmatprep.subr.bf16.mxu0 0
    %1921 = vmatpush1.bf16.msra.mxu0 0
    %1922 = vmatprep.subr.bf16.mxu0 0
    %1923 = vmatpush1.bf16.msra.mxu0 0
    %1924 = vmatprep.subr.bf16.mxu0 0
    %1925 = vmatpush1.bf16.msra.mxu0 0
    %1926 = vmatprep.subr.bf16.mxu0 0
    %1927 = vmatpush1.bf16.msra.mxu0 0
    %1928 = vmatprep.mubr.bf16.mxu0 0
    %1929 = vmatmul.mubr.bf16.gmra.mrb[0].mxu0 %v1689
    %v1930 = vpop.f32.mrb[0].mxu0
    %v1931 = vadd.f32 0.0, %v1930
    %v1932 = vpop.f32.mrb[0].mxu0
    %v1933 = vpop.f32.mrb[0].mxu0
    %v1934 = vadd.f32 0.0, %v1933
    %v1935 = vpop.f32.mrb[0].mxu0
    %1936 = vdwg.mxu0
    %1937 = vmatprep.subr.bf16.mxu0 0
    %1938 = vmatpush1.bf16.msra.mxu0 %v1681
    %1939 = vmatprep.subr.bf16.mxu0 0
    %1940 = vmatpush1.bf16.msra.mxu0 0
    %1941 = vmatprep.subr.bf16.mxu0 0
    %1942 = vmatpush1.bf16.msra.mxu0 0
    %1943 = vmatprep.subr.bf16.mxu0 0
    %1944 = vmatpush1.bf16.msra.mxu0 0
    %1945 = vmatprep.subr.bf16.mxu0 0
    %1946 = vmatpush1.bf16.msra.mxu0 0
    %1947 = vmatprep.subr.bf16.mxu0 0
    %1948 = vmatpush1.bf16.msra.mxu0 0
    %1949 = vmatprep.subr.bf16.mxu0 0
    %1950 = vmatpush1.bf16.msra.mxu0 0
    %1951 = vmatprep.subr.bf16.mxu0 0
    %1952 = vmatpush1.bf16.msra.mxu0 0
    %1953 = vmatprep.subr.bf16.mxu0 0
    %1954 = vmatpush1.bf16.msra.mxu0 0
    %1955 = vmatprep.subr.bf16.mxu0 0
    %1956 = vmatpush1.bf16.msra.mxu0 0
    %1957 = vmatprep.subr.bf16.mxu0 0
    %1958 = vmatpush1.bf16.msra.mxu0 0
    %1959 = vmatprep.subr.bf16.mxu0 0
    %1960 = vmatpush1.bf16.msra.mxu0 0
    %1961 = vmatprep.subr.bf16.mxu0 0
    %1962 = vmatpush1.bf16.msra.mxu0 0
    %1963 = vmatprep.subr.bf16.mxu0 0
    %1964 = vmatpush1.bf16.msra.mxu0 0
    %1965 = vmatprep.subr.bf16.mxu0 0
    %1966 = vmatpush1.bf16.msra.mxu0 0
    %1967 = vmatprep.subr.bf16.mxu0 0
    %1968 = vmatpush1.bf16.msra.mxu0 0
    %1969 = vmatprep.mubr.bf16.mxu0 0
    %1970 = vmatmul.mubr.bf16.gmra.mrb[0].mxu0 %v1689
    %v1971 = vpop.f32.mrb[0].mxu0
    %v1972 = vadd.f32 0.0, %v1971
    %v1973 = vpop.f32.mrb[0].mxu0
    %v1974 = vpop.f32.mrb[0].mxu0
    %v1975 = vadd.f32 0.0, %v1974
    %v1976 = vpop.f32.mrb[0].mxu0
    %1977 = vdwg.mxu0
    %1978 = vmatprep.subr.bf16.mxu0 0
    %1979 = vmatpush1.bf16.msra.mxu0 %v1682
    %1980 = vmatprep.subr.bf16.mxu0 0
    %1981 = vmatpush1.bf16.msra.mxu0 0
    %1982 = vmatprep.subr.bf16.mxu0 0
    %1983 = vmatpush1.bf16.msra.mxu0 0
    %1984 = vmatprep.subr.bf16.mxu0 0
    %1985 = vmatpush1.bf16.msra.mxu0 0
    %1986 = vmatprep.subr.bf16.mxu0 0
    %1987 = vmatpush1.bf16.msra.mxu0 0
    %1988 = vmatprep.subr.bf16.mxu0 0
    %1989 = vmatpush1.bf16.msra.mxu0 0
    %1990 = vmatprep.subr.bf16.mxu0 0
    %1991 = vmatpush1.bf16.msra.mxu0 0
    %1992 = vmatprep.subr.bf16.mxu0 0
    %1993 = vmatpush1.bf16.msra.mxu0 0
    %1994 = vmatprep.subr.bf16.mxu0 0
    %1995 = vmatpush1.bf16.msra.mxu0 0
    %1996 = vmatprep.subr.bf16.mxu0 0
    %1997 = vmatpush1.bf16.msra.mxu0 0
    %1998 = vmatprep.subr.bf16.mxu0 0
    %1999 = vmatpush1.bf16.msra.mxu0 0
    %2000 = vmatprep.subr.bf16.mxu0 0
    %2001 = vmatpush1.bf16.msra.mxu0 0
    %2002 = vmatprep.subr.bf16.mxu0 0
    %2003 = vmatpush1.bf16.msra.mxu0 0
    %2004 = vmatprep.subr.bf16.mxu0 0
    %2005 = vmatpush1.bf16.msra.mxu0 0
    %2006 = vmatprep.subr.bf16.mxu0 0
    %2007 = vmatpush1.bf16.msra.mxu0 0
    %2008 = vmatprep.subr.bf16.mxu0 0
    %2009 = vmatpush1.bf16.msra.mxu0 0
    %2010 = vmatprep.mubr.bf16.mxu0 0
    %2011 = vmatmul.mubr.bf16.gmra.mrb[0].mxu0 %v1689
    %v2012 = vpop.f32.mrb[0].mxu0
    %v2013 = vadd.f32 0.0, %v2012
    %v2014 = vpop.f32.mrb[0].mxu0
    %v2015 = vpop.f32.mrb[0].mxu0
    %v2016 = vadd.f32 0.0, %v2015
    %v2017 = vpop.f32.mrb[0].mxu0
    %2018 = vdwg.mxu0
    %v2019 = vmul.f32 %v1726, 0.2
    %v2020 = vmul.f32 %v1729, 0.2
    %v2021 = vmul.f32 %v1767, 0.2
    %v2022 = vmul.f32 %v1770, 0.2
    %v2023 = vmul.f32 %v1808, 0.2
    %v2024 = vmul.f32 %v1811, 0.2
    %v2025 = vmul.f32 %v1849, 0.2
    %v2026 = vmul.f32 %v1852, 0.2
    %v2027 = vmul.f32 %v1890, 0.2
    %v2028 = vmul.f32 %v1893, 0.2
    %v2029 = vmul.f32 %v1931, 0.2
    %v2030 = vmul.f32 %v1934, 0.2
    %v2031 = vmul.f32 %v1972, 0.2
    %v2032 = vmul.f32 %v1975, 0.2
    %v2033 = vmul.f32 %v2013, 0.2
    %v2034 = vmul.f32 %v2016, 0.2
    %v2035 = vmax.f32 %v1726, %v2019
    %v2036 = vmax.f32 %v1729, %v2020
    %v2037 = vmax.f32 %v1767, %v2021
    %v2038 = vmax.f32 %v1770, %v2022
    %v2039 = vmax.f32 %v1808, %v2023
    %v2040 = vmax.f32 %v1811, %v2024
    %v2041 = vmax.f32 %v1849, %v2025
    %v2042 = vmax.f32 %v1852, %v2026
    %v2043 = vmax.f32 %v1890, %v2027
    %v2044 = vmax.f32 %v1893, %v2028
    %v2045 = vmax.f32 %v1931, %v2029
    %v2046 = vmax.f32 %v1934, %v2030
    %v2047 = vmax.f32 %v1972, %v2031
    %v2048 = vmax.f32 %v1975, %v2032
    %v2049 = vmax.f32 %v2013, %v2033
    %v2050 = vmax.f32 %v2016, %v2034
    %v2051 = vpack.c.bf16 %v2036, %v2035
    %v2052 = vpack.c.bf16 %v2038, %v2037
    %v2053 = vpack.c.bf16 %v2040, %v2039
    %v2054 = vpack.c.bf16 %v2042, %v2041
    %v2055 = vpack.c.bf16 %v2044, %v2043
    %v2056 = vpack.c.bf16 %v2046, %v2045
    %v2057 = vpack.c.bf16 %v2048, %v2047
    %v2058 = vpack.c.bf16 %v2050, %v2049
    %2059 = vmatprep.subr.bf16.mxu0 0
    %2060 = vmatpush1.bf16.msra.mxu0 %v2051
    %2061 = vmatprep.subr.bf16.mxu0 0
    %2062 = vmatpush1.bf16.msra.mxu0 0
    %2063 = vmatprep.subr.bf16.mxu0 0
    %2064 = vmatpush1.bf16.msra.mxu0 0
    %2065 = vmatprep.subr.bf16.mxu0 0
    %2066 = vmatpush1.bf16.msra.mxu0 0
    %2067 = vmatprep.subr.bf16.mxu0 0
    %2068 = vmatpush1.bf16.msra.mxu0 0
    %2069 = vmatprep.subr.bf16.mxu0 0
    %2070 = vmatpush1.bf16.msra.mxu0 0
    %2071 = vmatprep.subr.bf16.mxu0 0
    %2072 = vmatpush1.bf16.msra.mxu0 0
    %2073 = vmatprep.subr.bf16.mxu0 0
    %2074 = vmatpush1.bf16.msra.mxu0 0
    %2075 = vmatprep.subr.bf16.mxu0 0
    %2076 = vmatpush1.bf16.msra.mxu0 0
    %2077 = vmatprep.subr.bf16.mxu0 0
    %2078 = vmatpush1.bf16.msra.mxu0 0
    %2079 = vmatprep.subr.bf16.mxu0 0
    %2080 = vmatpush1.bf16.msra.mxu0 0
    %2081 = vmatprep.subr.bf16.mxu0 0
    %2082 = vmatpush1.bf16.msra.mxu0 0
    %2083 = vmatprep.subr.bf16.mxu0 0
    %2084 = vmatpush1.bf16.msra.mxu0 0
    %2085 = vmatprep.subr.bf16.mxu0 0
    %2086 = vmatpush1.bf16.msra.mxu0 0
    %2087 = vmatprep.subr.bf16.mxu0 0
    %2088 = vmatpush1.bf16.msra.mxu0 0
    %2089 = vmatprep.subr.bf16.mxu0 0
    %2090 = vmatpush1.bf16.msra.mxu0 0
    %2091 = vmatprep.mubr.bf16.mxu0 0
    %2092 = vmatmul.mubr.bf16.gmra.mrb[0].mxu0 %v1689
    %v2093 = vpop.f32.mrb[0].mxu0
    %v2094 = vadd.f32 0.0, %v2093
    %v2095 = vpop.f32.mrb[0].mxu0
    %v2096 = vpop.f32.mrb[0].mxu0
    %v2097 = vadd.f32 0.0, %v2096
    %v2098 = vpop.f32.mrb[0].mxu0
    %2099 = vdwg.mxu0
    %2100 = vmatprep.subr.bf16.mxu0 0
    %2101 = vmatpush1.bf16.msra.mxu0 %v2052
    %2102 = vmatprep.subr.bf16.mxu0 0
    %2103 = vmatpush1.bf16.msra.mxu0 0
    %2104 = vmatprep.subr.bf16.mxu0 0
    %2105 = vmatpush1.bf16.msra.mxu0 0
    %2106 = vmatprep.subr.bf16.mxu0 0
    %2107 = vmatpush1.bf16.msra.mxu0 0
    %2108 = vmatprep.subr.bf16.mxu0 0
    %2109 = vmatpush1.bf16.msra.mxu0 0
    %2110 = vmatprep.subr.bf16.mxu0 0
    %2111 = vmatpush1.bf16.msra.mxu0 0
    %2112 = vmatprep.subr.bf16.mxu0 0
    %2113 = vmatpush1.bf16.msra.mxu0 0
    %2114 = vmatprep.subr.bf16.mxu0 0
    %2115 = vmatpush1.bf16.msra.mxu0 0
    %2116 = vmatprep.subr.bf16.mxu0 0
    %2117 = vmatpush1.bf16.msra.mxu0 0
    %2118 = vmatprep.subr.bf16.mxu0 0
    %2119 = vmatpush1.bf16.msra.mxu0 0
    %2120 = vmatprep.subr.bf16.mxu0 0
    %2121 = vmatpush1.bf16.msra.mxu0 0
    %2122 = vmatprep.subr.bf16.mxu0 0
    %2123 = vmatpush1.bf16.msra.mxu0 0
    %2124 = vmatprep.subr.bf16.mxu0 0
    %2125 = vmatpush1.bf16.msra.mxu0 0
    %2126 = vmatprep.subr.bf16.mxu0 0
    %2127 = vmatpush1.bf16.msra.mxu0 0
    %2128 = vmatprep.subr.bf16.mxu0 0
    %2129 = vmatpush1.bf16.msra.mxu0 0
    %2130 = vmatprep.subr.bf16.mxu0 0
    %2131 = vmatpush1.bf16.msra.mxu0 0
    %2132 = vmatprep.mubr.bf16.mxu0 0
    %2133 = vmatmul.mubr.bf16.gmra.mrb[0].mxu0 %v1689
    %v2134 = vpop.f32.mrb[0].mxu0
    %v2135 = vadd.f32 0.0, %v2134
    %v2136 = vpop.f32.mrb[0].mxu0
    %v2137 = vpop.f32.mrb[0].mxu0
    %v2138 = vadd.f32 0.0, %v2137
    %v2139 = vpop.f32.mrb[0].mxu0
    %2140 = vdwg.mxu0
    %2141 = vmatprep.subr.bf16.mxu0 0
    %2142 = vmatpush1.bf16.msra.mxu0 %v2053
    %2143 = vmatprep.subr.bf16.mxu0 0
    %2144 = vmatpush1.bf16.msra.mxu0 0
    %2145 = vmatprep.subr.bf16.mxu0 0
    %2146 = vmatpush1.bf16.msra.mxu0 0
    %2147 = vmatprep.subr.bf16.mxu0 0
    %2148 = vmatpush1.bf16.msra.mxu0 0
    %2149 = vmatprep.subr.bf16.mxu0 0
    %2150 = vmatpush1.bf16.msra.mxu0 0
    %2151 = vmatprep.subr.bf16.mxu0 0
    %2152 = vmatpush1.bf16.msra.mxu0 0
    %2153 = vmatprep.subr.bf16.mxu0 0
    %2154 = vmatpush1.bf16.msra.mxu0 0
    %2155 = vmatprep.subr.bf16.mxu0 0
    %2156 = vmatpush1.bf16.msra.mxu0 0
    %2157 = vmatprep.subr.bf16.mxu0 0
    %2158 = vmatpush1.bf16.msra.mxu0 0
    %2159 = vmatprep.subr.bf16.mxu0 0
    %2160 = vmatpush1.bf16.msra.mxu0 0
    %2161 = vmatprep.subr.bf16.mxu0 0
    %2162 = vmatpush1.bf16.msra.mxu0 0
    %2163 = vmatprep.subr.bf16.mxu0 0
    %2164 = vmatpush1.bf16.msra.mxu0 0
    %2165 = vmatprep.subr.bf16.mxu0 0
    %2166 = vmatpush1.bf16.msra.mxu0 0
    %2167 = vmatprep.subr.bf16.mxu0 0
    %2168 = vmatpush1.bf16.msra.mxu0 0
    %2169 = vmatprep.subr.bf16.mxu0 0
    %2170 = vmatpush1.bf16.msra.mxu0 0
    %2171 = vmatprep.subr.bf16.mxu0 0
    %2172 = vmatpush1.bf16.msra.mxu0 0
    %2173 = vmatprep.mubr.bf16.mxu0 0
    %2174 = vmatmul.mubr.bf16.gmra.mrb[0].mxu0 %v1689
    %v2175 = vpop.f32.mrb[0].mxu0
    %v2176 = vadd.f32 0.0, %v2175
    %v2177 = vpop.f32.mrb[0].mxu0
    %v2178 = vpop.f32.mrb[0].mxu0
    %v2179 = vadd.f32 0.0, %v2178
    %v2180 = vpop.f32.mrb[0].mxu0
    %2181 = vdwg.mxu0
    %2182 = vmatprep.subr.bf16.mxu0 0
    %2183 = vmatpush1.bf16.msra.mxu0 %v2054
    %2184 = vmatprep.subr.bf16.mxu0 0
    %2185 = vmatpush1.bf16.msra.mxu0 0
    %2186 = vmatprep.subr.bf16.mxu0 0
    %2187 = vmatpush1.bf16.msra.mxu0 0
    %2188 = vmatprep.subr.bf16.mxu0 0
    %2189 = vmatpush1.bf16.msra.mxu0 0
    %2190 = vmatprep.subr.bf16.mxu0 0
    %2191 = vmatpush1.bf16.msra.mxu0 0
    %2192 = vmatprep.subr.bf16.mxu0 0
    %2193 = vmatpush1.bf16.msra.mxu0 0
    %2194 = vmatprep.subr.bf16.mxu0 0
    %2195 = vmatpush1.bf16.msra.mxu0 0
    %2196 = vmatprep.subr.bf16.mxu0 0
    %2197 = vmatpush1.bf16.msra.mxu0 0
    %2198 = vmatprep.subr.bf16.mxu0 0
    %2199 = vmatpush1.bf16.msra.mxu0 0
    %2200 = vmatprep.subr.bf16.mxu0 0
    %2201 = vmatpush1.bf16.msra.mxu0 0
    %2202 = vmatprep.subr.bf16.mxu0 0
    %2203 = vmatpush1.bf16.msra.mxu0 0
    %2204 = vmatprep.subr.bf16.mxu0 0
    %2205 = vmatpush1.bf16.msra.mxu0 0
    %2206 = vmatprep.subr.bf16.mxu0 0
    %2207 = vmatpush1.bf16.msra.mxu0 0
    %2208 = vmatprep.subr.bf16.mxu0 0
    %2209 = vmatpush1.bf16.msra.mxu0 0
    %2210 = vmatprep.subr.bf16.mxu0 0
    %2211 = vmatpush1.bf16.msra.mxu0 0
    %2212 = vmatprep.subr.bf16.mxu0 0
    %2213 = vmatpush1.bf16.msra.mxu0 0
    %2214 = vmatprep.mubr.bf16.mxu0 0
    %2215 = vmatmul.mubr.bf16.gmra.mrb[0].mxu0 %v1689
    %v2216 = vpop.f32.mrb[0].mxu0
    %v2217 = vadd.f32 0.0, %v2216
    %v2218 = vpop.f32.mrb[0].mxu0
    %v2219 = vpop.f32.mrb[0].mxu0
    %v2220 = vadd.f32 0.0, %v2219
    %v2221 = vpop.f32.mrb[0].mxu0
    %2222 = vdwg.mxu0
    %2223 = vmatprep.subr.bf16.mxu0 0
    %2224 = vmatpush1.bf16.msra.mxu0 %v2055
    %2225 = vmatprep.subr.bf16.mxu0 0
    %2226 = vmatpush1.bf16.msra.mxu0 0
    %2227 = vmatprep.subr.bf16.mxu0 0
    %2228 = vmatpush1.bf16.msra.mxu0 0
    %2229 = vmatprep.subr.bf16.mxu0 0
    %2230 = vmatpush1.bf16.msra.mxu0 0
    %2231 = vmatprep.subr.bf16.mxu0 0
    %2232 = vmatpush1.bf16.msra.mxu0 0
    %2233 = vmatprep.subr.bf16.mxu0 0
    %2234 = vmatpush1.bf16.msra.mxu0 0
    %2235 = vmatprep.subr.bf16.mxu0 0
    %2236 = vmatpush1.bf16.msra.mxu0 0
    %2237 = vmatprep.subr.bf16.mxu0 0
    %2238 = vmatpush1.bf16.msra.mxu0 0
    %2239 = vmatprep.subr.bf16.mxu0 0
    %2240 = vmatpush1.bf16.msra.mxu0 0
    %2241 = vmatprep.subr.bf16.mxu0 0
    %2242 = vmatpush1.bf16.msra.mxu0 0
    %2243 = vmatprep.subr.bf16.mxu0 0
    %2244 = vmatpush1.bf16.msra.mxu0 0
    %2245 = vmatprep.subr.bf16.mxu0 0
    %2246 = vmatpush1.bf16.msra.mxu0 0
    %2247 = vmatprep.subr.bf16.mxu0 0
    %2248 = vmatpush1.bf16.msra.mxu0 0
    %2249 = vmatprep.subr.bf16.mxu0 0
    %2250 = vmatpush1.bf16.msra.mxu0 0
    %2251 = vmatprep.subr.bf16.mxu0 0
    %2252 = vmatpush1.bf16.msra.mxu0 0
    %2253 = vmatprep.subr.bf16.mxu0 0
    %2254 = vmatpush1.bf16.msra.mxu0 0
    %2255 = vmatprep.mubr.bf16.mxu0 0
    %2256 = vmatmul.mubr.bf16.gmra.mrb[0].mxu0 %v1689
    %v2257 = vpop.f32.mrb[0].mxu0
    %v2258 = vadd.f32 0.0, %v2257
    %v2259 = vpop.f32.mrb[0].mxu0
    %v2260 = vpop.f32.mrb[0].mxu0
    %v2261 = vadd.f32 0.0, %v2260
    %v2262 = vpop.f32.mrb[0].mxu0
    %2263 = vdwg.mxu0
    %2264 = vmatprep.subr.bf16.mxu0 0
    %2265 = vmatpush1.bf16.msra.mxu0 %v2056
    %2266 = vmatprep.subr.bf16.mxu0 0
    %2267 = vmatpush1.bf16.msra.mxu0 0
    %2268 = vmatprep.subr.bf16.mxu0 0
    %2269 = vmatpush1.bf16.msra.mxu0 0
    %2270 = vmatprep.subr.bf16.mxu0 0
    %2271 = vmatpush1.bf16.msra.mxu0 0
    %2272 = vmatprep.subr.bf16.mxu0 0
    %2273 = vmatpush1.bf16.msra.mxu0 0
    %2274 = vmatprep.subr.bf16.mxu0 0
    %2275 = vmatpush1.bf16.msra.mxu0 0
    %2276 = vmatprep.subr.bf16.mxu0 0
    %2277 = vmatpush1.bf16.msra.mxu0 0
    %2278 = vmatprep.subr.bf16.mxu0 0
    %2279 = vmatpush1.bf16.msra.mxu0 0
    %2280 = vmatprep.subr.bf16.mxu0 0
    %2281 = vmatpush1.bf16.msra.mxu0 0
    %2282 = vmatprep.subr.bf16.mxu0 0
    %2283 = vmatpush1.bf16.msra.mxu0 0
    %2284 = vmatprep.subr.bf16.mxu0 0
    %2285 = vmatpush1.bf16.msra.mxu0 0
    %2286 = vmatprep.subr.bf16.mxu0 0
    %2287 = vmatpush1.bf16.msra.mxu0 0
    %2288 = vmatprep.subr.bf16.mxu0 0
    %2289 = vmatpush1.bf16.msra.mxu0 0
    %2290 = vmatprep.subr.bf16.mxu0 0
    %2291 = vmatpush1.bf16.msra.mxu0 0
    %2292 = vmatprep.subr.bf16.mxu0 0
    %2293 = vmatpush1.bf16.msra.mxu0 0
    %2294 = vmatprep.subr.bf16.mxu0 0
    %2295 = vmatpush1.bf16.msra.mxu0 0
    %2296 = vmatprep.mubr.bf16.mxu0 0
    %2297 = vmatmul.mubr.bf16.gmra.mrb[0].mxu0 %v1689
    %v2298 = vpop.f32.mrb[0].mxu0
    %v2299 = vadd.f32 0.0, %v2298
    %v2300 = vpop.f32.mrb[0].mxu0
    %v2301 = vpop.f32.mrb[0].mxu0
    %v2302 = vadd.f32 0.0, %v2301
    %v2303 = vpop.f32.mrb[0].mxu0
    %2304 = vdwg.mxu0
    %2305 = vmatprep.subr.bf16.mxu0 0
    %2306 = vmatpush1.bf16.msra.mxu0 %v2057
    %2307 = vmatprep.subr.bf16.mxu0 0
    %2308 = vmatpush1.bf16.msra.mxu0 0
    %2309 = vmatprep.subr.bf16.mxu0 0
    %2310 = vmatpush1.bf16.msra.mxu0 0
    %2311 = vmatprep.subr.bf16.mxu0 0
    %2312 = vmatpush1.bf16.msra.mxu0 0
    %2313 = vmatprep.subr.bf16.mxu0 0
    %2314 = vmatpush1.bf16.msra.mxu0 0
    %2315 = vmatprep.subr.bf16.mxu0 0
    %2316 = vmatpush1.bf16.msra.mxu0 0
    %2317 = vmatprep.subr.bf16.mxu0 0
    %2318 = vmatpush1.bf16.msra.mxu0 0
    %2319 = vmatprep.subr.bf16.mxu0 0
    %2320 = vmatpush1.bf16.msra.mxu0 0
    %2321 = vmatprep.subr.bf16.mxu0 0
    %2322 = vmatpush1.bf16.msra.mxu0 0
    %2323 = vmatprep.subr.bf16.mxu0 0
    %2324 = vmatpush1.bf16.msra.mxu0 0
    %2325 = vmatprep.subr.bf16.mxu0 0
    %2326 = vmatpush1.bf16.msra.mxu0 0
    %2327 = vmatprep.subr.bf16.mxu0 0
    %2328 = vmatpush1.bf16.msra.mxu0 0
    %2329 = vmatprep.subr.bf16.mxu0 0
    %2330 = vmatpush1.bf16.msra.mxu0 0
    %2331 = vmatprep.subr.bf16.mxu0 0
    %2332 = vmatpush1.bf16.msra.mxu0 0
    %2333 = vmatprep.subr.bf16.mxu0 0
    %2334 = vmatpush1.bf16.msra.mxu0 0
    %2335 = vmatprep.subr.bf16.mxu0 0
    %2336 = vmatpush1.bf16.msra.mxu0 0
    %2337 = vmatprep.mubr.bf16.mxu0 0
    %2338 = vmatmul.mubr.bf16.gmra.mrb[0].mxu0 %v1689
    %v2339 = vpop.f32.mrb[0].mxu0
    %v2340 = vadd.f32 0.0, %v2339
    %v2341 = vpop.f32.mrb[0].mxu0
    %v2342 = vpop.f32.mrb[0].mxu0
    %v2343 = vadd.f32 0.0, %v2342
    %v2344 = vpop.f32.mrb[0].mxu0
    %2345 = vdwg.mxu0
    %2346 = vmatprep.subr.bf16.mxu0 0
    %2347 = vmatpush1.bf16.msra.mxu0 %v2058
    %2348 = vmatprep.subr.bf16.mxu0 0
    %2349 = vmatpush1.bf16.msra.mxu0 0
    %2350 = vmatprep.subr.bf16.mxu0 0
    %2351 = vmatpush1.bf16.msra.mxu0 0
    %2352 = vmatprep.subr.bf16.mxu0 0
    %2353 = vmatpush1.bf16.msra.mxu0 0
    %2354 = vmatprep.subr.bf16.mxu0 0
    %2355 = vmatpush1.bf16.msra.mxu0 0
    %2356 = vmatprep.subr.bf16.mxu0 0
    %2357 = vmatpush1.bf16.msra.mxu0 0
    %2358 = vmatprep.subr.bf16.mxu0 0
    %2359 = vmatpush1.bf16.msra.mxu0 0
    %2360 = vmatprep.subr.bf16.mxu0 0
    %2361 = vmatpush1.bf16.msra.mxu0 0
    %2362 = vmatprep.subr.bf16.mxu0 0
    %2363 = vmatpush1.bf16.msra.mxu0 0
    %2364 = vmatprep.subr.bf16.mxu0 0
    %2365 = vmatpush1.bf16.msra.mxu0 0
    %2366 = vmatprep.subr.bf16.mxu0 0
    %2367 = vmatpush1.bf16.msra.mxu0 0
    %2368 = vmatprep.subr.bf16.mxu0 0
    %2369 = vmatpush1.bf16.msra.mxu0 0
    %2370 = vmatprep.subr.bf16.mxu0 0
    %2371 = vmatpush1.bf16.msra.mxu0 0
    %2372 = vmatprep.subr.bf16.mxu0 0
    %2373 = vmatpush1.bf16.msra.mxu0 0
    %2374 = vmatprep.subr.bf16.mxu0 0
    %2375 = vmatpush1.bf16.msra.mxu0 0
    %2376 = vmatprep.subr.bf16.mxu0 0
    %2377 = vmatpush1.bf16.msra.mxu0 0
    %2378 = vmatprep.mubr.bf16.mxu0 0
    %2379 = vmatmul.mubr.bf16.gmra.mrb[0].mxu0 %v1689
    %v2380 = vpop.f32.mrb[0].mxu0
    %v2381 = vadd.f32 0.0, %v2380
    %v2382 = vpop.f32.mrb[0].mxu0
    %v2383 = vpop.f32.mrb[0].mxu0
    %v2384 = vadd.f32 0.0, %v2383
    %v2385 = vpop.f32.mrb[0].mxu0
    %2386 = vdwg.mxu0
    %v2387 = vpack.c.bf16 %v2097, %v2094
    %v2388 = vpack.c.bf16 %v2138, %v2135
    %v2389 = vpack.c.bf16 %v2179, %v2176
    %v2390 = vpack.c.bf16 %v2220, %v2217
    %v2391 = vpack.c.bf16 %v2261, %v2258
    %v2392 = vpack.c.bf16 %v2302, %v2299
    %v2393 = vpack.c.bf16 %v2343, %v2340
    %v2394 = vpack.c.bf16 %v2384, %v2381
    %v2411 = vunpack.c.l.b16 %v1642
    %v2412 = vunpack.c.l.b16 %v1643
    %v2413 = vunpack.c.l.b16 %v1644
    %v2414 = vunpack.c.l.b16 %v1645
    %v2415 = vunpack.c.l.b16 %v1646
    %v2416 = vunpack.c.l.b16 %v1647
    %v2417 = vunpack.c.l.b16 %v1648
    %v2418 = vunpack.c.l.b16 %v1649
    %v2419 = vunpack.c.l.b16 %v1650
    %v2420 = vunpack.c.l.b16 %v1651
    %v2421 = vunpack.c.l.b16 %v1652
    %v2422 = vunpack.c.l.b16 %v1653
    %v2423 = vunpack.c.l.b16 %v1654
    %v2424 = vunpack.c.l.b16 %v1655
    %v2425 = vunpack.c.l.b16 %v1656
    %v2426 = vunpack.c.l.b16 %v1657
    %v2427 = vpack.c.b16 %v2412, %v2411
    %v2428 = vpack.c.b16 %v2414, %v2413
    %v2429 = vpack.c.b16 %v2416, %v2415
    %v2430 = vpack.c.b16 %v2418, %v2417
    %v2431 = vpack.c.b16 %v2420, %v2419
    %v2432 = vpack.c.b16 %v2422, %v2421
    %v2433 = vpack.c.b16 %v2424, %v2423
    %v2434 = vpack.c.b16 %v2426, %v2425
    %2443 = vmatprep.subr.bf16.mxu0 0
    %2444 = vmatpush1.bf16.msra.mxu0 %v2427
    %2445 = vmatprep.subr.bf16.mxu0 0
    %2446 = vmatpush1.bf16.msra.mxu0 %v2428
    %2447 = vmatprep.subr.bf16.mxu0 0
    %2448 = vmatpush1.bf16.msra.mxu0 %v2429
    %2449 = vmatprep.subr.bf16.mxu0 0
    %2450 = vmatpush1.bf16.msra.mxu0 %v2430
    %2451 = vmatprep.subr.bf16.mxu0 0
    %2452 = vmatpush1.bf16.msra.mxu0 %v2431
    %2453 = vmatprep.subr.bf16.mxu0 0
    %2454 = vmatpush1.bf16.msra.mxu0 %v2432
    %2455 = vmatprep.subr.bf16.mxu0 0
    %2456 = vmatpush1.bf16.msra.mxu0 %v2433
    %2457 = vmatprep.subr.bf16.mxu0 0
    %2458 = vmatpush1.bf16.msra.mxu0 %v2434
    %2459 = vmatprep.subr.bf16.mxu0 0
    %2460 = vmatpush1.bf16.msra.mxu0 0
    %2461 = vmatprep.subr.bf16.mxu0 0
    %2462 = vmatpush1.bf16.msra.mxu0 0
    %2463 = vmatprep.subr.bf16.mxu0 0
    %2464 = vmatpush1.bf16.msra.mxu0 0
    %2465 = vmatprep.subr.bf16.mxu0 0
    %2466 = vmatpush1.bf16.msra.mxu0 0
    %2467 = vmatprep.subr.bf16.mxu0 0
    %2468 = vmatpush1.bf16.msra.mxu0 0
    %2469 = vmatprep.subr.bf16.mxu0 0
    %2470 = vmatpush1.bf16.msra.mxu0 0
    %2471 = vmatprep.subr.bf16.mxu0 0
    %2472 = vmatpush1.bf16.msra.mxu0 0
    %2473 = vmatprep.subr.bf16.mxu0 0
    %2474 = vmatpush1.bf16.msra.mxu0 0
    %2475 = vmatprep.mubr.bf16.mxu0 0
    %2476 = vmatmul.mubr.bf16.gmra.mrb[0].mxu0 %v2387
    %v2477 = vpop.f32.mrb[0].mxu0
    %v2478 = vadd.f32 0.0, %v2477
    %v2479 = vpop.f32.mrb[0].mxu0
    %v2480 = vpop.f32.mrb[0].mxu0
    %v2481 = vadd.f32 0.0, %v2480
    %v2482 = vpop.f32.mrb[0].mxu0
    %2483 = vmatprep.mubr.bf16.mxu0 0
    %2484 = vmatmul.mubr.bf16.gmra.mrb[0].mxu0 %v2388
    %v2485 = vpop.f32.mrb[0].mxu0
    %v2486 = vadd.f32 0.0, %v2485
    %v2487 = vpop.f32.mrb[0].mxu0
    %v2488 = vpop.f32.mrb[0].mxu0
    %v2489 = vadd.f32 0.0, %v2488
    %v2490 = vpop.f32.mrb[0].mxu0
    %2491 = vmatprep.mubr.bf16.mxu0 0
    %2492 = vmatmul.mubr.bf16.gmra.mrb[0].mxu0 %v2389
    %v2493 = vpop.f32.mrb[0].mxu0
    %v2494 = vadd.f32 0.0, %v2493
    %v2495 = vpop.f32.mrb[0].mxu0
    %v2496 = vpop.f32.mrb[0].mxu0
    %v2497 = vadd.f32 0.0, %v2496
    %v2498 = vpop.f32.mrb[0].mxu0
    %2499 = vmatprep.mubr.bf16.mxu0 0
    %2500 = vmatmul.mubr.bf16.gmra.mrb[0].mxu0 %v2390
    %v2501 = vpop.f32.mrb[0].mxu0
    %v2502 = vadd.f32 0.0, %v2501
    %v2503 = vpop.f32.mrb[0].mxu0
    %v2504 = vpop.f32.mrb[0].mxu0
    %v2505 = vadd.f32 0.0, %v2504
    %v2506 = vpop.f32.mrb[0].mxu0
    %2507 = vmatprep.mubr.bf16.mxu0 0
    %2508 = vmatmul.mubr.bf16.gmra.mrb[0].mxu0 %v2391
    %v2509 = vpop.f32.mrb[0].mxu0
    %v2510 = vadd.f32 0.0, %v2509
    %v2511 = vpop.f32.mrb[0].mxu0
    %v2512 = vpop.f32.mrb[0].mxu0
    %v2513 = vadd.f32 0.0, %v2512
    %v2514 = vpop.f32.mrb[0].mxu0
    %2515 = vmatprep.mubr.bf16.mxu0 0
    %2516 = vmatmul.mubr.bf16.gmra.mrb[0].mxu0 %v2392
    %v2517 = vpop.f32.mrb[0].mxu0
    %v2518 = vadd.f32 0.0, %v2517
    %v2519 = vpop.f32.mrb[0].mxu0
    %v2520 = vpop.f32.mrb[0].mxu0
    %v2521 = vadd.f32 0.0, %v2520
    %v2522 = vpop.f32.mrb[0].mxu0
    %2523 = vmatprep.mubr.bf16.mxu0 0
    %2524 = vmatmul.mubr.bf16.gmra.mrb[0].mxu0 %v2393
    %v2525 = vpop.f32.mrb[0].mxu0
    %v2526 = vadd.f32 0.0, %v2525
    %v2527 = vpop.f32.mrb[0].mxu0
    %v2528 = vpop.f32.mrb[0].mxu0
    %v2529 = vadd.f32 0.0, %v2528
    %v2530 = vpop.f32.mrb[0].mxu0
    %2531 = vmatprep.mubr.bf16.mxu0 0
    %2532 = vmatmul.mubr.bf16.gmra.mrb[0].mxu0 %v2394
    %v2533 = vpop.f32.mrb[0].mxu0
    %v2534 = vadd.f32 0.0, %v2533
    %v2535 = vpop.f32.mrb[0].mxu0
    %v2536 = vpop.f32.mrb[0].mxu0
    %v2537 = vadd.f32 0.0, %v2536
    %v2538 = vpop.f32.mrb[0].mxu0
    %2539 = vdwg.mxu0
    %v2541 = vlaneseq
    %v2542 = vshrl.u32 %v2541, 7
    %v2543 = vsub.s32 0, %v2542
    %v2544 = vrot.slane %v1674, %v2543
    %v2562 = vunpack.c.l.b16 %v1658
    %v2563 = vunpack.c.l.b16 %v1659
    %v2564 = vunpack.c.l.b16 %v1660
    %v2565 = vunpack.c.l.b16 %v1661
    %v2566 = vunpack.c.l.b16 %v1662
    %v2567 = vunpack.c.l.b16 %v1663
    %v2568 = vunpack.c.l.b16 %v1664
    %v2569 = vunpack.c.l.b16 %v1665
    %v2570 = vunpack.c.l.b16 %v1666
    %v2571 = vunpack.c.l.b16 %v1667
    %v2572 = vunpack.c.l.b16 %v1668
    %v2573 = vunpack.c.l.b16 %v1669
    %v2574 = vunpack.c.l.b16 %v1670
    %v2575 = vunpack.c.l.b16 %v1671
    %v2576 = vunpack.c.l.b16 %v1672
    %v2577 = vunpack.c.l.b16 %v1673
    %v2578 = vpack.c.b16 %v2563, %v2562
    %v2579 = vpack.c.b16 %v2565, %v2564
    %v2580 = vpack.c.b16 %v2567, %v2566
    %v2581 = vpack.c.b16 %v2569, %v2568
    %v2582 = vpack.c.b16 %v2571, %v2570
    %v2583 = vpack.c.b16 %v2573, %v2572
    %v2584 = vpack.c.b16 %v2575, %v2574
    %v2585 = vpack.c.b16 %v2577, %v2576
    %2594 = vmatprep.subr.bf16.mxu0 0
    %2595 = vmatpush1.bf16.msra.mxu0 %v2578
    %2596 = vmatprep.subr.bf16.mxu0 0
    %2597 = vmatpush1.bf16.msra.mxu0 %v2579
    %2598 = vmatprep.subr.bf16.mxu0 0
    %2599 = vmatpush1.bf16.msra.mxu0 %v2580
    %2600 = vmatprep.subr.bf16.mxu0 0
    %2601 = vmatpush1.bf16.msra.mxu0 %v2581
    %2602 = vmatprep.subr.bf16.mxu0 0
    %2603 = vmatpush1.bf16.msra.mxu0 %v2582
    %2604 = vmatprep.subr.bf16.mxu0 0
    %2605 = vmatpush1.bf16.msra.mxu0 %v2583
    %2606 = vmatprep.subr.bf16.mxu0 0
    %2607 = vmatpush1.bf16.msra.mxu0 %v2584
    %2608 = vmatprep.subr.bf16.mxu0 0
    %2609 = vmatpush1.bf16.msra.mxu0 %v2585
    %2610 = vmatprep.subr.bf16.mxu0 0
    %2611 = vmatpush1.bf16.msra.mxu0 0
    %2612 = vmatprep.subr.bf16.mxu0 0
    %2613 = vmatpush1.bf16.msra.mxu0 0
    %2614 = vmatprep.subr.bf16.mxu0 0
    %2615 = vmatpush1.bf16.msra.mxu0 0
    %2616 = vmatprep.subr.bf16.mxu0 0
    %2617 = vmatpush1.bf16.msra.mxu0 0
    %2618 = vmatprep.subr.bf16.mxu0 0
    %2619 = vmatpush1.bf16.msra.mxu0 0
    %2620 = vmatprep.subr.bf16.mxu0 0
    %2621 = vmatpush1.bf16.msra.mxu0 0
    %2622 = vmatprep.subr.bf16.mxu0 0
    %2623 = vmatpush1.bf16.msra.mxu0 0
    %2624 = vmatprep.subr.bf16.mxu0 0
    %2625 = vmatpush1.bf16.msra.mxu0 0
    %2626 = vmatprep.mubr.bf16.mxu0 0
    %2627 = vmatmul.mubr.bf16.gmra.mrb[0].mxu0 %v2387
    %v2628 = vpop.f32.mrb[0].mxu0
    %v2629 = vadd.f32 %v2544, %v2628
    %v2630 = vpop.f32.mrb[0].mxu0
    %v2631 = vpop.f32.mrb[0].mxu0
    %v2632 = vadd.f32 %v2544, %v2631
    %v2633 = vpop.f32.mrb[0].mxu0
    %2634 = vmatprep.mubr.bf16.mxu0 0
    %2635 = vmatmul.mubr.bf16.gmra.mrb[0].mxu0 %v2388
    %v2636 = vpop.f32.mrb[0].mxu0
    %v2637 = vadd.f32 %v2544, %v2636
    %v2638 = vpop.f32.mrb[0].mxu0
    %v2639 = vpop.f32.mrb[0].mxu0
    %v2640 = vadd.f32 %v2544, %v2639
    %v2641 = vpop.f32.mrb[0].mxu0
    %2642 = vmatprep.mubr.bf16.mxu0 0
    %2643 = vmatmul.mubr.bf16.gmra.mrb[0].mxu0 %v2389
    %v2644 = vpop.f32.mrb[0].mxu0
    %v2645 = vadd.f32 %v2544, %v2644
    %v2646 = vpop.f32.mrb[0].mxu0
    %v2647 = vpop.f32.mrb[0].mxu0
    %v2648 = vadd.f32 %v2544, %v2647
    %v2649 = vpop.f32.mrb[0].mxu0
    %2650 = vmatprep.mubr.bf16.mxu0 0
    %2651 = vmatmul.mubr.bf16.gmra.mrb[0].mxu0 %v2390
    %v2652 = vpop.f32.mrb[0].mxu0
    %v2653 = vadd.f32 %v2544, %v2652
    %v2654 = vpop.f32.mrb[0].mxu0
    %v2655 = vpop.f32.mrb[0].mxu0
    %v2656 = vadd.f32 %v2544, %v2655
    %v2657 = vpop.f32.mrb[0].mxu0
    %2658 = vmatprep.mubr.bf16.mxu0 0
    %2659 = vmatmul.mubr.bf16.gmra.mrb[0].mxu0 %v2391
    %v2660 = vpop.f32.mrb[0].mxu0
    %v2661 = vadd.f32 %v2544, %v2660
    %v2662 = vpop.f32.mrb[0].mxu0
    %v2663 = vpop.f32.mrb[0].mxu0
    %v2664 = vadd.f32 %v2544, %v2663
    %v2665 = vpop.f32.mrb[0].mxu0
    %2666 = vmatprep.mubr.bf16.mxu0 0
    %2667 = vmatmul.mubr.bf16.gmra.mrb[0].mxu0 %v2392
    %v2668 = vpop.f32.mrb[0].mxu0
    %v2669 = vadd.f32 %v2544, %v2668
    %v2670 = vpop.f32.mrb[0].mxu0
    %v2671 = vpop.f32.mrb[0].mxu0
    %v2672 = vadd.f32 %v2544, %v2671
    %v2673 = vpop.f32.mrb[0].mxu0
    %2674 = vmatprep.mubr.bf16.mxu0 0
    %2675 = vmatmul.mubr.bf16.gmra.mrb[0].mxu0 %v2393
    %v2676 = vpop.f32.mrb[0].mxu0
    %v2677 = vadd.f32 %v2544, %v2676
    %v2678 = vpop.f32.mrb[0].mxu0
    %v2679 = vpop.f32.mrb[0].mxu0
    %v2680 = vadd.f32 %v2544, %v2679
    %v2681 = vpop.f32.mrb[0].mxu0
    %2682 = vmatprep.mubr.bf16.mxu0 0
    %2683 = vmatmul.mubr.bf16.gmra.mrb[0].mxu0 %v2394
    %v2684 = vpop.f32.mrb[0].mxu0
    %v2685 = vadd.f32 %v2544, %v2684
    %v2686 = vpop.f32.mrb[0].mxu0
    %v2687 = vpop.f32.mrb[0].mxu0
    %v2688 = vadd.f32 %v2544, %v2687
    %v2689 = vpop.f32.mrb[0].mxu0
    %2690 = vdwg.mxu0
    %2691 = vst [vmem:[#allocation19] sm:$0xff] %v2478
    %2692 = vst [vmem:[#allocation19 + $0x8] sm:$0xff] %v2481
    %2693 = vst [vmem:[#allocation19 + $0x10] sm:$0xff] %v2486
    %2694 = vst [vmem:[#allocation19 + $0x18] sm:$0xff] %v2489
    %2695 = vst [vmem:[#allocation19 + $0x20] sm:$0xff] %v2494
    %2696 = vst [vmem:[#allocation19 + $0x28] sm:$0xff] %v2497
    %2697 = vst [vmem:[#allocation19 + $0x30] sm:$0xff] %v2502
    %2698 = vst [vmem:[#allocation19 + $0x38] sm:$0xff] %v2505
    %2699 = vst [vmem:[#allocation19 + $0x40] sm:$0xff] %v2510
    %2700 = vst [vmem:[#allocation19 + $0x48] sm:$0xff] %v2513
    %2701 = vst [vmem:[#allocation19 + $0x50] sm:$0xff] %v2518
    %2702 = vst [vmem:[#allocation19 + $0x58] sm:$0xff] %v2521
    %2703 = vst [vmem:[#allocation19 + $0x60] sm:$0xff] %v2526
    %2704 = vst [vmem:[#allocation19 + $0x68] sm:$0xff] %v2529
    %2705 = vst [vmem:[#allocation19 + $0x70] sm:$0xff] %v2534
    %2706 = vst [vmem:[#allocation19 + $0x78] sm:$0xff] %v2537
    %2707 = vst [vmem:[#allocation20] sm:$0xff] %v2629
    %2708 = vst [vmem:[#allocation20 + $0x8] sm:$0xff] %v2632
    %2709 = vst [vmem:[#allocation20 + $0x10] sm:$0xff] %v2637
    %2710 = vst [vmem:[#allocation20 + $0x18] sm:$0xff] %v2640
    %2711 = vst [vmem:[#allocation20 + $0x20] sm:$0xff] %v2645
    %2712 = vst [vmem:[#allocation20 + $0x28] sm:$0xff] %v2648
    %2713 = vst [vmem:[#allocation20 + $0x30] sm:$0xff] %v2653
    %2714 = vst [vmem:[#allocation20 + $0x38] sm:$0xff] %v2656
    %2715 = vst [vmem:[#allocation20 + $0x40] sm:$0xff] %v2661
    %2716 = vst [vmem:[#allocation20 + $0x48] sm:$0xff] %v2664
    %2717 = vst [vmem:[#allocation20 + $0x50] sm:$0xff] %v2669
    %2718 = vst [vmem:[#allocation20 + $0x58] sm:$0xff] %v2672
    %2719 = vst [vmem:[#allocation20 + $0x60] sm:$0xff] %v2677
    %2720 = vst [vmem:[#allocation20 + $0x68] sm:$0xff] %v2680
    %2721 = vst [vmem:[#allocation20 + $0x70] sm:$0xff] %v2685
    %2722 = vst [vmem:[#allocation20 + $0x78] sm:$0xff] %v2688
    // Predicated region
    $region86: #{tpu_custom_call.1} parent=1 // pred_check
      _
    $region87: #{tpu_custom_call.1} parent=1 // pred_check_branch
      %2724 = sbr.rel (0) target = $region89
    $region88: #{tpu_custom_call.1} parent=1 // pred_region
      %s2726 = ssub.s32 2048, 2048
      %2727 = vsyncadd [#allocation4], %s2726
      %s2728 = sshll.u32 [#allocation16], 4
      %s2729 = int_to_ptr.vmem [resolvable:$true] %s2728
      %2734 = dma.vmem_to_hbm [thread:$0]  %s2729, 2048, %s13, [#allocation4], 128, 128, 8
    $region89: #{tpu_custom_call.1} parent=1 // pred_fallthru
      _
    // Predicated region
    $region90: #{tpu_custom_call.1} parent=1 // pred_check
      _
    $region91: #{tpu_custom_call.1} parent=1 // pred_check_branch
      %2736 = sbr.rel (0) target = $region93
    $region92: #{tpu_custom_call.1} parent=1 // pred_region
      %s2738 = ssub.s32 2048, 2048
      %2739 = vsyncadd [#allocation18], %s2738
      %s2740 = sshll.u32 [#allocation17], 4
      %s2741 = int_to_ptr.vmem [resolvable:$true] %s2740
      %2746 = dma.vmem_to_hbm [thread:$0]  %s2741, 2048, %s14, [#allocation18], 128, 128, 8
    $region93: #{tpu_custom_call.1} parent=1 // pred_fallthru
      _
    // Predicated region
    $region94: #{tpu_custom_call.1} parent=1 // pred_check
      _
    $region95: #{tpu_custom_call.1} parent=1 // pred_check_branch
      %2748 = sbr.rel (0) target = $region97
    $region96: #{tpu_custom_call.1} parent=1 // pred_region
      %s2750 = ssub.s32 2048, 2048
      %2751 = vsyncadd [#allocation18], %s2750
      %s2752 = sshll.u32 [#allocation19], 4
      %s2753 = int_to_ptr.vmem [resolvable:$true] %s2752
      %2758 = dma.vmem_to_hbm [thread:$0]  %s2753, 2048, %s15, [#allocation18], 128, 128, 8
    $region97: #{tpu_custom_call.1} parent=1 // pred_fallthru
      _
    // Predicated region
    $region98: #{tpu_custom_call.1} parent=1 // pred_check
      _
    $region99: #{tpu_custom_call.1} parent=1 // pred_check_branch
      %2760 = sbr.rel (0) target = $region101
    $region100: #{tpu_custom_call.1} parent=1 // pred_region
      %s2762 = ssub.s32 2048, 2048
      %2763 = vsyncadd [#allocation21], %s2762
      %s2764 = sshll.u32 [#allocation20], 4
      %s2765 = int_to_ptr.vmem [resolvable:$true] %s2764
      %2770 = dma.vmem_to_hbm [thread:$0]  %s2765, 2048, %s16, [#allocation21], 128, 128, 8
    $region101: #{tpu_custom_call.1} parent=1 // pred_fallthru
      _
    // Predicated region
    $region102: #{tpu_custom_call.1} parent=1 // pred_check
      _
    $region103: #{tpu_custom_call.1} parent=1 // pred_check_branch
      %2772 = sbr.rel (0) target = $region105
    $region104: #{tpu_custom_call.1} parent=1 // pred_region
      %2773 = dma.done [#allocation4], 2048
    $region105: #{tpu_custom_call.1} parent=1 // pred_fallthru
      _
    // Predicated region
    $region106: #{tpu_custom_call.1} parent=1 // pred_check
      _
    $region107: #{tpu_custom_call.1} parent=1 // pred_check_branch
      %2775 = sbr.rel (0) target = $region109
    $region108: #{tpu_custom_call.1} parent=1 // pred_region
      %2776 = dma.done [#allocation18], 2048
    $region109: #{tpu_custom_call.1} parent=1 // pred_fallthru
      _
    // Predicated region
    $region110: #{tpu_custom_call.1} parent=1 // pred_check
      _
    $region111: #{tpu_custom_call.1} parent=1 // pred_check_branch
      %2778 = sbr.rel (0) target = $region113
    $region112: #{tpu_custom_call.1} parent=1 // pred_region
      %2779 = dma.done [#allocation18], 2048
    $region113: #{tpu_custom_call.1} parent=1 // pred_fallthru
      _
    // Predicated region
    $region114: #{tpu_custom_call.1} parent=1 // pred_check
      _
    $region115: #{tpu_custom_call.1} parent=1 // pred_check_branch
      %2781 = sbr.rel (0) target = $region117
    $region116: #{tpu_custom_call.1} parent=1 // pred_region
      %2782 = dma.done [#allocation21], 2048
    $region117: #{tpu_custom_call.1} parent=1 // pred_fallthru
      _
    %2783 = vsyncpa [#allocation3], 1
    %2784 = vsyncpa [#allocation6], 1
    %2785 = vsyncpa [#allocation9], 1
    %2786 = vsyncpa [#allocation12], 1
    %2787 = vsyncpa [#allocation15], 1
    %2788 = vsyncpa [#allocation4], 1
    %2789 = vsyncpa [#allocation18], 1
    %2790 = vsyncpa [#allocation21], 1

</llo_original>
